<compile_context>
chip_gen: v7x
topology: tpu7x:2x2x1
jax: 0.10.0
libtpu: 0.0.40
codegen_flags: <defaults>
</compile_context>

<pallas_src>
import jax
import jax.numpy as jnp
from jax.experimental import pallas as pl
from jax.experimental.pallas import tpu as pltpu

# ----------------------------- model config ---------------------------------
IMAGE_SIZE = 16
PATCH = 4
CHANNELS = 3
DIM = 32
N_LAYERS = 2
HEADS = 2
DIM_HEAD = 16
MLP_DIM = 64
NUM_CLASSES = 10
BATCH = 2

NUM_PATCHES = (IMAGE_SIZE // PATCH) * (IMAGE_SIZE // PATCH)   # 16
SEQ = NUM_PATCHES + 1                                         # 17 (cls token)
SEQ_PAD = 24                                                  # next multiple of 8
CLS_ROW = NUM_PATCHES                                         # cls stored at row 16 of each block
PATCH_DIM = CHANNELS * PATCH * PATCH                          # 48
INNER = HEADS * DIM_HEAD                                      # 32
SCALE = DIM_HEAD ** -0.5
LN_EPS = 1e-5


# ----------------------------- shared math helpers --------------------------
def _layernorm(x, g, b):
    mu = jnp.mean(x, axis=-1, keepdims=True)
    var = jnp.mean((x - mu) ** 2, axis=-1, keepdims=True)
    return (x - mu) * jax.lax.rsqrt(var + LN_EPS) * g + b


def _gelu(x):
    # TODO(synk): PyTorch nn.GELU() default is the exact erf form; the tanh
    # approximation is used so the transcendental maps cleanly onto the EUP.
    c = 0.7978845608028654  # sqrt(2/pi)
    return 0.5 * x * (1.0 + jnp.tanh(c * (x + 0.044715 * x * x * x)))


# ----------------------------- fused Pallas kernel ---------------------------
def vit_kernel(patches_ref, tok_ref, pw_ref, pb_ref,
               ln1g_ref, ln1b_ref, wq_ref, wk_ref, wv_ref, wo_ref, bo_ref,
               ln2g_ref, ln2b_ref, w1_ref, b1_ref, w2_ref, b2_ref,
               hg_ref, hb_ref, hw_ref, hbias_ref,
               out_ref, x_ref):
    # ---- patch embedding (batch folded into rows: (B*NP, PATCH_DIM)) -------
    pe = jnp.dot(patches_ref[...], pw_ref[...],
                 preferred_element_type=jnp.float32) + pb_ref[...]     # (B*NP, DIM)

    # ---- assemble token buffer in VMEM: rows 0..15 = patches+pos[1:],
    #      row 16 = cls + pos[0], rows 17..23 = zero padding ----------------
    x_ref[...] = tok_ref[...]
    for b in range(BATCH):
        sl = pl.ds(b * SEQ_PAD, NUM_PATCHES)
        x_ref[sl, :] = x_ref[sl, :] + pe[b * NUM_PATCHES:(b + 1) * NUM_PATCHES, :]

    # ---- transformer encoder, static unroll over layers --------------------
    for l in range(N_LAYERS):
        # ----- multi-head self-attention (pre-norm) -----
        x = x_ref[...]                                                 # (B*SEQ_PAD, DIM)
        h = _layernorm(x, ln1g_ref[l], ln1b_ref[l])
        wo_l = wo_ref[l]                                               # (INNER, DIM)
        bo_l = bo_ref[l]                                               # (1, DIM)
        for b in range(BATCH):                                         # static, aligned slices
            hb = h[b * SEQ_PAD: b * SEQ_PAD + SEQ, :]                  # (SEQ, DIM)
            attn_b = jnp.zeros((SEQ, DIM), jnp.float32)
            for hd in range(HEADS):                                    # static unroll over heads
                w_idx = l * HEADS + hd
                q = jnp.dot(hb, wq_ref[w_idx], preferred_element_type=jnp.float32)
                k = jnp.dot(hb, wk_ref[w_idx], preferred_element_type=jnp.float32)
                v = jnp.dot(hb, wv_ref[w_idx], preferred_element_type=jnp.float32)
                # q @ k^T without an explicit transpose (MXU takes the operand directly)
                s = jax.lax.dot_general(q, k, (((1,), (1,)), ((), ())),
                                        preferred_element_type=jnp.float32) * SCALE
                m = jnp.max(s, axis=-1, keepdims=True)
                e = jnp.exp(s - m)
                p = e * pl.reciprocal(jnp.sum(e, axis=-1, keepdims=True), approx=True)
                o_h = jnp.dot(p, v, preferred_element_type=jnp.float32)      # (SEQ, DH)
                # accumulate through sublane-aligned row slices of W_o (no lane concat)
                attn_b = attn_b + jnp.dot(
                    o_h, wo_l[hd * DIM_HEAD:(hd + 1) * DIM_HEAD, :],
                    preferred_element_type=jnp.float32)
            sl = pl.ds(b * SEQ_PAD, SEQ)
            x_ref[sl, :] = x[b * SEQ_PAD: b * SEQ_PAD + SEQ, :] + attn_b + bo_l

        # ----- feed-forward (pre-norm), batch folded into rows -----
        x = x_ref[...]
        h2 = _layernorm(x, ln2g_ref[l], ln2b_ref[l])
        mid = jnp.dot(h2, w1_ref[l], preferred_element_type=jnp.float32) + b1_ref[l]
        mid = _gelu(mid)
        ff = jnp.dot(mid, w2_ref[l], preferred_element_type=jnp.float32) + b2_ref[l]
        x_ref[...] = x + ff

    # ---- cls pooling + LayerNorm + classifier head --------------------------
    xf = x_ref[...]
    pooled = jnp.concatenate(
        [xf[b * SEQ_PAD + CLS_ROW: b * SEQ_PAD + CLS_ROW + 1, :] for b in range(BATCH)],
        axis=0)                                                        # (B, DIM)
    hN = _layernorm(pooled, hg_ref[...], hb_ref[...])
    out_ref[...] = (jnp.dot(hN, hw_ref[...], preferred_element_type=jnp.float32)
                    + hbias_ref[...])


def vit_pallas(patches, tok_init, p):
    """Single fused pallas_call: weights DMA'd once, activations never leave VMEM."""
    args = (patches, tok_init, p["patch_w"], p["patch_b"],
            p["ln1_g"], p["ln1_b"], p["wq"], p["wk"], p["wv"], p["wo"], p["bo"],
            p["ln2_g"], p["ln2_b"], p["w1"], p["b1"], p["w2"], p["b2"],
            p["head_g"], p["head_b"], p["head_w"], p["head_bias"])
    return pl.pallas_call(
        vit_kernel,
        out_shape=jax.ShapeDtypeStruct((BATCH, NUM_CLASSES), jnp.float32),
        scratch_shapes=[pltpu.VMEM((BATCH * SEQ_PAD, DIM), jnp.float32)],
    )(*args)


# ----------------------------- parameter init -------------------------------
def init_params(key):
    ks = iter(jax.random.split(key, 64))
    n = lambda shape, s=0.02: s * jax.random.normal(next(ks), shape, jnp.float32)

    return {
        "patch_w": n((PATCH_DIM, DIM)),
        "patch_b": jnp.zeros((1, DIM), jnp.float32),
        "pos_embedding": jax.random.normal(next(ks), (1, SEQ, DIM), jnp.float32),
        "cls_token": jax.random.normal(next(ks), (1, 1, DIM), jnp.float32),
        # Per-head q/k/v weights stacked along the leading (layer*head) axis.
        # NOTE: when importing real PyTorch to_qkv weights this must preserve
        # the [q|k|v] x head-major column ordering of the fused projection.
        "wq": n((N_LAYERS * HEADS, DIM, DIM_HEAD)),
        "wk": n((N_LAYERS * HEADS, DIM, DIM_HEAD)),
        "wv": n((N_LAYERS * HEADS, DIM, DIM_HEAD)),
        "wo": n((N_LAYERS, INNER, DIM)),
        "bo": jnp.zeros((N_LAYERS, 1, DIM), jnp.float32),
        "ln1_g": jnp.ones((N_LAYERS, 1, DIM), jnp.float32),
        "ln1_b": jnp.zeros((N_LAYERS, 1, DIM), jnp.float32),
        "ln2_g": jnp.ones((N_LAYERS, 1, DIM), jnp.float32),
        "ln2_b": jnp.zeros((N_LAYERS, 1, DIM), jnp.float32),
        "w1": n((N_LAYERS, DIM, MLP_DIM)),
        "b1": jnp.zeros((N_LAYERS, 1, MLP_DIM), jnp.float32),
        "w2": n((N_LAYERS, MLP_DIM, DIM)),
        "b2": jnp.zeros((N_LAYERS, 1, DIM), jnp.float32),
        "head_g": jnp.ones((1, DIM), jnp.float32),
        "head_b": jnp.zeros((1, DIM), jnp.float32),
        "head_w": n((DIM, NUM_CLASSES)),
        "head_bias": jnp.zeros((1, NUM_CLASSES), jnp.float32),
    }


# ----------------------------- forward pass ---------------------------------
@jax.jit
def vit_forward(params, inputs):
    """inputs: (B, C, H, W) float32 (NCHW, as in PyTorch)."""
    B = inputs.shape[0]
    hp = wp = IMAGE_SIZE // PATCH

    # Rearrange 'b c (h p1) (w p2) -> b (h w) (p1 p2 c)'  (pure layout glue)
    x = inputs.reshape(B, CHANNELS, hp, PATCH, wp, PATCH)
    x = jnp.transpose(x, (0, 2, 4, 3, 5, 1))               # (B, h, w, p1, p2, c)
    patches = x.reshape(B * NUM_PATCHES, PATCH_DIM)        # batch folded into rows

    # Parameter-only assembly of the token-buffer initializer (cls + pos),
    # padded to SEQ_PAD rows per batch block (no activation data involved).
    pos = params["pos_embedding"][0]                       # (SEQ, DIM)
    cls = params["cls_token"][0]                           # (1, DIM)
    block = jnp.concatenate(
        [pos[1:SEQ],                                       # patch-token positions
         cls + pos[0:1],                                   # cls token + its position
         jnp.zeros((SEQ_PAD - SEQ, DIM), jnp.float32)],    # padding rows
        axis=0)                                            # (SEQ_PAD, DIM)
    tok_init = jnp.tile(block, (BATCH, 1))                 # (B*SEQ_PAD, DIM)

    # Dropout p=0 -> identity. Everything else runs inside the fused kernel.
    return vit_pallas(patches, tok_init, params)


# ----------------------------- pure-JAX reference ----------------------------
def vit_reference(params, inputs):
    B = inputs.shape[0]
    hp = wp = IMAGE_SIZE // PATCH
    x = inputs.reshape(B, CHANNELS, hp, PATCH, wp, PATCH)
    x = jnp.transpose(x, (0, 2, 4, 3, 5, 1)).reshape(B, NUM_PATCHES, PATCH_DIM)
    x = x @ params["patch_w"] + params["patch_b"]
    cls = jnp.broadcast_to(params["cls_token"], (B, 1, DIM))
    x = jnp.concatenate([cls, x], axis=1) + params["pos_embedding"][:, :SEQ]
    for l in range(N_LAYERS):
        h = _layernorm(x, params["ln1_g"][l], params["ln1_b"][l])
        outs = []
        for hd in range(HEADS):
            w_idx = l * HEADS + hd
            q = h @ params["wq"][w_idx]
            k = h @ params["wk"][w_idx]
            v = h @ params["wv"][w_idx]
            s = jnp.einsum("bqd,bkd->bqk", q, k) * SCALE
            p = jax.nn.softmax(s, axis=-1)
            outs.append(jnp.einsum("bqk,bkd->bqd", p, v))
        attn = jnp.concatenate(outs, axis=-1) @ params["wo"][l] + params["bo"][l]
        x = x + attn
        h2 = _layernorm(x, params["ln2_g"][l], params["ln2_b"][l])
        mid = _gelu(h2 @ params["w1"][l] + params["b1"][l])
        x = x + mid @ params["w2"][l] + params["b2"][l]
    pooled = x[:, 0]
    hN = _layernorm(pooled, params["head_g"], params["head_b"])
    return hN @ params["head_w"] + params["head_bias"]


# ----------------------------- main ------------------------------------------
if __name__ == "__main__":
    key = jax.random.PRNGKey(0)
    k_in, k_par = jax.random.split(key)
    inputs = jax.random.normal(k_in, (BATCH, CHANNELS, IMAGE_SIZE, IMAGE_SIZE),
                               jnp.float32)
    params = init_params(k_par)

    logits = jax.block_until_ready(vit_forward(params, inputs))
    ref = jax.block_until_ready(vit_reference(params, inputs))

    assert logits.shape == (BATCH, NUM_CLASSES)
    assert bool(jnp.all(jnp.isfinite(logits)))
    assert bool(jnp.allclose(logits, ref, rtol=5e-2, atol=5e-2))
    print("KERNEL_OK")
</pallas_src>

<mosaic_0001>
module attributes {stable_mosaic.version = 11 : i64} {
  func.func @vit_kernel(%arg0: memref<32x48xf32, #tpu.memory_space<vmem>>, %arg1: memref<48x32xf32, #tpu.memory_space<vmem>>, %arg2: memref<48x32xf32, #tpu.memory_space<vmem>>, %arg3: memref<1x32xf32, #tpu.memory_space<vmem>>, %arg4: memref<2x1x32xf32, #tpu.memory_space<vmem>>, %arg5: memref<2x1x32xf32, #tpu.memory_space<vmem>>, %arg6: memref<4x32x16xf32, #tpu.memory_space<vmem>>, %arg7: memref<4x32x16xf32, #tpu.memory_space<vmem>>, %arg8: memref<4x32x16xf32, #tpu.memory_space<vmem>>, %arg9: memref<2x32x32xf32, #tpu.memory_space<vmem>>, %arg10: memref<2x1x32xf32, #tpu.memory_space<vmem>>, %arg11: memref<2x1x32xf32, #tpu.memory_space<vmem>>, %arg12: memref<2x1x32xf32, #tpu.memory_space<vmem>>, %arg13: memref<2x32x64xf32, #tpu.memory_space<vmem>>, %arg14: memref<2x1x64xf32, #tpu.memory_space<vmem>>, %arg15: memref<2x64x32xf32, #tpu.memory_space<vmem>>, %arg16: memref<2x1x32xf32, #tpu.memory_space<vmem>>, %arg17: memref<1x32xf32, #tpu.memory_space<vmem>>, %arg18: memref<1x32xf32, #tpu.memory_space<vmem>>, %arg19: memref<32x10xf32, #tpu.memory_space<vmem>>, %arg20: memref<1x10xf32, #tpu.memory_space<vmem>>, %arg21: memref<2x10xf32, #tpu.memory_space<vmem>>, %arg22: memref<48x32xf32, #tpu.memory_space<vmem>>) attributes {dimension_semantics = [], scalar_prefetch = 0 : i64, scratch_operands = 1 : i64, tpu.core_type = #tpu.core_type<tc>} {
    %c0 = arith.constant 0 : index
    %c0_0 = arith.constant 0 : index
    %0 = vector.load %arg0[%c0, %c0_0] : memref<32x48xf32, #tpu.memory_space<vmem>>, vector<32x48xf32>
    %c0_1 = arith.constant 0 : index
    %c0_2 = arith.constant 0 : index
    %1 = vector.load %arg2[%c0_1, %c0_2] : memref<48x32xf32, #tpu.memory_space<vmem>>, vector<48x32xf32>
    %cst = arith.constant dense<0.000000e+00> : vector<32x32xf32>
    %2 = tpu.matmul %0, %1, %cst {dimension_numbers = #tpu.dot_dimension_numbers<[1], [0], [0], [1], [0, 0, 1, 1], [], []>} : vector<32x48xf32>, vector<48x32xf32>, vector<32x32xf32> -> vector<32x32xf32>
    %c0_3 = arith.constant 0 : index
    %c0_4 = arith.constant 0 : index
    %3 = vector.load %arg3[%c0_3, %c0_4] : memref<1x32xf32, #tpu.memory_space<vmem>>, vector<1x32xf32>
    %4 = vector.broadcast %3 : vector<1x32xf32> to vector<32x32xf32>
    %5 = arith.addf %2, %4 : vector<32x32xf32>
    %c0_5 = arith.constant 0 : index
    %c0_6 = arith.constant 0 : index
    %6 = vector.load %arg1[%c0_5, %c0_6] : memref<48x32xf32, #tpu.memory_space<vmem>>, vector<48x32xf32>
    %c0_7 = arith.constant 0 : index
    %c0_8 = arith.constant 0 : index
    %7 = vector.load %arg22[%c0_7, %c0_8] : memref<48x32xf32, #tpu.memory_space<vmem>>, vector<48x32xf32>
    tpu.vector_store %arg22[%c0_7, %c0_8], %6 {strides = array<i32>} : memref<48x32xf32, #tpu.memory_space<vmem>>, vector<48x32xf32>,
    %c0_9 = arith.constant 0 : index
    %c0_10 = arith.constant 0 : index
    %8 = vector.load %arg22[%c0_9, %c0_10] : memref<48x32xf32, #tpu.memory_space<vmem>>, vector<16x32xf32>
    %9 = vector.extract_strided_slice %5 {offsets = [0, 0], sizes = [16, 32], strides = [1, 1]} : vector<32x32xf32> to vector<16x32xf32>
    %10 = arith.addf %8, %9 : vector<16x32xf32>
    %c0_11 = arith.constant 0 : index
    %c0_12 = arith.constant 0 : index
    %11 = vector.load %arg22[%c0_11, %c0_12] : memref<48x32xf32, #tpu.memory_space<vmem>>, vector<16x32xf32>
    tpu.vector_store %arg22[%c0_11, %c0_12], %10 {strides = array<i32>} : memref<48x32xf32, #tpu.memory_space<vmem>>, vector<16x32xf32>,
    %c24 = arith.constant 24 : index
    %c0_13 = arith.constant 0 : index
    %12 = vector.load %arg22[%c24, %c0_13] : memref<48x32xf32, #tpu.memory_space<vmem>>, vector<16x32xf32>
    %13 = vector.extract_strided_slice %5 {offsets = [16, 0], sizes = [16, 32], strides = [1, 1]} : vector<32x32xf32> to vector<16x32xf32>
    %14 = arith.addf %12, %13 : vector<16x32xf32>
    %c24_14 = arith.constant 24 : index
    %c0_15 = arith.constant 0 : index
    %15 = vector.load %arg22[%c24_14, %c0_15] : memref<48x32xf32, #tpu.memory_space<vmem>>, vector<16x32xf32>
    tpu.vector_store %arg22[%c24_14, %c0_15], %14 {strides = array<i32>} : memref<48x32xf32, #tpu.memory_space<vmem>>, vector<16x32xf32>,
    %c0_16 = arith.constant 0 : index
    %c0_17 = arith.constant 0 : index
    %16 = vector.load %arg22[%c0_16, %c0_17] : memref<48x32xf32, #tpu.memory_space<vmem>>, vector<48x32xf32>
    %c0_18 = arith.constant 0 : index
    %c0_19 = arith.constant 0 : index
    %c0_20 = arith.constant 0 : index
    %17 = vector.load %arg4[%c0_18, %c0_19, %c0_20] : memref<2x1x32xf32, #tpu.memory_space<vmem>>, vector<1x1x32xf32>
    %18 = vector.shape_cast %17 : vector<1x1x32xf32> to vector<1x32xf32>
    %c0_21 = arith.constant 0 : index
    %c0_22 = arith.constant 0 : index
    %c0_23 = arith.constant 0 : index
    %19 = vector.load %arg5[%c0_21, %c0_22, %c0_23] : memref<2x1x32xf32, #tpu.memory_space<vmem>>, vector<1x1x32xf32>
    %20 = vector.shape_cast %19 : vector<1x1x32xf32> to vector<1x32xf32>
    %cst_24 = arith.constant dense<0.000000e+00> : vector<48xf32>
    %21 = vector.multi_reduction <add>, %16, %cst_24 [1] : vector<48x32xf32> to vector<48xf32>
    %22 = vector.shape_cast %21 : vector<48xf32> to vector<48x1xf32>
    %cst_25 = arith.constant 3.200000e+01 : f32
    %23 = vector.broadcast %cst_25 : f32 to vector<48x1xf32>
    %24 = arith.divf %22, %23 : vector<48x1xf32>
    %25 = vector.broadcast %24 : vector<48x1xf32> to vector<48x32xf32>
    %26 = arith.subf %16, %25 : vector<48x32xf32>
    %27 = arith.mulf %26, %26 : vector<48x32xf32>
    %cst_26 = arith.constant dense<0.000000e+00> : vector<48xf32>
    %28 = vector.multi_reduction <add>, %27, %cst_26 [1] : vector<48x32xf32> to vector<48xf32>
    %29 = vector.shape_cast %28 : vector<48xf32> to vector<48x1xf32>
    %cst_27 = arith.constant 3.200000e+01 : f32
    %30 = vector.broadcast %cst_27 : f32 to vector<48x1xf32>
    %31 = arith.divf %29, %30 : vector<48x1xf32>
    %32 = vector.broadcast %24 : vector<48x1xf32> to vector<48x32xf32>
    %33 = arith.subf %16, %32 : vector<48x32xf32>
    %cst_28 = arith.constant 9.99999974E-6 : f32
    %34 = vector.broadcast %cst_28 : f32 to vector<48x1xf32>
    %35 = arith.addf %31, %34 : vector<48x1xf32>
    %36 = math.rsqrt %35 : vector<48x1xf32>
    %37 = vector.broadcast %36 : vector<48x1xf32> to vector<48x32xf32>
    %38 = arith.mulf %33, %37 : vector<48x32xf32>
    %39 = vector.broadcast %18 : vector<1x32xf32> to vector<48x32xf32>
    %40 = arith.mulf %38, %39 : vector<48x32xf32>
    %41 = vector.broadcast %20 : vector<1x32xf32> to vector<48x32xf32>
    %42 = arith.addf %40, %41 : vector<48x32xf32>
    %c0_29 = arith.constant 0 : index
    %c0_30 = arith.constant 0 : index
    %c0_31 = arith.constant 0 : index
    %43 = vector.load %arg9[%c0_29, %c0_30, %c0_31] : memref<2x32x32xf32, #tpu.memory_space<vmem>>, vector<1x32x32xf32>
    %44 = vector.shape_cast %43 : vector<1x32x32xf32> to vector<32x32xf32>
    %c0_32 = arith.constant 0 : index
    %c0_33 = arith.constant 0 : index
    %c0_34 = arith.constant 0 : index
    %45 = vector.load %arg10[%c0_32, %c0_33, %c0_34] : memref<2x1x32xf32, #tpu.memory_space<vmem>>, vector<1x1x32xf32>
    %46 = vector.shape_cast %45 : vector<1x1x32xf32> to vector<1x32xf32>
    %47 = vector.extract_strided_slice %42 {offsets = [0, 0], sizes = [17, 32], strides = [1, 1]} : vector<48x32xf32> to vector<17x32xf32>
    %cst_35 = arith.constant 0.000000e+00 : f32
    %48 = vector.broadcast %cst_35 : f32 to vector<17x32xf32>
    %c0_36 = arith.constant 0 : index
    %c0_37 = arith.constant 0 : index
    %c0_38 = arith.constant 0 : index
    %49 = vector.load %arg6[%c0_36, %c0_37, %c0_38] : memref<4x32x16xf32, #tpu.memory_space<vmem>>, vector<1x32x16xf32>
    %50 = vector.shape_cast %49 : vector<1x32x16xf32> to vector<32x16xf32>
    %cst_39 = arith.constant dense<0.000000e+00> : vector<17x16xf32>
    %51 = tpu.matmul %47, %50, %cst_39 {dimension_numbers = #tpu.dot_dimension_numbers<[1], [0], [0], [1], [0, 0, 1, 1], [], []>} : vector<17x32xf32>, vector<32x16xf32>, vector<17x16xf32> -> vector<17x16xf32>
    %c0_40 = arith.constant 0 : index
    %c0_41 = arith.constant 0 : index
    %c0_42 = arith.constant 0 : index
    %52 = vector.load %arg7[%c0_40, %c0_41, %c0_42] : memref<4x32x16xf32, #tpu.memory_space<vmem>>, vector<1x32x16xf32>
    %53 = vector.shape_cast %52 : vector<1x32x16xf32> to vector<32x16xf32>
    %cst_43 = arith.constant dense<0.000000e+00> : vector<17x16xf32>
    %54 = tpu.matmul %47, %53, %cst_43 {dimension_numbers = #tpu.dot_dimension_numbers<[1], [0], [0], [1], [0, 0, 1, 1], [], []>} : vector<17x32xf32>, vector<32x16xf32>, vector<17x16xf32> -> vector<17x16xf32>
    %c0_44 = arith.constant 0 : index
    %c0_45 = arith.constant 0 : index
    %c0_46 = arith.constant 0 : index
    %55 = vector.load %arg8[%c0_44, %c0_45, %c0_46] : memref<4x32x16xf32, #tpu.memory_space<vmem>>, vector<1x32x16xf32>
    %56 = vector.shape_cast %55 : vector<1x32x16xf32> to vector<32x16xf32>
    %cst_47 = arith.constant dense<0.000000e+00> : vector<17x16xf32>
    %57 = tpu.matmul %47, %56, %cst_47 {dimension_numbers = #tpu.dot_dimension_numbers<[1], [0], [0], [1], [0, 0, 1, 1], [], []>} : vector<17x32xf32>, vector<32x16xf32>, vector<17x16xf32> -> vector<17x16xf32>
    %cst_48 = arith.constant dense<0.000000e+00> : vector<17x17xf32>
    %58 = tpu.matmul %51, %54, %cst_48 {dimension_numbers = #tpu.dot_dimension_numbers<[1], [1], [0], [0], [0, 0, 1, 0], [], []>} : vector<17x16xf32>, vector<17x16xf32>, vector<17x17xf32> -> vector<17x17xf32>
    %cst_49 = arith.constant 2.500000e-01 : f32
    %59 = vector.broadcast %cst_49 : f32 to vector<17x17xf32>
    %60 = arith.mulf %58, %59 : vector<17x17xf32>
    %cst_50 = arith.constant dense<0xFF800000> : vector<17xf32>
    %61 = vector.multi_reduction <maximumf>, %60, %cst_50 [1] : vector<17x17xf32> to vector<17xf32>
    %62 = vector.shape_cast %61 : vector<17xf32> to vector<17x1xf32>
    %63 = vector.broadcast %62 : vector<17x1xf32> to vector<17x17xf32>
    %64 = arith.subf %60, %63 : vector<17x17xf32>
    %65 = math.exp %64 : vector<17x17xf32>
    %cst_51 = arith.constant dense<0.000000e+00> : vector<17xf32>
    %66 = vector.multi_reduction <add>, %65, %cst_51 [1] : vector<17x17xf32> to vector<17xf32>
    %67 = vector.shape_cast %66 : vector<17xf32> to vector<17x1xf32>
    %68 = tpu.reciprocal %67 {approx = true} : vector<17x1xf32> -> vector<17x1xf32>
    %69 = vector.broadcast %68 : vector<17x1xf32> to vector<17x17xf32>
    %70 = arith.mulf %65, %69 : vector<17x17xf32>
    %cst_52 = arith.constant dense<0.000000e+00> : vector<17x16xf32>
    %71 = tpu.matmul %70, %57, %cst_52 {dimension_numbers = #tpu.dot_dimension_numbers<[1], [0], [0], [1], [0, 0, 1, 1], [], []>} : vector<17x17xf32>, vector<17x16xf32>, vector<17x16xf32> -> vector<17x16xf32>
    %72 = vector.extract_strided_slice %44 {offsets = [0, 0], sizes = [16, 32], strides = [1, 1]} : vector<32x32xf32> to vector<16x32xf32>
    %cst_53 = arith.constant dense<0.000000e+00> : vector<17x32xf32>
    %73 = tpu.matmul %71, %72, %cst_53 {dimension_numbers = #tpu.dot_dimension_numbers<[1], [0], [0], [1], [0, 0, 1, 1], [], []>} : vector<17x16xf32>, vector<16x32xf32>, vector<17x32xf32> -> vector<17x32xf32>
    %74 = arith.addf %48, %73 : vector<17x32xf32>
    %c1 = arith.constant 1 : index
    %c0_54 = arith.constant 0 : index
    %c0_55 = arith.constant 0 : index
    %75 = vector.load %arg6[%c1, %c0_54, %c0_55] : memref<4x32x16xf32, #tpu.memory_space<vmem>>, vector<1x32x16xf32>
    %76 = vector.shape_cast %75 : vector<1x32x16xf32> to vector<32x16xf32>
    %cst_56 = arith.constant dense<0.000000e+00> : vector<17x16xf32>
    %77 = tpu.matmul %47, %76, %cst_56 {dimension_numbers = #tpu.dot_dimension_numbers<[1], [0], [0], [1], [0, 0, 1, 1], [], []>} : vector<17x32xf32>, vector<32x16xf32>, vector<17x16xf32> -> vector<17x16xf32>
    %c1_57 = arith.constant 1 : index
    %c0_58 = arith.constant 0 : index
    %c0_59 = arith.constant 0 : index
    %78 = vector.load %arg7[%c1_57, %c0_58, %c0_59] : memref<4x32x16xf32, #tpu.memory_space<vmem>>, vector<1x32x16xf32>
    %79 = vector.shape_cast %78 : vector<1x32x16xf32> to vector<32x16xf32>
    %cst_60 = arith.constant dense<0.000000e+00> : vector<17x16xf32>
    %80 = tpu.matmul %47, %79, %cst_60 {dimension_numbers = #tpu.dot_dimension_numbers<[1], [0], [0], [1], [0, 0, 1, 1], [], []>} : vector<17x32xf32>, vector<32x16xf32>, vector<17x16xf32> -> vector<17x16xf32>
    %c1_61 = arith.constant 1 : index
    %c0_62 = arith.constant 0 : index
    %c0_63 = arith.constant 0 : index
    %81 = vector.load %arg8[%c1_61, %c0_62, %c0_63] : memref<4x32x16xf32, #tpu.memory_space<vmem>>, vector<1x32x16xf32>
    %82 = vector.shape_cast %81 : vector<1x32x16xf32> to vector<32x16xf32>
    %cst_64 = arith.constant dense<0.000000e+00> : vector<17x16xf32>
    %83 = tpu.matmul %47, %82, %cst_64 {dimension_numbers = #tpu.dot_dimension_numbers<[1], [0], [0], [1], [0, 0, 1, 1], [], []>} : vector<17x32xf32>, vector<32x16xf32>, vector<17x16xf32> -> vector<17x16xf32>
    %cst_65 = arith.constant dense<0.000000e+00> : vector<17x17xf32>
    %84 = tpu.matmul %77, %80, %cst_65 {dimension_numbers = #tpu.dot_dimension_numbers<[1], [1], [0], [0], [0, 0, 1, 0], [], []>} : vector<17x16xf32>, vector<17x16xf32>, vector<17x17xf32> -> vector<17x17xf32>
    %cst_66 = arith.constant 2.500000e-01 : f32
    %85 = vector.broadcast %cst_66 : f32 to vector<17x17xf32>
    %86 = arith.mulf %84, %85 : vector<17x17xf32>
    %cst_67 = arith.constant dense<0xFF800000> : vector<17xf32>
    %87 = vector.multi_reduction <maximumf>, %86, %cst_67 [1] : vector<17x17xf32> to vector<17xf32>
    %88 = vector.shape_cast %87 : vector<17xf32> to vector<17x1xf32>
    %89 = vector.broadcast %88 : vector<17x1xf32> to vector<17x17xf32>
    %90 = arith.subf %86, %89 : vector<17x17xf32>
    %91 = math.exp %90 : vector<17x17xf32>
    %cst_68 = arith.constant dense<0.000000e+00> : vector<17xf32>
    %92 = vector.multi_reduction <add>, %91, %cst_68 [1] : vector<17x17xf32> to vector<17xf32>
    %93 = vector.shape_cast %92 : vector<17xf32> to vector<17x1xf32>
    %94 = tpu.reciprocal %93 {approx = true} : vector<17x1xf32> -> vector<17x1xf32>
    %95 = vector.broadcast %94 : vector<17x1xf32> to vector<17x17xf32>
    %96 = arith.mulf %91, %95 : vector<17x17xf32>
    %cst_69 = arith.constant dense<0.000000e+00> : vector<17x16xf32>
    %97 = tpu.matmul %96, %83, %cst_69 {dimension_numbers = #tpu.dot_dimension_numbers<[1], [0], [0], [1], [0, 0, 1, 1], [], []>} : vector<17x17xf32>, vector<17x16xf32>, vector<17x16xf32> -> vector<17x16xf32>
    %98 = vector.extract_strided_slice %44 {offsets = [16, 0], sizes = [16, 32], strides = [1, 1]} : vector<32x32xf32> to vector<16x32xf32>
    %cst_70 = arith.constant dense<0.000000e+00> : vector<17x32xf32>
    %99 = tpu.matmul %97, %98, %cst_70 {dimension_numbers = #tpu.dot_dimension_numbers<[1], [0], [0], [1], [0, 0, 1, 1], [], []>} : vector<17x16xf32>, vector<16x32xf32>, vector<17x32xf32> -> vector<17x32xf32>
    %100 = arith.addf %74, %99 : vector<17x32xf32>
    %101 = vector.extract_strided_slice %16 {offsets = [0, 0], sizes = [17, 32], strides = [1, 1]} : vector<48x32xf32> to vector<17x32xf32>
    %102 = arith.addf %101, %100 : vector<17x32xf32>
    %103 = vector.broadcast %46 : vector<1x32xf32> to vector<17x32xf32>
    %104 = arith.addf %102, %103 : vector<17x32xf32>
    %c0_71 = arith.constant 0 : index
    %c0_72 = arith.constant 0 : index
    %105 = vector.load %arg22[%c0_71, %c0_72] : memref<48x32xf32, #tpu.memory_space<vmem>>, vector<17x32xf32>
    tpu.vector_store %arg22[%c0_71, %c0_72], %104 {strides = array<i32>} : memref<48x32xf32, #tpu.memory_space<vmem>>, vector<17x32xf32>,
    %106 = vector.extract_strided_slice %42 {offsets = [24, 0], sizes = [17, 32], strides = [1, 1]} : vector<48x32xf32> to vector<17x32xf32>
    %cst_73 = arith.constant 0.000000e+00 : f32
    %107 = vector.broadcast %cst_73 : f32 to vector<17x32xf32>
    %c0_74 = arith.constant 0 : index
    %c0_75 = arith.constant 0 : index
    %c0_76 = arith.constant 0 : index
    %108 = vector.load %arg6[%c0_74, %c0_75, %c0_76] : memref<4x32x16xf32, #tpu.memory_space<vmem>>, vector<1x32x16xf32>
    %109 = vector.shape_cast %108 : vector<1x32x16xf32> to vector<32x16xf32>
    %cst_77 = arith.constant dense<0.000000e+00> : vector<17x16xf32>
    %110 = tpu.matmul %106, %109, %cst_77 {dimension_numbers = #tpu.dot_dimension_numbers<[1], [0], [0], [1], [0, 0, 1, 1], [], []>} : vector<17x32xf32>, vector<32x16xf32>, vector<17x16xf32> -> vector<17x16xf32>
    %c0_78 = arith.constant 0 : index
    %c0_79 = arith.constant 0 : index
    %c0_80 = arith.constant 0 : index
    %111 = vector.load %arg7[%c0_78, %c0_79, %c0_80] : memref<4x32x16xf32, #tpu.memory_space<vmem>>, vector<1x32x16xf32>
    %112 = vector.shape_cast %111 : vector<1x32x16xf32> to vector<32x16xf32>
    %cst_81 = arith.constant dense<0.000000e+00> : vector<17x16xf32>
    %113 = tpu.matmul %106, %112, %cst_81 {dimension_numbers = #tpu.dot_dimension_numbers<[1], [0], [0], [1], [0, 0, 1, 1], [], []>} : vector<17x32xf32>, vector<32x16xf32>, vector<17x16xf32> -> vector<17x16xf32>
    %c0_82 = arith.constant 0 : index
    %c0_83 = arith.constant 0 : index
    %c0_84 = arith.constant 0 : index
    %114 = vector.load %arg8[%c0_82, %c0_83, %c0_84] : memref<4x32x16xf32, #tpu.memory_space<vmem>>, vector<1x32x16xf32>
    %115 = vector.shape_cast %114 : vector<1x32x16xf32> to vector<32x16xf32>
    %cst_85 = arith.constant dense<0.000000e+00> : vector<17x16xf32>
    %116 = tpu.matmul %106, %115, %cst_85 {dimension_numbers = #tpu.dot_dimension_numbers<[1], [0], [0], [1], [0, 0, 1, 1], [], []>} : vector<17x32xf32>, vector<32x16xf32>, vector<17x16xf32> -> vector<17x16xf32>
    %cst_86 = arith.constant dense<0.000000e+00> : vector<17x17xf32>
    %117 = tpu.matmul %110, %113, %cst_86 {dimension_numbers = #tpu.dot_dimension_numbers<[1], [1], [0], [0], [0, 0, 1, 0], [], []>} : vector<17x16xf32>, vector<17x16xf32>, vector<17x17xf32> -> vector<17x17xf32>
    %cst_87 = arith.constant 2.500000e-01 : f32
    %118 = vector.broadcast %cst_87 : f32 to vector<17x17xf32>
    %119 = arith.mulf %117, %118 : vector<17x17xf32>
    %cst_88 = arith.constant dense<0xFF800000> : vector<17xf32>
    %120 = vector.multi_reduction <maximumf>, %119, %cst_88 [1] : vector<17x17xf32> to vector<17xf32>
    %121 = vector.shape_cast %120 : vector<17xf32> to vector<17x1xf32>
    %122 = vector.broadcast %121 : vector<17x1xf32> to vector<17x17xf32>
    %123 = arith.subf %119, %122 : vector<17x17xf32>
    %124 = math.exp %123 : vector<17x17xf32>
    %cst_89 = arith.constant dense<0.000000e+00> : vector<17xf32>
    %125 = vector.multi_reduction <add>, %124, %cst_89 [1] : vector<17x17xf32> to vector<17xf32>
    %126 = vector.shape_cast %125 : vector<17xf32> to vector<17x1xf32>
    %127 = tpu.reciprocal %126 {approx = true} : vector<17x1xf32> -> vector<17x1xf32>
    %128 = vector.broadcast %127 : vector<17x1xf32> to vector<17x17xf32>
    %129 = arith.mulf %124, %128 : vector<17x17xf32>
    %cst_90 = arith.constant dense<0.000000e+00> : vector<17x16xf32>
    %130 = tpu.matmul %129, %116, %cst_90 {dimension_numbers = #tpu.dot_dimension_numbers<[1], [0], [0], [1], [0, 0, 1, 1], [], []>} : vector<17x17xf32>, vector<17x16xf32>, vector<17x16xf32> -> vector<17x16xf32>
    %131 = vector.extract_strided_slice %44 {offsets = [0, 0], sizes = [16, 32], strides = [1, 1]} : vector<32x32xf32> to vector<16x32xf32>
    %cst_91 = arith.constant dense<0.000000e+00> : vector<17x32xf32>
    %132 = tpu.matmul %130, %131, %cst_91 {dimension_numbers = #tpu.dot_dimension_numbers<[1], [0], [0], [1], [0, 0, 1, 1], [], []>} : vector<17x16xf32>, vector<16x32xf32>, vector<17x32xf32> -> vector<17x32xf32>
    %133 = arith.addf %107, %132 : vector<17x32xf32>
    %c1_92 = arith.constant 1 : index
    %c0_93 = arith.constant 0 : index
    %c0_94 = arith.constant 0 : index
    %134 = vector.load %arg6[%c1_92, %c0_93, %c0_94] : memref<4x32x16xf32, #tpu.memory_space<vmem>>, vector<1x32x16xf32>
    %135 = vector.shape_cast %134 : vector<1x32x16xf32> to vector<32x16xf32>
    %cst_95 = arith.constant dense<0.000000e+00> : vector<17x16xf32>
    %136 = tpu.matmul %106, %135, %cst_95 {dimension_numbers = #tpu.dot_dimension_numbers<[1], [0], [0], [1], [0, 0, 1, 1], [], []>} : vector<17x32xf32>, vector<32x16xf32>, vector<17x16xf32> -> vector<17x16xf32>
    %c1_96 = arith.constant 1 : index
    %c0_97 = arith.constant 0 : index
    %c0_98 = arith.constant 0 : index
    %137 = vector.load %arg7[%c1_96, %c0_97, %c0_98] : memref<4x32x16xf32, #tpu.memory_space<vmem>>, vector<1x32x16xf32>
    %138 = vector.shape_cast %137 : vector<1x32x16xf32> to vector<32x16xf32>
    %cst_99 = arith.constant dense<0.000000e+00> : vector<17x16xf32>
    %139 = tpu.matmul %106, %138, %cst_99 {dimension_numbers = #tpu.dot_dimension_numbers<[1], [0], [0], [1], [0, 0, 1, 1], [], []>} : vector<17x32xf32>, vector<32x16xf32>, vector<17x16xf32> -> vector<17x16xf32>
    %c1_100 = arith.constant 1 : index
    %c0_101 = arith.constant 0 : index
    %c0_102 = arith.constant 0 : index
    %140 = vector.load %arg8[%c1_100, %c0_101, %c0_102] : memref<4x32x16xf32, #tpu.memory_space<vmem>>, vector<1x32x16xf32>
    %141 = vector.shape_cast %140 : vector<1x32x16xf32> to vector<32x16xf32>
    %cst_103 = arith.constant dense<0.000000e+00> : vector<17x16xf32>
    %142 = tpu.matmul %106, %141, %cst_103 {dimension_numbers = #tpu.dot_dimension_numbers<[1], [0], [0], [1], [0, 0, 1, 1], [], []>} : vector<17x32xf32>, vector<32x16xf32>, vector<17x16xf32> -> vector<17x16xf32>
    %cst_104 = arith.constant dense<0.000000e+00> : vector<17x17xf32>
    %143 = tpu.matmul %136, %139, %cst_104 {dimension_numbers = #tpu.dot_dimension_numbers<[1], [1], [0], [0], [0, 0, 1, 0], [], []>} : vector<17x16xf32>, vector<17x16xf32>, vector<17x17xf32> -> vector<17x17xf32>
    %cst_105 = arith.constant 2.500000e-01 : f32
    %144 = vector.broadcast %cst_105 : f32 to vector<17x17xf32>
    %145 = arith.mulf %143, %144 : vector<17x17xf32>
    %cst_106 = arith.constant dense<0xFF800000> : vector<17xf32>
    %146 = vector.multi_reduction <maximumf>, %145, %cst_106 [1] : vector<17x17xf32> to vector<17xf32>
    %147 = vector.shape_cast %146 : vector<17xf32> to vector<17x1xf32>
    %148 = vector.broadcast %147 : vector<17x1xf32> to vector<17x17xf32>
    %149 = arith.subf %145, %148 : vector<17x17xf32>
    %150 = math.exp %149 : vector<17x17xf32>
    %cst_107 = arith.constant dense<0.000000e+00> : vector<17xf32>
    %151 = vector.multi_reduction <add>, %150, %cst_107 [1] : vector<17x17xf32> to vector<17xf32>
    %152 = vector.shape_cast %151 : vector<17xf32> to vector<17x1xf32>
    %153 = tpu.reciprocal %152 {approx = true} : vector<17x1xf32> -> vector<17x1xf32>
    %154 = vector.broadcast %153 : vector<17x1xf32> to vector<17x17xf32>
    %155 = arith.mulf %150, %154 : vector<17x17xf32>
    %cst_108 = arith.constant dense<0.000000e+00> : vector<17x16xf32>
    %156 = tpu.matmul %155, %142, %cst_108 {dimension_numbers = #tpu.dot_dimension_numbers<[1], [0], [0], [1], [0, 0, 1, 1], [], []>} : vector<17x17xf32>, vector<17x16xf32>, vector<17x16xf32> -> vector<17x16xf32>
    %157 = vector.extract_strided_slice %44 {offsets = [16, 0], sizes = [16, 32], strides = [1, 1]} : vector<32x32xf32> to vector<16x32xf32>
    %cst_109 = arith.constant dense<0.000000e+00> : vector<17x32xf32>
    %158 = tpu.matmul %156, %157, %cst_109 {dimension_numbers = #tpu.dot_dimension_numbers<[1], [0], [0], [1], [0, 0, 1, 1], [], []>} : vector<17x16xf32>, vector<16x32xf32>, vector<17x32xf32> -> vector<17x32xf32>
    %159 = arith.addf %133, %158 : vector<17x32xf32>
    %160 = vector.extract_strided_slice %16 {offsets = [24, 0], sizes = [17, 32], strides = [1, 1]} : vector<48x32xf32> to vector<17x32xf32>
    %161 = arith.addf %160, %159 : vector<17x32xf32>
    %162 = vector.broadcast %46 : vector<1x32xf32> to vector<17x32xf32>
    %163 = arith.addf %161, %162 : vector<17x32xf32>
    %c24_110 = arith.constant 24 : index
    %c0_111 = arith.constant 0 : index
    %164 = vector.load %arg22[%c24_110, %c0_111] : memref<48x32xf32, #tpu.memory_space<vmem>>, vector<17x32xf32>
    tpu.vector_store %arg22[%c24_110, %c0_111], %163 {strides = array<i32>} : memref<48x32xf32, #tpu.memory_space<vmem>>, vector<17x32xf32>,
    %c0_112 = arith.constant 0 : index
    %c0_113 = arith.constant 0 : index
    %165 = vector.load %arg22[%c0_112, %c0_113] : memref<48x32xf32, #tpu.memory_space<vmem>>, vector<48x32xf32>
    %c0_114 = arith.constant 0 : index
    %c0_115 = arith.constant 0 : index
    %c0_116 = arith.constant 0 : index
    %166 = vector.load %arg11[%c0_114, %c0_115, %c0_116] : memref<2x1x32xf32, #tpu.memory_space<vmem>>, vector<1x1x32xf32>
    %167 = vector.shape_cast %166 : vector<1x1x32xf32> to vector<1x32xf32>
    %c0_117 = arith.constant 0 : index
    %c0_118 = arith.constant 0 : index
    %c0_119 = arith.constant 0 : index
    %168 = vector.load %arg12[%c0_117, %c0_118, %c0_119] : memref<2x1x32xf32, #tpu.memory_space<vmem>>, vector<1x1x32xf32>
    %169 = vector.shape_cast %168 : vector<1x1x32xf32> to vector<1x32xf32>
    %cst_120 = arith.constant dense<0.000000e+00> : vector<48xf32>
    %170 = vector.multi_reduction <add>, %165, %cst_120 [1] : vector<48x32xf32> to vector<48xf32>
    %171 = vector.shape_cast %170 : vector<48xf32> to vector<48x1xf32>
    %cst_121 = arith.constant 3.200000e+01 : f32
    %172 = vector.broadcast %cst_121 : f32 to vector<48x1xf32>
    %173 = arith.divf %171, %172 : vector<48x1xf32>
    %174 = vector.broadcast %173 : vector<48x1xf32> to vector<48x32xf32>
    %175 = arith.subf %165, %174 : vector<48x32xf32>
    %176 = arith.mulf %175, %175 : vector<48x32xf32>
    %cst_122 = arith.constant dense<0.000000e+00> : vector<48xf32>
    %177 = vector.multi_reduction <add>, %176, %cst_122 [1] : vector<48x32xf32> to vector<48xf32>
    %178 = vector.shape_cast %177 : vector<48xf32> to vector<48x1xf32>
    %cst_123 = arith.constant 3.200000e+01 : f32
    %179 = vector.broadcast %cst_123 : f32 to vector<48x1xf32>
    %180 = arith.divf %178, %179 : vector<48x1xf32>
    %181 = vector.broadcast %173 : vector<48x1xf32> to vector<48x32xf32>
    %182 = arith.subf %165, %181 : vector<48x32xf32>
    %cst_124 = arith.constant 9.99999974E-6 : f32
    %183 = vector.broadcast %cst_124 : f32 to vector<48x1xf32>
    %184 = arith.addf %180, %183 : vector<48x1xf32>
    %185 = math.rsqrt %184 : vector<48x1xf32>
    %186 = vector.broadcast %185 : vector<48x1xf32> to vector<48x32xf32>
    %187 = arith.mulf %182, %186 : vector<48x32xf32>
    %188 = vector.broadcast %167 : vector<1x32xf32> to vector<48x32xf32>
    %189 = arith.mulf %187, %188 : vector<48x32xf32>
    %190 = vector.broadcast %169 : vector<1x32xf32> to vector<48x32xf32>
    %191 = arith.addf %189, %190 : vector<48x32xf32>
    %c0_125 = arith.constant 0 : index
    %c0_126 = arith.constant 0 : index
    %c0_127 = arith.constant 0 : index
    %192 = vector.load %arg13[%c0_125, %c0_126, %c0_127] : memref<2x32x64xf32, #tpu.memory_space<vmem>>, vector<1x32x64xf32>
    %193 = vector.shape_cast %192 : vector<1x32x64xf32> to vector<32x64xf32>
    %cst_128 = arith.constant dense<0.000000e+00> : vector<48x64xf32>
    %194 = tpu.matmul %191, %193, %cst_128 {dimension_numbers = #tpu.dot_dimension_numbers<[1], [0], [0], [1], [0, 0, 1, 1], [], []>} : vector<48x32xf32>, vector<32x64xf32>, vector<48x64xf32> -> vector<48x64xf32>
    %c0_129 = arith.constant 0 : index
    %c0_130 = arith.constant 0 : index
    %c0_131 = arith.constant 0 : index
    %195 = vector.load %arg14[%c0_129, %c0_130, %c0_131] : memref<2x1x64xf32, #tpu.memory_space<vmem>>, vector<1x1x64xf32>
    %196 = vector.shape_cast %195 : vector<1x1x64xf32> to vector<1x64xf32>
    %197 = vector.broadcast %196 : vector<1x64xf32> to vector<48x64xf32>
    %198 = arith.addf %194, %197 : vector<48x64xf32>
    %cst_132 = arith.constant 5.000000e-01 : f32
    %199 = vector.broadcast %cst_132 : f32 to vector<48x64xf32>
    %200 = arith.mulf %199, %198 : vector<48x64xf32>
    %cst_133 = arith.constant 4.471500e-02 : f32
    %201 = vector.broadcast %cst_133 : f32 to vector<48x64xf32>
    %202 = arith.mulf %201, %198 : vector<48x64xf32>
    %203 = arith.mulf %202, %198 : vector<48x64xf32>
    %204 = arith.mulf %203, %198 : vector<48x64xf32>
    %205 = arith.addf %198, %204 : vector<48x64xf32>
    %cst_134 = arith.constant 0.797884583 : f32
    %206 = vector.broadcast %cst_134 : f32 to vector<48x64xf32>
    %207 = arith.mulf %206, %205 : vector<48x64xf32>
    %208 = math.tanh %207 : vector<48x64xf32>
    %cst_135 = arith.constant 1.000000e+00 : f32
    %209 = vector.broadcast %cst_135 : f32 to vector<48x64xf32>
    %210 = arith.addf %209, %208 : vector<48x64xf32>
    %211 = arith.mulf %200, %210 : vector<48x64xf32>
    %c0_136 = arith.constant 0 : index
    %c0_137 = arith.constant 0 : index
    %c0_138 = arith.constant 0 : index
    %212 = vector.load %arg15[%c0_136, %c0_137, %c0_138] : memref<2x64x32xf32, #tpu.memory_space<vmem>>, vector<1x64x32xf32>
    %213 = vector.shape_cast %212 : vector<1x64x32xf32> to vector<64x32xf32>
    %cst_139 = arith.constant dense<0.000000e+00> : vector<48x32xf32>
    %214 = tpu.matmul %211, %213, %cst_139 {dimension_numbers = #tpu.dot_dimension_numbers<[1], [0], [0], [1], [0, 0, 1, 1], [], []>} : vector<48x64xf32>, vector<64x32xf32>, vector<48x32xf32> -> vector<48x32xf32>
    %c0_140 = arith.constant 0 : index
    %c0_141 = arith.constant 0 : index
    %c0_142 = arith.constant 0 : index
    %215 = vector.load %arg16[%c0_140, %c0_141, %c0_142] : memref<2x1x32xf32, #tpu.memory_space<vmem>>, vector<1x1x32xf32>
    %216 = vector.shape_cast %215 : vector<1x1x32xf32> to vector<1x32xf32>
    %217 = vector.broadcast %216 : vector<1x32xf32> to vector<48x32xf32>
    %218 = arith.addf %214, %217 : vector<48x32xf32>
    %219 = arith.addf %165, %218 : vector<48x32xf32>
    %c0_143 = arith.constant 0 : index
    %c0_144 = arith.constant 0 : index
    %220 = vector.load %arg22[%c0_143, %c0_144] : memref<48x32xf32, #tpu.memory_space<vmem>>, vector<48x32xf32>
    tpu.vector_store %arg22[%c0_143, %c0_144], %219 {strides = array<i32>} : memref<48x32xf32, #tpu.memory_space<vmem>>, vector<48x32xf32>,
    %c0_145 = arith.constant 0 : index
    %c0_146 = arith.constant 0 : index
    %221 = vector.load %arg22[%c0_145, %c0_146] : memref<48x32xf32, #tpu.memory_space<vmem>>, vector<48x32xf32>
    %c1_147 = arith.constant 1 : index
    %c0_148 = arith.constant 0 : index
    %c0_149 = arith.constant 0 : index
    %222 = vector.load %arg4[%c1_147, %c0_148, %c0_149] : memref<2x1x32xf32, #tpu.memory_space<vmem>>, vector<1x1x32xf32>
    %223 = vector.shape_cast %222 : vector<1x1x32xf32> to vector<1x32xf32>
    %c1_150 = arith.constant 1 : index
    %c0_151 = arith.constant 0 : index
    %c0_152 = arith.constant 0 : index
    %224 = vector.load %arg5[%c1_150, %c0_151, %c0_152] : memref<2x1x32xf32, #tpu.memory_space<vmem>>, vector<1x1x32xf32>
    %225 = vector.shape_cast %224 : vector<1x1x32xf32> to vector<1x32xf32>
    %cst_153 = arith.constant dense<0.000000e+00> : vector<48xf32>
    %226 = vector.multi_reduction <add>, %221, %cst_153 [1] : vector<48x32xf32> to vector<48xf32>
    %227 = vector.shape_cast %226 : vector<48xf32> to vector<48x1xf32>
    %cst_154 = arith.constant 3.200000e+01 : f32
    %228 = vector.broadcast %cst_154 : f32 to vector<48x1xf32>
    %229 = arith.divf %227, %228 : vector<48x1xf32>
    %230 = vector.broadcast %229 : vector<48x1xf32> to vector<48x32xf32>
    %231 = arith.subf %221, %230 : vector<48x32xf32>
    %232 = arith.mulf %231, %231 : vector<48x32xf32>
    %cst_155 = arith.constant dense<0.000000e+00> : vector<48xf32>
    %233 = vector.multi_reduction <add>, %232, %cst_155 [1] : vector<48x32xf32> to vector<48xf32>
    %234 = vector.shape_cast %233 : vector<48xf32> to vector<48x1xf32>
    %cst_156 = arith.constant 3.200000e+01 : f32
    %235 = vector.broadcast %cst_156 : f32 to vector<48x1xf32>
    %236 = arith.divf %234, %235 : vector<48x1xf32>
    %237 = vector.broadcast %229 : vector<48x1xf32> to vector<48x32xf32>
    %238 = arith.subf %221, %237 : vector<48x32xf32>
    %cst_157 = arith.constant 9.99999974E-6 : f32
    %239 = vector.broadcast %cst_157 : f32 to vector<48x1xf32>
    %240 = arith.addf %236, %239 : vector<48x1xf32>
    %241 = math.rsqrt %240 : vector<48x1xf32>
    %242 = vector.broadcast %241 : vector<48x1xf32> to vector<48x32xf32>
    %243 = arith.mulf %238, %242 : vector<48x32xf32>
    %244 = vector.broadcast %223 : vector<1x32xf32> to vector<48x32xf32>
    %245 = arith.mulf %243, %244 : vector<48x32xf32>
    %246 = vector.broadcast %225 : vector<1x32xf32> to vector<48x32xf32>
    %247 = arith.addf %245, %246 : vector<48x32xf32>
    %c1_158 = arith.constant 1 : index
    %c0_159 = arith.constant 0 : index
    %c0_160 = arith.constant 0 : index
    %248 = vector.load %arg9[%c1_158, %c0_159, %c0_160] : memref<2x32x32xf32, #tpu.memory_space<vmem>>, vector<1x32x32xf32>
    %249 = vector.shape_cast %248 : vector<1x32x32xf32> to vector<32x32xf32>
    %c1_161 = arith.constant 1 : index
    %c0_162 = arith.constant 0 : index
    %c0_163 = arith.constant 0 : index
    %250 = vector.load %arg10[%c1_161, %c0_162, %c0_163] : memref<2x1x32xf32, #tpu.memory_space<vmem>>, vector<1x1x32xf32>
    %251 = vector.shape_cast %250 : vector<1x1x32xf32> to vector<1x32xf32>
    %252 = vector.extract_strided_slice %247 {offsets = [0, 0], sizes = [17, 32], strides = [1, 1]} : vector<48x32xf32> to vector<17x32xf32>
    %cst_164 = arith.constant 0.000000e+00 : f32
    %253 = vector.broadcast %cst_164 : f32 to vector<17x32xf32>
    %c2 = arith.constant 2 : index
    %c0_165 = arith.constant 0 : index
    %c0_166 = arith.constant 0 : index
    %254 = vector.load %arg6[%c2, %c0_165, %c0_166] : memref<4x32x16xf32, #tpu.memory_space<vmem>>, vector<1x32x16xf32>
    %255 = vector.shape_cast %254 : vector<1x32x16xf32> to vector<32x16xf32>
    %cst_167 = arith.constant dense<0.000000e+00> : vector<17x16xf32>
    %256 = tpu.matmul %252, %255, %cst_167 {dimension_numbers = #tpu.dot_dimension_numbers<[1], [0], [0], [1], [0, 0, 1, 1], [], []>} : vector<17x32xf32>, vector<32x16xf32>, vector<17x16xf32> -> vector<17x16xf32>
    %c2_168 = arith.constant 2 : index
    %c0_169 = arith.constant 0 : index
    %c0_170 = arith.constant 0 : index
    %257 = vector.load %arg7[%c2_168, %c0_169, %c0_170] : memref<4x32x16xf32, #tpu.memory_space<vmem>>, vector<1x32x16xf32>
    %258 = vector.shape_cast %257 : vector<1x32x16xf32> to vector<32x16xf32>
    %cst_171 = arith.constant dense<0.000000e+00> : vector<17x16xf32>
    %259 = tpu.matmul %252, %258, %cst_171 {dimension_numbers = #tpu.dot_dimension_numbers<[1], [0], [0], [1], [0, 0, 1, 1], [], []>} : vector<17x32xf32>, vector<32x16xf32>, vector<17x16xf32> -> vector<17x16xf32>
    %c2_172 = arith.constant 2 : index
    %c0_173 = arith.constant 0 : index
    %c0_174 = arith.constant 0 : index
    %260 = vector.load %arg8[%c2_172, %c0_173, %c0_174] : memref<4x32x16xf32, #tpu.memory_space<vmem>>, vector<1x32x16xf32>
    %261 = vector.shape_cast %260 : vector<1x32x16xf32> to vector<32x16xf32>
    %cst_175 = arith.constant dense<0.000000e+00> : vector<17x16xf32>
    %262 = tpu.matmul %252, %261, %cst_175 {dimension_numbers = #tpu.dot_dimension_numbers<[1], [0], [0], [1], [0, 0, 1, 1], [], []>} : vector<17x32xf32>, vector<32x16xf32>, vector<17x16xf32> -> vector<17x16xf32>
    %cst_176 = arith.constant dense<0.000000e+00> : vector<17x17xf32>
    %263 = tpu.matmul %256, %259, %cst_176 {dimension_numbers = #tpu.dot_dimension_numbers<[1], [1], [0], [0], [0, 0, 1, 0], [], []>} : vector<17x16xf32>, vector<17x16xf32>, vector<17x17xf32> -> vector<17x17xf32>
    %cst_177 = arith.constant 2.500000e-01 : f32
    %264 = vector.broadcast %cst_177 : f32 to vector<17x17xf32>
    %265 = arith.mulf %263, %264 : vector<17x17xf32>
    %cst_178 = arith.constant dense<0xFF800000> : vector<17xf32>
    %266 = vector.multi_reduction <maximumf>, %265, %cst_178 [1] : vector<17x17xf32> to vector<17xf32>
    %267 = vector.shape_cast %266 : vector<17xf32> to vector<17x1xf32>
    %268 = vector.broadcast %267 : vector<17x1xf32> to vector<17x17xf32>
    %269 = arith.subf %265, %268 : vector<17x17xf32>
    %270 = math.exp %269 : vector<17x17xf32>
    %cst_179 = arith.constant dense<0.000000e+00> : vector<17xf32>
    %271 = vector.multi_reduction <add>, %270, %cst_179 [1] : vector<17x17xf32> to vector<17xf32>
    %272 = vector.shape_cast %271 : vector<17xf32> to vector<17x1xf32>
    %273 = tpu.reciprocal %272 {approx = true} : vector<17x1xf32> -> vector<17x1xf32>
    %274 = vector.broadcast %273 : vector<17x1xf32> to vector<17x17xf32>
    %275 = arith.mulf %270, %274 : vector<17x17xf32>
    %cst_180 = arith.constant dense<0.000000e+00> : vector<17x16xf32>
    %276 = tpu.matmul %275, %262, %cst_180 {dimension_numbers = #tpu.dot_dimension_numbers<[1], [0], [0], [1], [0, 0, 1, 1], [], []>} : vector<17x17xf32>, vector<17x16xf32>, vector<17x16xf32> -> vector<17x16xf32>
    %277 = vector.extract_strided_slice %249 {offsets = [0, 0], sizes = [16, 32], strides = [1, 1]} : vector<32x32xf32> to vector<16x32xf32>
    %cst_181 = arith.constant dense<0.000000e+00> : vector<17x32xf32>
    %278 = tpu.matmul %276, %277, %cst_181 {dimension_numbers = #tpu.dot_dimension_numbers<[1], [0], [0], [1], [0, 0, 1, 1], [], []>} : vector<17x16xf32>, vector<16x32xf32>, vector<17x32xf32> -> vector<17x32xf32>
    %279 = arith.addf %253, %278 : vector<17x32xf32>
    %c3 = arith.constant 3 : index
    %c0_182 = arith.constant 0 : index
    %c0_183 = arith.constant 0 : index
    %280 = vector.load %arg6[%c3, %c0_182, %c0_183] : memref<4x32x16xf32, #tpu.memory_space<vmem>>, vector<1x32x16xf32>
    %281 = vector.shape_cast %280 : vector<1x32x16xf32> to vector<32x16xf32>
    %cst_184 = arith.constant dense<0.000000e+00> : vector<17x16xf32>
    %282 = tpu.matmul %252, %281, %cst_184 {dimension_numbers = #tpu.dot_dimension_numbers<[1], [0], [0], [1], [0, 0, 1, 1], [], []>} : vector<17x32xf32>, vector<32x16xf32>, vector<17x16xf32> -> vector<17x16xf32>
    %c3_185 = arith.constant 3 : index
    %c0_186 = arith.constant 0 : index
    %c0_187 = arith.constant 0 : index
    %283 = vector.load %arg7[%c3_185, %c0_186, %c0_187] : memref<4x32x16xf32, #tpu.memory_space<vmem>>, vector<1x32x16xf32>
    %284 = vector.shape_cast %283 : vector<1x32x16xf32> to vector<32x16xf32>
    %cst_188 = arith.constant dense<0.000000e+00> : vector<17x16xf32>
    %285 = tpu.matmul %252, %284, %cst_188 {dimension_numbers = #tpu.dot_dimension_numbers<[1], [0], [0], [1], [0, 0, 1, 1], [], []>} : vector<17x32xf32>, vector<32x16xf32>, vector<17x16xf32> -> vector<17x16xf32>
    %c3_189 = arith.constant 3 : index
    %c0_190 = arith.constant 0 : index
    %c0_191 = arith.constant 0 : index
    %286 = vector.load %arg8[%c3_189, %c0_190, %c0_191] : memref<4x32x16xf32, #tpu.memory_space<vmem>>, vector<1x32x16xf32>
    %287 = vector.shape_cast %286 : vector<1x32x16xf32> to vector<32x16xf32>
    %cst_192 = arith.constant dense<0.000000e+00> : vector<17x16xf32>
    %288 = tpu.matmul %252, %287, %cst_192 {dimension_numbers = #tpu.dot_dimension_numbers<[1], [0], [0], [1], [0, 0, 1, 1], [], []>} : vector<17x32xf32>, vector<32x16xf32>, vector<17x16xf32> -> vector<17x16xf32>
    %cst_193 = arith.constant dense<0.000000e+00> : vector<17x17xf32>
    %289 = tpu.matmul %282, %285, %cst_193 {dimension_numbers = #tpu.dot_dimension_numbers<[1], [1], [0], [0], [0, 0, 1, 0], [], []>} : vector<17x16xf32>, vector<17x16xf32>, vector<17x17xf32> -> vector<17x17xf32>
    %cst_194 = arith.constant 2.500000e-01 : f32
    %290 = vector.broadcast %cst_194 : f32 to vector<17x17xf32>
    %291 = arith.mulf %289, %290 : vector<17x17xf32>
    %cst_195 = arith.constant dense<0xFF800000> : vector<17xf32>
    %292 = vector.multi_reduction <maximumf>, %291, %cst_195 [1] : vector<17x17xf32> to vector<17xf32>
    %293 = vector.shape_cast %292 : vector<17xf32> to vector<17x1xf32>
    %294 = vector.broadcast %293 : vector<17x1xf32> to vector<17x17xf32>
    %295 = arith.subf %291, %294 : vector<17x17xf32>
    %296 = math.exp %295 : vector<17x17xf32>
    %cst_196 = arith.constant dense<0.000000e+00> : vector<17xf32>
    %297 = vector.multi_reduction <add>, %296, %cst_196 [1] : vector<17x17xf32> to vector<17xf32>
    %298 = vector.shape_cast %297 : vector<17xf32> to vector<17x1xf32>
    %299 = tpu.reciprocal %298 {approx = true} : vector<17x1xf32> -> vector<17x1xf32>
    %300 = vector.broadcast %299 : vector<17x1xf32> to vector<17x17xf32>
    %301 = arith.mulf %296, %300 : vector<17x17xf32>
    %cst_197 = arith.constant dense<0.000000e+00> : vector<17x16xf32>
    %302 = tpu.matmul %301, %288, %cst_197 {dimension_numbers = #tpu.dot_dimension_numbers<[1], [0], [0], [1], [0, 0, 1, 1], [], []>} : vector<17x17xf32>, vector<17x16xf32>, vector<17x16xf32> -> vector<17x16xf32>
    %303 = vector.extract_strided_slice %249 {offsets = [16, 0], sizes = [16, 32], strides = [1, 1]} : vector<32x32xf32> to vector<16x32xf32>
    %cst_198 = arith.constant dense<0.000000e+00> : vector<17x32xf32>
    %304 = tpu.matmul %302, %303, %cst_198 {dimension_numbers = #tpu.dot_dimension_numbers<[1], [0], [0], [1], [0, 0, 1, 1], [], []>} : vector<17x16xf32>, vector<16x32xf32>, vector<17x32xf32> -> vector<17x32xf32>
    %305 = arith.addf %279, %304 : vector<17x32xf32>
    %306 = vector.extract_strided_slice %221 {offsets = [0, 0], sizes = [17, 32], strides = [1, 1]} : vector<48x32xf32> to vector<17x32xf32>
    %307 = arith.addf %306, %305 : vector<17x32xf32>
    %308 = vector.broadcast %251 : vector<1x32xf32> to vector<17x32xf32>
    %309 = arith.addf %307, %308 : vector<17x32xf32>
    %c0_199 = arith.constant 0 : index
    %c0_200 = arith.constant 0 : index
    %310 = vector.load %arg22[%c0_199, %c0_200] : memref<48x32xf32, #tpu.memory_space<vmem>>, vector<17x32xf32>
    tpu.vector_store %arg22[%c0_199, %c0_200], %309 {strides = array<i32>} : memref<48x32xf32, #tpu.memory_space<vmem>>, vector<17x32xf32>,
    %311 = vector.extract_strided_slice %247 {offsets = [24, 0], sizes = [17, 32], strides = [1, 1]} : vector<48x32xf32> to vector<17x32xf32>
    %cst_201 = arith.constant 0.000000e+00 : f32
    %312 = vector.broadcast %cst_201 : f32 to vector<17x32xf32>
    %c2_202 = arith.constant 2 : index
    %c0_203 = arith.constant 0 : index
    %c0_204 = arith.constant 0 : index
    %313 = vector.load %arg6[%c2_202, %c0_203, %c0_204] : memref<4x32x16xf32, #tpu.memory_space<vmem>>, vector<1x32x16xf32>
    %314 = vector.shape_cast %313 : vector<1x32x16xf32> to vector<32x16xf32>
    %cst_205 = arith.constant dense<0.000000e+00> : vector<17x16xf32>
    %315 = tpu.matmul %311, %314, %cst_205 {dimension_numbers = #tpu.dot_dimension_numbers<[1], [0], [0], [1], [0, 0, 1, 1], [], []>} : vector<17x32xf32>, vector<32x16xf32>, vector<17x16xf32> -> vector<17x16xf32>
    %c2_206 = arith.constant 2 : index
    %c0_207 = arith.constant 0 : index
    %c0_208 = arith.constant 0 : index
    %316 = vector.load %arg7[%c2_206, %c0_207, %c0_208] : memref<4x32x16xf32, #tpu.memory_space<vmem>>, vector<1x32x16xf32>
    %317 = vector.shape_cast %316 : vector<1x32x16xf32> to vector<32x16xf32>
    %cst_209 = arith.constant dense<0.000000e+00> : vector<17x16xf32>
    %318 = tpu.matmul %311, %317, %cst_209 {dimension_numbers = #tpu.dot_dimension_numbers<[1], [0], [0], [1], [0, 0, 1, 1], [], []>} : vector<17x32xf32>, vector<32x16xf32>, vector<17x16xf32> -> vector<17x16xf32>
    %c2_210 = arith.constant 2 : index
    %c0_211 = arith.constant 0 : index
    %c0_212 = arith.constant 0 : index
    %319 = vector.load %arg8[%c2_210, %c0_211, %c0_212] : memref<4x32x16xf32, #tpu.memory_space<vmem>>, vector<1x32x16xf32>
    %320 = vector.shape_cast %319 : vector<1x32x16xf32> to vector<32x16xf32>
    %cst_213 = arith.constant dense<0.000000e+00> : vector<17x16xf32>
    %321 = tpu.matmul %311, %320, %cst_213 {dimension_numbers = #tpu.dot_dimension_numbers<[1], [0], [0], [1], [0, 0, 1, 1], [], []>} : vector<17x32xf32>, vector<32x16xf32>, vector<17x16xf32> -> vector<17x16xf32>
    %cst_214 = arith.constant dense<0.000000e+00> : vector<17x17xf32>
    %322 = tpu.matmul %315, %318, %cst_214 {dimension_numbers = #tpu.dot_dimension_numbers<[1], [1], [0], [0], [0, 0, 1, 0], [], []>} : vector<17x16xf32>, vector<17x16xf32>, vector<17x17xf32> -> vector<17x17xf32>
    %cst_215 = arith.constant 2.500000e-01 : f32
    %323 = vector.broadcast %cst_215 : f32 to vector<17x17xf32>
    %324 = arith.mulf %322, %323 : vector<17x17xf32>
    %cst_216 = arith.constant dense<0xFF800000> : vector<17xf32>
    %325 = vector.multi_reduction <maximumf>, %324, %cst_216 [1] : vector<17x17xf32> to vector<17xf32>
    %326 = vector.shape_cast %325 : vector<17xf32> to vector<17x1xf32>
    %327 = vector.broadcast %326 : vector<17x1xf32> to vector<17x17xf32>
    %328 = arith.subf %324, %327 : vector<17x17xf32>
    %329 = math.exp %328 : vector<17x17xf32>
    %cst_217 = arith.constant dense<0.000000e+00> : vector<17xf32>
    %330 = vector.multi_reduction <add>, %329, %cst_217 [1] : vector<17x17xf32> to vector<17xf32>
    %331 = vector.shape_cast %330 : vector<17xf32> to vector<17x1xf32>
    %332 = tpu.reciprocal %331 {approx = true} : vector<17x1xf32> -> vector<17x1xf32>
    %333 = vector.broadcast %332 : vector<17x1xf32> to vector<17x17xf32>
    %334 = arith.mulf %329, %333 : vector<17x17xf32>
    %cst_218 = arith.constant dense<0.000000e+00> : vector<17x16xf32>
    %335 = tpu.matmul %334, %321, %cst_218 {dimension_numbers = #tpu.dot_dimension_numbers<[1], [0], [0], [1], [0, 0, 1, 1], [], []>} : vector<17x17xf32>, vector<17x16xf32>, vector<17x16xf32> -> vector<17x16xf32>
    %336 = vector.extract_strided_slice %249 {offsets = [0, 0], sizes = [16, 32], strides = [1, 1]} : vector<32x32xf32> to vector<16x32xf32>
    %cst_219 = arith.constant dense<0.000000e+00> : vector<17x32xf32>
    %337 = tpu.matmul %335, %336, %cst_219 {dimension_numbers = #tpu.dot_dimension_numbers<[1], [0], [0], [1], [0, 0, 1, 1], [], []>} : vector<17x16xf32>, vector<16x32xf32>, vector<17x32xf32> -> vector<17x32xf32>
    %338 = arith.addf %312, %337 : vector<17x32xf32>
    %c3_220 = arith.constant 3 : index
    %c0_221 = arith.constant 0 : index
    %c0_222 = arith.constant 0 : index
    %339 = vector.load %arg6[%c3_220, %c0_221, %c0_222] : memref<4x32x16xf32, #tpu.memory_space<vmem>>, vector<1x32x16xf32>
    %340 = vector.shape_cast %339 : vector<1x32x16xf32> to vector<32x16xf32>
    %cst_223 = arith.constant dense<0.000000e+00> : vector<17x16xf32>
    %341 = tpu.matmul %311, %340, %cst_223 {dimension_numbers = #tpu.dot_dimension_numbers<[1], [0], [0], [1], [0, 0, 1, 1], [], []>} : vector<17x32xf32>, vector<32x16xf32>, vector<17x16xf32> -> vector<17x16xf32>
    %c3_224 = arith.constant 3 : index
    %c0_225 = arith.constant 0 : index
    %c0_226 = arith.constant 0 : index
    %342 = vector.load %arg7[%c3_224, %c0_225, %c0_226] : memref<4x32x16xf32, #tpu.memory_space<vmem>>, vector<1x32x16xf32>
    %343 = vector.shape_cast %342 : vector<1x32x16xf32> to vector<32x16xf32>
    %cst_227 = arith.constant dense<0.000000e+00> : vector<17x16xf32>
    %344 = tpu.matmul %311, %343, %cst_227 {dimension_numbers = #tpu.dot_dimension_numbers<[1], [0], [0], [1], [0, 0, 1, 1], [], []>} : vector<17x32xf32>, vector<32x16xf32>, vector<17x16xf32> -> vector<17x16xf32>
    %c3_228 = arith.constant 3 : index
    %c0_229 = arith.constant 0 : index
    %c0_230 = arith.constant 0 : index
    %345 = vector.load %arg8[%c3_228, %c0_229, %c0_230] : memref<4x32x16xf32, #tpu.memory_space<vmem>>, vector<1x32x16xf32>
    %346 = vector.shape_cast %345 : vector<1x32x16xf32> to vector<32x16xf32>
    %cst_231 = arith.constant dense<0.000000e+00> : vector<17x16xf32>
    %347 = tpu.matmul %311, %346, %cst_231 {dimension_numbers = #tpu.dot_dimension_numbers<[1], [0], [0], [1], [0, 0, 1, 1], [], []>} : vector<17x32xf32>, vector<32x16xf32>, vector<17x16xf32> -> vector<17x16xf32>
    %cst_232 = arith.constant dense<0.000000e+00> : vector<17x17xf32>
    %348 = tpu.matmul %341, %344, %cst_232 {dimension_numbers = #tpu.dot_dimension_numbers<[1], [1], [0], [0], [0, 0, 1, 0], [], []>} : vector<17x16xf32>, vector<17x16xf32>, vector<17x17xf32> -> vector<17x17xf32>
    %cst_233 = arith.constant 2.500000e-01 : f32
    %349 = vector.broadcast %cst_233 : f32 to vector<17x17xf32>
    %350 = arith.mulf %348, %349 : vector<17x17xf32>
    %cst_234 = arith.constant dense<0xFF800000> : vector<17xf32>
    %351 = vector.multi_reduction <maximumf>, %350, %cst_234 [1] : vector<17x17xf32> to vector<17xf32>
    %352 = vector.shape_cast %351 : vector<17xf32> to vector<17x1xf32>
    %353 = vector.broadcast %352 : vector<17x1xf32> to vector<17x17xf32>
    %354 = arith.subf %350, %353 : vector<17x17xf32>
    %355 = math.exp %354 : vector<17x17xf32>
    %cst_235 = arith.constant dense<0.000000e+00> : vector<17xf32>
    %356 = vector.multi_reduction <add>, %355, %cst_235 [1] : vector<17x17xf32> to vector<17xf32>
    %357 = vector.shape_cast %356 : vector<17xf32> to vector<17x1xf32>
    %358 = tpu.reciprocal %357 {approx = true} : vector<17x1xf32> -> vector<17x1xf32>
    %359 = vector.broadcast %358 : vector<17x1xf32> to vector<17x17xf32>
    %360 = arith.mulf %355, %359 : vector<17x17xf32>
    %cst_236 = arith.constant dense<0.000000e+00> : vector<17x16xf32>
    %361 = tpu.matmul %360, %347, %cst_236 {dimension_numbers = #tpu.dot_dimension_numbers<[1], [0], [0], [1], [0, 0, 1, 1], [], []>} : vector<17x17xf32>, vector<17x16xf32>, vector<17x16xf32> -> vector<17x16xf32>
    %362 = vector.extract_strided_slice %249 {offsets = [16, 0], sizes = [16, 32], strides = [1, 1]} : vector<32x32xf32> to vector<16x32xf32>
    %cst_237 = arith.constant dense<0.000000e+00> : vector<17x32xf32>
    %363 = tpu.matmul %361, %362, %cst_237 {dimension_numbers = #tpu.dot_dimension_numbers<[1], [0], [0], [1], [0, 0, 1, 1], [], []>} : vector<17x16xf32>, vector<16x32xf32>, vector<17x32xf32> -> vector<17x32xf32>
    %364 = arith.addf %338, %363 : vector<17x32xf32>
    %365 = vector.extract_strided_slice %221 {offsets = [24, 0], sizes = [17, 32], strides = [1, 1]} : vector<48x32xf32> to vector<17x32xf32>
    %366 = arith.addf %365, %364 : vector<17x32xf32>
    %367 = vector.broadcast %251 : vector<1x32xf32> to vector<17x32xf32>
    %368 = arith.addf %366, %367 : vector<17x32xf32>
    %c24_238 = arith.constant 24 : index
    %c0_239 = arith.constant 0 : index
    %369 = vector.load %arg22[%c24_238, %c0_239] : memref<48x32xf32, #tpu.memory_space<vmem>>, vector<17x32xf32>
    tpu.vector_store %arg22[%c24_238, %c0_239], %368 {strides = array<i32>} : memref<48x32xf32, #tpu.memory_space<vmem>>, vector<17x32xf32>,
    %c0_240 = arith.constant 0 : index
    %c0_241 = arith.constant 0 : index
    %370 = vector.load %arg22[%c0_240, %c0_241] : memref<48x32xf32, #tpu.memory_space<vmem>>, vector<48x32xf32>
    %c1_242 = arith.constant 1 : index
    %c0_243 = arith.constant 0 : index
    %c0_244 = arith.constant 0 : index
    %371 = vector.load %arg11[%c1_242, %c0_243, %c0_244] : memref<2x1x32xf32, #tpu.memory_space<vmem>>, vector<1x1x32xf32>
    %372 = vector.shape_cast %371 : vector<1x1x32xf32> to vector<1x32xf32>
    %c1_245 = arith.constant 1 : index
    %c0_246 = arith.constant 0 : index
    %c0_247 = arith.constant 0 : index
    %373 = vector.load %arg12[%c1_245, %c0_246, %c0_247] : memref<2x1x32xf32, #tpu.memory_space<vmem>>, vector<1x1x32xf32>
    %374 = vector.shape_cast %373 : vector<1x1x32xf32> to vector<1x32xf32>
    %cst_248 = arith.constant dense<0.000000e+00> : vector<48xf32>
    %375 = vector.multi_reduction <add>, %370, %cst_248 [1] : vector<48x32xf32> to vector<48xf32>
    %376 = vector.shape_cast %375 : vector<48xf32> to vector<48x1xf32>
    %cst_249 = arith.constant 3.200000e+01 : f32
    %377 = vector.broadcast %cst_249 : f32 to vector<48x1xf32>
    %378 = arith.divf %376, %377 : vector<48x1xf32>
    %379 = vector.broadcast %378 : vector<48x1xf32> to vector<48x32xf32>
    %380 = arith.subf %370, %379 : vector<48x32xf32>
    %381 = arith.mulf %380, %380 : vector<48x32xf32>
    %cst_250 = arith.constant dense<0.000000e+00> : vector<48xf32>
    %382 = vector.multi_reduction <add>, %381, %cst_250 [1] : vector<48x32xf32> to vector<48xf32>
    %383 = vector.shape_cast %382 : vector<48xf32> to vector<48x1xf32>
    %cst_251 = arith.constant 3.200000e+01 : f32
    %384 = vector.broadcast %cst_251 : f32 to vector<48x1xf32>
    %385 = arith.divf %383, %384 : vector<48x1xf32>
    %386 = vector.broadcast %378 : vector<48x1xf32> to vector<48x32xf32>
    %387 = arith.subf %370, %386 : vector<48x32xf32>
    %cst_252 = arith.constant 9.99999974E-6 : f32
    %388 = vector.broadcast %cst_252 : f32 to vector<48x1xf32>
    %389 = arith.addf %385, %388 : vector<48x1xf32>
    %390 = math.rsqrt %389 : vector<48x1xf32>
    %391 = vector.broadcast %390 : vector<48x1xf32> to vector<48x32xf32>
    %392 = arith.mulf %387, %391 : vector<48x32xf32>
    %393 = vector.broadcast %372 : vector<1x32xf32> to vector<48x32xf32>
    %394 = arith.mulf %392, %393 : vector<48x32xf32>
    %395 = vector.broadcast %374 : vector<1x32xf32> to vector<48x32xf32>
    %396 = arith.addf %394, %395 : vector<48x32xf32>
    %c1_253 = arith.constant 1 : index
    %c0_254 = arith.constant 0 : index
    %c0_255 = arith.constant 0 : index
    %397 = vector.load %arg13[%c1_253, %c0_254, %c0_255] : memref<2x32x64xf32, #tpu.memory_space<vmem>>, vector<1x32x64xf32>
    %398 = vector.shape_cast %397 : vector<1x32x64xf32> to vector<32x64xf32>
    %cst_256 = arith.constant dense<0.000000e+00> : vector<48x64xf32>
    %399 = tpu.matmul %396, %398, %cst_256 {dimension_numbers = #tpu.dot_dimension_numbers<[1], [0], [0], [1], [0, 0, 1, 1], [], []>} : vector<48x32xf32>, vector<32x64xf32>, vector<48x64xf32> -> vector<48x64xf32>
    %c1_257 = arith.constant 1 : index
    %c0_258 = arith.constant 0 : index
    %c0_259 = arith.constant 0 : index
    %400 = vector.load %arg14[%c1_257, %c0_258, %c0_259] : memref<2x1x64xf32, #tpu.memory_space<vmem>>, vector<1x1x64xf32>
    %401 = vector.shape_cast %400 : vector<1x1x64xf32> to vector<1x64xf32>
    %402 = vector.broadcast %401 : vector<1x64xf32> to vector<48x64xf32>
    %403 = arith.addf %399, %402 : vector<48x64xf32>
    %cst_260 = arith.constant 5.000000e-01 : f32
    %404 = vector.broadcast %cst_260 : f32 to vector<48x64xf32>
    %405 = arith.mulf %404, %403 : vector<48x64xf32>
    %cst_261 = arith.constant 4.471500e-02 : f32
    %406 = vector.broadcast %cst_261 : f32 to vector<48x64xf32>
    %407 = arith.mulf %406, %403 : vector<48x64xf32>
    %408 = arith.mulf %407, %403 : vector<48x64xf32>
    %409 = arith.mulf %408, %403 : vector<48x64xf32>
    %410 = arith.addf %403, %409 : vector<48x64xf32>
    %cst_262 = arith.constant 0.797884583 : f32
    %411 = vector.broadcast %cst_262 : f32 to vector<48x64xf32>
    %412 = arith.mulf %411, %410 : vector<48x64xf32>
    %413 = math.tanh %412 : vector<48x64xf32>
    %cst_263 = arith.constant 1.000000e+00 : f32
    %414 = vector.broadcast %cst_263 : f32 to vector<48x64xf32>
    %415 = arith.addf %414, %413 : vector<48x64xf32>
    %416 = arith.mulf %405, %415 : vector<48x64xf32>
    %c1_264 = arith.constant 1 : index
    %c0_265 = arith.constant 0 : index
    %c0_266 = arith.constant 0 : index
    %417 = vector.load %arg15[%c1_264, %c0_265, %c0_266] : memref<2x64x32xf32, #tpu.memory_space<vmem>>, vector<1x64x32xf32>
    %418 = vector.shape_cast %417 : vector<1x64x32xf32> to vector<64x32xf32>
    %cst_267 = arith.constant dense<0.000000e+00> : vector<48x32xf32>
    %419 = tpu.matmul %416, %418, %cst_267 {dimension_numbers = #tpu.dot_dimension_numbers<[1], [0], [0], [1], [0, 0, 1, 1], [], []>} : vector<48x64xf32>, vector<64x32xf32>, vector<48x32xf32> -> vector<48x32xf32>
    %c1_268 = arith.constant 1 : index
    %c0_269 = arith.constant 0 : index
    %c0_270 = arith.constant 0 : index
    %420 = vector.load %arg16[%c1_268, %c0_269, %c0_270] : memref<2x1x32xf32, #tpu.memory_space<vmem>>, vector<1x1x32xf32>
    %421 = vector.shape_cast %420 : vector<1x1x32xf32> to vector<1x32xf32>
    %422 = vector.broadcast %421 : vector<1x32xf32> to vector<48x32xf32>
    %423 = arith.addf %419, %422 : vector<48x32xf32>
    %424 = arith.addf %370, %423 : vector<48x32xf32>
    %c0_271 = arith.constant 0 : index
    %c0_272 = arith.constant 0 : index
    %425 = vector.load %arg22[%c0_271, %c0_272] : memref<48x32xf32, #tpu.memory_space<vmem>>, vector<48x32xf32>
    tpu.vector_store %arg22[%c0_271, %c0_272], %424 {strides = array<i32>} : memref<48x32xf32, #tpu.memory_space<vmem>>, vector<48x32xf32>,
    %c0_273 = arith.constant 0 : index
    %c0_274 = arith.constant 0 : index
    %426 = vector.load %arg22[%c0_273, %c0_274] : memref<48x32xf32, #tpu.memory_space<vmem>>, vector<48x32xf32>
    %427 = vector.extract_strided_slice %426 {offsets = [16, 0], sizes = [1, 32], strides = [1, 1]} : vector<48x32xf32> to vector<1x32xf32>
    %428 = vector.extract_strided_slice %426 {offsets = [40, 0], sizes = [1, 32], strides = [1, 1]} : vector<48x32xf32> to vector<1x32xf32>
    %429 = tpu.concatenate %427, %428 in 0 : vector<1x32xf32>, vector<1x32xf32> -> vector<2x32xf32>
    %c0_275 = arith.constant 0 : index
    %c0_276 = arith.constant 0 : index
    %430 = vector.load %arg17[%c0_275, %c0_276] : memref<1x32xf32, #tpu.memory_space<vmem>>, vector<1x32xf32>
    %c0_277 = arith.constant 0 : index
    %c0_278 = arith.constant 0 : index
    %431 = vector.load %arg18[%c0_277, %c0_278] : memref<1x32xf32, #tpu.memory_space<vmem>>, vector<1x32xf32>
    %cst_279 = arith.constant dense<0.000000e+00> : vector<2xf32>
    %432 = vector.multi_reduction <add>, %429, %cst_279 [1] : vector<2x32xf32> to vector<2xf32>
    %433 = vector.shape_cast %432 : vector<2xf32> to vector<2x1xf32>
    %cst_280 = arith.constant 3.200000e+01 : f32
    %434 = vector.broadcast %cst_280 : f32 to vector<2x1xf32>
    %435 = arith.divf %433, %434 : vector<2x1xf32>
    %436 = vector.broadcast %435 : vector<2x1xf32> to vector<2x32xf32>
    %437 = arith.subf %429, %436 : vector<2x32xf32>
    %438 = arith.mulf %437, %437 : vector<2x32xf32>
    %cst_281 = arith.constant dense<0.000000e+00> : vector<2xf32>
    %439 = vector.multi_reduction <add>, %438, %cst_281 [1] : vector<2x32xf32> to vector<2xf32>
    %440 = vector.shape_cast %439 : vector<2xf32> to vector<2x1xf32>
    %cst_282 = arith.constant 3.200000e+01 : f32
    %441 = vector.broadcast %cst_282 : f32 to vector<2x1xf32>
    %442 = arith.divf %440, %441 : vector<2x1xf32>
    %443 = vector.broadcast %435 : vector<2x1xf32> to vector<2x32xf32>
    %444 = arith.subf %429, %443 : vector<2x32xf32>
    %cst_283 = arith.constant 9.99999974E-6 : f32
    %445 = vector.broadcast %cst_283 : f32 to vector<2x1xf32>
    %446 = arith.addf %442, %445 : vector<2x1xf32>
    %447 = math.rsqrt %446 : vector<2x1xf32>
    %448 = vector.broadcast %447 : vector<2x1xf32> to vector<2x32xf32>
    %449 = arith.mulf %444, %448 : vector<2x32xf32>
    %450 = vector.broadcast %430 : vector<1x32xf32> to vector<2x32xf32>
    %451 = arith.mulf %449, %450 : vector<2x32xf32>
    %452 = vector.broadcast %431 : vector<1x32xf32> to vector<2x32xf32>
    %453 = arith.addf %451, %452 : vector<2x32xf32>
    %c0_284 = arith.constant 0 : index
    %c0_285 = arith.constant 0 : index
    %454 = vector.load %arg19[%c0_284, %c0_285] : memref<32x10xf32, #tpu.memory_space<vmem>>, vector<32x10xf32>
    %cst_286 = arith.constant dense<0.000000e+00> : vector<2x10xf32>
    %455 = tpu.matmul %453, %454, %cst_286 {dimension_numbers = #tpu.dot_dimension_numbers<[1], [0], [0], [1], [0, 0, 1, 1], [], []>} : vector<2x32xf32>, vector<32x10xf32>, vector<2x10xf32> -> vector<2x10xf32>
    %c0_287 = arith.constant 0 : index
    %c0_288 = arith.constant 0 : index
    %456 = vector.load %arg20[%c0_287, %c0_288] : memref<1x10xf32, #tpu.memory_space<vmem>>, vector<1x10xf32>
    %457 = vector.broadcast %456 : vector<1x10xf32> to vector<2x10xf32>
    %458 = arith.addf %455, %457 : vector<2x10xf32>
    %c0_289 = arith.constant 0 : index
    %c0_290 = arith.constant 0 : index
    %459 = vector.load %arg21[%c0_289, %c0_290] : memref<2x10xf32, #tpu.memory_space<vmem>>, vector<2x10xf32>
    tpu.vector_store %arg21[%c0_289, %c0_290], %458 {strides = array<i32>} : memref<2x10xf32, #tpu.memory_space<vmem>>, vector<2x10xf32>,
    return
  }
}

</mosaic_0001>

<llo_original>
// kernel: vit_forward.1
$region0: #{vit_forward.1}
  #allocation0 [shape = 'u32[]', space=smem, size = 0x4, offset = 0x4, fixed_abs, tag = 'smem constant byte address 0x4 - core index']
  #allocation1 [shape = 'u32[144,128]{1,0:T(1,128)}', space=vmem, size = 0x12000, scoped, tag = 'internal scratch']
  #allocation2 [shape = 'f32[48,32]{1,0:T(8,128)}', space=vmem, size = 0x6000, scoped, tag = 'scratch operand']
  %s0 = inlined_call_operand.vmem [shape: f32[32,48], index: 0, kind: input, shape index: {}]
  %s1 = inlined_call_operand.vmem [shape: f32[48,32], index: 1, kind: input, shape index: {}]
  %s2 = inlined_call_operand.vmem [shape: f32[48,32], index: 2, kind: input, shape index: {}]
  %s3 = inlined_call_operand.vmem [shape: f32[1,32], index: 3, kind: input, shape index: {}]
  %s4 = inlined_call_operand.vmem [shape: f32[2,1,32], index: 4, kind: input, shape index: {}]
  %s5 = inlined_call_operand.vmem [shape: f32[2,1,32], index: 5, kind: input, shape index: {}]
  %s6 = inlined_call_operand.vmem [shape: f32[4,32,16], index: 6, kind: input, shape index: {}]
  %s7 = inlined_call_operand.vmem [shape: f32[4,32,16], index: 7, kind: input, shape index: {}]
  %s8 = inlined_call_operand.vmem [shape: f32[4,32,16], index: 8, kind: input, shape index: {}]
  %s9 = inlined_call_operand.vmem [shape: f32[2,32,32], index: 9, kind: input, shape index: {}]
  %s10 = inlined_call_operand.vmem [shape: f32[2,1,32], index: 10, kind: input, shape index: {}]
  %s11 = inlined_call_operand.vmem [shape: f32[2,1,32], index: 11, kind: input, shape index: {}]
  %s12 = inlined_call_operand.vmem [shape: f32[2,1,32], index: 12, kind: input, shape index: {}]
  %s13 = inlined_call_operand.vmem [shape: f32[2,32,64], index: 13, kind: input, shape index: {}]
  %s14 = inlined_call_operand.vmem [shape: f32[2,1,64], index: 14, kind: input, shape index: {}]
  %s15 = inlined_call_operand.vmem [shape: f32[2,64,32], index: 15, kind: input, shape index: {}]
  %s16 = inlined_call_operand.vmem [shape: f32[2,1,32], index: 16, kind: input, shape index: {}]
  %s17 = inlined_call_operand.vmem [shape: f32[1,32], index: 17, kind: input, shape index: {}]
  %s18 = inlined_call_operand.vmem [shape: f32[1,32], index: 18, kind: input, shape index: {}]
  %s19 = inlined_call_operand.vmem [shape: f32[32,10], index: 19, kind: input, shape index: {}]
  %s20 = inlined_call_operand.vmem [shape: f32[1,10], index: 20, kind: input, shape index: {}]
  %s21 = inlined_call_operand.hbm [shape: f32[2,10], index: 21, kind: output, shape index: {}]
  %s22 = sld [smem:[#allocation0]]
  $region94: #{vit_forward.1} parent=0
    _
  %s24 = ssub.s32 1, %s22
  %s25 = scalar_select 0, %s24, %s22
  $region1: #{vit_forward.1} parent=0
    #allocation3 [shape = 'u8[1024]{0}', space=vmem, size = 0x400, scoped, tag = 'output window, operand 0, single buffered']
    #allocation4 [shape = 's32[1]{0}', space=sflag, size = 0x4, scoped, tag = 'scoped memory for vit_forward.1']
    %26 = vsyncpa [#allocation4], 0
    // Predicated region
    $region2: #{vit_forward.1} parent=1 // pred_check
      _
    $region3: #{vit_forward.1} parent=1 // pred_check_branch
      %28 = sbr.rel (0) target = $region5
    $region4: #{vit_forward.1} parent=1 // pred_region
      _
    $region5: #{vit_forward.1} parent=1 // pred_fallthru
      _
    // Predicated region
    $region6: #{vit_forward.1} parent=1 // pred_check
      _
    $region7: #{vit_forward.1} parent=1 // pred_check_branch
      %30 = sbr.rel (0) target = $region9
    $region8: #{vit_forward.1} parent=1 // pred_region
      _
    $region9: #{vit_forward.1} parent=1 // pred_fallthru
      _
    // Predicated region
    $region10: #{vit_forward.1} parent=1 // pred_check
      _
    $region11: #{vit_forward.1} parent=1 // pred_check_branch
      %32 = sbr.rel (0) target = $region13
    $region12: #{vit_forward.1} parent=1 // pred_region
      _
    $region13: #{vit_forward.1} parent=1 // pred_fallthru
      _
    // Predicated region
    $region14: #{vit_forward.1} parent=1 // pred_check
      _
    $region15: #{vit_forward.1} parent=1 // pred_check_branch
      %34 = sbr.rel (0) target = $region17
    $region16: #{vit_forward.1} parent=1 // pred_region
      _
    $region17: #{vit_forward.1} parent=1 // pred_fallthru
      _
    // Predicated region
    $region18: #{vit_forward.1} parent=1 // pred_check
      _
    $region19: #{vit_forward.1} parent=1 // pred_check_branch
      %36 = sbr.rel (0) target = $region21
    $region20: #{vit_forward.1} parent=1 // pred_region
      _
    $region21: #{vit_forward.1} parent=1 // pred_fallthru
      _
    // Predicated region
    $region22: #{vit_forward.1} parent=1 // pred_check
      _
    $region23: #{vit_forward.1} parent=1 // pred_check_branch
      %38 = sbr.rel (0) target = $region25
    $region24: #{vit_forward.1} parent=1 // pred_region
      _
    $region25: #{vit_forward.1} parent=1 // pred_fallthru
      _
    // Predicated region
    $region26: #{vit_forward.1} parent=1 // pred_check
      _
    $region27: #{vit_forward.1} parent=1 // pred_check_branch
      %40 = sbr.rel (0) target = $region29
    $region28: #{vit_forward.1} parent=1 // pred_region
      _
    $region29: #{vit_forward.1} parent=1 // pred_fallthru
      _
    // Predicated region
    $region30: #{vit_forward.1} parent=1 // pred_check
      _
    $region31: #{vit_forward.1} parent=1 // pred_check_branch
      %42 = sbr.rel (0) target = $region33
    $region32: #{vit_forward.1} parent=1 // pred_region
      _
    $region33: #{vit_forward.1} parent=1 // pred_fallthru
      _
    // Predicated region
    $region34: #{vit_forward.1} parent=1 // pred_check
      _
    $region35: #{vit_forward.1} parent=1 // pred_check_branch
      %44 = sbr.rel (0) target = $region37
    $region36: #{vit_forward.1} parent=1 // pred_region
      _
    $region37: #{vit_forward.1} parent=1 // pred_fallthru
      _
    // Predicated region
    $region38: #{vit_forward.1} parent=1 // pred_check
      _
    $region39: #{vit_forward.1} parent=1 // pred_check_branch
      %46 = sbr.rel (0) target = $region41
    $region40: #{vit_forward.1} parent=1 // pred_region
      _
    $region41: #{vit_forward.1} parent=1 // pred_fallthru
      _
    // Predicated region
    $region42: #{vit_forward.1} parent=1 // pred_check
      _
    $region43: #{vit_forward.1} parent=1 // pred_check_branch
      %48 = sbr.rel (0) target = $region45
    $region44: #{vit_forward.1} parent=1 // pred_region
      _
    $region45: #{vit_forward.1} parent=1 // pred_fallthru
      _
    // Predicated region
    $region46: #{vit_forward.1} parent=1 // pred_check
      _
    $region47: #{vit_forward.1} parent=1 // pred_check_branch
      %50 = sbr.rel (0) target = $region49
    $region48: #{vit_forward.1} parent=1 // pred_region
      _
    $region49: #{vit_forward.1} parent=1 // pred_fallthru
      _
    // Predicated region
    $region50: #{vit_forward.1} parent=1 // pred_check
      _
    $region51: #{vit_forward.1} parent=1 // pred_check_branch
      %52 = sbr.rel (0) target = $region53
    $region52: #{vit_forward.1} parent=1 // pred_region
      _
    $region53: #{vit_forward.1} parent=1 // pred_fallthru
      _
    // Predicated region
    $region54: #{vit_forward.1} parent=1 // pred_check
      _
    $region55: #{vit_forward.1} parent=1 // pred_check_branch
      %54 = sbr.rel (0) target = $region57
    $region56: #{vit_forward.1} parent=1 // pred_region
      _
    $region57: #{vit_forward.1} parent=1 // pred_fallthru
      _
    // Predicated region
    $region58: #{vit_forward.1} parent=1 // pred_check
      _
    $region59: #{vit_forward.1} parent=1 // pred_check_branch
      %56 = sbr.rel (0) target = $region61
    $region60: #{vit_forward.1} parent=1 // pred_region
      _
    $region61: #{vit_forward.1} parent=1 // pred_fallthru
      _
    // Predicated region
    $region62: #{vit_forward.1} parent=1 // pred_check
      _
    $region63: #{vit_forward.1} parent=1 // pred_check_branch
      %58 = sbr.rel (0) target = $region65
    $region64: #{vit_forward.1} parent=1 // pred_region
      _
    $region65: #{vit_forward.1} parent=1 // pred_fallthru
      _
    // Predicated region
    $region66: #{vit_forward.1} parent=1 // pred_check
      _
    $region67: #{vit_forward.1} parent=1 // pred_check_branch
      %60 = sbr.rel (0) target = $region69
    $region68: #{vit_forward.1} parent=1 // pred_region
      _
    $region69: #{vit_forward.1} parent=1 // pred_fallthru
      _
    // Predicated region
    $region70: #{vit_forward.1} parent=1 // pred_check
      _
    $region71: #{vit_forward.1} parent=1 // pred_check_branch
      %62 = sbr.rel (0) target = $region73
    $region72: #{vit_forward.1} parent=1 // pred_region
      _
    $region73: #{vit_forward.1} parent=1 // pred_fallthru
      _
    // Predicated region
    $region74: #{vit_forward.1} parent=1 // pred_check
      _
    $region75: #{vit_forward.1} parent=1 // pred_check_branch
      %64 = sbr.rel (0) target = $region77
    $region76: #{vit_forward.1} parent=1 // pred_region
      _
    $region77: #{vit_forward.1} parent=1 // pred_fallthru
      _
    // Predicated region
    $region78: #{vit_forward.1} parent=1 // pred_check
      _
    $region79: #{vit_forward.1} parent=1 // pred_check_branch
      %66 = sbr.rel (0) target = $region81
    $region80: #{vit_forward.1} parent=1 // pred_region
      _
    $region81: #{vit_forward.1} parent=1 // pred_fallthru
      _
    // Predicated region
    $region82: #{vit_forward.1} parent=1 // pred_check
      _
    $region83: #{vit_forward.1} parent=1 // pred_check_branch
      %68 = sbr.rel (0) target = $region85
    $region84: #{vit_forward.1} parent=1 // pred_region
      _
    $region85: #{vit_forward.1} parent=1 // pred_fallthru
      _
    %v69 = vld [vmem:[%s0] sm:$0xff]
    %v70 = vld [vmem:[%s0 + $0x8] sm:$0xff]
    %v71 = vld [vmem:[%s0 + $0x10] sm:$0xff]
    %v72 = vld [vmem:[%s0 + $0x18] sm:$0xff]
    %v73 = vld [vmem:[%s2] sm:$0xff]
    %v74 = vld [vmem:[%s2 + $0x8] sm:$0xff]
    %v75 = vld [vmem:[%s2 + $0x10] sm:$0xff]
    %v76 = vld [vmem:[%s2 + $0x18] sm:$0xff]
    %v77 = vld [vmem:[%s2 + $0x20] sm:$0xff]
    %v78 = vld [vmem:[%s2 + $0x28] sm:$0xff]
    %v79 = vld [vmem:[%s3] sm:$0x1]
    %v81 = vlaneseq
    %v82 = vshrl.u32 %v81, 7
    %v83 = vsub.s32 0, %v82
    %v84 = vrot.slane %v79, %v83
    %vm86 = vcmask 392192
    %v88 = vsel %vm86, %v69, 0
    %v91 = vsel %vm86, %v70, 0
    %v94 = vsel %vm86, %v71, 0
    %v97 = vsel %vm86, %v72, 0
    %99 = vmatprep.subr.mxu0 0.0
    %100 = vmatpush1.msra.mxu0 %v73
    %101 = vmatprep.subr.mxu0 0.0
    %102 = vmatpush1.msra.mxu0 %v74
    %103 = vmatprep.subr.mxu0 0.0
    %104 = vmatpush1.msra.mxu0 %v75
    %105 = vmatprep.subr.mxu0 0.0
    %106 = vmatpush1.msra.mxu0 %v76
    %107 = vmatprep.subr.mxu0 0.0
    %108 = vmatpush1.msra.mxu0 %v77
    %109 = vmatprep.subr.mxu0 0.0
    %110 = vmatpush1.msra.mxu0 %v78
    %111 = vmatprep.subr.mxu0 0.0
    %112 = vmatpush1.msra.mxu0 0.0
    %113 = vmatprep.subr.mxu0 0.0
    %114 = vmatpush1.msra.mxu0 0.0
    %115 = vmatprep.subr.mxu0 0.0
    %116 = vmatpush1.msra.mxu0 0.0
    %117 = vmatprep.subr.mxu0 0.0
    %118 = vmatpush1.msra.mxu0 0.0
    %119 = vmatprep.subr.mxu0 0.0
    %120 = vmatpush1.msra.mxu0 0.0
    %121 = vmatprep.subr.mxu0 0.0
    %122 = vmatpush1.msra.mxu0 0.0
    %123 = vmatprep.subr.mxu0 0.0
    %124 = vmatpush1.msra.mxu0 0.0
    %125 = vmatprep.subr.mxu0 0.0
    %126 = vmatpush1.msra.mxu0 0.0
    %127 = vmatprep.subr.mxu0 0.0
    %128 = vmatpush1.msra.mxu0 0.0
    %129 = vmatprep.subr.mxu0 0.0
    %130 = vmatpush1.msra.mxu0 0.0
    %131 = vmatprep.subr.mxu0 0.0
    %132 = vmatpush1.msra.mxu0 0.0
    %133 = vmatprep.subr.mxu0 0.0
    %134 = vmatpush1.msra.mxu0 0.0
    %135 = vmatprep.subr.mxu0 0.0
    %136 = vmatpush1.msra.mxu0 0.0
    %137 = vmatprep.subr.mxu0 0.0
    %138 = vmatpush1.msra.mxu0 0.0
    %139 = vmatprep.subr.mxu0 0.0
    %140 = vmatpush1.msra.mxu0 0.0
    %141 = vmatprep.subr.mxu0 0.0
    %142 = vmatpush1.msra.mxu0 0.0
    %143 = vmatprep.subr.mxu0 0.0
    %144 = vmatpush1.msra.mxu0 0.0
    %145 = vmatprep.subr.mxu0 0.0
    %146 = vmatpush1.msra.mxu0 0.0
    %147 = vmatprep.subr.mxu0 0.0
    %148 = vmatpush1.msra.mxu0 0.0
    %149 = vmatprep.subr.mxu0 0.0
    %150 = vmatpush1.msra.mxu0 0.0
    %151 = vmatprep.subr.mxu0 0.0
    %152 = vmatpush1.msra.mxu0 0.0
    %153 = vmatprep.subr.mxu0 0.0
    %154 = vmatpush1.msra.mxu0 0.0
    %155 = vmatprep.subr.mxu0 0.0
    %156 = vmatpush1.msra.mxu0 0.0
    %157 = vmatprep.subr.mxu0 0.0
    %158 = vmatpush1.msra.mxu0 0.0
    %159 = vmatprep.subr.mxu0 0.0
    %160 = vmatpush1.msra.mxu0 0.0
    %161 = vmatprep.subr.mxu0 0.0
    %162 = vmatpush1.msra.mxu0 0.0
    %163 = vmatprep.mubr.f32.mxu0 0.0
    %164 = vmatmul.mubr.f32.gmra.mrb[0].mxu0 %v88
    %v165 = vpop.f32.mrb[0].mxu0
    %v166 = vadd.f32 %v84, %v165
    %v167 = vpop.f32.mrb[0].mxu0
    %168 = vmatprep.mubr.f32.mxu0 0.0
    %169 = vmatmul.mubr.f32.gmra.mrb[0].mxu0 %v91
    %v170 = vpop.f32.mrb[0].mxu0
    %v171 = vadd.f32 %v84, %v170
    %v172 = vpop.f32.mrb[0].mxu0
    %173 = vmatprep.mubr.f32.mxu0 0.0
    %174 = vmatmul.mubr.f32.gmra.mrb[0].mxu0 %v94
    %v175 = vpop.f32.mrb[0].mxu0
    %v176 = vadd.f32 %v84, %v175
    %v177 = vpop.f32.mrb[0].mxu0
    %178 = vmatprep.mubr.f32.mxu0 0.0
    %179 = vmatmul.mubr.f32.gmra.mrb[0].mxu0 %v97
    %v180 = vpop.f32.mrb[0].mxu0
    %v181 = vadd.f32 %v84, %v180
    %v182 = vpop.f32.mrb[0].mxu0
    %183 = vdwg.mxu0
    %v184 = vld [vmem:[%s1] sm:$0xff]
    %v185 = vld [vmem:[%s1 + $0x8] sm:$0xff]
    %v186 = vld [vmem:[%s1 + $0x10] sm:$0xff]
    %v187 = vld [vmem:[%s1 + $0x18] sm:$0xff]
    %v188 = vld [vmem:[%s1 + $0x20] sm:$0xff]
    %v189 = vld [vmem:[%s1 + $0x28] sm:$0xff]
    %vm190 = vcmask 261120
    %191 = vst.msk [vmem:[#allocation2] sm:$0xff] %vm190, %v184
    %192 = vst.msk [vmem:[#allocation2 + $0x8] sm:$0xff] %vm190, %v185
    %193 = vst.msk [vmem:[#allocation2 + $0x10] sm:$0xff] %vm190, %v186
    %194 = vst.msk [vmem:[#allocation2 + $0x18] sm:$0xff] %vm190, %v187
    %195 = vst.msk [vmem:[#allocation2 + $0x20] sm:$0xff] %vm190, %v188
    %196 = vst.msk [vmem:[#allocation2 + $0x28] sm:$0xff] %vm190, %v189
    %v197 = vld [vmem:[#allocation2] sm:$0xff]
    %v198 = vld [vmem:[#allocation2 + $0x8] sm:$0xff]
    %v199 = vadd.f32 %v197, %v166
    %v200 = vadd.f32 %v198, %v171
    %201 = vst.msk [vmem:[#allocation2] sm:$0xff] %vm190, %v199
    %202 = vst.msk [vmem:[#allocation2 + $0x8] sm:$0xff] %vm190, %v200
    %v203 = vld [vmem:[#allocation2 + $0x18] sm:$0xff]
    %v204 = vld [vmem:[#allocation2 + $0x20] sm:$0xff]
    %v205 = vadd.f32 %v203, %v176
    %v206 = vadd.f32 %v204, %v181
    %207 = vst.msk [vmem:[#allocation2 + $0x18] sm:$0xff] %vm190, %v205
    %208 = vst.msk [vmem:[#allocation2 + $0x20] sm:$0xff] %vm190, %v206
    %v209 = vld [vmem:[#allocation2] sm:$0xff]
    %v210 = vld [vmem:[#allocation2 + $0x8] sm:$0xff]
    %v211 = vld [vmem:[#allocation2 + $0x10] sm:$0xff]
    %v212 = vld [vmem:[#allocation2 + $0x18] sm:$0xff]
    %v213 = vld [vmem:[#allocation2 + $0x20] sm:$0xff]
    %v214 = vld [vmem:[#allocation2 + $0x28] sm:$0xff]
    %v215 = vld [vmem:[%s4] sm:$0x1]
    %v216 = vld [vmem:[%s5] sm:$0x1]
    %v217 = vsel %vm190, %v209, 0.0
    %218 = vadd.xlane.f32.xlu0 %v217
    %v219 = vpop.xlane.xlu0 %218
    %v220 = vsel %vm190, %v210, 0.0
    %221 = vadd.xlane.f32.xlu0 %v220
    %v222 = vpop.xlane.xlu0 %221
    %v223 = vsel %vm190, %v211, 0.0
    %224 = vadd.xlane.f32.xlu0 %v223
    %v225 = vpop.xlane.xlu0 %224
    %v226 = vsel %vm190, %v212, 0.0
    %227 = vadd.xlane.f32.xlu0 %v226
    %v228 = vpop.xlane.xlu0 %227
    %v229 = vsel %vm190, %v213, 0.0
    %230 = vadd.xlane.f32.xlu0 %v229
    %v231 = vpop.xlane.xlu0 %230
    %v232 = vsel %vm190, %v214, 0.0
    %233 = vadd.xlane.f32.xlu0 %v232
    %v234 = vpop.xlane.xlu0 %233
    %v235 = vrcp.pop 32.0
    %v236 = vmul.f32 %v219, %v235
    %v237 = vmul.f32 %v222, %v235
    %v238 = vmul.f32 %v225, %v235
    %v239 = vmul.f32 %v228, %v235
    %v240 = vmul.f32 %v231, %v235
    %v241 = vmul.f32 %v234, %v235
    %v242 = vsub.f32 %v209, %v236
    %v243 = vsub.f32 %v210, %v237
    %v244 = vsub.f32 %v211, %v238
    %v245 = vsub.f32 %v212, %v239
    %v246 = vsub.f32 %v213, %v240
    %v247 = vsub.f32 %v214, %v241
    %v248 = vmul.f32 %v242, %v242
    %v249 = vmul.f32 %v243, %v243
    %v250 = vmul.f32 %v244, %v244
    %v251 = vmul.f32 %v245, %v245
    %v252 = vmul.f32 %v246, %v246
    %v253 = vmul.f32 %v247, %v247
    %v254 = vsel %vm190, %v248, 0.0
    %255 = vadd.xlane.f32.xlu0 %v254
    %v256 = vpop.xlane.xlu0 %255
    %v257 = vsel %vm190, %v249, 0.0
    %258 = vadd.xlane.f32.xlu0 %v257
    %v259 = vpop.xlane.xlu0 %258
    %v260 = vsel %vm190, %v250, 0.0
    %261 = vadd.xlane.f32.xlu0 %v260
    %v262 = vpop.xlane.xlu0 %261
    %v263 = vsel %vm190, %v251, 0.0
    %264 = vadd.xlane.f32.xlu0 %v263
    %v265 = vpop.xlane.xlu0 %264
    %v266 = vsel %vm190, %v252, 0.0
    %267 = vadd.xlane.f32.xlu0 %v266
    %v268 = vpop.xlane.xlu0 %267
    %v269 = vsel %vm190, %v253, 0.0
    %270 = vadd.xlane.f32.xlu0 %v269
    %v271 = vpop.xlane.xlu0 %270
    %v272 = vmul.f32 %v256, %v235
    %v273 = vmul.f32 %v259, %v235
    %v274 = vmul.f32 %v262, %v235
    %v275 = vmul.f32 %v265, %v235
    %v276 = vmul.f32 %v268, %v235
    %v277 = vmul.f32 %v271, %v235
    %v278 = vadd.f32 %v272, 1e-05
    %v279 = vadd.f32 %v273, 1e-05
    %v280 = vadd.f32 %v274, 1e-05
    %v281 = vadd.f32 %v275, 1e-05
    %v282 = vadd.f32 %v276, 1e-05
    %v283 = vadd.f32 %v277, 1e-05
    %v284 = vrsqrt.pop %v278
    %v285 = vrsqrt.pop %v279
    %v286 = vrsqrt.pop %v280
    %v287 = vrsqrt.pop %v281
    %v288 = vrsqrt.pop %v282
    %v289 = vrsqrt.pop %v283
    %v290 = vmul.f32 %v242, %v284
    %v291 = vmul.f32 %v243, %v285
    %v292 = vmul.f32 %v244, %v286
    %v293 = vmul.f32 %v245, %v287
    %v294 = vmul.f32 %v246, %v288
    %v295 = vmul.f32 %v247, %v289
    %v297 = vlaneseq
    %v298 = vshrl.u32 %v297, 7
    %v299 = vsub.s32 0, %v298
    %v300 = vrot.slane %v215, %v299
    %v302 = vmul.f32 %v290, %v300
    %v303 = vmul.f32 %v291, %v300
    %v304 = vmul.f32 %v292, %v300
    %v305 = vmul.f32 %v293, %v300
    %v306 = vmul.f32 %v294, %v300
    %v307 = vmul.f32 %v295, %v300
    %v309 = vlaneseq
    %v310 = vshrl.u32 %v309, 7
    %v311 = vsub.s32 0, %v310
    %v312 = vrot.slane %v216, %v311
    %v314 = vadd.f32 %v302, %v312
    %v315 = vadd.f32 %v303, %v312
    %v316 = vadd.f32 %v304, %v312
    %v317 = vadd.f32 %v305, %v312
    %v318 = vadd.f32 %v306, %v312
    %v319 = vadd.f32 %v307, %v312
    %v320 = vld [vmem:[%s9] sm:$0xff]
    %v321 = vld [vmem:[%s9 + $0x8] sm:$0xff]
    %v322 = vld [vmem:[%s9 + $0x10] sm:$0xff]
    %v323 = vld [vmem:[%s9 + $0x18] sm:$0xff]
    %v324 = vld [vmem:[%s10] sm:$0x1]
    %v325 = vld [vmem:[%s6] sm:$0xff]
    %v326 = vld [vmem:[%s6 + $0x8] sm:$0xff]
    %v327 = vld [vmem:[%s6 + $0x10] sm:$0xff]
    %v328 = vld [vmem:[%s6 + $0x18] sm:$0xff]
    %v330 = vsel %vm190, %v314, 0
    %v333 = vsel %vm190, %v315, 0
    %v336 = vsel %vm190, %v316, 0
    %338 = vmatprep.subr.mxu0 0.0
    %339 = vmatpush1.msra.mxu0 %v325
    %340 = vmatprep.subr.mxu0 0.0
    %341 = vmatpush1.msra.mxu0 %v326
    %342 = vmatprep.subr.mxu0 0.0
    %343 = vmatpush1.msra.mxu0 %v327
    %344 = vmatprep.subr.mxu0 0.0
    %345 = vmatpush1.msra.mxu0 %v328
    %346 = vmatprep.subr.mxu0 0.0
    %347 = vmatpush1.msra.mxu0 0.0
    %348 = vmatprep.subr.mxu0 0.0
    %349 = vmatpush1.msra.mxu0 0.0
    %350 = vmatprep.subr.mxu0 0.0
    %351 = vmatpush1.msra.mxu0 0.0
    %352 = vmatprep.subr.mxu0 0.0
    %353 = vmatpush1.msra.mxu0 0.0
    %354 = vmatprep.subr.mxu0 0.0
    %355 = vmatpush1.msra.mxu0 0.0
    %356 = vmatprep.subr.mxu0 0.0
    %357 = vmatpush1.msra.mxu0 0.0
    %358 = vmatprep.subr.mxu0 0.0
    %359 = vmatpush1.msra.mxu0 0.0
    %360 = vmatprep.subr.mxu0 0.0
    %361 = vmatpush1.msra.mxu0 0.0
    %362 = vmatprep.subr.mxu0 0.0
    %363 = vmatpush1.msra.mxu0 0.0
    %364 = vmatprep.subr.mxu0 0.0
    %365 = vmatpush1.msra.mxu0 0.0
    %366 = vmatprep.subr.mxu0 0.0
    %367 = vmatpush1.msra.mxu0 0.0
    %368 = vmatprep.subr.mxu0 0.0
    %369 = vmatpush1.msra.mxu0 0.0
    %370 = vmatprep.subr.mxu0 0.0
    %371 = vmatpush1.msra.mxu0 0.0
    %372 = vmatprep.subr.mxu0 0.0
    %373 = vmatpush1.msra.mxu0 0.0
    %374 = vmatprep.subr.mxu0 0.0
    %375 = vmatpush1.msra.mxu0 0.0
    %376 = vmatprep.subr.mxu0 0.0
    %377 = vmatpush1.msra.mxu0 0.0
    %378 = vmatprep.subr.mxu0 0.0
    %379 = vmatpush1.msra.mxu0 0.0
    %380 = vmatprep.subr.mxu0 0.0
    %381 = vmatpush1.msra.mxu0 0.0
    %382 = vmatprep.subr.mxu0 0.0
    %383 = vmatpush1.msra.mxu0 0.0
    %384 = vmatprep.subr.mxu0 0.0
    %385 = vmatpush1.msra.mxu0 0.0
    %386 = vmatprep.subr.mxu0 0.0
    %387 = vmatpush1.msra.mxu0 0.0
    %388 = vmatprep.subr.mxu0 0.0
    %389 = vmatpush1.msra.mxu0 0.0
    %390 = vmatprep.subr.mxu0 0.0
    %391 = vmatpush1.msra.mxu0 0.0
    %392 = vmatprep.subr.mxu0 0.0
    %393 = vmatpush1.msra.mxu0 0.0
    %394 = vmatprep.subr.mxu0 0.0
    %395 = vmatpush1.msra.mxu0 0.0
    %396 = vmatprep.subr.mxu0 0.0
    %397 = vmatpush1.msra.mxu0 0.0
    %398 = vmatprep.subr.mxu0 0.0
    %399 = vmatpush1.msra.mxu0 0.0
    %400 = vmatprep.subr.mxu0 0.0
    %401 = vmatpush1.msra.mxu0 0.0
    %402 = vmatprep.mubr.f32.mxu0 0.0
    %403 = vmatmul.mubr.f32.gmra.mrb[0].mxu0 %v330
    %v404 = vpop.f32.mrb[0].mxu0
    %v405 = vadd.f32 0.0, %v404
    %v406 = vpop.f32.mrb[0].mxu0
    %407 = vmatprep.mubr.f32.mxu0 0.0
    %408 = vmatmul.mubr.f32.gmra.mrb[0].mxu0 %v333
    %v409 = vpop.f32.mrb[0].mxu0
    %v410 = vadd.f32 0.0, %v409
    %v411 = vpop.f32.mrb[0].mxu0
    %412 = vmatprep.mubr.f32.mxu0 0.0
    %413 = vmatmul.mubr.f32.gmra.mrb[0].mxu0 %v336
    %v414 = vpop.f32.mrb[0].mxu0
    %v415 = vadd.f32 0.0, %v414
    %v416 = vpop.f32.mrb[0].mxu0
    %417 = vdwg.mxu0
    %v418 = vld [vmem:[%s7] sm:$0xff]
    %v419 = vld [vmem:[%s7 + $0x8] sm:$0xff]
    %v420 = vld [vmem:[%s7 + $0x10] sm:$0xff]
    %v421 = vld [vmem:[%s7 + $0x18] sm:$0xff]
    %422 = vmatprep.subr.mxu0 0.0
    %423 = vmatpush1.msra.mxu0 %v418
    %424 = vmatprep.subr.mxu0 0.0
    %425 = vmatpush1.msra.mxu0 %v419
    %426 = vmatprep.subr.mxu0 0.0
    %427 = vmatpush1.msra.mxu0 %v420
    %428 = vmatprep.subr.mxu0 0.0
    %429 = vmatpush1.msra.mxu0 %v421
    %430 = vmatprep.subr.mxu0 0.0
    %431 = vmatpush1.msra.mxu0 0.0
    %432 = vmatprep.subr.mxu0 0.0
    %433 = vmatpush1.msra.mxu0 0.0
    %434 = vmatprep.subr.mxu0 0.0
    %435 = vmatpush1.msra.mxu0 0.0
    %436 = vmatprep.subr.mxu0 0.0
    %437 = vmatpush1.msra.mxu0 0.0
    %438 = vmatprep.subr.mxu0 0.0
    %439 = vmatpush1.msra.mxu0 0.0
    %440 = vmatprep.subr.mxu0 0.0
    %441 = vmatpush1.msra.mxu0 0.0
    %442 = vmatprep.subr.mxu0 0.0
    %443 = vmatpush1.msra.mxu0 0.0
    %444 = vmatprep.subr.mxu0 0.0
    %445 = vmatpush1.msra.mxu0 0.0
    %446 = vmatprep.subr.mxu0 0.0
    %447 = vmatpush1.msra.mxu0 0.0
    %448 = vmatprep.subr.mxu0 0.0
    %449 = vmatpush1.msra.mxu0 0.0
    %450 = vmatprep.subr.mxu0 0.0
    %451 = vmatpush1.msra.mxu0 0.0
    %452 = vmatprep.subr.mxu0 0.0
    %453 = vmatpush1.msra.mxu0 0.0
    %454 = vmatprep.subr.mxu0 0.0
    %455 = vmatpush1.msra.mxu0 0.0
    %456 = vmatprep.subr.mxu0 0.0
    %457 = vmatpush1.msra.mxu0 0.0
    %458 = vmatprep.subr.mxu0 0.0
    %459 = vmatpush1.msra.mxu0 0.0
    %460 = vmatprep.subr.mxu0 0.0
    %461 = vmatpush1.msra.mxu0 0.0
    %462 = vmatprep.subr.mxu0 0.0
    %463 = vmatpush1.msra.mxu0 0.0
    %464 = vmatprep.subr.mxu0 0.0
    %465 = vmatpush1.msra.mxu0 0.0
    %466 = vmatprep.subr.mxu0 0.0
    %467 = vmatpush1.msra.mxu0 0.0
    %468 = vmatprep.subr.mxu0 0.0
    %469 = vmatpush1.msra.mxu0 0.0
    %470 = vmatprep.subr.mxu0 0.0
    %471 = vmatpush1.msra.mxu0 0.0
    %472 = vmatprep.subr.mxu0 0.0
    %473 = vmatpush1.msra.mxu0 0.0
    %474 = vmatprep.subr.mxu0 0.0
    %475 = vmatpush1.msra.mxu0 0.0
    %476 = vmatprep.subr.mxu0 0.0
    %477 = vmatpush1.msra.mxu0 0.0
    %478 = vmatprep.subr.mxu0 0.0
    %479 = vmatpush1.msra.mxu0 0.0
    %480 = vmatprep.subr.mxu0 0.0
    %481 = vmatpush1.msra.mxu0 0.0
    %482 = vmatprep.subr.mxu0 0.0
    %483 = vmatpush1.msra.mxu0 0.0
    %484 = vmatprep.subr.mxu0 0.0
    %485 = vmatpush1.msra.mxu0 0.0
    %486 = vmatprep.mubr.f32.mxu0 0.0
    %487 = vmatmul.mubr.f32.gmra.mrb[0].mxu0 %v330
    %v488 = vpop.f32.mrb[0].mxu0
    %v489 = vadd.f32 0.0, %v488
    %v490 = vpop.f32.mrb[0].mxu0
    %491 = vmatprep.mubr.f32.mxu0 0.0
    %492 = vmatmul.mubr.f32.gmra.mrb[0].mxu0 %v333
    %v493 = vpop.f32.mrb[0].mxu0
    %v494 = vadd.f32 0.0, %v493
    %v495 = vpop.f32.mrb[0].mxu0
    %496 = vmatprep.mubr.f32.mxu0 0.0
    %497 = vmatmul.mubr.f32.gmra.mrb[0].mxu0 %v336
    %v498 = vpop.f32.mrb[0].mxu0
    %v499 = vadd.f32 0.0, %v498
    %v500 = vpop.f32.mrb[0].mxu0
    %501 = vdwg.mxu0
    %v502 = vld [vmem:[%s8] sm:$0xff]
    %v503 = vld [vmem:[%s8 + $0x8] sm:$0xff]
    %v504 = vld [vmem:[%s8 + $0x10] sm:$0xff]
    %v505 = vld [vmem:[%s8 + $0x18] sm:$0xff]
    %506 = vmatprep.subr.mxu0 0.0
    %507 = vmatpush1.msra.mxu0 %v502
    %508 = vmatprep.subr.mxu0 0.0
    %509 = vmatpush1.msra.mxu0 %v503
    %510 = vmatprep.subr.mxu0 0.0
    %511 = vmatpush1.msra.mxu0 %v504
    %512 = vmatprep.subr.mxu0 0.0
    %513 = vmatpush1.msra.mxu0 %v505
    %514 = vmatprep.subr.mxu0 0.0
    %515 = vmatpush1.msra.mxu0 0.0
    %516 = vmatprep.subr.mxu0 0.0
    %517 = vmatpush1.msra.mxu0 0.0
    %518 = vmatprep.subr.mxu0 0.0
    %519 = vmatpush1.msra.mxu0 0.0
    %520 = vmatprep.subr.mxu0 0.0
    %521 = vmatpush1.msra.mxu0 0.0
    %522 = vmatprep.subr.mxu0 0.0
    %523 = vmatpush1.msra.mxu0 0.0
    %524 = vmatprep.subr.mxu0 0.0
    %525 = vmatpush1.msra.mxu0 0.0
    %526 = vmatprep.subr.mxu0 0.0
    %527 = vmatpush1.msra.mxu0 0.0
    %528 = vmatprep.subr.mxu0 0.0
    %529 = vmatpush1.msra.mxu0 0.0
    %530 = vmatprep.subr.mxu0 0.0
    %531 = vmatpush1.msra.mxu0 0.0
    %532 = vmatprep.subr.mxu0 0.0
    %533 = vmatpush1.msra.mxu0 0.0
    %534 = vmatprep.subr.mxu0 0.0
    %535 = vmatpush1.msra.mxu0 0.0
    %536 = vmatprep.subr.mxu0 0.0
    %537 = vmatpush1.msra.mxu0 0.0
    %538 = vmatprep.subr.mxu0 0.0
    %539 = vmatpush1.msra.mxu0 0.0
    %540 = vmatprep.subr.mxu0 0.0
    %541 = vmatpush1.msra.mxu0 0.0
    %542 = vmatprep.subr.mxu0 0.0
    %543 = vmatpush1.msra.mxu0 0.0
    %544 = vmatprep.subr.mxu0 0.0
    %545 = vmatpush1.msra.mxu0 0.0
    %546 = vmatprep.subr.mxu0 0.0
    %547 = vmatpush1.msra.mxu0 0.0
    %548 = vmatprep.subr.mxu0 0.0
    %549 = vmatpush1.msra.mxu0 0.0
    %550 = vmatprep.subr.mxu0 0.0
    %551 = vmatpush1.msra.mxu0 0.0
    %552 = vmatprep.subr.mxu0 0.0
    %553 = vmatpush1.msra.mxu0 0.0
    %554 = vmatprep.subr.mxu0 0.0
    %555 = vmatpush1.msra.mxu0 0.0
    %556 = vmatprep.subr.mxu0 0.0
    %557 = vmatpush1.msra.mxu0 0.0
    %558 = vmatprep.subr.mxu0 0.0
    %559 = vmatpush1.msra.mxu0 0.0
    %560 = vmatprep.subr.mxu0 0.0
    %561 = vmatpush1.msra.mxu0 0.0
    %562 = vmatprep.subr.mxu0 0.0
    %563 = vmatpush1.msra.mxu0 0.0
    %564 = vmatprep.subr.mxu0 0.0
    %565 = vmatpush1.msra.mxu0 0.0
    %566 = vmatprep.subr.mxu0 0.0
    %567 = vmatpush1.msra.mxu0 0.0
    %568 = vmatprep.subr.mxu0 0.0
    %569 = vmatpush1.msra.mxu0 0.0
    %570 = vmatprep.mubr.f32.mxu0 0.0
    %571 = vmatmul.mubr.f32.gmra.mrb[0].mxu0 %v330
    %v572 = vpop.f32.mrb[0].mxu0
    %v573 = vadd.f32 0.0, %v572
    %v574 = vpop.f32.mrb[0].mxu0
    %575 = vmatprep.mubr.f32.mxu0 0.0
    %576 = vmatmul.mubr.f32.gmra.mrb[0].mxu0 %v333
    %v577 = vpop.f32.mrb[0].mxu0
    %v578 = vadd.f32 0.0, %v577
    %v579 = vpop.f32.mrb[0].mxu0
    %580 = vmatprep.mubr.f32.mxu0 0.0
    %581 = vmatmul.mubr.f32.gmra.mrb[0].mxu0 %v336
    %v582 = vpop.f32.mrb[0].mxu0
    %v583 = vadd.f32 0.0, %v582
    %v584 = vpop.f32.mrb[0].mxu0
    %585 = vdwg.mxu0
    %vm586 = vcmask 130048
    %v588 = vsel %vm586, %v405, 0
    %v591 = vsel %vm586, %v410, 0
    %v594 = vsel %vm586, %v415, 0
    %v597 = vsel %vm586, %v489, 0
    %v600 = vsel %vm586, %v494, 0
    %v603 = vsel %vm586, %v499, 0
    %605 = vmatprep.subr.mxu0 0.0
    %606 = vmatpush1.xpose.msra.mxu0 %v597
    %607 = vmatprep.subr.mxu0 0.0
    %608 = vmatpush1.xpose.msra.mxu0 %v600
    %609 = vmatprep.subr.mxu0 0.0
    %610 = vmatpush1.xpose.msra.mxu0 %v603
    %611 = vmatprep.subr.mxu0 0.0
    %612 = vmatpush1.xpose.msra.mxu0 0.0
    %613 = vmatprep.subr.mxu0 0.0
    %614 = vmatpush1.xpose.msra.mxu0 0.0
    %615 = vmatprep.subr.mxu0 0.0
    %616 = vmatpush1.xpose.msra.mxu0 0.0
    %617 = vmatprep.subr.mxu0 0.0
    %618 = vmatpush1.xpose.msra.mxu0 0.0
    %619 = vmatprep.subr.mxu0 0.0
    %620 = vmatpush1.xpose.msra.mxu0 0.0
    %621 = vmatprep.subr.mxu0 0.0
    %622 = vmatpush1.xpose.msra.mxu0 0.0
    %623 = vmatprep.subr.mxu0 0.0
    %624 = vmatpush1.xpose.msra.mxu0 0.0
    %625 = vmatprep.subr.mxu0 0.0
    %626 = vmatpush1.xpose.msra.mxu0 0.0
    %627 = vmatprep.subr.mxu0 0.0
    %628 = vmatpush1.xpose.msra.mxu0 0.0
    %629 = vmatprep.subr.mxu0 0.0
    %630 = vmatpush1.xpose.msra.mxu0 0.0
    %631 = vmatprep.subr.mxu0 0.0
    %632 = vmatpush1.xpose.msra.mxu0 0.0
    %633 = vmatprep.subr.mxu0 0.0
    %634 = vmatpush1.xpose.msra.mxu0 0.0
    %635 = vmatprep.subr.mxu0 0.0
    %636 = vmatpush1.xpose.msra.mxu0 0.0
    %637 = vmatprep.subr.mxu0 0.0
    %638 = vmatpush1.xpose.msra.mxu0 0.0
    %639 = vmatprep.subr.mxu0 0.0
    %640 = vmatpush1.xpose.msra.mxu0 0.0
    %641 = vmatprep.subr.mxu0 0.0
    %642 = vmatpush1.xpose.msra.mxu0 0.0
    %643 = vmatprep.subr.mxu0 0.0
    %644 = vmatpush1.xpose.msra.mxu0 0.0
    %645 = vmatprep.subr.mxu0 0.0
    %646 = vmatpush1.xpose.msra.mxu0 0.0
    %647 = vmatprep.subr.mxu0 0.0
    %648 = vmatpush1.xpose.msra.mxu0 0.0
    %649 = vmatprep.subr.mxu0 0.0
    %650 = vmatpush1.xpose.msra.mxu0 0.0
    %651 = vmatprep.subr.mxu0 0.0
    %652 = vmatpush1.xpose.msra.mxu0 0.0
    %653 = vmatprep.subr.mxu0 0.0
    %654 = vmatpush1.xpose.msra.mxu0 0.0
    %655 = vmatprep.subr.mxu0 0.0
    %656 = vmatpush1.xpose.msra.mxu0 0.0
    %657 = vmatprep.subr.mxu0 0.0
    %658 = vmatpush1.xpose.msra.mxu0 0.0
    %659 = vmatprep.subr.mxu0 0.0
    %660 = vmatpush1.xpose.msra.mxu0 0.0
    %661 = vmatprep.subr.mxu0 0.0
    %662 = vmatpush1.xpose.msra.mxu0 0.0
    %663 = vmatprep.subr.mxu0 0.0
    %664 = vmatpush1.xpose.msra.mxu0 0.0
    %665 = vmatprep.subr.mxu0 0.0
    %666 = vmatpush1.xpose.msra.mxu0 0.0
    %667 = vmatprep.subr.mxu0 0.0
    %668 = vmatpush1.xpose.msra.mxu0 0.0
    %669 = vmatprep.mubr.f32.mxu0 0.0
    %670 = vmatmul.mubr.f32.gmra.mrb[0].mxu0 %v588
    %v671 = vpop.f32.mrb[0].mxu0
    %v672 = vadd.f32 0.0, %v671
    %v673 = vpop.f32.mrb[0].mxu0
    %674 = vmatprep.mubr.f32.mxu0 0.0
    %675 = vmatmul.mubr.f32.gmra.mrb[0].mxu0 %v591
    %v676 = vpop.f32.mrb[0].mxu0
    %v677 = vadd.f32 0.0, %v676
    %v678 = vpop.f32.mrb[0].mxu0
    %679 = vmatprep.mubr.f32.mxu0 0.0
    %680 = vmatmul.mubr.f32.gmra.mrb[0].mxu0 %v594
    %v681 = vpop.f32.mrb[0].mxu0
    %v682 = vadd.f32 0.0, %v681
    %v683 = vpop.f32.mrb[0].mxu0
    %684 = vdwg.mxu0
    %v685 = vmul.f32 %v672, 0.25
    %v686 = vmul.f32 %v677, 0.25
    %v687 = vmul.f32 %v682, 0.25
    %vm688 = vcmask 138240
    %v689 = vsel %vm688, %v685, -inf
    %690 = vmax.xlane.f32.xlu0 %v689
    %v691 = vpop.xlane.xlu0 %690
    %v692 = vsel %vm688, %v686, -inf
    %693 = vmax.xlane.f32.xlu0 %v692
    %v694 = vpop.xlane.xlu0 %693
    %vm695 = vcmask 131072
    %v696 = vsel %vm695, %v687, -inf
    %697 = vmax.xlane.f32.xlu0 %v696
    %v698 = vpop.xlane.xlu0 %697
    %v699 = vsub.f32 %v685, %v691
    %v700 = vsub.f32 %v686, %v694
    %v701 = vsub.f32 %v687, %v698
    %v702 = vmul.f32 %v699, 1.442695
    %v703 = vpow.pop %v702
    %v704 = vmul.f32 %v700, 1.442695
    %v705 = vpow.pop %v704
    %v706 = vmul.f32 %v701, 1.442695
    %v707 = vpow.pop %v706
    %v708 = vsel %vm688, %v703, 0.0
    %709 = vadd.xlane.f32.xlu0 %v708
    %v710 = vpop.xlane.xlu0 %709
    %v711 = vsel %vm688, %v705, 0.0
    %712 = vadd.xlane.f32.xlu0 %v711
    %v713 = vpop.xlane.xlu0 %712
    %v714 = vsel %vm695, %v707, 0.0
    %715 = vadd.xlane.f32.xlu0 %v714
    %v716 = vpop.xlane.xlu0 %715
    %v717 = vrcp.pop %v710
    %v718 = vrcp.pop %v713
    %v719 = vrcp.pop %v716
    %v720 = vmul.f32 %v703, %v717
    %v721 = vmul.f32 %v705, %v718
    %v722 = vmul.f32 %v707, %v719
    %v724 = vsel %vm688, %v720, 0
    %v727 = vsel %vm688, %v721, 0
    %v730 = vsel %vm688, %v722, 0
    %vm732 = vcmask 1040384
    %v734 = vsel %vm732, %v583, 0
    %736 = vmatprep.subr.mxu0 0.0
    %737 = vmatpush1.msra.mxu0 %v573
    %738 = vmatprep.subr.mxu0 0.0
    %739 = vmatpush1.msra.mxu0 %v578
    %740 = vmatprep.subr.mxu0 0.0
    %741 = vmatpush1.msra.mxu0 %v734
    %742 = vmatprep.subr.mxu0 0.0
    %743 = vmatpush1.msra.mxu0 0.0
    %744 = vmatprep.subr.mxu0 0.0
    %745 = vmatpush1.msra.mxu0 0.0
    %746 = vmatprep.subr.mxu0 0.0
    %747 = vmatpush1.msra.mxu0 0.0
    %748 = vmatprep.subr.mxu0 0.0
    %749 = vmatpush1.msra.mxu0 0.0
    %750 = vmatprep.subr.mxu0 0.0
    %751 = vmatpush1.msra.mxu0 0.0
    %752 = vmatprep.subr.mxu0 0.0
    %753 = vmatpush1.msra.mxu0 0.0
    %754 = vmatprep.subr.mxu0 0.0
    %755 = vmatpush1.msra.mxu0 0.0
    %756 = vmatprep.subr.mxu0 0.0
    %757 = vmatpush1.msra.mxu0 0.0
    %758 = vmatprep.subr.mxu0 0.0
    %759 = vmatpush1.msra.mxu0 0.0
    %760 = vmatprep.subr.mxu0 0.0
    %761 = vmatpush1.msra.mxu0 0.0
    %762 = vmatprep.subr.mxu0 0.0
    %763 = vmatpush1.msra.mxu0 0.0
    %764 = vmatprep.subr.mxu0 0.0
    %765 = vmatpush1.msra.mxu0 0.0
    %766 = vmatprep.subr.mxu0 0.0
    %767 = vmatpush1.msra.mxu0 0.0
    %768 = vmatprep.subr.mxu0 0.0
    %769 = vmatpush1.msra.mxu0 0.0
    %770 = vmatprep.subr.mxu0 0.0
    %771 = vmatpush1.msra.mxu0 0.0
    %772 = vmatprep.subr.mxu0 0.0
    %773 = vmatpush1.msra.mxu0 0.0
    %774 = vmatprep.subr.mxu0 0.0
    %775 = vmatpush1.msra.mxu0 0.0
    %776 = vmatprep.subr.mxu0 0.0
    %777 = vmatpush1.msra.mxu0 0.0
    %778 = vmatprep.subr.mxu0 0.0
    %779 = vmatpush1.msra.mxu0 0.0
    %780 = vmatprep.subr.mxu0 0.0
    %781 = vmatpush1.msra.mxu0 0.0
    %782 = vmatprep.subr.mxu0 0.0
    %783 = vmatpush1.msra.mxu0 0.0
    %784 = vmatprep.subr.mxu0 0.0
    %785 = vmatpush1.msra.mxu0 0.0
    %786 = vmatprep.subr.mxu0 0.0
    %787 = vmatpush1.msra.mxu0 0.0
    %788 = vmatprep.subr.mxu0 0.0
    %789 = vmatpush1.msra.mxu0 0.0
    %790 = vmatprep.subr.mxu0 0.0
    %791 = vmatpush1.msra.mxu0 0.0
    %792 = vmatprep.subr.mxu0 0.0
    %793 = vmatpush1.msra.mxu0 0.0
    %794 = vmatprep.subr.mxu0 0.0
    %795 = vmatpush1.msra.mxu0 0.0
    %796 = vmatprep.subr.mxu0 0.0
    %797 = vmatpush1.msra.mxu0 0.0
    %798 = vmatprep.subr.mxu0 0.0
    %799 = vmatpush1.msra.mxu0 0.0
    %800 = vmatprep.mubr.f32.mxu0 0.0
    %801 = vmatmul.mubr.f32.gmra.mrb[0].mxu0 %v724
    %v802 = vpop.f32.mrb[0].mxu0
    %v803 = vadd.f32 0.0, %v802
    %v804 = vpop.f32.mrb[0].mxu0
    %805 = vmatprep.mubr.f32.mxu0 0.0
    %806 = vmatmul.mubr.f32.gmra.mrb[0].mxu0 %v727
    %v807 = vpop.f32.mrb[0].mxu0
    %v808 = vadd.f32 0.0, %v807
    %v809 = vpop.f32.mrb[0].mxu0
    %810 = vmatprep.mubr.f32.mxu0 0.0
    %811 = vmatmul.mubr.f32.gmra.mrb[0].mxu0 %v730
    %v812 = vpop.f32.mrb[0].mxu0
    %v813 = vadd.f32 0.0, %v812
    %v814 = vpop.f32.mrb[0].mxu0
    %815 = vdwg.mxu0
    %s816 = scalar_lea.vmem %s6, 32
    %v817 = vld [vmem:[%s816] sm:$0xff]
    %v818 = vld [vmem:[%s816 + $0x8] sm:$0xff]
    %v819 = vld [vmem:[%s816 + $0x10] sm:$0xff]
    %v820 = vld [vmem:[%s816 + $0x18] sm:$0xff]
    %821 = vmatprep.subr.mxu0 0.0
    %822 = vmatpush1.msra.mxu0 %v817
    %823 = vmatprep.subr.mxu0 0.0
    %824 = vmatpush1.msra.mxu0 %v818
    %825 = vmatprep.subr.mxu0 0.0
    %826 = vmatpush1.msra.mxu0 %v819
    %827 = vmatprep.subr.mxu0 0.0
    %828 = vmatpush1.msra.mxu0 %v820
    %829 = vmatprep.subr.mxu0 0.0
    %830 = vmatpush1.msra.mxu0 0.0
    %831 = vmatprep.subr.mxu0 0.0
    %832 = vmatpush1.msra.mxu0 0.0
    %833 = vmatprep.subr.mxu0 0.0
    %834 = vmatpush1.msra.mxu0 0.0
    %835 = vmatprep.subr.mxu0 0.0
    %836 = vmatpush1.msra.mxu0 0.0
    %837 = vmatprep.subr.mxu0 0.0
    %838 = vmatpush1.msra.mxu0 0.0
    %839 = vmatprep.subr.mxu0 0.0
    %840 = vmatpush1.msra.mxu0 0.0
    %841 = vmatprep.subr.mxu0 0.0
    %842 = vmatpush1.msra.mxu0 0.0
    %843 = vmatprep.subr.mxu0 0.0
    %844 = vmatpush1.msra.mxu0 0.0
    %845 = vmatprep.subr.mxu0 0.0
    %846 = vmatpush1.msra.mxu0 0.0
    %847 = vmatprep.subr.mxu0 0.0
    %848 = vmatpush1.msra.mxu0 0.0
    %849 = vmatprep.subr.mxu0 0.0
    %850 = vmatpush1.msra.mxu0 0.0
    %851 = vmatprep.subr.mxu0 0.0
    %852 = vmatpush1.msra.mxu0 0.0
    %853 = vmatprep.subr.mxu0 0.0
    %854 = vmatpush1.msra.mxu0 0.0
    %855 = vmatprep.subr.mxu0 0.0
    %856 = vmatpush1.msra.mxu0 0.0
    %857 = vmatprep.subr.mxu0 0.0
    %858 = vmatpush1.msra.mxu0 0.0
    %859 = vmatprep.subr.mxu0 0.0
    %860 = vmatpush1.msra.mxu0 0.0
    %861 = vmatprep.subr.mxu0 0.0
    %862 = vmatpush1.msra.mxu0 0.0
    %863 = vmatprep.subr.mxu0 0.0
    %864 = vmatpush1.msra.mxu0 0.0
    %865 = vmatprep.subr.mxu0 0.0
    %866 = vmatpush1.msra.mxu0 0.0
    %867 = vmatprep.subr.mxu0 0.0
    %868 = vmatpush1.msra.mxu0 0.0
    %869 = vmatprep.subr.mxu0 0.0
    %870 = vmatpush1.msra.mxu0 0.0
    %871 = vmatprep.subr.mxu0 0.0
    %872 = vmatpush1.msra.mxu0 0.0
    %873 = vmatprep.subr.mxu0 0.0
    %874 = vmatpush1.msra.mxu0 0.0
    %875 = vmatprep.subr.mxu0 0.0
    %876 = vmatpush1.msra.mxu0 0.0
    %877 = vmatprep.subr.mxu0 0.0
    %878 = vmatpush1.msra.mxu0 0.0
    %879 = vmatprep.subr.mxu0 0.0
    %880 = vmatpush1.msra.mxu0 0.0
    %881 = vmatprep.subr.mxu0 0.0
    %882 = vmatpush1.msra.mxu0 0.0
    %883 = vmatprep.subr.mxu0 0.0
    %884 = vmatpush1.msra.mxu0 0.0
    %885 = vmatprep.mubr.f32.mxu0 0.0
    %886 = vmatmul.mubr.f32.gmra.mrb[0].mxu0 %v330
    %v887 = vpop.f32.mrb[0].mxu0
    %v888 = vadd.f32 0.0, %v887
    %v889 = vpop.f32.mrb[0].mxu0
    %890 = vmatprep.mubr.f32.mxu0 0.0
    %891 = vmatmul.mubr.f32.gmra.mrb[0].mxu0 %v333
    %v892 = vpop.f32.mrb[0].mxu0
    %v893 = vadd.f32 0.0, %v892
    %v894 = vpop.f32.mrb[0].mxu0
    %895 = vmatprep.mubr.f32.mxu0 0.0
    %896 = vmatmul.mubr.f32.gmra.mrb[0].mxu0 %v336
    %v897 = vpop.f32.mrb[0].mxu0
    %v898 = vadd.f32 0.0, %v897
    %v899 = vpop.f32.mrb[0].mxu0
    %900 = vdwg.mxu0
    %s901 = scalar_lea.vmem %s7, 32
    %v902 = vld [vmem:[%s901] sm:$0xff]
    %v903 = vld [vmem:[%s901 + $0x8] sm:$0xff]
    %v904 = vld [vmem:[%s901 + $0x10] sm:$0xff]
    %v905 = vld [vmem:[%s901 + $0x18] sm:$0xff]
    %906 = vmatprep.subr.mxu0 0.0
    %907 = vmatpush1.msra.mxu0 %v902
    %908 = vmatprep.subr.mxu0 0.0
    %909 = vmatpush1.msra.mxu0 %v903
    %910 = vmatprep.subr.mxu0 0.0
    %911 = vmatpush1.msra.mxu0 %v904
    %912 = vmatprep.subr.mxu0 0.0
    %913 = vmatpush1.msra.mxu0 %v905
    %914 = vmatprep.subr.mxu0 0.0
    %915 = vmatpush1.msra.mxu0 0.0
    %916 = vmatprep.subr.mxu0 0.0
    %917 = vmatpush1.msra.mxu0 0.0
    %918 = vmatprep.subr.mxu0 0.0
    %919 = vmatpush1.msra.mxu0 0.0
    %920 = vmatprep.subr.mxu0 0.0
    %921 = vmatpush1.msra.mxu0 0.0
    %922 = vmatprep.subr.mxu0 0.0
    %923 = vmatpush1.msra.mxu0 0.0
    %924 = vmatprep.subr.mxu0 0.0
    %925 = vmatpush1.msra.mxu0 0.0
    %926 = vmatprep.subr.mxu0 0.0
    %927 = vmatpush1.msra.mxu0 0.0
    %928 = vmatprep.subr.mxu0 0.0
    %929 = vmatpush1.msra.mxu0 0.0
    %930 = vmatprep.subr.mxu0 0.0
    %931 = vmatpush1.msra.mxu0 0.0
    %932 = vmatprep.subr.mxu0 0.0
    %933 = vmatpush1.msra.mxu0 0.0
    %934 = vmatprep.subr.mxu0 0.0
    %935 = vmatpush1.msra.mxu0 0.0
    %936 = vmatprep.subr.mxu0 0.0
    %937 = vmatpush1.msra.mxu0 0.0
    %938 = vmatprep.subr.mxu0 0.0
    %939 = vmatpush1.msra.mxu0 0.0
    %940 = vmatprep.subr.mxu0 0.0
    %941 = vmatpush1.msra.mxu0 0.0
    %942 = vmatprep.subr.mxu0 0.0
    %943 = vmatpush1.msra.mxu0 0.0
    %944 = vmatprep.subr.mxu0 0.0
    %945 = vmatpush1.msra.mxu0 0.0
    %946 = vmatprep.subr.mxu0 0.0
    %947 = vmatpush1.msra.mxu0 0.0
    %948 = vmatprep.subr.mxu0 0.0
    %949 = vmatpush1.msra.mxu0 0.0
    %950 = vmatprep.subr.mxu0 0.0
    %951 = vmatpush1.msra.mxu0 0.0
    %952 = vmatprep.subr.mxu0 0.0
    %953 = vmatpush1.msra.mxu0 0.0
    %954 = vmatprep.subr.mxu0 0.0
    %955 = vmatpush1.msra.mxu0 0.0
    %956 = vmatprep.subr.mxu0 0.0
    %957 = vmatpush1.msra.mxu0 0.0
    %958 = vmatprep.subr.mxu0 0.0
    %959 = vmatpush1.msra.mxu0 0.0
    %960 = vmatprep.subr.mxu0 0.0
    %961 = vmatpush1.msra.mxu0 0.0
    %962 = vmatprep.subr.mxu0 0.0
    %963 = vmatpush1.msra.mxu0 0.0
    %964 = vmatprep.subr.mxu0 0.0
    %965 = vmatpush1.msra.mxu0 0.0
    %966 = vmatprep.subr.mxu0 0.0
    %967 = vmatpush1.msra.mxu0 0.0
    %968 = vmatprep.subr.mxu0 0.0
    %969 = vmatpush1.msra.mxu0 0.0
    %970 = vmatprep.mubr.f32.mxu0 0.0
    %971 = vmatmul.mubr.f32.gmra.mrb[0].mxu0 %v330
    %v972 = vpop.f32.mrb[0].mxu0
    %v973 = vadd.f32 0.0, %v972
    %v974 = vpop.f32.mrb[0].mxu0
    %975 = vmatprep.mubr.f32.mxu0 0.0
    %976 = vmatmul.mubr.f32.gmra.mrb[0].mxu0 %v333
    %v977 = vpop.f32.mrb[0].mxu0
    %v978 = vadd.f32 0.0, %v977
    %v979 = vpop.f32.mrb[0].mxu0
    %980 = vmatprep.mubr.f32.mxu0 0.0
    %981 = vmatmul.mubr.f32.gmra.mrb[0].mxu0 %v336
    %v982 = vpop.f32.mrb[0].mxu0
    %v983 = vadd.f32 0.0, %v982
    %v984 = vpop.f32.mrb[0].mxu0
    %985 = vdwg.mxu0
    %s986 = scalar_lea.vmem %s8, 32
    %v987 = vld [vmem:[%s986] sm:$0xff]
    %v988 = vld [vmem:[%s986 + $0x8] sm:$0xff]
    %v989 = vld [vmem:[%s986 + $0x10] sm:$0xff]
    %v990 = vld [vmem:[%s986 + $0x18] sm:$0xff]
    %991 = vmatprep.subr.mxu0 0.0
    %992 = vmatpush1.msra.mxu0 %v987
    %993 = vmatprep.subr.mxu0 0.0
    %994 = vmatpush1.msra.mxu0 %v988
    %995 = vmatprep.subr.mxu0 0.0
    %996 = vmatpush1.msra.mxu0 %v989
    %997 = vmatprep.subr.mxu0 0.0
    %998 = vmatpush1.msra.mxu0 %v990
    %999 = vmatprep.subr.mxu0 0.0
    %1000 = vmatpush1.msra.mxu0 0.0
    %1001 = vmatprep.subr.mxu0 0.0
    %1002 = vmatpush1.msra.mxu0 0.0
    %1003 = vmatprep.subr.mxu0 0.0
    %1004 = vmatpush1.msra.mxu0 0.0
    %1005 = vmatprep.subr.mxu0 0.0
    %1006 = vmatpush1.msra.mxu0 0.0
    %1007 = vmatprep.subr.mxu0 0.0
    %1008 = vmatpush1.msra.mxu0 0.0
    %1009 = vmatprep.subr.mxu0 0.0
    %1010 = vmatpush1.msra.mxu0 0.0
    %1011 = vmatprep.subr.mxu0 0.0
    %1012 = vmatpush1.msra.mxu0 0.0
    %1013 = vmatprep.subr.mxu0 0.0
    %1014 = vmatpush1.msra.mxu0 0.0
    %1015 = vmatprep.subr.mxu0 0.0
    %1016 = vmatpush1.msra.mxu0 0.0
    %1017 = vmatprep.subr.mxu0 0.0
    %1018 = vmatpush1.msra.mxu0 0.0
    %1019 = vmatprep.subr.mxu0 0.0
    %1020 = vmatpush1.msra.mxu0 0.0
    %1021 = vmatprep.subr.mxu0 0.0
    %1022 = vmatpush1.msra.mxu0 0.0
    %1023 = vmatprep.subr.mxu0 0.0
    %1024 = vmatpush1.msra.mxu0 0.0
    %1025 = vmatprep.subr.mxu0 0.0
    %1026 = vmatpush1.msra.mxu0 0.0
    %1027 = vmatprep.subr.mxu0 0.0
    %1028 = vmatpush1.msra.mxu0 0.0
    %1029 = vmatprep.subr.mxu0 0.0
    %1030 = vmatpush1.msra.mxu0 0.0
    %1031 = vmatprep.subr.mxu0 0.0
    %1032 = vmatpush1.msra.mxu0 0.0
    %1033 = vmatprep.subr.mxu0 0.0
    %1034 = vmatpush1.msra.mxu0 0.0
    %1035 = vmatprep.subr.mxu0 0.0
    %1036 = vmatpush1.msra.mxu0 0.0
    %1037 = vmatprep.subr.mxu0 0.0
    %1038 = vmatpush1.msra.mxu0 0.0
    %1039 = vmatprep.subr.mxu0 0.0
    %1040 = vmatpush1.msra.mxu0 0.0
    %1041 = vmatprep.subr.mxu0 0.0
    %1042 = vmatpush1.msra.mxu0 0.0
    %1043 = vmatprep.subr.mxu0 0.0
    %1044 = vmatpush1.msra.mxu0 0.0
    %1045 = vmatprep.subr.mxu0 0.0
    %1046 = vmatpush1.msra.mxu0 0.0
    %1047 = vmatprep.subr.mxu0 0.0
    %1048 = vmatpush1.msra.mxu0 0.0
    %1049 = vmatprep.subr.mxu0 0.0
    %1050 = vmatpush1.msra.mxu0 0.0
    %1051 = vmatprep.subr.mxu0 0.0
    %1052 = vmatpush1.msra.mxu0 0.0
    %1053 = vmatprep.subr.mxu0 0.0
    %1054 = vmatpush1.msra.mxu0 0.0
    %1055 = vmatprep.mubr.f32.mxu0 0.0
    %1056 = vmatmul.mubr.f32.gmra.mrb[0].mxu0 %v330
    %v1057 = vpop.f32.mrb[0].mxu0
    %v1058 = vadd.f32 0.0, %v1057
    %v1059 = vpop.f32.mrb[0].mxu0
    %1060 = vmatprep.mubr.f32.mxu0 0.0
    %1061 = vmatmul.mubr.f32.gmra.mrb[0].mxu0 %v333
    %v1062 = vpop.f32.mrb[0].mxu0
    %v1063 = vadd.f32 0.0, %v1062
    %v1064 = vpop.f32.mrb[0].mxu0
    %1065 = vmatprep.mubr.f32.mxu0 0.0
    %1066 = vmatmul.mubr.f32.gmra.mrb[0].mxu0 %v336
    %v1067 = vpop.f32.mrb[0].mxu0
    %v1068 = vadd.f32 0.0, %v1067
    %v1069 = vpop.f32.mrb[0].mxu0
    %1070 = vdwg.mxu0
    %v1072 = vsel %vm586, %v888, 0
    %v1075 = vsel %vm586, %v893, 0
    %v1078 = vsel %vm586, %v898, 0
    %v1081 = vsel %vm586, %v973, 0
    %v1084 = vsel %vm586, %v978, 0
    %v1087 = vsel %vm586, %v983, 0
    %1089 = vmatprep.subr.mxu0 0.0
    %1090 = vmatpush1.xpose.msra.mxu0 %v1081
    %1091 = vmatprep.subr.mxu0 0.0
    %1092 = vmatpush1.xpose.msra.mxu0 %v1084
    %1093 = vmatprep.subr.mxu0 0.0
    %1094 = vmatpush1.xpose.msra.mxu0 %v1087
    %1095 = vmatprep.subr.mxu0 0.0
    %1096 = vmatpush1.xpose.msra.mxu0 0.0
    %1097 = vmatprep.subr.mxu0 0.0
    %1098 = vmatpush1.xpose.msra.mxu0 0.0
    %1099 = vmatprep.subr.mxu0 0.0
    %1100 = vmatpush1.xpose.msra.mxu0 0.0
    %1101 = vmatprep.subr.mxu0 0.0
    %1102 = vmatpush1.xpose.msra.mxu0 0.0
    %1103 = vmatprep.subr.mxu0 0.0
    %1104 = vmatpush1.xpose.msra.mxu0 0.0
    %1105 = vmatprep.subr.mxu0 0.0
    %1106 = vmatpush1.xpose.msra.mxu0 0.0
    %1107 = vmatprep.subr.mxu0 0.0
    %1108 = vmatpush1.xpose.msra.mxu0 0.0
    %1109 = vmatprep.subr.mxu0 0.0
    %1110 = vmatpush1.xpose.msra.mxu0 0.0
    %1111 = vmatprep.subr.mxu0 0.0
    %1112 = vmatpush1.xpose.msra.mxu0 0.0
    %1113 = vmatprep.subr.mxu0 0.0
    %1114 = vmatpush1.xpose.msra.mxu0 0.0
    %1115 = vmatprep.subr.mxu0 0.0
    %1116 = vmatpush1.xpose.msra.mxu0 0.0
    %1117 = vmatprep.subr.mxu0 0.0
    %1118 = vmatpush1.xpose.msra.mxu0 0.0
    %1119 = vmatprep.subr.mxu0 0.0
    %1120 = vmatpush1.xpose.msra.mxu0 0.0
    %1121 = vmatprep.subr.mxu0 0.0
    %1122 = vmatpush1.xpose.msra.mxu0 0.0
    %1123 = vmatprep.subr.mxu0 0.0
    %1124 = vmatpush1.xpose.msra.mxu0 0.0
    %1125 = vmatprep.subr.mxu0 0.0
    %1126 = vmatpush1.xpose.msra.mxu0 0.0
    %1127 = vmatprep.subr.mxu0 0.0
    %1128 = vmatpush1.xpose.msra.mxu0 0.0
    %1129 = vmatprep.subr.mxu0 0.0
    %1130 = vmatpush1.xpose.msra.mxu0 0.0
    %1131 = vmatprep.subr.mxu0 0.0
    %1132 = vmatpush1.xpose.msra.mxu0 0.0
    %1133 = vmatprep.subr.mxu0 0.0
    %1134 = vmatpush1.xpose.msra.mxu0 0.0
    %1135 = vmatprep.subr.mxu0 0.0
    %1136 = vmatpush1.xpose.msra.mxu0 0.0
    %1137 = vmatprep.subr.mxu0 0.0
    %1138 = vmatpush1.xpose.msra.mxu0 0.0
    %1139 = vmatprep.subr.mxu0 0.0
    %1140 = vmatpush1.xpose.msra.mxu0 0.0
    %1141 = vmatprep.subr.mxu0 0.0
    %1142 = vmatpush1.xpose.msra.mxu0 0.0
    %1143 = vmatprep.subr.mxu0 0.0
    %1144 = vmatpush1.xpose.msra.mxu0 0.0
    %1145 = vmatprep.subr.mxu0 0.0
    %1146 = vmatpush1.xpose.msra.mxu0 0.0
    %1147 = vmatprep.subr.mxu0 0.0
    %1148 = vmatpush1.xpose.msra.mxu0 0.0
    %1149 = vmatprep.subr.mxu0 0.0
    %1150 = vmatpush1.xpose.msra.mxu0 0.0
    %1151 = vmatprep.subr.mxu0 0.0
    %1152 = vmatpush1.xpose.msra.mxu0 0.0
    %1153 = vmatprep.mubr.f32.mxu0 0.0
    %1154 = vmatmul.mubr.f32.gmra.mrb[0].mxu0 %v1072
    %v1155 = vpop.f32.mrb[0].mxu0
    %v1156 = vadd.f32 0.0, %v1155
    %v1157 = vpop.f32.mrb[0].mxu0
    %1158 = vmatprep.mubr.f32.mxu0 0.0
    %1159 = vmatmul.mubr.f32.gmra.mrb[0].mxu0 %v1075
    %v1160 = vpop.f32.mrb[0].mxu0
    %v1161 = vadd.f32 0.0, %v1160
    %v1162 = vpop.f32.mrb[0].mxu0
    %1163 = vmatprep.mubr.f32.mxu0 0.0
    %1164 = vmatmul.mubr.f32.gmra.mrb[0].mxu0 %v1078
    %v1165 = vpop.f32.mrb[0].mxu0
    %v1166 = vadd.f32 0.0, %v1165
    %v1167 = vpop.f32.mrb[0].mxu0
    %1168 = vdwg.mxu0
    %v1169 = vmul.f32 %v1156, 0.25
    %v1170 = vmul.f32 %v1161, 0.25
    %v1171 = vmul.f32 %v1166, 0.25
    %v1172 = vsel %vm688, %v1169, -inf
    %1173 = vmax.xlane.f32.xlu0 %v1172
    %v1174 = vpop.xlane.xlu0 %1173
    %v1175 = vsel %vm688, %v1170, -inf
    %1176 = vmax.xlane.f32.xlu0 %v1175
    %v1177 = vpop.xlane.xlu0 %1176
    %v1178 = vsel %vm695, %v1171, -inf
    %1179 = vmax.xlane.f32.xlu0 %v1178
    %v1180 = vpop.xlane.xlu0 %1179
    %v1181 = vsub.f32 %v1169, %v1174
    %v1182 = vsub.f32 %v1170, %v1177
    %v1183 = vsub.f32 %v1171, %v1180
    %v1184 = vmul.f32 %v1181, 1.442695
    %v1185 = vpow.pop %v1184
    %v1186 = vmul.f32 %v1182, 1.442695
    %v1187 = vpow.pop %v1186
    %v1188 = vmul.f32 %v1183, 1.442695
    %v1189 = vpow.pop %v1188
    %v1190 = vsel %vm688, %v1185, 0.0
    %1191 = vadd.xlane.f32.xlu0 %v1190
    %v1192 = vpop.xlane.xlu0 %1191
    %v1193 = vsel %vm688, %v1187, 0.0
    %1194 = vadd.xlane.f32.xlu0 %v1193
    %v1195 = vpop.xlane.xlu0 %1194
    %v1196 = vsel %vm695, %v1189, 0.0
    %1197 = vadd.xlane.f32.xlu0 %v1196
    %v1198 = vpop.xlane.xlu0 %1197
    %v1199 = vrcp.pop %v1192
    %v1200 = vrcp.pop %v1195
    %v1201 = vrcp.pop %v1198
    %v1202 = vmul.f32 %v1185, %v1199
    %v1203 = vmul.f32 %v1187, %v1200
    %v1204 = vmul.f32 %v1189, %v1201
    %v1206 = vsel %vm688, %v1202, 0
    %v1209 = vsel %vm688, %v1203, 0
    %v1212 = vsel %vm688, %v1204, 0
    %v1215 = vsel %vm732, %v1068, 0
    %1217 = vmatprep.subr.mxu0 0.0
    %1218 = vmatpush1.msra.mxu0 %v1058
    %1219 = vmatprep.subr.mxu0 0.0
    %1220 = vmatpush1.msra.mxu0 %v1063
    %1221 = vmatprep.subr.mxu0 0.0
    %1222 = vmatpush1.msra.mxu0 %v1215
    %1223 = vmatprep.subr.mxu0 0.0
    %1224 = vmatpush1.msra.mxu0 0.0
    %1225 = vmatprep.subr.mxu0 0.0
    %1226 = vmatpush1.msra.mxu0 0.0
    %1227 = vmatprep.subr.mxu0 0.0
    %1228 = vmatpush1.msra.mxu0 0.0
    %1229 = vmatprep.subr.mxu0 0.0
    %1230 = vmatpush1.msra.mxu0 0.0
    %1231 = vmatprep.subr.mxu0 0.0
    %1232 = vmatpush1.msra.mxu0 0.0
    %1233 = vmatprep.subr.mxu0 0.0
    %1234 = vmatpush1.msra.mxu0 0.0
    %1235 = vmatprep.subr.mxu0 0.0
    %1236 = vmatpush1.msra.mxu0 0.0
    %1237 = vmatprep.subr.mxu0 0.0
    %1238 = vmatpush1.msra.mxu0 0.0
    %1239 = vmatprep.subr.mxu0 0.0
    %1240 = vmatpush1.msra.mxu0 0.0
    %1241 = vmatprep.subr.mxu0 0.0
    %1242 = vmatpush1.msra.mxu0 0.0
    %1243 = vmatprep.subr.mxu0 0.0
    %1244 = vmatpush1.msra.mxu0 0.0
    %1245 = vmatprep.subr.mxu0 0.0
    %1246 = vmatpush1.msra.mxu0 0.0
    %1247 = vmatprep.subr.mxu0 0.0
    %1248 = vmatpush1.msra.mxu0 0.0
    %1249 = vmatprep.subr.mxu0 0.0
    %1250 = vmatpush1.msra.mxu0 0.0
    %1251 = vmatprep.subr.mxu0 0.0
    %1252 = vmatpush1.msra.mxu0 0.0
    %1253 = vmatprep.subr.mxu0 0.0
    %1254 = vmatpush1.msra.mxu0 0.0
    %1255 = vmatprep.subr.mxu0 0.0
    %1256 = vmatpush1.msra.mxu0 0.0
    %1257 = vmatprep.subr.mxu0 0.0
    %1258 = vmatpush1.msra.mxu0 0.0
    %1259 = vmatprep.subr.mxu0 0.0
    %1260 = vmatpush1.msra.mxu0 0.0
    %1261 = vmatprep.subr.mxu0 0.0
    %1262 = vmatpush1.msra.mxu0 0.0
    %1263 = vmatprep.subr.mxu0 0.0
    %1264 = vmatpush1.msra.mxu0 0.0
    %1265 = vmatprep.subr.mxu0 0.0
    %1266 = vmatpush1.msra.mxu0 0.0
    %1267 = vmatprep.subr.mxu0 0.0
    %1268 = vmatpush1.msra.mxu0 0.0
    %1269 = vmatprep.subr.mxu0 0.0
    %1270 = vmatpush1.msra.mxu0 0.0
    %1271 = vmatprep.subr.mxu0 0.0
    %1272 = vmatpush1.msra.mxu0 0.0
    %1273 = vmatprep.subr.mxu0 0.0
    %1274 = vmatpush1.msra.mxu0 0.0
    %1275 = vmatprep.subr.mxu0 0.0
    %1276 = vmatpush1.msra.mxu0 0.0
    %1277 = vmatprep.subr.mxu0 0.0
    %1278 = vmatpush1.msra.mxu0 0.0
    %1279 = vmatprep.subr.mxu0 0.0
    %1280 = vmatpush1.msra.mxu0 0.0
    %1281 = vmatprep.mubr.f32.mxu0 0.0
    %1282 = vmatmul.mubr.f32.gmra.mrb[0].mxu0 %v1206
    %v1283 = vpop.f32.mrb[0].mxu0
    %v1284 = vadd.f32 0.0, %v1283
    %v1285 = vpop.f32.mrb[0].mxu0
    %1286 = vmatprep.mubr.f32.mxu0 0.0
    %1287 = vmatmul.mubr.f32.gmra.mrb[0].mxu0 %v1209
    %v1288 = vpop.f32.mrb[0].mxu0
    %v1289 = vadd.f32 0.0, %v1288
    %v1290 = vpop.f32.mrb[0].mxu0
    %1291 = vmatprep.mubr.f32.mxu0 0.0
    %1292 = vmatmul.mubr.f32.gmra.mrb[0].mxu0 %v1212
    %v1293 = vpop.f32.mrb[0].mxu0
    %v1294 = vadd.f32 0.0, %v1293
    %v1295 = vpop.f32.mrb[0].mxu0
    %1296 = vdwg.mxu0
    %v1298 = vsel %vm586, %v1284, 0
    %v1301 = vsel %vm586, %v1289, 0
    %v1304 = vsel %vm586, %v1294, 0
    %1306 = vmatprep.subr.mxu0 0.0
    %1307 = vmatpush1.msra.mxu0 %v322
    %1308 = vmatprep.subr.mxu0 0.0
    %1309 = vmatpush1.msra.mxu0 %v323
    %1310 = vmatprep.subr.mxu0 0.0
    %1311 = vmatpush1.msra.mxu0 0.0
    %1312 = vmatprep.subr.mxu0 0.0
    %1313 = vmatpush1.msra.mxu0 0.0
    %1314 = vmatprep.subr.mxu0 0.0
    %1315 = vmatpush1.msra.mxu0 0.0
    %1316 = vmatprep.subr.mxu0 0.0
    %1317 = vmatpush1.msra.mxu0 0.0
    %1318 = vmatprep.subr.mxu0 0.0
    %1319 = vmatpush1.msra.mxu0 0.0
    %1320 = vmatprep.subr.mxu0 0.0
    %1321 = vmatpush1.msra.mxu0 0.0
    %1322 = vmatprep.subr.mxu0 0.0
    %1323 = vmatpush1.msra.mxu0 0.0
    %1324 = vmatprep.subr.mxu0 0.0
    %1325 = vmatpush1.msra.mxu0 0.0
    %1326 = vmatprep.subr.mxu0 0.0
    %1327 = vmatpush1.msra.mxu0 0.0
    %1328 = vmatprep.subr.mxu0 0.0
    %1329 = vmatpush1.msra.mxu0 0.0
    %1330 = vmatprep.subr.mxu0 0.0
    %1331 = vmatpush1.msra.mxu0 0.0
    %1332 = vmatprep.subr.mxu0 0.0
    %1333 = vmatpush1.msra.mxu0 0.0
    %1334 = vmatprep.subr.mxu0 0.0
    %1335 = vmatpush1.msra.mxu0 0.0
    %1336 = vmatprep.subr.mxu0 0.0
    %1337 = vmatpush1.msra.mxu0 0.0
    %1338 = vmatprep.subr.mxu0 0.0
    %1339 = vmatpush1.msra.mxu0 0.0
    %1340 = vmatprep.subr.mxu0 0.0
    %1341 = vmatpush1.msra.mxu0 0.0
    %1342 = vmatprep.subr.mxu0 0.0
    %1343 = vmatpush1.msra.mxu0 0.0
    %1344 = vmatprep.subr.mxu0 0.0
    %1345 = vmatpush1.msra.mxu0 0.0
    %1346 = vmatprep.subr.mxu0 0.0
    %1347 = vmatpush1.msra.mxu0 0.0
    %1348 = vmatprep.subr.mxu0 0.0
    %1349 = vmatpush1.msra.mxu0 0.0
    %1350 = vmatprep.subr.mxu0 0.0
    %1351 = vmatpush1.msra.mxu0 0.0
    %1352 = vmatprep.subr.mxu0 0.0
    %1353 = vmatpush1.msra.mxu0 0.0
    %1354 = vmatprep.subr.mxu0 0.0
    %1355 = vmatpush1.msra.mxu0 0.0
    %1356 = vmatprep.subr.mxu0 0.0
    %1357 = vmatpush1.msra.mxu0 0.0
    %1358 = vmatprep.subr.mxu0 0.0
    %1359 = vmatpush1.msra.mxu0 0.0
    %1360 = vmatprep.subr.mxu0 0.0
    %1361 = vmatpush1.msra.mxu0 0.0
    %1362 = vmatprep.subr.mxu0 0.0
    %1363 = vmatpush1.msra.mxu0 0.0
    %1364 = vmatprep.subr.mxu0 0.0
    %1365 = vmatpush1.msra.mxu0 0.0
    %1366 = vmatprep.subr.mxu0 0.0
    %1367 = vmatpush1.msra.mxu0 0.0
    %1368 = vmatprep.subr.mxu0 0.0
    %1369 = vmatpush1.msra.mxu0 0.0
    %1370 = vmatprep.mubr.f32.mxu0 0.0
    %1371 = vmatmul.mubr.f32.gmra.mrb[0].mxu0 %v1298
    %v1372 = vpop.f32.mrb[0].mxu0
    %v1373 = vadd.f32 0.0, %v1372
    %v1374 = vpop.f32.mrb[0].mxu0
    %1375 = vmatprep.mubr.f32.mxu0 0.0
    %1376 = vmatmul.mubr.f32.gmra.mrb[0].mxu0 %v1301
    %v1377 = vpop.f32.mrb[0].mxu0
    %v1378 = vadd.f32 0.0, %v1377
    %v1379 = vpop.f32.mrb[0].mxu0
    %1380 = vmatprep.mubr.f32.mxu0 0.0
    %1381 = vmatmul.mubr.f32.gmra.mrb[0].mxu0 %v1304
    %v1382 = vpop.f32.mrb[0].mxu0
    %v1383 = vadd.f32 0.0, %v1382
    %v1384 = vpop.f32.mrb[0].mxu0
    %1385 = vdwg.mxu0
    %v1387 = vsel %vm586, %v803, 0
    %v1390 = vsel %vm586, %v808, 0
    %v1393 = vsel %vm586, %v813, 0
    %1395 = vmatprep.subr.mxu0 0.0
    %1396 = vmatpush1.msra.mxu0 %v320
    %1397 = vmatprep.subr.mxu0 0.0
    %1398 = vmatpush1.msra.mxu0 %v321
    %1399 = vmatprep.subr.mxu0 0.0
    %1400 = vmatpush1.msra.mxu0 0.0
    %1401 = vmatprep.subr.mxu0 0.0
    %1402 = vmatpush1.msra.mxu0 0.0
    %1403 = vmatprep.subr.mxu0 0.0
    %1404 = vmatpush1.msra.mxu0 0.0
    %1405 = vmatprep.subr.mxu0 0.0
    %1406 = vmatpush1.msra.mxu0 0.0
    %1407 = vmatprep.subr.mxu0 0.0
    %1408 = vmatpush1.msra.mxu0 0.0
    %1409 = vmatprep.subr.mxu0 0.0
    %1410 = vmatpush1.msra.mxu0 0.0
    %1411 = vmatprep.subr.mxu0 0.0
    %1412 = vmatpush1.msra.mxu0 0.0
    %1413 = vmatprep.subr.mxu0 0.0
    %1414 = vmatpush1.msra.mxu0 0.0
    %1415 = vmatprep.subr.mxu0 0.0
    %1416 = vmatpush1.msra.mxu0 0.0
    %1417 = vmatprep.subr.mxu0 0.0
    %1418 = vmatpush1.msra.mxu0 0.0
    %1419 = vmatprep.subr.mxu0 0.0
    %1420 = vmatpush1.msra.mxu0 0.0
    %1421 = vmatprep.subr.mxu0 0.0
    %1422 = vmatpush1.msra.mxu0 0.0
    %1423 = vmatprep.subr.mxu0 0.0
    %1424 = vmatpush1.msra.mxu0 0.0
    %1425 = vmatprep.subr.mxu0 0.0
    %1426 = vmatpush1.msra.mxu0 0.0
    %1427 = vmatprep.subr.mxu0 0.0
    %1428 = vmatpush1.msra.mxu0 0.0
    %1429 = vmatprep.subr.mxu0 0.0
    %1430 = vmatpush1.msra.mxu0 0.0
    %1431 = vmatprep.subr.mxu0 0.0
    %1432 = vmatpush1.msra.mxu0 0.0
    %1433 = vmatprep.subr.mxu0 0.0
    %1434 = vmatpush1.msra.mxu0 0.0
    %1435 = vmatprep.subr.mxu0 0.0
    %1436 = vmatpush1.msra.mxu0 0.0
    %1437 = vmatprep.subr.mxu0 0.0
    %1438 = vmatpush1.msra.mxu0 0.0
    %1439 = vmatprep.subr.mxu0 0.0
    %1440 = vmatpush1.msra.mxu0 0.0
    %1441 = vmatprep.subr.mxu0 0.0
    %1442 = vmatpush1.msra.mxu0 0.0
    %1443 = vmatprep.subr.mxu0 0.0
    %1444 = vmatpush1.msra.mxu0 0.0
    %1445 = vmatprep.subr.mxu0 0.0
    %1446 = vmatpush1.msra.mxu0 0.0
    %1447 = vmatprep.subr.mxu0 0.0
    %1448 = vmatpush1.msra.mxu0 0.0
    %1449 = vmatprep.subr.mxu0 0.0
    %1450 = vmatpush1.msra.mxu0 0.0
    %1451 = vmatprep.subr.mxu0 0.0
    %1452 = vmatpush1.msra.mxu0 0.0
    %1453 = vmatprep.subr.mxu0 0.0
    %1454 = vmatpush1.msra.mxu0 0.0
    %1455 = vmatprep.subr.mxu0 0.0
    %1456 = vmatpush1.msra.mxu0 0.0
    %1457 = vmatprep.subr.mxu0 0.0
    %1458 = vmatpush1.msra.mxu0 0.0
    %1459 = vmatprep.mubr.f32.mxu0 0.0
    %1460 = vmatmul.mubr.f32.gmra.mrb[0].mxu0 %v1387
    %v1461 = vpop.f32.mrb[0].mxu0
    %v1462 = vadd.f32 %v1373, %v1461
    %v1463 = vpop.f32.mrb[0].mxu0
    %1464 = vmatprep.mubr.f32.mxu0 0.0
    %1465 = vmatmul.mubr.f32.gmra.mrb[0].mxu0 %v1390
    %v1466 = vpop.f32.mrb[0].mxu0
    %v1467 = vadd.f32 %v1378, %v1466
    %v1468 = vpop.f32.mrb[0].mxu0
    %1469 = vmatprep.mubr.f32.mxu0 0.0
    %1470 = vmatmul.mubr.f32.gmra.mrb[0].mxu0 %v1393
    %v1471 = vpop.f32.mrb[0].mxu0
    %v1472 = vadd.f32 %v1383, %v1471
    %v1473 = vpop.f32.mrb[0].mxu0
    %1474 = vdwg.mxu0
    %v1475 = vadd.f32 %v209, %v1462
    %v1476 = vadd.f32 %v210, %v1467
    %v1477 = vadd.f32 %v211, %v1472
    %v1479 = vlaneseq
    %v1480 = vshrl.u32 %v1479, 7
    %v1481 = vsub.s32 0, %v1480
    %v1482 = vrot.slane %v324, %v1481
    %v1484 = vadd.f32 %v1475, %v1482
    %v1485 = vadd.f32 %v1476, %v1482
    %v1486 = vadd.f32 %v1477, %v1482
    %1487 = vst.msk [vmem:[#allocation2] sm:$0xff] %vm190, %v1484
    %1488 = vst.msk [vmem:[#allocation2 + $0x8] sm:$0xff] %vm190, %v1485
    %vm1489 = vcmask 253952
    %1490 = vst.msk [vmem:[#allocation2 + $0x10] sm:$0x1] %vm1489, %v1486
    %v1491 = vld [vmem:[%s6] sm:$0xff]
    %v1492 = vld [vmem:[%s6 + $0x8] sm:$0xff]
    %v1493 = vld [vmem:[%s6 + $0x10] sm:$0xff]
    %v1494 = vld [vmem:[%s6 + $0x18] sm:$0xff]
    %v1496 = vsel %vm190, %v317, 0
    %v1499 = vsel %vm190, %v318, 0
    %v1502 = vsel %vm190, %v319, 0
    %1504 = vmatprep.subr.mxu0 0.0
    %1505 = vmatpush1.msra.mxu0 %v1491
    %1506 = vmatprep.subr.mxu0 0.0
    %1507 = vmatpush1.msra.mxu0 %v1492
    %1508 = vmatprep.subr.mxu0 0.0
    %1509 = vmatpush1.msra.mxu0 %v1493
    %1510 = vmatprep.subr.mxu0 0.0
    %1511 = vmatpush1.msra.mxu0 %v1494
    %1512 = vmatprep.subr.mxu0 0.0
    %1513 = vmatpush1.msra.mxu0 0.0
    %1514 = vmatprep.subr.mxu0 0.0
    %1515 = vmatpush1.msra.mxu0 0.0
    %1516 = vmatprep.subr.mxu0 0.0
    %1517 = vmatpush1.msra.mxu0 0.0
    %1518 = vmatprep.subr.mxu0 0.0
    %1519 = vmatpush1.msra.mxu0 0.0
    %1520 = vmatprep.subr.mxu0 0.0
    %1521 = vmatpush1.msra.mxu0 0.0
    %1522 = vmatprep.subr.mxu0 0.0
    %1523 = vmatpush1.msra.mxu0 0.0
    %1524 = vmatprep.subr.mxu0 0.0
    %1525 = vmatpush1.msra.mxu0 0.0
    %1526 = vmatprep.subr.mxu0 0.0
    %1527 = vmatpush1.msra.mxu0 0.0
    %1528 = vmatprep.subr.mxu0 0.0
    %1529 = vmatpush1.msra.mxu0 0.0
    %1530 = vmatprep.subr.mxu0 0.0
    %1531 = vmatpush1.msra.mxu0 0.0
    %1532 = vmatprep.subr.mxu0 0.0
    %1533 = vmatpush1.msra.mxu0 0.0
    %1534 = vmatprep.subr.mxu0 0.0
    %1535 = vmatpush1.msra.mxu0 0.0
    %1536 = vmatprep.subr.mxu0 0.0
    %1537 = vmatpush1.msra.mxu0 0.0
    %1538 = vmatprep.subr.mxu0 0.0
    %1539 = vmatpush1.msra.mxu0 0.0
    %1540 = vmatprep.subr.mxu0 0.0
    %1541 = vmatpush1.msra.mxu0 0.0
    %1542 = vmatprep.subr.mxu0 0.0
    %1543 = vmatpush1.msra.mxu0 0.0
    %1544 = vmatprep.subr.mxu0 0.0
    %1545 = vmatpush1.msra.mxu0 0.0
    %1546 = vmatprep.subr.mxu0 0.0
    %1547 = vmatpush1.msra.mxu0 0.0
    %1548 = vmatprep.subr.mxu0 0.0
    %1549 = vmatpush1.msra.mxu0 0.0
    %1550 = vmatprep.subr.mxu0 0.0
    %1551 = vmatpush1.msra.mxu0 0.0
    %1552 = vmatprep.subr.mxu0 0.0
    %1553 = vmatpush1.msra.mxu0 0.0
    %1554 = vmatprep.subr.mxu0 0.0
    %1555 = vmatpush1.msra.mxu0 0.0
    %1556 = vmatprep.subr.mxu0 0.0
    %1557 = vmatpush1.msra.mxu0 0.0
    %1558 = vmatprep.subr.mxu0 0.0
    %1559 = vmatpush1.msra.mxu0 0.0
    %1560 = vmatprep.subr.mxu0 0.0
    %1561 = vmatpush1.msra.mxu0 0.0
    %1562 = vmatprep.subr.mxu0 0.0
    %1563 = vmatpush1.msra.mxu0 0.0
    %1564 = vmatprep.subr.mxu0 0.0
    %1565 = vmatpush1.msra.mxu0 0.0
    %1566 = vmatprep.subr.mxu0 0.0
    %1567 = vmatpush1.msra.mxu0 0.0
    %1568 = vmatprep.mubr.f32.mxu0 0.0
    %1569 = vmatmul.mubr.f32.gmra.mrb[0].mxu0 %v1496
    %v1570 = vpop.f32.mrb[0].mxu0
    %v1571 = vadd.f32 0.0, %v1570
    %v1572 = vpop.f32.mrb[0].mxu0
    %1573 = vmatprep.mubr.f32.mxu0 0.0
    %1574 = vmatmul.mubr.f32.gmra.mrb[0].mxu0 %v1499
    %v1575 = vpop.f32.mrb[0].mxu0
    %v1576 = vadd.f32 0.0, %v1575
    %v1577 = vpop.f32.mrb[0].mxu0
    %1578 = vmatprep.mubr.f32.mxu0 0.0
    %1579 = vmatmul.mubr.f32.gmra.mrb[0].mxu0 %v1502
    %v1580 = vpop.f32.mrb[0].mxu0
    %v1581 = vadd.f32 0.0, %v1580
    %v1582 = vpop.f32.mrb[0].mxu0
    %1583 = vdwg.mxu0
    %v1584 = vld [vmem:[%s7] sm:$0xff]
    %v1585 = vld [vmem:[%s7 + $0x8] sm:$0xff]
    %v1586 = vld [vmem:[%s7 + $0x10] sm:$0xff]
    %v1587 = vld [vmem:[%s7 + $0x18] sm:$0xff]
    %1588 = vmatprep.subr.mxu0 0.0
    %1589 = vmatpush1.msra.mxu0 %v1584
    %1590 = vmatprep.subr.mxu0 0.0
    %1591 = vmatpush1.msra.mxu0 %v1585
    %1592 = vmatprep.subr.mxu0 0.0
    %1593 = vmatpush1.msra.mxu0 %v1586
    %1594 = vmatprep.subr.mxu0 0.0
    %1595 = vmatpush1.msra.mxu0 %v1587
    %1596 = vmatprep.subr.mxu0 0.0
    %1597 = vmatpush1.msra.mxu0 0.0
    %1598 = vmatprep.subr.mxu0 0.0
    %1599 = vmatpush1.msra.mxu0 0.0
    %1600 = vmatprep.subr.mxu0 0.0
    %1601 = vmatpush1.msra.mxu0 0.0
    %1602 = vmatprep.subr.mxu0 0.0
    %1603 = vmatpush1.msra.mxu0 0.0
    %1604 = vmatprep.subr.mxu0 0.0
    %1605 = vmatpush1.msra.mxu0 0.0
    %1606 = vmatprep.subr.mxu0 0.0
    %1607 = vmatpush1.msra.mxu0 0.0
    %1608 = vmatprep.subr.mxu0 0.0
    %1609 = vmatpush1.msra.mxu0 0.0
    %1610 = vmatprep.subr.mxu0 0.0
    %1611 = vmatpush1.msra.mxu0 0.0
    %1612 = vmatprep.subr.mxu0 0.0
    %1613 = vmatpush1.msra.mxu0 0.0
    %1614 = vmatprep.subr.mxu0 0.0
    %1615 = vmatpush1.msra.mxu0 0.0
    %1616 = vmatprep.subr.mxu0 0.0
    %1617 = vmatpush1.msra.mxu0 0.0
    %1618 = vmatprep.subr.mxu0 0.0
    %1619 = vmatpush1.msra.mxu0 0.0
    %1620 = vmatprep.subr.mxu0 0.0
    %1621 = vmatpush1.msra.mxu0 0.0
    %1622 = vmatprep.subr.mxu0 0.0
    %1623 = vmatpush1.msra.mxu0 0.0
    %1624 = vmatprep.subr.mxu0 0.0
    %1625 = vmatpush1.msra.mxu0 0.0
    %1626 = vmatprep.subr.mxu0 0.0
    %1627 = vmatpush1.msra.mxu0 0.0
    %1628 = vmatprep.subr.mxu0 0.0
    %1629 = vmatpush1.msra.mxu0 0.0
    %1630 = vmatprep.subr.mxu0 0.0
    %1631 = vmatpush1.msra.mxu0 0.0
    %1632 = vmatprep.subr.mxu0 0.0
    %1633 = vmatpush1.msra.mxu0 0.0
    %1634 = vmatprep.subr.mxu0 0.0
    %1635 = vmatpush1.msra.mxu0 0.0
    %1636 = vmatprep.subr.mxu0 0.0
    %1637 = vmatpush1.msra.mxu0 0.0
    %1638 = vmatprep.subr.mxu0 0.0
    %1639 = vmatpush1.msra.mxu0 0.0
    %1640 = vmatprep.subr.mxu0 0.0
    %1641 = vmatpush1.msra.mxu0 0.0
    %1642 = vmatprep.subr.mxu0 0.0
    %1643 = vmatpush1.msra.mxu0 0.0
    %1644 = vmatprep.subr.mxu0 0.0
    %1645 = vmatpush1.msra.mxu0 0.0
    %1646 = vmatprep.subr.mxu0 0.0
    %1647 = vmatpush1.msra.mxu0 0.0
    %1648 = vmatprep.subr.mxu0 0.0
    %1649 = vmatpush1.msra.mxu0 0.0
    %1650 = vmatprep.subr.mxu0 0.0
    %1651 = vmatpush1.msra.mxu0 0.0
    %1652 = vmatprep.mubr.f32.mxu0 0.0
    %1653 = vmatmul.mubr.f32.gmra.mrb[0].mxu0 %v1496
    %v1654 = vpop.f32.mrb[0].mxu0
    %v1655 = vadd.f32 0.0, %v1654
    %v1656 = vpop.f32.mrb[0].mxu0
    %1657 = vmatprep.mubr.f32.mxu0 0.0
    %1658 = vmatmul.mubr.f32.gmra.mrb[0].mxu0 %v1499
    %v1659 = vpop.f32.mrb[0].mxu0
    %v1660 = vadd.f32 0.0, %v1659
    %v1661 = vpop.f32.mrb[0].mxu0
    %1662 = vmatprep.mubr.f32.mxu0 0.0
    %1663 = vmatmul.mubr.f32.gmra.mrb[0].mxu0 %v1502
    %v1664 = vpop.f32.mrb[0].mxu0
    %v1665 = vadd.f32 0.0, %v1664
    %v1666 = vpop.f32.mrb[0].mxu0
    %1667 = vdwg.mxu0
    %v1668 = vld [vmem:[%s8] sm:$0xff]
    %v1669 = vld [vmem:[%s8 + $0x8] sm:$0xff]
    %v1670 = vld [vmem:[%s8 + $0x10] sm:$0xff]
    %v1671 = vld [vmem:[%s8 + $0x18] sm:$0xff]
    %1672 = vmatprep.subr.mxu0 0.0
    %1673 = vmatpush1.msra.mxu0 %v1668
    %1674 = vmatprep.subr.mxu0 0.0
    %1675 = vmatpush1.msra.mxu0 %v1669
    %1676 = vmatprep.subr.mxu0 0.0
    %1677 = vmatpush1.msra.mxu0 %v1670
    %1678 = vmatprep.subr.mxu0 0.0
    %1679 = vmatpush1.msra.mxu0 %v1671
    %1680 = vmatprep.subr.mxu0 0.0
    %1681 = vmatpush1.msra.mxu0 0.0
    %1682 = vmatprep.subr.mxu0 0.0
    %1683 = vmatpush1.msra.mxu0 0.0
    %1684 = vmatprep.subr.mxu0 0.0
    %1685 = vmatpush1.msra.mxu0 0.0
    %1686 = vmatprep.subr.mxu0 0.0
    %1687 = vmatpush1.msra.mxu0 0.0
    %1688 = vmatprep.subr.mxu0 0.0
    %1689 = vmatpush1.msra.mxu0 0.0
    %1690 = vmatprep.subr.mxu0 0.0
    %1691 = vmatpush1.msra.mxu0 0.0
    %1692 = vmatprep.subr.mxu0 0.0
    %1693 = vmatpush1.msra.mxu0 0.0
    %1694 = vmatprep.subr.mxu0 0.0
    %1695 = vmatpush1.msra.mxu0 0.0
    %1696 = vmatprep.subr.mxu0 0.0
    %1697 = vmatpush1.msra.mxu0 0.0
    %1698 = vmatprep.subr.mxu0 0.0
    %1699 = vmatpush1.msra.mxu0 0.0
    %1700 = vmatprep.subr.mxu0 0.0
    %1701 = vmatpush1.msra.mxu0 0.0
    %1702 = vmatprep.subr.mxu0 0.0
    %1703 = vmatpush1.msra.mxu0 0.0
    %1704 = vmatprep.subr.mxu0 0.0
    %1705 = vmatpush1.msra.mxu0 0.0
    %1706 = vmatprep.subr.mxu0 0.0
    %1707 = vmatpush1.msra.mxu0 0.0
    %1708 = vmatprep.subr.mxu0 0.0
    %1709 = vmatpush1.msra.mxu0 0.0
    %1710 = vmatprep.subr.mxu0 0.0
    %1711 = vmatpush1.msra.mxu0 0.0
    %1712 = vmatprep.subr.mxu0 0.0
    %1713 = vmatpush1.msra.mxu0 0.0
    %1714 = vmatprep.subr.mxu0 0.0
    %1715 = vmatpush1.msra.mxu0 0.0
    %1716 = vmatprep.subr.mxu0 0.0
    %1717 = vmatpush1.msra.mxu0 0.0
    %1718 = vmatprep.subr.mxu0 0.0
    %1719 = vmatpush1.msra.mxu0 0.0
    %1720 = vmatprep.subr.mxu0 0.0
    %1721 = vmatpush1.msra.mxu0 0.0
    %1722 = vmatprep.subr.mxu0 0.0
    %1723 = vmatpush1.msra.mxu0 0.0
    %1724 = vmatprep.subr.mxu0 0.0
    %1725 = vmatpush1.msra.mxu0 0.0
    %1726 = vmatprep.subr.mxu0 0.0
    %1727 = vmatpush1.msra.mxu0 0.0
    %1728 = vmatprep.subr.mxu0 0.0
    %1729 = vmatpush1.msra.mxu0 0.0
    %1730 = vmatprep.subr.mxu0 0.0
    %1731 = vmatpush1.msra.mxu0 0.0
    %1732 = vmatprep.subr.mxu0 0.0
    %1733 = vmatpush1.msra.mxu0 0.0
    %1734 = vmatprep.subr.mxu0 0.0
    %1735 = vmatpush1.msra.mxu0 0.0
    %1736 = vmatprep.mubr.f32.mxu0 0.0
    %1737 = vmatmul.mubr.f32.gmra.mrb[0].mxu0 %v1496
    %v1738 = vpop.f32.mrb[0].mxu0
    %v1739 = vadd.f32 0.0, %v1738
    %v1740 = vpop.f32.mrb[0].mxu0
    %1741 = vmatprep.mubr.f32.mxu0 0.0
    %1742 = vmatmul.mubr.f32.gmra.mrb[0].mxu0 %v1499
    %v1743 = vpop.f32.mrb[0].mxu0
    %v1744 = vadd.f32 0.0, %v1743
    %v1745 = vpop.f32.mrb[0].mxu0
    %1746 = vmatprep.mubr.f32.mxu0 0.0
    %1747 = vmatmul.mubr.f32.gmra.mrb[0].mxu0 %v1502
    %v1748 = vpop.f32.mrb[0].mxu0
    %v1749 = vadd.f32 0.0, %v1748
    %v1750 = vpop.f32.mrb[0].mxu0
    %1751 = vdwg.mxu0
    %v1753 = vsel %vm586, %v1571, 0
    %v1756 = vsel %vm586, %v1576, 0
    %v1759 = vsel %vm586, %v1581, 0
    %v1762 = vsel %vm586, %v1655, 0
    %v1765 = vsel %vm586, %v1660, 0
    %v1768 = vsel %vm586, %v1665, 0
    %1770 = vmatprep.subr.mxu0 0.0
    %1771 = vmatpush1.xpose.msra.mxu0 %v1762
    %1772 = vmatprep.subr.mxu0 0.0
    %1773 = vmatpush1.xpose.msra.mxu0 %v1765
    %1774 = vmatprep.subr.mxu0 0.0
    %1775 = vmatpush1.xpose.msra.mxu0 %v1768
    %1776 = vmatprep.subr.mxu0 0.0
    %1777 = vmatpush1.xpose.msra.mxu0 0.0
    %1778 = vmatprep.subr.mxu0 0.0
    %1779 = vmatpush1.xpose.msra.mxu0 0.0
    %1780 = vmatprep.subr.mxu0 0.0
    %1781 = vmatpush1.xpose.msra.mxu0 0.0
    %1782 = vmatprep.subr.mxu0 0.0
    %1783 = vmatpush1.xpose.msra.mxu0 0.0
    %1784 = vmatprep.subr.mxu0 0.0
    %1785 = vmatpush1.xpose.msra.mxu0 0.0
    %1786 = vmatprep.subr.mxu0 0.0
    %1787 = vmatpush1.xpose.msra.mxu0 0.0
    %1788 = vmatprep.subr.mxu0 0.0
    %1789 = vmatpush1.xpose.msra.mxu0 0.0
    %1790 = vmatprep.subr.mxu0 0.0
    %1791 = vmatpush1.xpose.msra.mxu0 0.0
    %1792 = vmatprep.subr.mxu0 0.0
    %1793 = vmatpush1.xpose.msra.mxu0 0.0
    %1794 = vmatprep.subr.mxu0 0.0
    %1795 = vmatpush1.xpose.msra.mxu0 0.0
    %1796 = vmatprep.subr.mxu0 0.0
    %1797 = vmatpush1.xpose.msra.mxu0 0.0
    %1798 = vmatprep.subr.mxu0 0.0
    %1799 = vmatpush1.xpose.msra.mxu0 0.0
    %1800 = vmatprep.subr.mxu0 0.0
    %1801 = vmatpush1.xpose.msra.mxu0 0.0
    %1802 = vmatprep.subr.mxu0 0.0
    %1803 = vmatpush1.xpose.msra.mxu0 0.0
    %1804 = vmatprep.subr.mxu0 0.0
    %1805 = vmatpush1.xpose.msra.mxu0 0.0
    %1806 = vmatprep.subr.mxu0 0.0
    %1807 = vmatpush1.xpose.msra.mxu0 0.0
    %1808 = vmatprep.subr.mxu0 0.0
    %1809 = vmatpush1.xpose.msra.mxu0 0.0
    %1810 = vmatprep.subr.mxu0 0.0
    %1811 = vmatpush1.xpose.msra.mxu0 0.0
    %1812 = vmatprep.subr.mxu0 0.0
    %1813 = vmatpush1.xpose.msra.mxu0 0.0
    %1814 = vmatprep.subr.mxu0 0.0
    %1815 = vmatpush1.xpose.msra.mxu0 0.0
    %1816 = vmatprep.subr.mxu0 0.0
    %1817 = vmatpush1.xpose.msra.mxu0 0.0
    %1818 = vmatprep.subr.mxu0 0.0
    %1819 = vmatpush1.xpose.msra.mxu0 0.0
    %1820 = vmatprep.subr.mxu0 0.0
    %1821 = vmatpush1.xpose.msra.mxu0 0.0
    %1822 = vmatprep.subr.mxu0 0.0
    %1823 = vmatpush1.xpose.msra.mxu0 0.0
    %1824 = vmatprep.subr.mxu0 0.0
    %1825 = vmatpush1.xpose.msra.mxu0 0.0
    %1826 = vmatprep.subr.mxu0 0.0
    %1827 = vmatpush1.xpose.msra.mxu0 0.0
    %1828 = vmatprep.subr.mxu0 0.0
    %1829 = vmatpush1.xpose.msra.mxu0 0.0
    %1830 = vmatprep.subr.mxu0 0.0
    %1831 = vmatpush1.xpose.msra.mxu0 0.0
    %1832 = vmatprep.subr.mxu0 0.0
    %1833 = vmatpush1.xpose.msra.mxu0 0.0
    %1834 = vmatprep.mubr.f32.mxu0 0.0
    %1835 = vmatmul.mubr.f32.gmra.mrb[0].mxu0 %v1753
    %v1836 = vpop.f32.mrb[0].mxu0
    %v1837 = vadd.f32 0.0, %v1836
    %v1838 = vpop.f32.mrb[0].mxu0
    %1839 = vmatprep.mubr.f32.mxu0 0.0
    %1840 = vmatmul.mubr.f32.gmra.mrb[0].mxu0 %v1756
    %v1841 = vpop.f32.mrb[0].mxu0
    %v1842 = vadd.f32 0.0, %v1841
    %v1843 = vpop.f32.mrb[0].mxu0
    %1844 = vmatprep.mubr.f32.mxu0 0.0
    %1845 = vmatmul.mubr.f32.gmra.mrb[0].mxu0 %v1759
    %v1846 = vpop.f32.mrb[0].mxu0
    %v1847 = vadd.f32 0.0, %v1846
    %v1848 = vpop.f32.mrb[0].mxu0
    %1849 = vdwg.mxu0
    %v1850 = vmul.f32 %v1837, 0.25
    %v1851 = vmul.f32 %v1842, 0.25
    %v1852 = vmul.f32 %v1847, 0.25
    %v1853 = vsel %vm688, %v1850, -inf
    %1854 = vmax.xlane.f32.xlu0 %v1853
    %v1855 = vpop.xlane.xlu0 %1854
    %v1856 = vsel %vm688, %v1851, -inf
    %1857 = vmax.xlane.f32.xlu0 %v1856
    %v1858 = vpop.xlane.xlu0 %1857
    %v1859 = vsel %vm695, %v1852, -inf
    %1860 = vmax.xlane.f32.xlu0 %v1859
    %v1861 = vpop.xlane.xlu0 %1860
    %v1862 = vsub.f32 %v1850, %v1855
    %v1863 = vsub.f32 %v1851, %v1858
    %v1864 = vsub.f32 %v1852, %v1861
    %v1865 = vmul.f32 %v1862, 1.442695
    %v1866 = vpow.pop %v1865
    %v1867 = vmul.f32 %v1863, 1.442695
    %v1868 = vpow.pop %v1867
    %v1869 = vmul.f32 %v1864, 1.442695
    %v1870 = vpow.pop %v1869
    %v1871 = vsel %vm688, %v1866, 0.0
    %1872 = vadd.xlane.f32.xlu0 %v1871
    %v1873 = vpop.xlane.xlu0 %1872
    %v1874 = vsel %vm688, %v1868, 0.0
    %1875 = vadd.xlane.f32.xlu0 %v1874
    %v1876 = vpop.xlane.xlu0 %1875
    %v1877 = vsel %vm695, %v1870, 0.0
    %1878 = vadd.xlane.f32.xlu0 %v1877
    %v1879 = vpop.xlane.xlu0 %1878
    %v1880 = vrcp.pop %v1873
    %v1881 = vrcp.pop %v1876
    %v1882 = vrcp.pop %v1879
    %v1883 = vmul.f32 %v1866, %v1880
    %v1884 = vmul.f32 %v1868, %v1881
    %v1885 = vmul.f32 %v1870, %v1882
    %v1887 = vsel %vm688, %v1883, 0
    %v1890 = vsel %vm688, %v1884, 0
    %v1893 = vsel %vm688, %v1885, 0
    %v1896 = vsel %vm732, %v1749, 0
    %1898 = vmatprep.subr.mxu0 0.0
    %1899 = vmatpush1.msra.mxu0 %v1739
    %1900 = vmatprep.subr.mxu0 0.0
    %1901 = vmatpush1.msra.mxu0 %v1744
    %1902 = vmatprep.subr.mxu0 0.0
    %1903 = vmatpush1.msra.mxu0 %v1896
    %1904 = vmatprep.subr.mxu0 0.0
    %1905 = vmatpush1.msra.mxu0 0.0
    %1906 = vmatprep.subr.mxu0 0.0
    %1907 = vmatpush1.msra.mxu0 0.0
    %1908 = vmatprep.subr.mxu0 0.0
    %1909 = vmatpush1.msra.mxu0 0.0
    %1910 = vmatprep.subr.mxu0 0.0
    %1911 = vmatpush1.msra.mxu0 0.0
    %1912 = vmatprep.subr.mxu0 0.0
    %1913 = vmatpush1.msra.mxu0 0.0
    %1914 = vmatprep.subr.mxu0 0.0
    %1915 = vmatpush1.msra.mxu0 0.0
    %1916 = vmatprep.subr.mxu0 0.0
    %1917 = vmatpush1.msra.mxu0 0.0
    %1918 = vmatprep.subr.mxu0 0.0
    %1919 = vmatpush1.msra.mxu0 0.0
    %1920 = vmatprep.subr.mxu0 0.0
    %1921 = vmatpush1.msra.mxu0 0.0
    %1922 = vmatprep.subr.mxu0 0.0
    %1923 = vmatpush1.msra.mxu0 0.0
    %1924 = vmatprep.subr.mxu0 0.0
    %1925 = vmatpush1.msra.mxu0 0.0
    %1926 = vmatprep.subr.mxu0 0.0
    %1927 = vmatpush1.msra.mxu0 0.0
    %1928 = vmatprep.subr.mxu0 0.0
    %1929 = vmatpush1.msra.mxu0 0.0
    %1930 = vmatprep.subr.mxu0 0.0
    %1931 = vmatpush1.msra.mxu0 0.0
    %1932 = vmatprep.subr.mxu0 0.0
    %1933 = vmatpush1.msra.mxu0 0.0
    %1934 = vmatprep.subr.mxu0 0.0
    %1935 = vmatpush1.msra.mxu0 0.0
    %1936 = vmatprep.subr.mxu0 0.0
    %1937 = vmatpush1.msra.mxu0 0.0
    %1938 = vmatprep.subr.mxu0 0.0
    %1939 = vmatpush1.msra.mxu0 0.0
    %1940 = vmatprep.subr.mxu0 0.0
    %1941 = vmatpush1.msra.mxu0 0.0
    %1942 = vmatprep.subr.mxu0 0.0
    %1943 = vmatpush1.msra.mxu0 0.0
    %1944 = vmatprep.subr.mxu0 0.0
    %1945 = vmatpush1.msra.mxu0 0.0
    %1946 = vmatprep.subr.mxu0 0.0
    %1947 = vmatpush1.msra.mxu0 0.0
    %1948 = vmatprep.subr.mxu0 0.0
    %1949 = vmatpush1.msra.mxu0 0.0
    %1950 = vmatprep.subr.mxu0 0.0
    %1951 = vmatpush1.msra.mxu0 0.0
    %1952 = vmatprep.subr.mxu0 0.0
    %1953 = vmatpush1.msra.mxu0 0.0
    %1954 = vmatprep.subr.mxu0 0.0
    %1955 = vmatpush1.msra.mxu0 0.0
    %1956 = vmatprep.subr.mxu0 0.0
    %1957 = vmatpush1.msra.mxu0 0.0
    %1958 = vmatprep.subr.mxu0 0.0
    %1959 = vmatpush1.msra.mxu0 0.0
    %1960 = vmatprep.subr.mxu0 0.0
    %1961 = vmatpush1.msra.mxu0 0.0
    %1962 = vmatprep.mubr.f32.mxu0 0.0
    %1963 = vmatmul.mubr.f32.gmra.mrb[0].mxu0 %v1887
    %v1964 = vpop.f32.mrb[0].mxu0
    %v1965 = vadd.f32 0.0, %v1964
    %v1966 = vpop.f32.mrb[0].mxu0
    %1967 = vmatprep.mubr.f32.mxu0 0.0
    %1968 = vmatmul.mubr.f32.gmra.mrb[0].mxu0 %v1890
    %v1969 = vpop.f32.mrb[0].mxu0
    %v1970 = vadd.f32 0.0, %v1969
    %v1971 = vpop.f32.mrb[0].mxu0
    %1972 = vmatprep.mubr.f32.mxu0 0.0
    %1973 = vmatmul.mubr.f32.gmra.mrb[0].mxu0 %v1893
    %v1974 = vpop.f32.mrb[0].mxu0
    %v1975 = vadd.f32 0.0, %v1974
    %v1976 = vpop.f32.mrb[0].mxu0
    %1977 = vdwg.mxu0
    %v1978 = vld [vmem:[%s816] sm:$0xff]
    %v1979 = vld [vmem:[%s816 + $0x8] sm:$0xff]
    %v1980 = vld [vmem:[%s816 + $0x10] sm:$0xff]
    %v1981 = vld [vmem:[%s816 + $0x18] sm:$0xff]
    %1982 = vmatprep.subr.mxu0 0.0
    %1983 = vmatpush1.msra.mxu0 %v1978
    %1984 = vmatprep.subr.mxu0 0.0
    %1985 = vmatpush1.msra.mxu0 %v1979
    %1986 = vmatprep.subr.mxu0 0.0
    %1987 = vmatpush1.msra.mxu0 %v1980
    %1988 = vmatprep.subr.mxu0 0.0
    %1989 = vmatpush1.msra.mxu0 %v1981
    %1990 = vmatprep.subr.mxu0 0.0
    %1991 = vmatpush1.msra.mxu0 0.0
    %1992 = vmatprep.subr.mxu0 0.0
    %1993 = vmatpush1.msra.mxu0 0.0
    %1994 = vmatprep.subr.mxu0 0.0
    %1995 = vmatpush1.msra.mxu0 0.0
    %1996 = vmatprep.subr.mxu0 0.0
    %1997 = vmatpush1.msra.mxu0 0.0
    %1998 = vmatprep.subr.mxu0 0.0
    %1999 = vmatpush1.msra.mxu0 0.0
    %2000 = vmatprep.subr.mxu0 0.0
    %2001 = vmatpush1.msra.mxu0 0.0
    %2002 = vmatprep.subr.mxu0 0.0
    %2003 = vmatpush1.msra.mxu0 0.0
    %2004 = vmatprep.subr.mxu0 0.0
    %2005 = vmatpush1.msra.mxu0 0.0
    %2006 = vmatprep.subr.mxu0 0.0
    %2007 = vmatpush1.msra.mxu0 0.0
    %2008 = vmatprep.subr.mxu0 0.0
    %2009 = vmatpush1.msra.mxu0 0.0
    %2010 = vmatprep.subr.mxu0 0.0
    %2011 = vmatpush1.msra.mxu0 0.0
    %2012 = vmatprep.subr.mxu0 0.0
    %2013 = vmatpush1.msra.mxu0 0.0
    %2014 = vmatprep.subr.mxu0 0.0
    %2015 = vmatpush1.msra.mxu0 0.0
    %2016 = vmatprep.subr.mxu0 0.0
    %2017 = vmatpush1.msra.mxu0 0.0
    %2018 = vmatprep.subr.mxu0 0.0
    %2019 = vmatpush1.msra.mxu0 0.0
    %2020 = vmatprep.subr.mxu0 0.0
    %2021 = vmatpush1.msra.mxu0 0.0
    %2022 = vmatprep.subr.mxu0 0.0
    %2023 = vmatpush1.msra.mxu0 0.0
    %2024 = vmatprep.subr.mxu0 0.0
    %2025 = vmatpush1.msra.mxu0 0.0
    %2026 = vmatprep.subr.mxu0 0.0
    %2027 = vmatpush1.msra.mxu0 0.0
    %2028 = vmatprep.subr.mxu0 0.0
    %2029 = vmatpush1.msra.mxu0 0.0
    %2030 = vmatprep.subr.mxu0 0.0
    %2031 = vmatpush1.msra.mxu0 0.0
    %2032 = vmatprep.subr.mxu0 0.0
    %2033 = vmatpush1.msra.mxu0 0.0
    %2034 = vmatprep.subr.mxu0 0.0
    %2035 = vmatpush1.msra.mxu0 0.0
    %2036 = vmatprep.subr.mxu0 0.0
    %2037 = vmatpush1.msra.mxu0 0.0
    %2038 = vmatprep.subr.mxu0 0.0
    %2039 = vmatpush1.msra.mxu0 0.0
    %2040 = vmatprep.subr.mxu0 0.0
    %2041 = vmatpush1.msra.mxu0 0.0
    %2042 = vmatprep.subr.mxu0 0.0
    %2043 = vmatpush1.msra.mxu0 0.0
    %2044 = vmatprep.subr.mxu0 0.0
    %2045 = vmatpush1.msra.mxu0 0.0
    %2046 = vmatprep.mubr.f32.mxu0 0.0
    %2047 = vmatmul.mubr.f32.gmra.mrb[0].mxu0 %v1496
    %v2048 = vpop.f32.mrb[0].mxu0
    %v2049 = vadd.f32 0.0, %v2048
    %v2050 = vpop.f32.mrb[0].mxu0
    %2051 = vmatprep.mubr.f32.mxu0 0.0
    %2052 = vmatmul.mubr.f32.gmra.mrb[0].mxu0 %v1499
    %v2053 = vpop.f32.mrb[0].mxu0
    %v2054 = vadd.f32 0.0, %v2053
    %v2055 = vpop.f32.mrb[0].mxu0
    %2056 = vmatprep.mubr.f32.mxu0 0.0
    %2057 = vmatmul.mubr.f32.gmra.mrb[0].mxu0 %v1502
    %v2058 = vpop.f32.mrb[0].mxu0
    %v2059 = vadd.f32 0.0, %v2058
    %v2060 = vpop.f32.mrb[0].mxu0
    %2061 = vdwg.mxu0
    %v2062 = vld [vmem:[%s901] sm:$0xff]
    %v2063 = vld [vmem:[%s901 + $0x8] sm:$0xff]
    %v2064 = vld [vmem:[%s901 + $0x10] sm:$0xff]
    %v2065 = vld [vmem:[%s901 + $0x18] sm:$0xff]
    %2066 = vmatprep.subr.mxu0 0.0
    %2067 = vmatpush1.msra.mxu0 %v2062
    %2068 = vmatprep.subr.mxu0 0.0
    %2069 = vmatpush1.msra.mxu0 %v2063
    %2070 = vmatprep.subr.mxu0 0.0
    %2071 = vmatpush1.msra.mxu0 %v2064
    %2072 = vmatprep.subr.mxu0 0.0
    %2073 = vmatpush1.msra.mxu0 %v2065
    %2074 = vmatprep.subr.mxu0 0.0
    %2075 = vmatpush1.msra.mxu0 0.0
    %2076 = vmatprep.subr.mxu0 0.0
    %2077 = vmatpush1.msra.mxu0 0.0
    %2078 = vmatprep.subr.mxu0 0.0
    %2079 = vmatpush1.msra.mxu0 0.0
    %2080 = vmatprep.subr.mxu0 0.0
    %2081 = vmatpush1.msra.mxu0 0.0
    %2082 = vmatprep.subr.mxu0 0.0
    %2083 = vmatpush1.msra.mxu0 0.0
    %2084 = vmatprep.subr.mxu0 0.0
    %2085 = vmatpush1.msra.mxu0 0.0
    %2086 = vmatprep.subr.mxu0 0.0
    %2087 = vmatpush1.msra.mxu0 0.0
    %2088 = vmatprep.subr.mxu0 0.0
    %2089 = vmatpush1.msra.mxu0 0.0
    %2090 = vmatprep.subr.mxu0 0.0
    %2091 = vmatpush1.msra.mxu0 0.0
    %2092 = vmatprep.subr.mxu0 0.0
    %2093 = vmatpush1.msra.mxu0 0.0
    %2094 = vmatprep.subr.mxu0 0.0
    %2095 = vmatpush1.msra.mxu0 0.0
    %2096 = vmatprep.subr.mxu0 0.0
    %2097 = vmatpush1.msra.mxu0 0.0
    %2098 = vmatprep.subr.mxu0 0.0
    %2099 = vmatpush1.msra.mxu0 0.0
    %2100 = vmatprep.subr.mxu0 0.0
    %2101 = vmatpush1.msra.mxu0 0.0
    %2102 = vmatprep.subr.mxu0 0.0
    %2103 = vmatpush1.msra.mxu0 0.0
    %2104 = vmatprep.subr.mxu0 0.0
    %2105 = vmatpush1.msra.mxu0 0.0
    %2106 = vmatprep.subr.mxu0 0.0
    %2107 = vmatpush1.msra.mxu0 0.0
    %2108 = vmatprep.subr.mxu0 0.0
    %2109 = vmatpush1.msra.mxu0 0.0
    %2110 = vmatprep.subr.mxu0 0.0
    %2111 = vmatpush1.msra.mxu0 0.0
    %2112 = vmatprep.subr.mxu0 0.0
    %2113 = vmatpush1.msra.mxu0 0.0
    %2114 = vmatprep.subr.mxu0 0.0
    %2115 = vmatpush1.msra.mxu0 0.0
    %2116 = vmatprep.subr.mxu0 0.0
    %2117 = vmatpush1.msra.mxu0 0.0
    %2118 = vmatprep.subr.mxu0 0.0
    %2119 = vmatpush1.msra.mxu0 0.0
    %2120 = vmatprep.subr.mxu0 0.0
    %2121 = vmatpush1.msra.mxu0 0.0
    %2122 = vmatprep.subr.mxu0 0.0
    %2123 = vmatpush1.msra.mxu0 0.0
    %2124 = vmatprep.subr.mxu0 0.0
    %2125 = vmatpush1.msra.mxu0 0.0
    %2126 = vmatprep.subr.mxu0 0.0
    %2127 = vmatpush1.msra.mxu0 0.0
    %2128 = vmatprep.subr.mxu0 0.0
    %2129 = vmatpush1.msra.mxu0 0.0
    %2130 = vmatprep.mubr.f32.mxu0 0.0
    %2131 = vmatmul.mubr.f32.gmra.mrb[0].mxu0 %v1496
    %v2132 = vpop.f32.mrb[0].mxu0
    %v2133 = vadd.f32 0.0, %v2132
    %v2134 = vpop.f32.mrb[0].mxu0
    %2135 = vmatprep.mubr.f32.mxu0 0.0
    %2136 = vmatmul.mubr.f32.gmra.mrb[0].mxu0 %v1499
    %v2137 = vpop.f32.mrb[0].mxu0
    %v2138 = vadd.f32 0.0, %v2137
    %v2139 = vpop.f32.mrb[0].mxu0
    %2140 = vmatprep.mubr.f32.mxu0 0.0
    %2141 = vmatmul.mubr.f32.gmra.mrb[0].mxu0 %v1502
    %v2142 = vpop.f32.mrb[0].mxu0
    %v2143 = vadd.f32 0.0, %v2142
    %v2144 = vpop.f32.mrb[0].mxu0
    %2145 = vdwg.mxu0
    %v2146 = vld [vmem:[%s986] sm:$0xff]
    %v2147 = vld [vmem:[%s986 + $0x8] sm:$0xff]
    %v2148 = vld [vmem:[%s986 + $0x10] sm:$0xff]
    %v2149 = vld [vmem:[%s986 + $0x18] sm:$0xff]
    %2150 = vmatprep.subr.mxu0 0.0
    %2151 = vmatpush1.msra.mxu0 %v2146
    %2152 = vmatprep.subr.mxu0 0.0
    %2153 = vmatpush1.msra.mxu0 %v2147
    %2154 = vmatprep.subr.mxu0 0.0
    %2155 = vmatpush1.msra.mxu0 %v2148
    %2156 = vmatprep.subr.mxu0 0.0
    %2157 = vmatpush1.msra.mxu0 %v2149
    %2158 = vmatprep.subr.mxu0 0.0
    %2159 = vmatpush1.msra.mxu0 0.0
    %2160 = vmatprep.subr.mxu0 0.0
    %2161 = vmatpush1.msra.mxu0 0.0
    %2162 = vmatprep.subr.mxu0 0.0
    %2163 = vmatpush1.msra.mxu0 0.0
    %2164 = vmatprep.subr.mxu0 0.0
    %2165 = vmatpush1.msra.mxu0 0.0
    %2166 = vmatprep.subr.mxu0 0.0
    %2167 = vmatpush1.msra.mxu0 0.0
    %2168 = vmatprep.subr.mxu0 0.0
    %2169 = vmatpush1.msra.mxu0 0.0
    %2170 = vmatprep.subr.mxu0 0.0
    %2171 = vmatpush1.msra.mxu0 0.0
    %2172 = vmatprep.subr.mxu0 0.0
    %2173 = vmatpush1.msra.mxu0 0.0
    %2174 = vmatprep.subr.mxu0 0.0
    %2175 = vmatpush1.msra.mxu0 0.0
    %2176 = vmatprep.subr.mxu0 0.0
    %2177 = vmatpush1.msra.mxu0 0.0
    %2178 = vmatprep.subr.mxu0 0.0
    %2179 = vmatpush1.msra.mxu0 0.0
    %2180 = vmatprep.subr.mxu0 0.0
    %2181 = vmatpush1.msra.mxu0 0.0
    %2182 = vmatprep.subr.mxu0 0.0
    %2183 = vmatpush1.msra.mxu0 0.0
    %2184 = vmatprep.subr.mxu0 0.0
    %2185 = vmatpush1.msra.mxu0 0.0
    %2186 = vmatprep.subr.mxu0 0.0
    %2187 = vmatpush1.msra.mxu0 0.0
    %2188 = vmatprep.subr.mxu0 0.0
    %2189 = vmatpush1.msra.mxu0 0.0
    %2190 = vmatprep.subr.mxu0 0.0
    %2191 = vmatpush1.msra.mxu0 0.0
    %2192 = vmatprep.subr.mxu0 0.0
    %2193 = vmatpush1.msra.mxu0 0.0
    %2194 = vmatprep.subr.mxu0 0.0
    %2195 = vmatpush1.msra.mxu0 0.0
    %2196 = vmatprep.subr.mxu0 0.0
    %2197 = vmatpush1.msra.mxu0 0.0
    %2198 = vmatprep.subr.mxu0 0.0
    %2199 = vmatpush1.msra.mxu0 0.0
    %2200 = vmatprep.subr.mxu0 0.0
    %2201 = vmatpush1.msra.mxu0 0.0
    %2202 = vmatprep.subr.mxu0 0.0
    %2203 = vmatpush1.msra.mxu0 0.0
    %2204 = vmatprep.subr.mxu0 0.0
    %2205 = vmatpush1.msra.mxu0 0.0
    %2206 = vmatprep.subr.mxu0 0.0
    %2207 = vmatpush1.msra.mxu0 0.0
    %2208 = vmatprep.subr.mxu0 0.0
    %2209 = vmatpush1.msra.mxu0 0.0
    %2210 = vmatprep.subr.mxu0 0.0
    %2211 = vmatpush1.msra.mxu0 0.0
    %2212 = vmatprep.subr.mxu0 0.0
    %2213 = vmatpush1.msra.mxu0 0.0
    %2214 = vmatprep.mubr.f32.mxu0 0.0
    %2215 = vmatmul.mubr.f32.gmra.mrb[0].mxu0 %v1496
    %v2216 = vpop.f32.mrb[0].mxu0
    %v2217 = vadd.f32 0.0, %v2216
    %v2218 = vpop.f32.mrb[0].mxu0
    %2219 = vmatprep.mubr.f32.mxu0 0.0
    %2220 = vmatmul.mubr.f32.gmra.mrb[0].mxu0 %v1499
    %v2221 = vpop.f32.mrb[0].mxu0
    %v2222 = vadd.f32 0.0, %v2221
    %v2223 = vpop.f32.mrb[0].mxu0
    %2224 = vmatprep.mubr.f32.mxu0 0.0
    %2225 = vmatmul.mubr.f32.gmra.mrb[0].mxu0 %v1502
    %v2226 = vpop.f32.mrb[0].mxu0
    %v2227 = vadd.f32 0.0, %v2226
    %v2228 = vpop.f32.mrb[0].mxu0
    %2229 = vdwg.mxu0
    %v2231 = vsel %vm586, %v2049, 0
    %v2234 = vsel %vm586, %v2054, 0
    %v2237 = vsel %vm586, %v2059, 0
    %v2240 = vsel %vm586, %v2133, 0
    %v2243 = vsel %vm586, %v2138, 0
    %v2246 = vsel %vm586, %v2143, 0
    %2248 = vmatprep.subr.mxu0 0.0
    %2249 = vmatpush1.xpose.msra.mxu0 %v2240
    %2250 = vmatprep.subr.mxu0 0.0
    %2251 = vmatpush1.xpose.msra.mxu0 %v2243
    %2252 = vmatprep.subr.mxu0 0.0
    %2253 = vmatpush1.xpose.msra.mxu0 %v2246
    %2254 = vmatprep.subr.mxu0 0.0
    %2255 = vmatpush1.xpose.msra.mxu0 0.0
    %2256 = vmatprep.subr.mxu0 0.0
    %2257 = vmatpush1.xpose.msra.mxu0 0.0
    %2258 = vmatprep.subr.mxu0 0.0
    %2259 = vmatpush1.xpose.msra.mxu0 0.0
    %2260 = vmatprep.subr.mxu0 0.0
    %2261 = vmatpush1.xpose.msra.mxu0 0.0
    %2262 = vmatprep.subr.mxu0 0.0
    %2263 = vmatpush1.xpose.msra.mxu0 0.0
    %2264 = vmatprep.subr.mxu0 0.0
    %2265 = vmatpush1.xpose.msra.mxu0 0.0
    %2266 = vmatprep.subr.mxu0 0.0
    %2267 = vmatpush1.xpose.msra.mxu0 0.0
    %2268 = vmatprep.subr.mxu0 0.0
    %2269 = vmatpush1.xpose.msra.mxu0 0.0
    %2270 = vmatprep.subr.mxu0 0.0
    %2271 = vmatpush1.xpose.msra.mxu0 0.0
    %2272 = vmatprep.subr.mxu0 0.0
    %2273 = vmatpush1.xpose.msra.mxu0 0.0
    %2274 = vmatprep.subr.mxu0 0.0
    %2275 = vmatpush1.xpose.msra.mxu0 0.0
    %2276 = vmatprep.subr.mxu0 0.0
    %2277 = vmatpush1.xpose.msra.mxu0 0.0
    %2278 = vmatprep.subr.mxu0 0.0
    %2279 = vmatpush1.xpose.msra.mxu0 0.0
    %2280 = vmatprep.subr.mxu0 0.0
    %2281 = vmatpush1.xpose.msra.mxu0 0.0
    %2282 = vmatprep.subr.mxu0 0.0
    %2283 = vmatpush1.xpose.msra.mxu0 0.0
    %2284 = vmatprep.subr.mxu0 0.0
    %2285 = vmatpush1.xpose.msra.mxu0 0.0
    %2286 = vmatprep.subr.mxu0 0.0
    %2287 = vmatpush1.xpose.msra.mxu0 0.0
    %2288 = vmatprep.subr.mxu0 0.0
    %2289 = vmatpush1.xpose.msra.mxu0 0.0
    %2290 = vmatprep.subr.mxu0 0.0
    %2291 = vmatpush1.xpose.msra.mxu0 0.0
    %2292 = vmatprep.subr.mxu0 0.0
    %2293 = vmatpush1.xpose.msra.mxu0 0.0
    %2294 = vmatprep.subr.mxu0 0.0
    %2295 = vmatpush1.xpose.msra.mxu0 0.0
    %2296 = vmatprep.subr.mxu0 0.0
    %2297 = vmatpush1.xpose.msra.mxu0 0.0
    %2298 = vmatprep.subr.mxu0 0.0
    %2299 = vmatpush1.xpose.msra.mxu0 0.0
    %2300 = vmatprep.subr.mxu0 0.0
    %2301 = vmatpush1.xpose.msra.mxu0 0.0
    %2302 = vmatprep.subr.mxu0 0.0
    %2303 = vmatpush1.xpose.msra.mxu0 0.0
    %2304 = vmatprep.subr.mxu0 0.0
    %2305 = vmatpush1.xpose.msra.mxu0 0.0
    %2306 = vmatprep.subr.mxu0 0.0
    %2307 = vmatpush1.xpose.msra.mxu0 0.0
    %2308 = vmatprep.subr.mxu0 0.0
    %2309 = vmatpush1.xpose.msra.mxu0 0.0
    %2310 = vmatprep.subr.mxu0 0.0
    %2311 = vmatpush1.xpose.msra.mxu0 0.0
    %2312 = vmatprep.mubr.f32.mxu0 0.0
    %2313 = vmatmul.mubr.f32.gmra.mrb[0].mxu0 %v2231
    %v2314 = vpop.f32.mrb[0].mxu0
    %v2315 = vadd.f32 0.0, %v2314
    %v2316 = vpop.f32.mrb[0].mxu0
    %2317 = vmatprep.mubr.f32.mxu0 0.0
    %2318 = vmatmul.mubr.f32.gmra.mrb[0].mxu0 %v2234
    %v2319 = vpop.f32.mrb[0].mxu0
    %v2320 = vadd.f32 0.0, %v2319
    %v2321 = vpop.f32.mrb[0].mxu0
    %2322 = vmatprep.mubr.f32.mxu0 0.0
    %2323 = vmatmul.mubr.f32.gmra.mrb[0].mxu0 %v2237
    %v2324 = vpop.f32.mrb[0].mxu0
    %v2325 = vadd.f32 0.0, %v2324
    %v2326 = vpop.f32.mrb[0].mxu0
    %2327 = vdwg.mxu0
    %v2328 = vmul.f32 %v2315, 0.25
    %v2329 = vmul.f32 %v2320, 0.25
    %v2330 = vmul.f32 %v2325, 0.25
    %v2331 = vsel %vm688, %v2328, -inf
    %2332 = vmax.xlane.f32.xlu0 %v2331
    %v2333 = vpop.xlane.xlu0 %2332
    %v2334 = vsel %vm688, %v2329, -inf
    %2335 = vmax.xlane.f32.xlu0 %v2334
    %v2336 = vpop.xlane.xlu0 %2335
    %v2337 = vsel %vm695, %v2330, -inf
    %2338 = vmax.xlane.f32.xlu0 %v2337
    %v2339 = vpop.xlane.xlu0 %2338
    %v2340 = vsub.f32 %v2328, %v2333
    %v2341 = vsub.f32 %v2329, %v2336
    %v2342 = vsub.f32 %v2330, %v2339
    %v2343 = vmul.f32 %v2340, 1.442695
    %v2344 = vpow.pop %v2343
    %v2345 = vmul.f32 %v2341, 1.442695
    %v2346 = vpow.pop %v2345
    %v2347 = vmul.f32 %v2342, 1.442695
    %v2348 = vpow.pop %v2347
    %v2349 = vsel %vm688, %v2344, 0.0
    %2350 = vadd.xlane.f32.xlu0 %v2349
    %v2351 = vpop.xlane.xlu0 %2350
    %v2352 = vsel %vm688, %v2346, 0.0
    %2353 = vadd.xlane.f32.xlu0 %v2352
    %v2354 = vpop.xlane.xlu0 %2353
    %v2355 = vsel %vm695, %v2348, 0.0
    %2356 = vadd.xlane.f32.xlu0 %v2355
    %v2357 = vpop.xlane.xlu0 %2356
    %v2358 = vrcp.pop %v2351
    %v2359 = vrcp.pop %v2354
    %v2360 = vrcp.pop %v2357
    %v2361 = vmul.f32 %v2344, %v2358
    %v2362 = vmul.f32 %v2346, %v2359
    %v2363 = vmul.f32 %v2348, %v2360
    %v2365 = vsel %vm688, %v2361, 0
    %v2368 = vsel %vm688, %v2362, 0
    %v2371 = vsel %vm688, %v2363, 0
    %v2374 = vsel %vm732, %v2227, 0
    %2376 = vmatprep.subr.mxu0 0.0
    %2377 = vmatpush1.msra.mxu0 %v2217
    %2378 = vmatprep.subr.mxu0 0.0
    %2379 = vmatpush1.msra.mxu0 %v2222
    %2380 = vmatprep.subr.mxu0 0.0
    %2381 = vmatpush1.msra.mxu0 %v2374
    %2382 = vmatprep.subr.mxu0 0.0
    %2383 = vmatpush1.msra.mxu0 0.0
    %2384 = vmatprep.subr.mxu0 0.0
    %2385 = vmatpush1.msra.mxu0 0.0
    %2386 = vmatprep.subr.mxu0 0.0
    %2387 = vmatpush1.msra.mxu0 0.0
    %2388 = vmatprep.subr.mxu0 0.0
    %2389 = vmatpush1.msra.mxu0 0.0
    %2390 = vmatprep.subr.mxu0 0.0
    %2391 = vmatpush1.msra.mxu0 0.0
    %2392 = vmatprep.subr.mxu0 0.0
    %2393 = vmatpush1.msra.mxu0 0.0
    %2394 = vmatprep.subr.mxu0 0.0
    %2395 = vmatpush1.msra.mxu0 0.0
    %2396 = vmatprep.subr.mxu0 0.0
    %2397 = vmatpush1.msra.mxu0 0.0
    %2398 = vmatprep.subr.mxu0 0.0
    %2399 = vmatpush1.msra.mxu0 0.0
    %2400 = vmatprep.subr.mxu0 0.0
    %2401 = vmatpush1.msra.mxu0 0.0
    %2402 = vmatprep.subr.mxu0 0.0
    %2403 = vmatpush1.msra.mxu0 0.0
    %2404 = vmatprep.subr.mxu0 0.0
    %2405 = vmatpush1.msra.mxu0 0.0
    %2406 = vmatprep.subr.mxu0 0.0
    %2407 = vmatpush1.msra.mxu0 0.0
    %2408 = vmatprep.subr.mxu0 0.0
    %2409 = vmatpush1.msra.mxu0 0.0
    %2410 = vmatprep.subr.mxu0 0.0
    %2411 = vmatpush1.msra.mxu0 0.0
    %2412 = vmatprep.subr.mxu0 0.0
    %2413 = vmatpush1.msra.mxu0 0.0
    %2414 = vmatprep.subr.mxu0 0.0
    %2415 = vmatpush1.msra.mxu0 0.0
    %2416 = vmatprep.subr.mxu0 0.0
    %2417 = vmatpush1.msra.mxu0 0.0
    %2418 = vmatprep.subr.mxu0 0.0
    %2419 = vmatpush1.msra.mxu0 0.0
    %2420 = vmatprep.subr.mxu0 0.0
    %2421 = vmatpush1.msra.mxu0 0.0
    %2422 = vmatprep.subr.mxu0 0.0
    %2423 = vmatpush1.msra.mxu0 0.0
    %2424 = vmatprep.subr.mxu0 0.0
    %2425 = vmatpush1.msra.mxu0 0.0
    %2426 = vmatprep.subr.mxu0 0.0
    %2427 = vmatpush1.msra.mxu0 0.0
    %2428 = vmatprep.subr.mxu0 0.0
    %2429 = vmatpush1.msra.mxu0 0.0
    %2430 = vmatprep.subr.mxu0 0.0
    %2431 = vmatpush1.msra.mxu0 0.0
    %2432 = vmatprep.subr.mxu0 0.0
    %2433 = vmatpush1.msra.mxu0 0.0
    %2434 = vmatprep.subr.mxu0 0.0
    %2435 = vmatpush1.msra.mxu0 0.0
    %2436 = vmatprep.subr.mxu0 0.0
    %2437 = vmatpush1.msra.mxu0 0.0
    %2438 = vmatprep.subr.mxu0 0.0
    %2439 = vmatpush1.msra.mxu0 0.0
    %2440 = vmatprep.mubr.f32.mxu0 0.0
    %2441 = vmatmul.mubr.f32.gmra.mrb[0].mxu0 %v2365
    %v2442 = vpop.f32.mrb[0].mxu0
    %v2443 = vadd.f32 0.0, %v2442
    %v2444 = vpop.f32.mrb[0].mxu0
    %2445 = vmatprep.mubr.f32.mxu0 0.0
    %2446 = vmatmul.mubr.f32.gmra.mrb[0].mxu0 %v2368
    %v2447 = vpop.f32.mrb[0].mxu0
    %v2448 = vadd.f32 0.0, %v2447
    %v2449 = vpop.f32.mrb[0].mxu0
    %2450 = vmatprep.mubr.f32.mxu0 0.0
    %2451 = vmatmul.mubr.f32.gmra.mrb[0].mxu0 %v2371
    %v2452 = vpop.f32.mrb[0].mxu0
    %v2453 = vadd.f32 0.0, %v2452
    %v2454 = vpop.f32.mrb[0].mxu0
    %2455 = vdwg.mxu0
    %v2457 = vsel %vm586, %v2443, 0
    %v2460 = vsel %vm586, %v2448, 0
    %v2463 = vsel %vm586, %v2453, 0
    %2465 = vmatprep.subr.mxu0 0.0
    %2466 = vmatpush1.msra.mxu0 %v322
    %2467 = vmatprep.subr.mxu0 0.0
    %2468 = vmatpush1.msra.mxu0 %v323
    %2469 = vmatprep.subr.mxu0 0.0
    %2470 = vmatpush1.msra.mxu0 0.0
    %2471 = vmatprep.subr.mxu0 0.0
    %2472 = vmatpush1.msra.mxu0 0.0
    %2473 = vmatprep.subr.mxu0 0.0
    %2474 = vmatpush1.msra.mxu0 0.0
    %2475 = vmatprep.subr.mxu0 0.0
    %2476 = vmatpush1.msra.mxu0 0.0
    %2477 = vmatprep.subr.mxu0 0.0
    %2478 = vmatpush1.msra.mxu0 0.0
    %2479 = vmatprep.subr.mxu0 0.0
    %2480 = vmatpush1.msra.mxu0 0.0
    %2481 = vmatprep.subr.mxu0 0.0
    %2482 = vmatpush1.msra.mxu0 0.0
    %2483 = vmatprep.subr.mxu0 0.0
    %2484 = vmatpush1.msra.mxu0 0.0
    %2485 = vmatprep.subr.mxu0 0.0
    %2486 = vmatpush1.msra.mxu0 0.0
    %2487 = vmatprep.subr.mxu0 0.0
    %2488 = vmatpush1.msra.mxu0 0.0
    %2489 = vmatprep.subr.mxu0 0.0
    %2490 = vmatpush1.msra.mxu0 0.0
    %2491 = vmatprep.subr.mxu0 0.0
    %2492 = vmatpush1.msra.mxu0 0.0
    %2493 = vmatprep.subr.mxu0 0.0
    %2494 = vmatpush1.msra.mxu0 0.0
    %2495 = vmatprep.subr.mxu0 0.0
    %2496 = vmatpush1.msra.mxu0 0.0
    %2497 = vmatprep.subr.mxu0 0.0
    %2498 = vmatpush1.msra.mxu0 0.0
    %2499 = vmatprep.subr.mxu0 0.0
    %2500 = vmatpush1.msra.mxu0 0.0
    %2501 = vmatprep.subr.mxu0 0.0
    %2502 = vmatpush1.msra.mxu0 0.0
    %2503 = vmatprep.subr.mxu0 0.0
    %2504 = vmatpush1.msra.mxu0 0.0
    %2505 = vmatprep.subr.mxu0 0.0
    %2506 = vmatpush1.msra.mxu0 0.0
    %2507 = vmatprep.subr.mxu0 0.0
    %2508 = vmatpush1.msra.mxu0 0.0
    %2509 = vmatprep.subr.mxu0 0.0
    %2510 = vmatpush1.msra.mxu0 0.0
    %2511 = vmatprep.subr.mxu0 0.0
    %2512 = vmatpush1.msra.mxu0 0.0
    %2513 = vmatprep.subr.mxu0 0.0
    %2514 = vmatpush1.msra.mxu0 0.0
    %2515 = vmatprep.subr.mxu0 0.0
    %2516 = vmatpush1.msra.mxu0 0.0
    %2517 = vmatprep.subr.mxu0 0.0
    %2518 = vmatpush1.msra.mxu0 0.0
    %2519 = vmatprep.subr.mxu0 0.0
    %2520 = vmatpush1.msra.mxu0 0.0
    %2521 = vmatprep.subr.mxu0 0.0
    %2522 = vmatpush1.msra.mxu0 0.0
    %2523 = vmatprep.subr.mxu0 0.0
    %2524 = vmatpush1.msra.mxu0 0.0
    %2525 = vmatprep.subr.mxu0 0.0
    %2526 = vmatpush1.msra.mxu0 0.0
    %2527 = vmatprep.subr.mxu0 0.0
    %2528 = vmatpush1.msra.mxu0 0.0
    %2529 = vmatprep.mubr.f32.mxu0 0.0
    %2530 = vmatmul.mubr.f32.gmra.mrb[0].mxu0 %v2457
    %v2531 = vpop.f32.mrb[0].mxu0
    %v2532 = vadd.f32 0.0, %v2531
    %v2533 = vpop.f32.mrb[0].mxu0
    %2534 = vmatprep.mubr.f32.mxu0 0.0
    %2535 = vmatmul.mubr.f32.gmra.mrb[0].mxu0 %v2460
    %v2536 = vpop.f32.mrb[0].mxu0
    %v2537 = vadd.f32 0.0, %v2536
    %v2538 = vpop.f32.mrb[0].mxu0
    %2539 = vmatprep.mubr.f32.mxu0 0.0
    %2540 = vmatmul.mubr.f32.gmra.mrb[0].mxu0 %v2463
    %v2541 = vpop.f32.mrb[0].mxu0
    %v2542 = vadd.f32 0.0, %v2541
    %v2543 = vpop.f32.mrb[0].mxu0
    %2544 = vdwg.mxu0
    %v2546 = vsel %vm586, %v1965, 0
    %v2549 = vsel %vm586, %v1970, 0
    %v2552 = vsel %vm586, %v1975, 0
    %2554 = vmatprep.subr.mxu0 0.0
    %2555 = vmatpush1.msra.mxu0 %v320
    %2556 = vmatprep.subr.mxu0 0.0
    %2557 = vmatpush1.msra.mxu0 %v321
    %2558 = vmatprep.subr.mxu0 0.0
    %2559 = vmatpush1.msra.mxu0 0.0
    %2560 = vmatprep.subr.mxu0 0.0
    %2561 = vmatpush1.msra.mxu0 0.0
    %2562 = vmatprep.subr.mxu0 0.0
    %2563 = vmatpush1.msra.mxu0 0.0
    %2564 = vmatprep.subr.mxu0 0.0
    %2565 = vmatpush1.msra.mxu0 0.0
    %2566 = vmatprep.subr.mxu0 0.0
    %2567 = vmatpush1.msra.mxu0 0.0
    %2568 = vmatprep.subr.mxu0 0.0
    %2569 = vmatpush1.msra.mxu0 0.0
    %2570 = vmatprep.subr.mxu0 0.0
    %2571 = vmatpush1.msra.mxu0 0.0
    %2572 = vmatprep.subr.mxu0 0.0
    %2573 = vmatpush1.msra.mxu0 0.0
    %2574 = vmatprep.subr.mxu0 0.0
    %2575 = vmatpush1.msra.mxu0 0.0
    %2576 = vmatprep.subr.mxu0 0.0
    %2577 = vmatpush1.msra.mxu0 0.0
    %2578 = vmatprep.subr.mxu0 0.0
    %2579 = vmatpush1.msra.mxu0 0.0
    %2580 = vmatprep.subr.mxu0 0.0
    %2581 = vmatpush1.msra.mxu0 0.0
    %2582 = vmatprep.subr.mxu0 0.0
    %2583 = vmatpush1.msra.mxu0 0.0
    %2584 = vmatprep.subr.mxu0 0.0
    %2585 = vmatpush1.msra.mxu0 0.0
    %2586 = vmatprep.subr.mxu0 0.0
    %2587 = vmatpush1.msra.mxu0 0.0
    %2588 = vmatprep.subr.mxu0 0.0
    %2589 = vmatpush1.msra.mxu0 0.0
    %2590 = vmatprep.subr.mxu0 0.0
    %2591 = vmatpush1.msra.mxu0 0.0
    %2592 = vmatprep.subr.mxu0 0.0
    %2593 = vmatpush1.msra.mxu0 0.0
    %2594 = vmatprep.subr.mxu0 0.0
    %2595 = vmatpush1.msra.mxu0 0.0
    %2596 = vmatprep.subr.mxu0 0.0
    %2597 = vmatpush1.msra.mxu0 0.0
    %2598 = vmatprep.subr.mxu0 0.0
    %2599 = vmatpush1.msra.mxu0 0.0
    %2600 = vmatprep.subr.mxu0 0.0
    %2601 = vmatpush1.msra.mxu0 0.0
    %2602 = vmatprep.subr.mxu0 0.0
    %2603 = vmatpush1.msra.mxu0 0.0
    %2604 = vmatprep.subr.mxu0 0.0
    %2605 = vmatpush1.msra.mxu0 0.0
    %2606 = vmatprep.subr.mxu0 0.0
    %2607 = vmatpush1.msra.mxu0 0.0
    %2608 = vmatprep.subr.mxu0 0.0
    %2609 = vmatpush1.msra.mxu0 0.0
    %2610 = vmatprep.subr.mxu0 0.0
    %2611 = vmatpush1.msra.mxu0 0.0
    %2612 = vmatprep.subr.mxu0 0.0
    %2613 = vmatpush1.msra.mxu0 0.0
    %2614 = vmatprep.subr.mxu0 0.0
    %2615 = vmatpush1.msra.mxu0 0.0
    %2616 = vmatprep.subr.mxu0 0.0
    %2617 = vmatpush1.msra.mxu0 0.0
    %2618 = vmatprep.mubr.f32.mxu0 0.0
    %2619 = vmatmul.mubr.f32.gmra.mrb[0].mxu0 %v2546
    %v2620 = vpop.f32.mrb[0].mxu0
    %v2621 = vadd.f32 %v2532, %v2620
    %v2622 = vpop.f32.mrb[0].mxu0
    %2623 = vmatprep.mubr.f32.mxu0 0.0
    %2624 = vmatmul.mubr.f32.gmra.mrb[0].mxu0 %v2549
    %v2625 = vpop.f32.mrb[0].mxu0
    %v2626 = vadd.f32 %v2537, %v2625
    %v2627 = vpop.f32.mrb[0].mxu0
    %2628 = vmatprep.mubr.f32.mxu0 0.0
    %2629 = vmatmul.mubr.f32.gmra.mrb[0].mxu0 %v2552
    %v2630 = vpop.f32.mrb[0].mxu0
    %v2631 = vadd.f32 %v2542, %v2630
    %v2632 = vpop.f32.mrb[0].mxu0
    %2633 = vdwg.mxu0
    %v2634 = vadd.f32 %v212, %v2621
    %v2635 = vadd.f32 %v213, %v2626
    %v2636 = vadd.f32 %v214, %v2631
    %v2637 = vadd.f32 %v2634, %v1482
    %v2638 = vadd.f32 %v2635, %v1482
    %v2639 = vadd.f32 %v2636, %v1482
    %2640 = vst.msk [vmem:[#allocation2 + $0x18] sm:$0xff] %vm190, %v2637
    %2641 = vst.msk [vmem:[#allocation2 + $0x20] sm:$0xff] %vm190, %v2638
    %2642 = vst.msk [vmem:[#allocation2 + $0x28] sm:$0x1] %vm1489, %v2639
    %v2643 = vld [vmem:[#allocation2] sm:$0xff]
    %v2644 = vld [vmem:[#allocation2 + $0x8] sm:$0xff]
    %v2645 = vld [vmem:[#allocation2 + $0x10] sm:$0xff]
    %v2646 = vld [vmem:[#allocation2 + $0x18] sm:$0xff]
    %v2647 = vld [vmem:[#allocation2 + $0x20] sm:$0xff]
    %v2648 = vld [vmem:[#allocation2 + $0x28] sm:$0xff]
    %v2649 = vld [vmem:[%s11] sm:$0x1]
    %v2650 = vld [vmem:[%s12] sm:$0x1]
    %v2651 = vsel %vm190, %v2643, 0.0
    %2652 = vadd.xlane.f32.xlu0 %v2651
    %v2653 = vpop.xlane.xlu0 %2652
    %v2654 = vsel %vm190, %v2644, 0.0
    %2655 = vadd.xlane.f32.xlu0 %v2654
    %v2656 = vpop.xlane.xlu0 %2655
    %v2657 = vsel %vm190, %v2645, 0.0
    %2658 = vadd.xlane.f32.xlu0 %v2657
    %v2659 = vpop.xlane.xlu0 %2658
    %v2660 = vsel %vm190, %v2646, 0.0
    %2661 = vadd.xlane.f32.xlu0 %v2660
    %v2662 = vpop.xlane.xlu0 %2661
    %v2663 = vsel %vm190, %v2647, 0.0
    %2664 = vadd.xlane.f32.xlu0 %v2663
    %v2665 = vpop.xlane.xlu0 %2664
    %v2666 = vsel %vm190, %v2648, 0.0
    %2667 = vadd.xlane.f32.xlu0 %v2666
    %v2668 = vpop.xlane.xlu0 %2667
    %v2669 = vmul.f32 %v2653, %v235
    %v2670 = vmul.f32 %v2656, %v235
    %v2671 = vmul.f32 %v2659, %v235
    %v2672 = vmul.f32 %v2662, %v235
    %v2673 = vmul.f32 %v2665, %v235
    %v2674 = vmul.f32 %v2668, %v235
    %v2675 = vsub.f32 %v2643, %v2669
    %v2676 = vsub.f32 %v2644, %v2670
    %v2677 = vsub.f32 %v2645, %v2671
    %v2678 = vsub.f32 %v2646, %v2672
    %v2679 = vsub.f32 %v2647, %v2673
    %v2680 = vsub.f32 %v2648, %v2674
    %v2681 = vmul.f32 %v2675, %v2675
    %v2682 = vmul.f32 %v2676, %v2676
    %v2683 = vmul.f32 %v2677, %v2677
    %v2684 = vmul.f32 %v2678, %v2678
    %v2685 = vmul.f32 %v2679, %v2679
    %v2686 = vmul.f32 %v2680, %v2680
    %v2687 = vsel %vm190, %v2681, 0.0
    %2688 = vadd.xlane.f32.xlu0 %v2687
    %v2689 = vpop.xlane.xlu0 %2688
    %v2690 = vsel %vm190, %v2682, 0.0
    %2691 = vadd.xlane.f32.xlu0 %v2690
    %v2692 = vpop.xlane.xlu0 %2691
    %v2693 = vsel %vm190, %v2683, 0.0
    %2694 = vadd.xlane.f32.xlu0 %v2693
    %v2695 = vpop.xlane.xlu0 %2694
    %v2696 = vsel %vm190, %v2684, 0.0
    %2697 = vadd.xlane.f32.xlu0 %v2696
    %v2698 = vpop.xlane.xlu0 %2697
    %v2699 = vsel %vm190, %v2685, 0.0
    %2700 = vadd.xlane.f32.xlu0 %v2699
    %v2701 = vpop.xlane.xlu0 %2700
    %v2702 = vsel %vm190, %v2686, 0.0
    %2703 = vadd.xlane.f32.xlu0 %v2702
    %v2704 = vpop.xlane.xlu0 %2703
    %v2705 = vmul.f32 %v2689, %v235
    %v2706 = vmul.f32 %v2692, %v235
    %v2707 = vmul.f32 %v2695, %v235
    %v2708 = vmul.f32 %v2698, %v235
    %v2709 = vmul.f32 %v2701, %v235
    %v2710 = vmul.f32 %v2704, %v235
    %v2711 = vadd.f32 %v2705, 1e-05
    %v2712 = vadd.f32 %v2706, 1e-05
    %v2713 = vadd.f32 %v2707, 1e-05
    %v2714 = vadd.f32 %v2708, 1e-05
    %v2715 = vadd.f32 %v2709, 1e-05
    %v2716 = vadd.f32 %v2710, 1e-05
    %v2717 = vrsqrt.pop %v2711
    %v2718 = vrsqrt.pop %v2712
    %v2719 = vrsqrt.pop %v2713
    %v2720 = vrsqrt.pop %v2714
    %v2721 = vrsqrt.pop %v2715
    %v2722 = vrsqrt.pop %v2716
    %v2723 = vmul.f32 %v2675, %v2717
    %v2724 = vmul.f32 %v2676, %v2718
    %v2725 = vmul.f32 %v2677, %v2719
    %v2726 = vmul.f32 %v2678, %v2720
    %v2727 = vmul.f32 %v2679, %v2721
    %v2728 = vmul.f32 %v2680, %v2722
    %v2730 = vlaneseq
    %v2731 = vshrl.u32 %v2730, 7
    %v2732 = vsub.s32 0, %v2731
    %v2733 = vrot.slane %v2649, %v2732
    %v2735 = vmul.f32 %v2723, %v2733
    %v2736 = vmul.f32 %v2724, %v2733
    %v2737 = vmul.f32 %v2725, %v2733
    %v2738 = vmul.f32 %v2726, %v2733
    %v2739 = vmul.f32 %v2727, %v2733
    %v2740 = vmul.f32 %v2728, %v2733
    %v2742 = vlaneseq
    %v2743 = vshrl.u32 %v2742, 7
    %v2744 = vsub.s32 0, %v2743
    %v2745 = vrot.slane %v2650, %v2744
    %v2747 = vadd.f32 %v2735, %v2745
    %v2748 = vadd.f32 %v2736, %v2745
    %v2749 = vadd.f32 %v2737, %v2745
    %v2750 = vadd.f32 %v2738, %v2745
    %v2751 = vadd.f32 %v2739, %v2745
    %v2752 = vadd.f32 %v2740, %v2745
    %v2753 = vld [vmem:[%s13] sm:$0xff]
    %v2754 = vld [vmem:[%s13 + $0x8] sm:$0xff]
    %v2755 = vld [vmem:[%s13 + $0x10] sm:$0xff]
    %v2756 = vld [vmem:[%s13 + $0x18] sm:$0xff]
    %v2757 = vld [vmem:[%s14] sm:$0x1]
    %v2759 = vlaneseq
    %v2760 = vshrl.u32 %v2759, 7
    %v2761 = vsub.s32 0, %v2760
    %v2762 = vrot.slane %v2757, %v2761
    %v2765 = vsel %vm190, %v2747, 0
    %v2768 = vsel %vm190, %v2748, 0
    %v2771 = vsel %vm190, %v2749, 0
    %v2774 = vsel %vm190, %v2750, 0
    %v2777 = vsel %vm190, %v2751, 0
    %v2780 = vsel %vm190, %v2752, 0
    %2782 = vmatprep.subr.mxu0 0.0
    %2783 = vmatpush1.msra.mxu0 %v2753
    %2784 = vmatprep.subr.mxu0 0.0
    %2785 = vmatpush1.msra.mxu0 %v2754
    %2786 = vmatprep.subr.mxu0 0.0
    %2787 = vmatpush1.msra.mxu0 %v2755
    %2788 = vmatprep.subr.mxu0 0.0
    %2789 = vmatpush1.msra.mxu0 %v2756
    %2790 = vmatprep.subr.mxu0 0.0
    %2791 = vmatpush1.msra.mxu0 0.0
    %2792 = vmatprep.subr.mxu0 0.0
    %2793 = vmatpush1.msra.mxu0 0.0
    %2794 = vmatprep.subr.mxu0 0.0
    %2795 = vmatpush1.msra.mxu0 0.0
    %2796 = vmatprep.subr.mxu0 0.0
    %2797 = vmatpush1.msra.mxu0 0.0
    %2798 = vmatprep.subr.mxu0 0.0
    %2799 = vmatpush1.msra.mxu0 0.0
    %2800 = vmatprep.subr.mxu0 0.0
    %2801 = vmatpush1.msra.mxu0 0.0
    %2802 = vmatprep.subr.mxu0 0.0
    %2803 = vmatpush1.msra.mxu0 0.0
    %2804 = vmatprep.subr.mxu0 0.0
    %2805 = vmatpush1.msra.mxu0 0.0
    %2806 = vmatprep.subr.mxu0 0.0
    %2807 = vmatpush1.msra.mxu0 0.0
    %2808 = vmatprep.subr.mxu0 0.0
    %2809 = vmatpush1.msra.mxu0 0.0
    %2810 = vmatprep.subr.mxu0 0.0
    %2811 = vmatpush1.msra.mxu0 0.0
    %2812 = vmatprep.subr.mxu0 0.0
    %2813 = vmatpush1.msra.mxu0 0.0
    %2814 = vmatprep.subr.mxu0 0.0
    %2815 = vmatpush1.msra.mxu0 0.0
    %2816 = vmatprep.subr.mxu0 0.0
    %2817 = vmatpush1.msra.mxu0 0.0
    %2818 = vmatprep.subr.mxu0 0.0
    %2819 = vmatpush1.msra.mxu0 0.0
    %2820 = vmatprep.subr.mxu0 0.0
    %2821 = vmatpush1.msra.mxu0 0.0
    %2822 = vmatprep.subr.mxu0 0.0
    %2823 = vmatpush1.msra.mxu0 0.0
    %2824 = vmatprep.subr.mxu0 0.0
    %2825 = vmatpush1.msra.mxu0 0.0
    %2826 = vmatprep.subr.mxu0 0.0
    %2827 = vmatpush1.msra.mxu0 0.0
    %2828 = vmatprep.subr.mxu0 0.0
    %2829 = vmatpush1.msra.mxu0 0.0
    %2830 = vmatprep.subr.mxu0 0.0
    %2831 = vmatpush1.msra.mxu0 0.0
    %2832 = vmatprep.subr.mxu0 0.0
    %2833 = vmatpush1.msra.mxu0 0.0
    %2834 = vmatprep.subr.mxu0 0.0
    %2835 = vmatpush1.msra.mxu0 0.0
    %2836 = vmatprep.subr.mxu0 0.0
    %2837 = vmatpush1.msra.mxu0 0.0
    %2838 = vmatprep.subr.mxu0 0.0
    %2839 = vmatpush1.msra.mxu0 0.0
    %2840 = vmatprep.subr.mxu0 0.0
    %2841 = vmatpush1.msra.mxu0 0.0
    %2842 = vmatprep.subr.mxu0 0.0
    %2843 = vmatpush1.msra.mxu0 0.0
    %2844 = vmatprep.subr.mxu0 0.0
    %2845 = vmatpush1.msra.mxu0 0.0
    %2846 = vmatprep.mubr.f32.mxu0 0.0
    %2847 = vmatmul.mubr.f32.gmra.mrb[0].mxu0 %v2765
    %v2848 = vpop.f32.mrb[0].mxu0
    %v2849 = vadd.f32 %v2762, %v2848
    %v2850 = vpop.f32.mrb[0].mxu0
    %2851 = vmatprep.mubr.f32.mxu0 0.0
    %2852 = vmatmul.mubr.f32.gmra.mrb[0].mxu0 %v2768
    %v2853 = vpop.f32.mrb[0].mxu0
    %v2854 = vadd.f32 %v2762, %v2853
    %v2855 = vpop.f32.mrb[0].mxu0
    %2856 = vmatprep.mubr.f32.mxu0 0.0
    %2857 = vmatmul.mubr.f32.gmra.mrb[0].mxu0 %v2771
    %v2858 = vpop.f32.mrb[0].mxu0
    %v2859 = vadd.f32 %v2762, %v2858
    %v2860 = vpop.f32.mrb[0].mxu0
    %2861 = vmatprep.mubr.f32.mxu0 0.0
    %2862 = vmatmul.mubr.f32.gmra.mrb[0].mxu0 %v2774
    %v2863 = vpop.f32.mrb[0].mxu0
    %v2864 = vadd.f32 %v2762, %v2863
    %v2865 = vpop.f32.mrb[0].mxu0
    %2866 = vmatprep.mubr.f32.mxu0 0.0
    %2867 = vmatmul.mubr.f32.gmra.mrb[0].mxu0 %v2777
    %v2868 = vpop.f32.mrb[0].mxu0
    %v2869 = vadd.f32 %v2762, %v2868
    %v2870 = vpop.f32.mrb[0].mxu0
    %2871 = vmatprep.mubr.f32.mxu0 0.0
    %2872 = vmatmul.mubr.f32.gmra.mrb[0].mxu0 %v2780
    %v2873 = vpop.f32.mrb[0].mxu0
    %v2874 = vadd.f32 %v2762, %v2873
    %v2875 = vpop.f32.mrb[0].mxu0
    %2876 = vdwg.mxu0
    %v2877 = vmul.f32 %v2849, 0.5
    %v2878 = vmul.f32 %v2854, 0.5
    %v2879 = vmul.f32 %v2859, 0.5
    %v2880 = vmul.f32 %v2864, 0.5
    %v2881 = vmul.f32 %v2869, 0.5
    %v2882 = vmul.f32 %v2874, 0.5
    %v2883 = vmul.f32 %v2849, 0.044715
    %v2884 = vmul.f32 %v2854, 0.044715
    %v2885 = vmul.f32 %v2859, 0.044715
    %v2886 = vmul.f32 %v2864, 0.044715
    %v2887 = vmul.f32 %v2869, 0.044715
    %v2888 = vmul.f32 %v2874, 0.044715
    %v2889 = vmul.f32 %v2883, %v2849
    %v2890 = vmul.f32 %v2884, %v2854
    %v2891 = vmul.f32 %v2885, %v2859
    %v2892 = vmul.f32 %v2886, %v2864
    %v2893 = vmul.f32 %v2887, %v2869
    %v2894 = vmul.f32 %v2888, %v2874
    %v2895 = vmul.f32 %v2889, %v2849
    %v2896 = vmul.f32 %v2890, %v2854
    %v2897 = vmul.f32 %v2891, %v2859
    %v2898 = vmul.f32 %v2892, %v2864
    %v2899 = vmul.f32 %v2893, %v2869
    %v2900 = vmul.f32 %v2894, %v2874
    %v2901 = vadd.f32 %v2849, %v2895
    %v2902 = vadd.f32 %v2854, %v2896
    %v2903 = vadd.f32 %v2859, %v2897
    %v2904 = vadd.f32 %v2864, %v2898
    %v2905 = vadd.f32 %v2869, %v2899
    %v2906 = vadd.f32 %v2874, %v2900
    %v2907 = vmul.f32 %v2901, 0.7978846
    %v2908 = vmul.f32 %v2902, 0.7978846
    %v2909 = vmul.f32 %v2903, 0.7978846
    %v2910 = vmul.f32 %v2904, 0.7978846
    %v2911 = vmul.f32 %v2905, 0.7978846
    %v2912 = vmul.f32 %v2906, 0.7978846
    %v2913 = vtanh.pop %v2907
    %v2914 = vtanh.pop %v2908
    %v2915 = vtanh.pop %v2909
    %v2916 = vtanh.pop %v2910
    %v2917 = vtanh.pop %v2911
    %v2918 = vtanh.pop %v2912
    %v2919 = vadd.f32 %v2913, 1.0
    %v2920 = vadd.f32 %v2914, 1.0
    %v2921 = vadd.f32 %v2915, 1.0
    %v2922 = vadd.f32 %v2916, 1.0
    %v2923 = vadd.f32 %v2917, 1.0
    %v2924 = vadd.f32 %v2918, 1.0
    %v2925 = vmul.f32 %v2877, %v2919
    %v2926 = vmul.f32 %v2878, %v2920
    %v2927 = vmul.f32 %v2879, %v2921
    %v2928 = vmul.f32 %v2880, %v2922
    %v2929 = vmul.f32 %v2881, %v2923
    %v2930 = vmul.f32 %v2882, %v2924
    %v2931 = vld [vmem:[%s15] sm:$0xff]
    %v2932 = vld [vmem:[%s15 + $0x8] sm:$0xff]
    %v2933 = vld [vmem:[%s15 + $0x10] sm:$0xff]
    %v2934 = vld [vmem:[%s15 + $0x18] sm:$0xff]
    %v2935 = vld [vmem:[%s15 + $0x20] sm:$0xff]
    %v2936 = vld [vmem:[%s15 + $0x28] sm:$0xff]
    %v2937 = vld [vmem:[%s15 + $0x30] sm:$0xff]
    %v2938 = vld [vmem:[%s15 + $0x38] sm:$0xff]
    %v2939 = vld [vmem:[%s16] sm:$0x1]
    %v2941 = vlaneseq
    %v2942 = vshrl.u32 %v2941, 7
    %v2943 = vsub.s32 0, %v2942
    %v2944 = vrot.slane %v2939, %v2943
    %vm2946 = vcmask 523264
    %v2948 = vsel %vm2946, %v2925, 0
    %v2951 = vsel %vm2946, %v2926, 0
    %v2954 = vsel %vm2946, %v2927, 0
    %v2957 = vsel %vm2946, %v2928, 0
    %v2960 = vsel %vm2946, %v2929, 0
    %v2963 = vsel %vm2946, %v2930, 0
    %2965 = vmatprep.subr.mxu0 0.0
    %2966 = vmatpush1.msra.mxu0 %v2931
    %2967 = vmatprep.subr.mxu0 0.0
    %2968 = vmatpush1.msra.mxu0 %v2932
    %2969 = vmatprep.subr.mxu0 0.0
    %2970 = vmatpush1.msra.mxu0 %v2933
    %2971 = vmatprep.subr.mxu0 0.0
    %2972 = vmatpush1.msra.mxu0 %v2934
    %2973 = vmatprep.subr.mxu0 0.0
    %2974 = vmatpush1.msra.mxu0 %v2935
    %2975 = vmatprep.subr.mxu0 0.0
    %2976 = vmatpush1.msra.mxu0 %v2936
    %2977 = vmatprep.subr.mxu0 0.0
    %2978 = vmatpush1.msra.mxu0 %v2937
    %2979 = vmatprep.subr.mxu0 0.0
    %2980 = vmatpush1.msra.mxu0 %v2938
    %2981 = vmatprep.subr.mxu0 0.0
    %2982 = vmatpush1.msra.mxu0 0.0
    %2983 = vmatprep.subr.mxu0 0.0
    %2984 = vmatpush1.msra.mxu0 0.0
    %2985 = vmatprep.subr.mxu0 0.0
    %2986 = vmatpush1.msra.mxu0 0.0
    %2987 = vmatprep.subr.mxu0 0.0
    %2988 = vmatpush1.msra.mxu0 0.0
    %2989 = vmatprep.subr.mxu0 0.0
    %2990 = vmatpush1.msra.mxu0 0.0
    %2991 = vmatprep.subr.mxu0 0.0
    %2992 = vmatpush1.msra.mxu0 0.0
    %2993 = vmatprep.subr.mxu0 0.0
    %2994 = vmatpush1.msra.mxu0 0.0
    %2995 = vmatprep.subr.mxu0 0.0
    %2996 = vmatpush1.msra.mxu0 0.0
    %2997 = vmatprep.subr.mxu0 0.0
    %2998 = vmatpush1.msra.mxu0 0.0
    %2999 = vmatprep.subr.mxu0 0.0
    %3000 = vmatpush1.msra.mxu0 0.0
    %3001 = vmatprep.subr.mxu0 0.0
    %3002 = vmatpush1.msra.mxu0 0.0
    %3003 = vmatprep.subr.mxu0 0.0
    %3004 = vmatpush1.msra.mxu0 0.0
    %3005 = vmatprep.subr.mxu0 0.0
    %3006 = vmatpush1.msra.mxu0 0.0
    %3007 = vmatprep.subr.mxu0 0.0
    %3008 = vmatpush1.msra.mxu0 0.0
    %3009 = vmatprep.subr.mxu0 0.0
    %3010 = vmatpush1.msra.mxu0 0.0
    %3011 = vmatprep.subr.mxu0 0.0
    %3012 = vmatpush1.msra.mxu0 0.0
    %3013 = vmatprep.subr.mxu0 0.0
    %3014 = vmatpush1.msra.mxu0 0.0
    %3015 = vmatprep.subr.mxu0 0.0
    %3016 = vmatpush1.msra.mxu0 0.0
    %3017 = vmatprep.subr.mxu0 0.0
    %3018 = vmatpush1.msra.mxu0 0.0
    %3019 = vmatprep.subr.mxu0 0.0
    %3020 = vmatpush1.msra.mxu0 0.0
    %3021 = vmatprep.subr.mxu0 0.0
    %3022 = vmatpush1.msra.mxu0 0.0
    %3023 = vmatprep.subr.mxu0 0.0
    %3024 = vmatpush1.msra.mxu0 0.0
    %3025 = vmatprep.subr.mxu0 0.0
    %3026 = vmatpush1.msra.mxu0 0.0
    %3027 = vmatprep.subr.mxu0 0.0
    %3028 = vmatpush1.msra.mxu0 0.0
    %3029 = vmatprep.mubr.f32.mxu0 0.0
    %3030 = vmatmul.mubr.f32.gmra.mrb[0].mxu0 %v2948
    %v3031 = vpop.f32.mrb[0].mxu0
    %v3032 = vadd.f32 %v2944, %v3031
    %v3033 = vpop.f32.mrb[0].mxu0
    %3034 = vmatprep.mubr.f32.mxu0 0.0
    %3035 = vmatmul.mubr.f32.gmra.mrb[0].mxu0 %v2951
    %v3036 = vpop.f32.mrb[0].mxu0
    %v3037 = vadd.f32 %v2944, %v3036
    %v3038 = vpop.f32.mrb[0].mxu0
    %3039 = vmatprep.mubr.f32.mxu0 0.0
    %3040 = vmatmul.mubr.f32.gmra.mrb[0].mxu0 %v2954
    %v3041 = vpop.f32.mrb[0].mxu0
    %v3042 = vadd.f32 %v2944, %v3041
    %v3043 = vpop.f32.mrb[0].mxu0
    %3044 = vmatprep.mubr.f32.mxu0 0.0
    %3045 = vmatmul.mubr.f32.gmra.mrb[0].mxu0 %v2957
    %v3046 = vpop.f32.mrb[0].mxu0
    %v3047 = vadd.f32 %v2944, %v3046
    %v3048 = vpop.f32.mrb[0].mxu0
    %3049 = vmatprep.mubr.f32.mxu0 0.0
    %3050 = vmatmul.mubr.f32.gmra.mrb[0].mxu0 %v2960
    %v3051 = vpop.f32.mrb[0].mxu0
    %v3052 = vadd.f32 %v2944, %v3051
    %v3053 = vpop.f32.mrb[0].mxu0
    %3054 = vmatprep.mubr.f32.mxu0 0.0
    %3055 = vmatmul.mubr.f32.gmra.mrb[0].mxu0 %v2963
    %v3056 = vpop.f32.mrb[0].mxu0
    %v3057 = vadd.f32 %v2944, %v3056
    %v3058 = vpop.f32.mrb[0].mxu0
    %3059 = vdwg.mxu0
    %v3060 = vadd.f32 %v2643, %v3032
    %v3061 = vadd.f32 %v2644, %v3037
    %v3062 = vadd.f32 %v2645, %v3042
    %v3063 = vadd.f32 %v2646, %v3047
    %v3064 = vadd.f32 %v2647, %v3052
    %v3065 = vadd.f32 %v2648, %v3057
    %3066 = vst.msk [vmem:[#allocation2] sm:$0xff] %vm190, %v3060
    %3067 = vst.msk [vmem:[#allocation2 + $0x8] sm:$0xff] %vm190, %v3061
    %3068 = vst.msk [vmem:[#allocation2 + $0x10] sm:$0xff] %vm190, %v3062
    %3069 = vst.msk [vmem:[#allocation2 + $0x18] sm:$0xff] %vm190, %v3063
    %3070 = vst.msk [vmem:[#allocation2 + $0x20] sm:$0xff] %vm190, %v3064
    %3071 = vst.msk [vmem:[#allocation2 + $0x28] sm:$0xff] %vm190, %v3065
    %v3072 = vld [vmem:[#allocation2] sm:$0xff]
    %v3073 = vld [vmem:[#allocation2 + $0x8] sm:$0xff]
    %v3074 = vld [vmem:[#allocation2 + $0x10] sm:$0xff]
    %v3075 = vld [vmem:[#allocation2 + $0x18] sm:$0xff]
    %v3076 = vld [vmem:[#allocation2 + $0x20] sm:$0xff]
    %v3077 = vld [vmem:[#allocation2 + $0x28] sm:$0xff]
    %s3078 = scalar_lea.vmem %s4, 1
    %v3079 = vld [vmem:[%s3078] sm:$0x1]
    %s3080 = scalar_lea.vmem %s5, 1
    %v3081 = vld [vmem:[%s3080] sm:$0x1]
    %v3082 = vsel %vm190, %v3072, 0.0
    %3083 = vadd.xlane.f32.xlu0 %v3082
    %v3084 = vpop.xlane.xlu0 %3083
    %v3085 = vsel %vm190, %v3073, 0.0
    %3086 = vadd.xlane.f32.xlu0 %v3085
    %v3087 = vpop.xlane.xlu0 %3086
    %v3088 = vsel %vm190, %v3074, 0.0
    %3089 = vadd.xlane.f32.xlu0 %v3088
    %v3090 = vpop.xlane.xlu0 %3089
    %v3091 = vsel %vm190, %v3075, 0.0
    %3092 = vadd.xlane.f32.xlu0 %v3091
    %v3093 = vpop.xlane.xlu0 %3092
    %v3094 = vsel %vm190, %v3076, 0.0
    %3095 = vadd.xlane.f32.xlu0 %v3094
    %v3096 = vpop.xlane.xlu0 %3095
    %v3097 = vsel %vm190, %v3077, 0.0
    %3098 = vadd.xlane.f32.xlu0 %v3097
    %v3099 = vpop.xlane.xlu0 %3098
    %v3100 = vmul.f32 %v3084, %v235
    %v3101 = vmul.f32 %v3087, %v235
    %v3102 = vmul.f32 %v3090, %v235
    %v3103 = vmul.f32 %v3093, %v235
    %v3104 = vmul.f32 %v3096, %v235
    %v3105 = vmul.f32 %v3099, %v235
    %v3106 = vsub.f32 %v3072, %v3100
    %v3107 = vsub.f32 %v3073, %v3101
    %v3108 = vsub.f32 %v3074, %v3102
    %v3109 = vsub.f32 %v3075, %v3103
    %v3110 = vsub.f32 %v3076, %v3104
    %v3111 = vsub.f32 %v3077, %v3105
    %v3112 = vmul.f32 %v3106, %v3106
    %v3113 = vmul.f32 %v3107, %v3107
    %v3114 = vmul.f32 %v3108, %v3108
    %v3115 = vmul.f32 %v3109, %v3109
    %v3116 = vmul.f32 %v3110, %v3110
    %v3117 = vmul.f32 %v3111, %v3111
    %v3118 = vsel %vm190, %v3112, 0.0
    %3119 = vadd.xlane.f32.xlu0 %v3118
    %v3120 = vpop.xlane.xlu0 %3119
    %v3121 = vsel %vm190, %v3113, 0.0
    %3122 = vadd.xlane.f32.xlu0 %v3121
    %v3123 = vpop.xlane.xlu0 %3122
    %v3124 = vsel %vm190, %v3114, 0.0
    %3125 = vadd.xlane.f32.xlu0 %v3124
    %v3126 = vpop.xlane.xlu0 %3125
    %v3127 = vsel %vm190, %v3115, 0.0
    %3128 = vadd.xlane.f32.xlu0 %v3127
    %v3129 = vpop.xlane.xlu0 %3128
    %v3130 = vsel %vm190, %v3116, 0.0
    %3131 = vadd.xlane.f32.xlu0 %v3130
    %v3132 = vpop.xlane.xlu0 %3131
    %v3133 = vsel %vm190, %v3117, 0.0
    %3134 = vadd.xlane.f32.xlu0 %v3133
    %v3135 = vpop.xlane.xlu0 %3134
    %v3136 = vmul.f32 %v3120, %v235
    %v3137 = vmul.f32 %v3123, %v235
    %v3138 = vmul.f32 %v3126, %v235
    %v3139 = vmul.f32 %v3129, %v235
    %v3140 = vmul.f32 %v3132, %v235
    %v3141 = vmul.f32 %v3135, %v235
    %v3142 = vadd.f32 %v3136, 1e-05
    %v3143 = vadd.f32 %v3137, 1e-05
    %v3144 = vadd.f32 %v3138, 1e-05
    %v3145 = vadd.f32 %v3139, 1e-05
    %v3146 = vadd.f32 %v3140, 1e-05
    %v3147 = vadd.f32 %v3141, 1e-05
    %v3148 = vrsqrt.pop %v3142
    %v3149 = vrsqrt.pop %v3143
    %v3150 = vrsqrt.pop %v3144
    %v3151 = vrsqrt.pop %v3145
    %v3152 = vrsqrt.pop %v3146
    %v3153 = vrsqrt.pop %v3147
    %v3154 = vmul.f32 %v3106, %v3148
    %v3155 = vmul.f32 %v3107, %v3149
    %v3156 = vmul.f32 %v3108, %v3150
    %v3157 = vmul.f32 %v3109, %v3151
    %v3158 = vmul.f32 %v3110, %v3152
    %v3159 = vmul.f32 %v3111, %v3153
    %v3161 = vlaneseq
    %v3162 = vshrl.u32 %v3161, 7
    %v3163 = vsub.s32 0, %v3162
    %v3164 = vrot.slane %v3079, %v3163
    %v3166 = vmul.f32 %v3154, %v3164
    %v3167 = vmul.f32 %v3155, %v3164
    %v3168 = vmul.f32 %v3156, %v3164
    %v3169 = vmul.f32 %v3157, %v3164
    %v3170 = vmul.f32 %v3158, %v3164
    %v3171 = vmul.f32 %v3159, %v3164
    %v3173 = vlaneseq
    %v3174 = vshrl.u32 %v3173, 7
    %v3175 = vsub.s32 0, %v3174
    %v3176 = vrot.slane %v3081, %v3175
    %v3178 = vadd.f32 %v3166, %v3176
    %v3179 = vadd.f32 %v3167, %v3176
    %v3180 = vadd.f32 %v3168, %v3176
    %v3181 = vadd.f32 %v3169, %v3176
    %v3182 = vadd.f32 %v3170, %v3176
    %v3183 = vadd.f32 %v3171, %v3176
    %s3184 = scalar_lea.vmem %s9, 32
    %v3185 = vld [vmem:[%s3184] sm:$0xff]
    %v3186 = vld [vmem:[%s3184 + $0x8] sm:$0xff]
    %v3187 = vld [vmem:[%s3184 + $0x10] sm:$0xff]
    %v3188 = vld [vmem:[%s3184 + $0x18] sm:$0xff]
    %s3189 = scalar_lea.vmem %s10, 1
    %v3190 = vld [vmem:[%s3189] sm:$0x1]
    %s3191 = scalar_lea.vmem %s6, 64
    %v3192 = vld [vmem:[%s3191] sm:$0xff]
    %v3193 = vld [vmem:[%s3191 + $0x8] sm:$0xff]
    %v3194 = vld [vmem:[%s3191 + $0x10] sm:$0xff]
    %v3195 = vld [vmem:[%s3191 + $0x18] sm:$0xff]
    %v3197 = vsel %vm190, %v3178, 0
    %v3200 = vsel %vm190, %v3179, 0
    %v3203 = vsel %vm190, %v3180, 0
    %3205 = vmatprep.subr.mxu0 0.0
    %3206 = vmatpush1.msra.mxu0 %v3192
    %3207 = vmatprep.subr.mxu0 0.0
    %3208 = vmatpush1.msra.mxu0 %v3193
    %3209 = vmatprep.subr.mxu0 0.0
    %3210 = vmatpush1.msra.mxu0 %v3194
    %3211 = vmatprep.subr.mxu0 0.0
    %3212 = vmatpush1.msra.mxu0 %v3195
    %3213 = vmatprep.subr.mxu0 0.0
    %3214 = vmatpush1.msra.mxu0 0.0
    %3215 = vmatprep.subr.mxu0 0.0
    %3216 = vmatpush1.msra.mxu0 0.0
    %3217 = vmatprep.subr.mxu0 0.0
    %3218 = vmatpush1.msra.mxu0 0.0
    %3219 = vmatprep.subr.mxu0 0.0
    %3220 = vmatpush1.msra.mxu0 0.0
    %3221 = vmatprep.subr.mxu0 0.0
    %3222 = vmatpush1.msra.mxu0 0.0
    %3223 = vmatprep.subr.mxu0 0.0
    %3224 = vmatpush1.msra.mxu0 0.0
    %3225 = vmatprep.subr.mxu0 0.0
    %3226 = vmatpush1.msra.mxu0 0.0
    %3227 = vmatprep.subr.mxu0 0.0
    %3228 = vmatpush1.msra.mxu0 0.0
    %3229 = vmatprep.subr.mxu0 0.0
    %3230 = vmatpush1.msra.mxu0 0.0
    %3231 = vmatprep.subr.mxu0 0.0
    %3232 = vmatpush1.msra.mxu0 0.0
    %3233 = vmatprep.subr.mxu0 0.0
    %3234 = vmatpush1.msra.mxu0 0.0
    %3235 = vmatprep.subr.mxu0 0.0
    %3236 = vmatpush1.msra.mxu0 0.0
    %3237 = vmatprep.subr.mxu0 0.0
    %3238 = vmatpush1.msra.mxu0 0.0
    %3239 = vmatprep.subr.mxu0 0.0
    %3240 = vmatpush1.msra.mxu0 0.0
    %3241 = vmatprep.subr.mxu0 0.0
    %3242 = vmatpush1.msra.mxu0 0.0
    %3243 = vmatprep.subr.mxu0 0.0
    %3244 = vmatpush1.msra.mxu0 0.0
    %3245 = vmatprep.subr.mxu0 0.0
    %3246 = vmatpush1.msra.mxu0 0.0
    %3247 = vmatprep.subr.mxu0 0.0
    %3248 = vmatpush1.msra.mxu0 0.0
    %3249 = vmatprep.subr.mxu0 0.0
    %3250 = vmatpush1.msra.mxu0 0.0
    %3251 = vmatprep.subr.mxu0 0.0
    %3252 = vmatpush1.msra.mxu0 0.0
    %3253 = vmatprep.subr.mxu0 0.0
    %3254 = vmatpush1.msra.mxu0 0.0
    %3255 = vmatprep.subr.mxu0 0.0
    %3256 = vmatpush1.msra.mxu0 0.0
    %3257 = vmatprep.subr.mxu0 0.0
    %3258 = vmatpush1.msra.mxu0 0.0
    %3259 = vmatprep.subr.mxu0 0.0
    %3260 = vmatpush1.msra.mxu0 0.0
    %3261 = vmatprep.subr.mxu0 0.0
    %3262 = vmatpush1.msra.mxu0 0.0
    %3263 = vmatprep.subr.mxu0 0.0
    %3264 = vmatpush1.msra.mxu0 0.0
    %3265 = vmatprep.subr.mxu0 0.0
    %3266 = vmatpush1.msra.mxu0 0.0
    %3267 = vmatprep.subr.mxu0 0.0
    %3268 = vmatpush1.msra.mxu0 0.0
    %3269 = vmatprep.mubr.f32.mxu0 0.0
    %3270 = vmatmul.mubr.f32.gmra.mrb[0].mxu0 %v3197
    %v3271 = vpop.f32.mrb[0].mxu0
    %v3272 = vadd.f32 0.0, %v3271
    %v3273 = vpop.f32.mrb[0].mxu0
    %3274 = vmatprep.mubr.f32.mxu0 0.0
    %3275 = vmatmul.mubr.f32.gmra.mrb[0].mxu0 %v3200
    %v3276 = vpop.f32.mrb[0].mxu0
    %v3277 = vadd.f32 0.0, %v3276
    %v3278 = vpop.f32.mrb[0].mxu0
    %3279 = vmatprep.mubr.f32.mxu0 0.0
    %3280 = vmatmul.mubr.f32.gmra.mrb[0].mxu0 %v3203
    %v3281 = vpop.f32.mrb[0].mxu0
    %v3282 = vadd.f32 0.0, %v3281
    %v3283 = vpop.f32.mrb[0].mxu0
    %3284 = vdwg.mxu0
    %s3285 = scalar_lea.vmem %s7, 64
    %v3286 = vld [vmem:[%s3285] sm:$0xff]
    %v3287 = vld [vmem:[%s3285 + $0x8] sm:$0xff]
    %v3288 = vld [vmem:[%s3285 + $0x10] sm:$0xff]
    %v3289 = vld [vmem:[%s3285 + $0x18] sm:$0xff]
    %3290 = vmatprep.subr.mxu0 0.0
    %3291 = vmatpush1.msra.mxu0 %v3286
    %3292 = vmatprep.subr.mxu0 0.0
    %3293 = vmatpush1.msra.mxu0 %v3287
    %3294 = vmatprep.subr.mxu0 0.0
    %3295 = vmatpush1.msra.mxu0 %v3288
    %3296 = vmatprep.subr.mxu0 0.0
    %3297 = vmatpush1.msra.mxu0 %v3289
    %3298 = vmatprep.subr.mxu0 0.0
    %3299 = vmatpush1.msra.mxu0 0.0
    %3300 = vmatprep.subr.mxu0 0.0
    %3301 = vmatpush1.msra.mxu0 0.0
    %3302 = vmatprep.subr.mxu0 0.0
    %3303 = vmatpush1.msra.mxu0 0.0
    %3304 = vmatprep.subr.mxu0 0.0
    %3305 = vmatpush1.msra.mxu0 0.0
    %3306 = vmatprep.subr.mxu0 0.0
    %3307 = vmatpush1.msra.mxu0 0.0
    %3308 = vmatprep.subr.mxu0 0.0
    %3309 = vmatpush1.msra.mxu0 0.0
    %3310 = vmatprep.subr.mxu0 0.0
    %3311 = vmatpush1.msra.mxu0 0.0
    %3312 = vmatprep.subr.mxu0 0.0
    %3313 = vmatpush1.msra.mxu0 0.0
    %3314 = vmatprep.subr.mxu0 0.0
    %3315 = vmatpush1.msra.mxu0 0.0
    %3316 = vmatprep.subr.mxu0 0.0
    %3317 = vmatpush1.msra.mxu0 0.0
    %3318 = vmatprep.subr.mxu0 0.0
    %3319 = vmatpush1.msra.mxu0 0.0
    %3320 = vmatprep.subr.mxu0 0.0
    %3321 = vmatpush1.msra.mxu0 0.0
    %3322 = vmatprep.subr.mxu0 0.0
    %3323 = vmatpush1.msra.mxu0 0.0
    %3324 = vmatprep.subr.mxu0 0.0
    %3325 = vmatpush1.msra.mxu0 0.0
    %3326 = vmatprep.subr.mxu0 0.0
    %3327 = vmatpush1.msra.mxu0 0.0
    %3328 = vmatprep.subr.mxu0 0.0
    %3329 = vmatpush1.msra.mxu0 0.0
    %3330 = vmatprep.subr.mxu0 0.0
    %3331 = vmatpush1.msra.mxu0 0.0
    %3332 = vmatprep.subr.mxu0 0.0
    %3333 = vmatpush1.msra.mxu0 0.0
    %3334 = vmatprep.subr.mxu0 0.0
    %3335 = vmatpush1.msra.mxu0 0.0
    %3336 = vmatprep.subr.mxu0 0.0
    %3337 = vmatpush1.msra.mxu0 0.0
    %3338 = vmatprep.subr.mxu0 0.0
    %3339 = vmatpush1.msra.mxu0 0.0
    %3340 = vmatprep.subr.mxu0 0.0
    %3341 = vmatpush1.msra.mxu0 0.0
    %3342 = vmatprep.subr.mxu0 0.0
    %3343 = vmatpush1.msra.mxu0 0.0
    %3344 = vmatprep.subr.mxu0 0.0
    %3345 = vmatpush1.msra.mxu0 0.0
    %3346 = vmatprep.subr.mxu0 0.0
    %3347 = vmatpush1.msra.mxu0 0.0
    %3348 = vmatprep.subr.mxu0 0.0
    %3349 = vmatpush1.msra.mxu0 0.0
    %3350 = vmatprep.subr.mxu0 0.0
    %3351 = vmatpush1.msra.mxu0 0.0
    %3352 = vmatprep.subr.mxu0 0.0
    %3353 = vmatpush1.msra.mxu0 0.0
    %3354 = vmatprep.mubr.f32.mxu0 0.0
    %3355 = vmatmul.mubr.f32.gmra.mrb[0].mxu0 %v3197
    %v3356 = vpop.f32.mrb[0].mxu0
    %v3357 = vadd.f32 0.0, %v3356
    %v3358 = vpop.f32.mrb[0].mxu0
    %3359 = vmatprep.mubr.f32.mxu0 0.0
    %3360 = vmatmul.mubr.f32.gmra.mrb[0].mxu0 %v3200
    %v3361 = vpop.f32.mrb[0].mxu0
    %v3362 = vadd.f32 0.0, %v3361
    %v3363 = vpop.f32.mrb[0].mxu0
    %3364 = vmatprep.mubr.f32.mxu0 0.0
    %3365 = vmatmul.mubr.f32.gmra.mrb[0].mxu0 %v3203
    %v3366 = vpop.f32.mrb[0].mxu0
    %v3367 = vadd.f32 0.0, %v3366
    %v3368 = vpop.f32.mrb[0].mxu0
    %3369 = vdwg.mxu0
    %s3370 = scalar_lea.vmem %s8, 64
    %v3371 = vld [vmem:[%s3370] sm:$0xff]
    %v3372 = vld [vmem:[%s3370 + $0x8] sm:$0xff]
    %v3373 = vld [vmem:[%s3370 + $0x10] sm:$0xff]
    %v3374 = vld [vmem:[%s3370 + $0x18] sm:$0xff]
    %3375 = vmatprep.subr.mxu0 0.0
    %3376 = vmatpush1.msra.mxu0 %v3371
    %3377 = vmatprep.subr.mxu0 0.0
    %3378 = vmatpush1.msra.mxu0 %v3372
    %3379 = vmatprep.subr.mxu0 0.0
    %3380 = vmatpush1.msra.mxu0 %v3373
    %3381 = vmatprep.subr.mxu0 0.0
    %3382 = vmatpush1.msra.mxu0 %v3374
    %3383 = vmatprep.subr.mxu0 0.0
    %3384 = vmatpush1.msra.mxu0 0.0
    %3385 = vmatprep.subr.mxu0 0.0
    %3386 = vmatpush1.msra.mxu0 0.0
    %3387 = vmatprep.subr.mxu0 0.0
    %3388 = vmatpush1.msra.mxu0 0.0
    %3389 = vmatprep.subr.mxu0 0.0
    %3390 = vmatpush1.msra.mxu0 0.0
    %3391 = vmatprep.subr.mxu0 0.0
    %3392 = vmatpush1.msra.mxu0 0.0
    %3393 = vmatprep.subr.mxu0 0.0
    %3394 = vmatpush1.msra.mxu0 0.0
    %3395 = vmatprep.subr.mxu0 0.0
    %3396 = vmatpush1.msra.mxu0 0.0
    %3397 = vmatprep.subr.mxu0 0.0
    %3398 = vmatpush1.msra.mxu0 0.0
    %3399 = vmatprep.subr.mxu0 0.0
    %3400 = vmatpush1.msra.mxu0 0.0
    %3401 = vmatprep.subr.mxu0 0.0
    %3402 = vmatpush1.msra.mxu0 0.0
    %3403 = vmatprep.subr.mxu0 0.0
    %3404 = vmatpush1.msra.mxu0 0.0
    %3405 = vmatprep.subr.mxu0 0.0
    %3406 = vmatpush1.msra.mxu0 0.0
    %3407 = vmatprep.subr.mxu0 0.0
    %3408 = vmatpush1.msra.mxu0 0.0
    %3409 = vmatprep.subr.mxu0 0.0
    %3410 = vmatpush1.msra.mxu0 0.0
    %3411 = vmatprep.subr.mxu0 0.0
    %3412 = vmatpush1.msra.mxu0 0.0
    %3413 = vmatprep.subr.mxu0 0.0
    %3414 = vmatpush1.msra.mxu0 0.0
    %3415 = vmatprep.subr.mxu0 0.0
    %3416 = vmatpush1.msra.mxu0 0.0
    %3417 = vmatprep.subr.mxu0 0.0
    %3418 = vmatpush1.msra.mxu0 0.0
    %3419 = vmatprep.subr.mxu0 0.0
    %3420 = vmatpush1.msra.mxu0 0.0
    %3421 = vmatprep.subr.mxu0 0.0
    %3422 = vmatpush1.msra.mxu0 0.0
    %3423 = vmatprep.subr.mxu0 0.0
    %3424 = vmatpush1.msra.mxu0 0.0
    %3425 = vmatprep.subr.mxu0 0.0
    %3426 = vmatpush1.msra.mxu0 0.0
    %3427 = vmatprep.subr.mxu0 0.0
    %3428 = vmatpush1.msra.mxu0 0.0
    %3429 = vmatprep.subr.mxu0 0.0
    %3430 = vmatpush1.msra.mxu0 0.0
    %3431 = vmatprep.subr.mxu0 0.0
    %3432 = vmatpush1.msra.mxu0 0.0
    %3433 = vmatprep.subr.mxu0 0.0
    %3434 = vmatpush1.msra.mxu0 0.0
    %3435 = vmatprep.subr.mxu0 0.0
    %3436 = vmatpush1.msra.mxu0 0.0
    %3437 = vmatprep.subr.mxu0 0.0
    %3438 = vmatpush1.msra.mxu0 0.0
    %3439 = vmatprep.mubr.f32.mxu0 0.0
    %3440 = vmatmul.mubr.f32.gmra.mrb[0].mxu0 %v3197
    %v3441 = vpop.f32.mrb[0].mxu0
    %v3442 = vadd.f32 0.0, %v3441
    %v3443 = vpop.f32.mrb[0].mxu0
    %3444 = vmatprep.mubr.f32.mxu0 0.0
    %3445 = vmatmul.mubr.f32.gmra.mrb[0].mxu0 %v3200
    %v3446 = vpop.f32.mrb[0].mxu0
    %v3447 = vadd.f32 0.0, %v3446
    %v3448 = vpop.f32.mrb[0].mxu0
    %3449 = vmatprep.mubr.f32.mxu0 0.0
    %3450 = vmatmul.mubr.f32.gmra.mrb[0].mxu0 %v3203
    %v3451 = vpop.f32.mrb[0].mxu0
    %v3452 = vadd.f32 0.0, %v3451
    %v3453 = vpop.f32.mrb[0].mxu0
    %3454 = vdwg.mxu0
    %v3456 = vsel %vm586, %v3272, 0
    %v3459 = vsel %vm586, %v3277, 0
    %v3462 = vsel %vm586, %v3282, 0
    %v3465 = vsel %vm586, %v3357, 0
    %v3468 = vsel %vm586, %v3362, 0
    %v3471 = vsel %vm586, %v3367, 0
    %3473 = vmatprep.subr.mxu0 0.0
    %3474 = vmatpush1.xpose.msra.mxu0 %v3465
    %3475 = vmatprep.subr.mxu0 0.0
    %3476 = vmatpush1.xpose.msra.mxu0 %v3468
    %3477 = vmatprep.subr.mxu0 0.0
    %3478 = vmatpush1.xpose.msra.mxu0 %v3471
    %3479 = vmatprep.subr.mxu0 0.0
    %3480 = vmatpush1.xpose.msra.mxu0 0.0
    %3481 = vmatprep.subr.mxu0 0.0
    %3482 = vmatpush1.xpose.msra.mxu0 0.0
    %3483 = vmatprep.subr.mxu0 0.0
    %3484 = vmatpush1.xpose.msra.mxu0 0.0
    %3485 = vmatprep.subr.mxu0 0.0
    %3486 = vmatpush1.xpose.msra.mxu0 0.0
    %3487 = vmatprep.subr.mxu0 0.0
    %3488 = vmatpush1.xpose.msra.mxu0 0.0
    %3489 = vmatprep.subr.mxu0 0.0
    %3490 = vmatpush1.xpose.msra.mxu0 0.0
    %3491 = vmatprep.subr.mxu0 0.0
    %3492 = vmatpush1.xpose.msra.mxu0 0.0
    %3493 = vmatprep.subr.mxu0 0.0
    %3494 = vmatpush1.xpose.msra.mxu0 0.0
    %3495 = vmatprep.subr.mxu0 0.0
    %3496 = vmatpush1.xpose.msra.mxu0 0.0
    %3497 = vmatprep.subr.mxu0 0.0
    %3498 = vmatpush1.xpose.msra.mxu0 0.0
    %3499 = vmatprep.subr.mxu0 0.0
    %3500 = vmatpush1.xpose.msra.mxu0 0.0
    %3501 = vmatprep.subr.mxu0 0.0
    %3502 = vmatpush1.xpose.msra.mxu0 0.0
    %3503 = vmatprep.subr.mxu0 0.0
    %3504 = vmatpush1.xpose.msra.mxu0 0.0
    %3505 = vmatprep.subr.mxu0 0.0
    %3506 = vmatpush1.xpose.msra.mxu0 0.0
    %3507 = vmatprep.subr.mxu0 0.0
    %3508 = vmatpush1.xpose.msra.mxu0 0.0
    %3509 = vmatprep.subr.mxu0 0.0
    %3510 = vmatpush1.xpose.msra.mxu0 0.0
    %3511 = vmatprep.subr.mxu0 0.0
    %3512 = vmatpush1.xpose.msra.mxu0 0.0
    %3513 = vmatprep.subr.mxu0 0.0
    %3514 = vmatpush1.xpose.msra.mxu0 0.0
    %3515 = vmatprep.subr.mxu0 0.0
    %3516 = vmatpush1.xpose.msra.mxu0 0.0
    %3517 = vmatprep.subr.mxu0 0.0
    %3518 = vmatpush1.xpose.msra.mxu0 0.0
    %3519 = vmatprep.subr.mxu0 0.0
    %3520 = vmatpush1.xpose.msra.mxu0 0.0
    %3521 = vmatprep.subr.mxu0 0.0
    %3522 = vmatpush1.xpose.msra.mxu0 0.0
    %3523 = vmatprep.subr.mxu0 0.0
    %3524 = vmatpush1.xpose.msra.mxu0 0.0
    %3525 = vmatprep.subr.mxu0 0.0
    %3526 = vmatpush1.xpose.msra.mxu0 0.0
    %3527 = vmatprep.subr.mxu0 0.0
    %3528 = vmatpush1.xpose.msra.mxu0 0.0
    %3529 = vmatprep.subr.mxu0 0.0
    %3530 = vmatpush1.xpose.msra.mxu0 0.0
    %3531 = vmatprep.subr.mxu0 0.0
    %3532 = vmatpush1.xpose.msra.mxu0 0.0
    %3533 = vmatprep.subr.mxu0 0.0
    %3534 = vmatpush1.xpose.msra.mxu0 0.0
    %3535 = vmatprep.subr.mxu0 0.0
    %3536 = vmatpush1.xpose.msra.mxu0 0.0
    %3537 = vmatprep.mubr.f32.mxu0 0.0
    %3538 = vmatmul.mubr.f32.gmra.mrb[0].mxu0 %v3456
    %v3539 = vpop.f32.mrb[0].mxu0
    %v3540 = vadd.f32 0.0, %v3539
    %v3541 = vpop.f32.mrb[0].mxu0
    %3542 = vmatprep.mubr.f32.mxu0 0.0
    %3543 = vmatmul.mubr.f32.gmra.mrb[0].mxu0 %v3459
    %v3544 = vpop.f32.mrb[0].mxu0
    %v3545 = vadd.f32 0.0, %v3544
    %v3546 = vpop.f32.mrb[0].mxu0
    %3547 = vmatprep.mubr.f32.mxu0 0.0
    %3548 = vmatmul.mubr.f32.gmra.mrb[0].mxu0 %v3462
    %v3549 = vpop.f32.mrb[0].mxu0
    %v3550 = vadd.f32 0.0, %v3549
    %v3551 = vpop.f32.mrb[0].mxu0
    %3552 = vdwg.mxu0
    %v3553 = vmul.f32 %v3540, 0.25
    %v3554 = vmul.f32 %v3545, 0.25
    %v3555 = vmul.f32 %v3550, 0.25
    %v3556 = vsel %vm688, %v3553, -inf
    %3557 = vmax.xlane.f32.xlu0 %v3556
    %v3558 = vpop.xlane.xlu0 %3557
    %v3559 = vsel %vm688, %v3554, -inf
    %3560 = vmax.xlane.f32.xlu0 %v3559
    %v3561 = vpop.xlane.xlu0 %3560
    %v3562 = vsel %vm695, %v3555, -inf
    %3563 = vmax.xlane.f32.xlu0 %v3562
    %v3564 = vpop.xlane.xlu0 %3563
    %v3565 = vsub.f32 %v3553, %v3558
    %v3566 = vsub.f32 %v3554, %v3561
    %v3567 = vsub.f32 %v3555, %v3564
    %v3568 = vmul.f32 %v3565, 1.442695
    %v3569 = vpow.pop %v3568
    %v3570 = vmul.f32 %v3566, 1.442695
    %v3571 = vpow.pop %v3570
    %v3572 = vmul.f32 %v3567, 1.442695
    %v3573 = vpow.pop %v3572
    %v3574 = vsel %vm688, %v3569, 0.0
    %3575 = vadd.xlane.f32.xlu0 %v3574
    %v3576 = vpop.xlane.xlu0 %3575
    %v3577 = vsel %vm688, %v3571, 0.0
    %3578 = vadd.xlane.f32.xlu0 %v3577
    %v3579 = vpop.xlane.xlu0 %3578
    %v3580 = vsel %vm695, %v3573, 0.0
    %3581 = vadd.xlane.f32.xlu0 %v3580
    %v3582 = vpop.xlane.xlu0 %3581
    %v3583 = vrcp.pop %v3576
    %v3584 = vrcp.pop %v3579
    %v3585 = vrcp.pop %v3582
    %v3586 = vmul.f32 %v3569, %v3583
    %v3587 = vmul.f32 %v3571, %v3584
    %v3588 = vmul.f32 %v3573, %v3585
    %v3590 = vsel %vm688, %v3586, 0
    %v3593 = vsel %vm688, %v3587, 0
    %v3596 = vsel %vm688, %v3588, 0
    %v3599 = vsel %vm732, %v3452, 0
    %3601 = vmatprep.subr.mxu0 0.0
    %3602 = vmatpush1.msra.mxu0 %v3442
    %3603 = vmatprep.subr.mxu0 0.0
    %3604 = vmatpush1.msra.mxu0 %v3447
    %3605 = vmatprep.subr.mxu0 0.0
    %3606 = vmatpush1.msra.mxu0 %v3599
    %3607 = vmatprep.subr.mxu0 0.0
    %3608 = vmatpush1.msra.mxu0 0.0
    %3609 = vmatprep.subr.mxu0 0.0
    %3610 = vmatpush1.msra.mxu0 0.0
    %3611 = vmatprep.subr.mxu0 0.0
    %3612 = vmatpush1.msra.mxu0 0.0
    %3613 = vmatprep.subr.mxu0 0.0
    %3614 = vmatpush1.msra.mxu0 0.0
    %3615 = vmatprep.subr.mxu0 0.0
    %3616 = vmatpush1.msra.mxu0 0.0
    %3617 = vmatprep.subr.mxu0 0.0
    %3618 = vmatpush1.msra.mxu0 0.0
    %3619 = vmatprep.subr.mxu0 0.0
    %3620 = vmatpush1.msra.mxu0 0.0
    %3621 = vmatprep.subr.mxu0 0.0
    %3622 = vmatpush1.msra.mxu0 0.0
    %3623 = vmatprep.subr.mxu0 0.0
    %3624 = vmatpush1.msra.mxu0 0.0
    %3625 = vmatprep.subr.mxu0 0.0
    %3626 = vmatpush1.msra.mxu0 0.0
    %3627 = vmatprep.subr.mxu0 0.0
    %3628 = vmatpush1.msra.mxu0 0.0
    %3629 = vmatprep.subr.mxu0 0.0
    %3630 = vmatpush1.msra.mxu0 0.0
    %3631 = vmatprep.subr.mxu0 0.0
    %3632 = vmatpush1.msra.mxu0 0.0
    %3633 = vmatprep.subr.mxu0 0.0
    %3634 = vmatpush1.msra.mxu0 0.0
    %3635 = vmatprep.subr.mxu0 0.0
    %3636 = vmatpush1.msra.mxu0 0.0
    %3637 = vmatprep.subr.mxu0 0.0
    %3638 = vmatpush1.msra.mxu0 0.0
    %3639 = vmatprep.subr.mxu0 0.0
    %3640 = vmatpush1.msra.mxu0 0.0
    %3641 = vmatprep.subr.mxu0 0.0
    %3642 = vmatpush1.msra.mxu0 0.0
    %3643 = vmatprep.subr.mxu0 0.0
    %3644 = vmatpush1.msra.mxu0 0.0
    %3645 = vmatprep.subr.mxu0 0.0
    %3646 = vmatpush1.msra.mxu0 0.0
    %3647 = vmatprep.subr.mxu0 0.0
    %3648 = vmatpush1.msra.mxu0 0.0
    %3649 = vmatprep.subr.mxu0 0.0
    %3650 = vmatpush1.msra.mxu0 0.0
    %3651 = vmatprep.subr.mxu0 0.0
    %3652 = vmatpush1.msra.mxu0 0.0
    %3653 = vmatprep.subr.mxu0 0.0
    %3654 = vmatpush1.msra.mxu0 0.0
    %3655 = vmatprep.subr.mxu0 0.0
    %3656 = vmatpush1.msra.mxu0 0.0
    %3657 = vmatprep.subr.mxu0 0.0
    %3658 = vmatpush1.msra.mxu0 0.0
    %3659 = vmatprep.subr.mxu0 0.0
    %3660 = vmatpush1.msra.mxu0 0.0
    %3661 = vmatprep.subr.mxu0 0.0
    %3662 = vmatpush1.msra.mxu0 0.0
    %3663 = vmatprep.subr.mxu0 0.0
    %3664 = vmatpush1.msra.mxu0 0.0
    %3665 = vmatprep.mubr.f32.mxu0 0.0
    %3666 = vmatmul.mubr.f32.gmra.mrb[0].mxu0 %v3590
    %v3667 = vpop.f32.mrb[0].mxu0
    %v3668 = vadd.f32 0.0, %v3667
    %v3669 = vpop.f32.mrb[0].mxu0
    %3670 = vmatprep.mubr.f32.mxu0 0.0
    %3671 = vmatmul.mubr.f32.gmra.mrb[0].mxu0 %v3593
    %v3672 = vpop.f32.mrb[0].mxu0
    %v3673 = vadd.f32 0.0, %v3672
    %v3674 = vpop.f32.mrb[0].mxu0
    %3675 = vmatprep.mubr.f32.mxu0 0.0
    %3676 = vmatmul.mubr.f32.gmra.mrb[0].mxu0 %v3596
    %v3677 = vpop.f32.mrb[0].mxu0
    %v3678 = vadd.f32 0.0, %v3677
    %v3679 = vpop.f32.mrb[0].mxu0
    %3680 = vdwg.mxu0
    %s3681 = scalar_lea.vmem %s6, 96
    %v3682 = vld [vmem:[%s3681] sm:$0xff]
    %v3683 = vld [vmem:[%s3681 + $0x8] sm:$0xff]
    %v3684 = vld [vmem:[%s3681 + $0x10] sm:$0xff]
    %v3685 = vld [vmem:[%s3681 + $0x18] sm:$0xff]
    %3686 = vmatprep.subr.mxu0 0.0
    %3687 = vmatpush1.msra.mxu0 %v3682
    %3688 = vmatprep.subr.mxu0 0.0
    %3689 = vmatpush1.msra.mxu0 %v3683
    %3690 = vmatprep.subr.mxu0 0.0
    %3691 = vmatpush1.msra.mxu0 %v3684
    %3692 = vmatprep.subr.mxu0 0.0
    %3693 = vmatpush1.msra.mxu0 %v3685
    %3694 = vmatprep.subr.mxu0 0.0
    %3695 = vmatpush1.msra.mxu0 0.0
    %3696 = vmatprep.subr.mxu0 0.0
    %3697 = vmatpush1.msra.mxu0 0.0
    %3698 = vmatprep.subr.mxu0 0.0
    %3699 = vmatpush1.msra.mxu0 0.0
    %3700 = vmatprep.subr.mxu0 0.0
    %3701 = vmatpush1.msra.mxu0 0.0
    %3702 = vmatprep.subr.mxu0 0.0
    %3703 = vmatpush1.msra.mxu0 0.0
    %3704 = vmatprep.subr.mxu0 0.0
    %3705 = vmatpush1.msra.mxu0 0.0
    %3706 = vmatprep.subr.mxu0 0.0
    %3707 = vmatpush1.msra.mxu0 0.0
    %3708 = vmatprep.subr.mxu0 0.0
    %3709 = vmatpush1.msra.mxu0 0.0
    %3710 = vmatprep.subr.mxu0 0.0
    %3711 = vmatpush1.msra.mxu0 0.0
    %3712 = vmatprep.subr.mxu0 0.0
    %3713 = vmatpush1.msra.mxu0 0.0
    %3714 = vmatprep.subr.mxu0 0.0
    %3715 = vmatpush1.msra.mxu0 0.0
    %3716 = vmatprep.subr.mxu0 0.0
    %3717 = vmatpush1.msra.mxu0 0.0
    %3718 = vmatprep.subr.mxu0 0.0
    %3719 = vmatpush1.msra.mxu0 0.0
    %3720 = vmatprep.subr.mxu0 0.0
    %3721 = vmatpush1.msra.mxu0 0.0
    %3722 = vmatprep.subr.mxu0 0.0
    %3723 = vmatpush1.msra.mxu0 0.0
    %3724 = vmatprep.subr.mxu0 0.0
    %3725 = vmatpush1.msra.mxu0 0.0
    %3726 = vmatprep.subr.mxu0 0.0
    %3727 = vmatpush1.msra.mxu0 0.0
    %3728 = vmatprep.subr.mxu0 0.0
    %3729 = vmatpush1.msra.mxu0 0.0
    %3730 = vmatprep.subr.mxu0 0.0
    %3731 = vmatpush1.msra.mxu0 0.0
    %3732 = vmatprep.subr.mxu0 0.0
    %3733 = vmatpush1.msra.mxu0 0.0
    %3734 = vmatprep.subr.mxu0 0.0
    %3735 = vmatpush1.msra.mxu0 0.0
    %3736 = vmatprep.subr.mxu0 0.0
    %3737 = vmatpush1.msra.mxu0 0.0
    %3738 = vmatprep.subr.mxu0 0.0
    %3739 = vmatpush1.msra.mxu0 0.0
    %3740 = vmatprep.subr.mxu0 0.0
    %3741 = vmatpush1.msra.mxu0 0.0
    %3742 = vmatprep.subr.mxu0 0.0
    %3743 = vmatpush1.msra.mxu0 0.0
    %3744 = vmatprep.subr.mxu0 0.0
    %3745 = vmatpush1.msra.mxu0 0.0
    %3746 = vmatprep.subr.mxu0 0.0
    %3747 = vmatpush1.msra.mxu0 0.0
    %3748 = vmatprep.subr.mxu0 0.0
    %3749 = vmatpush1.msra.mxu0 0.0
    %3750 = vmatprep.mubr.f32.mxu0 0.0
    %3751 = vmatmul.mubr.f32.gmra.mrb[0].mxu0 %v3197
    %v3752 = vpop.f32.mrb[0].mxu0
    %v3753 = vadd.f32 0.0, %v3752
    %v3754 = vpop.f32.mrb[0].mxu0
    %3755 = vmatprep.mubr.f32.mxu0 0.0
    %3756 = vmatmul.mubr.f32.gmra.mrb[0].mxu0 %v3200
    %v3757 = vpop.f32.mrb[0].mxu0
    %v3758 = vadd.f32 0.0, %v3757
    %v3759 = vpop.f32.mrb[0].mxu0
    %3760 = vmatprep.mubr.f32.mxu0 0.0
    %3761 = vmatmul.mubr.f32.gmra.mrb[0].mxu0 %v3203
    %v3762 = vpop.f32.mrb[0].mxu0
    %v3763 = vadd.f32 0.0, %v3762
    %v3764 = vpop.f32.mrb[0].mxu0
    %3765 = vdwg.mxu0
    %s3766 = scalar_lea.vmem %s7, 96
    %v3767 = vld [vmem:[%s3766] sm:$0xff]
    %v3768 = vld [vmem:[%s3766 + $0x8] sm:$0xff]
    %v3769 = vld [vmem:[%s3766 + $0x10] sm:$0xff]
    %v3770 = vld [vmem:[%s3766 + $0x18] sm:$0xff]
    %3771 = vmatprep.subr.mxu0 0.0
    %3772 = vmatpush1.msra.mxu0 %v3767
    %3773 = vmatprep.subr.mxu0 0.0
    %3774 = vmatpush1.msra.mxu0 %v3768
    %3775 = vmatprep.subr.mxu0 0.0
    %3776 = vmatpush1.msra.mxu0 %v3769
    %3777 = vmatprep.subr.mxu0 0.0
    %3778 = vmatpush1.msra.mxu0 %v3770
    %3779 = vmatprep.subr.mxu0 0.0
    %3780 = vmatpush1.msra.mxu0 0.0
    %3781 = vmatprep.subr.mxu0 0.0
    %3782 = vmatpush1.msra.mxu0 0.0
    %3783 = vmatprep.subr.mxu0 0.0
    %3784 = vmatpush1.msra.mxu0 0.0
    %3785 = vmatprep.subr.mxu0 0.0
    %3786 = vmatpush1.msra.mxu0 0.0
    %3787 = vmatprep.subr.mxu0 0.0
    %3788 = vmatpush1.msra.mxu0 0.0
    %3789 = vmatprep.subr.mxu0 0.0
    %3790 = vmatpush1.msra.mxu0 0.0
    %3791 = vmatprep.subr.mxu0 0.0
    %3792 = vmatpush1.msra.mxu0 0.0
    %3793 = vmatprep.subr.mxu0 0.0
    %3794 = vmatpush1.msra.mxu0 0.0
    %3795 = vmatprep.subr.mxu0 0.0
    %3796 = vmatpush1.msra.mxu0 0.0
    %3797 = vmatprep.subr.mxu0 0.0
    %3798 = vmatpush1.msra.mxu0 0.0
    %3799 = vmatprep.subr.mxu0 0.0
    %3800 = vmatpush1.msra.mxu0 0.0
    %3801 = vmatprep.subr.mxu0 0.0
    %3802 = vmatpush1.msra.mxu0 0.0
    %3803 = vmatprep.subr.mxu0 0.0
    %3804 = vmatpush1.msra.mxu0 0.0
    %3805 = vmatprep.subr.mxu0 0.0
    %3806 = vmatpush1.msra.mxu0 0.0
    %3807 = vmatprep.subr.mxu0 0.0
    %3808 = vmatpush1.msra.mxu0 0.0
    %3809 = vmatprep.subr.mxu0 0.0
    %3810 = vmatpush1.msra.mxu0 0.0
    %3811 = vmatprep.subr.mxu0 0.0
    %3812 = vmatpush1.msra.mxu0 0.0
    %3813 = vmatprep.subr.mxu0 0.0
    %3814 = vmatpush1.msra.mxu0 0.0
    %3815 = vmatprep.subr.mxu0 0.0
    %3816 = vmatpush1.msra.mxu0 0.0
    %3817 = vmatprep.subr.mxu0 0.0
    %3818 = vmatpush1.msra.mxu0 0.0
    %3819 = vmatprep.subr.mxu0 0.0
    %3820 = vmatpush1.msra.mxu0 0.0
    %3821 = vmatprep.subr.mxu0 0.0
    %3822 = vmatpush1.msra.mxu0 0.0
    %3823 = vmatprep.subr.mxu0 0.0
    %3824 = vmatpush1.msra.mxu0 0.0
    %3825 = vmatprep.subr.mxu0 0.0
    %3826 = vmatpush1.msra.mxu0 0.0
    %3827 = vmatprep.subr.mxu0 0.0
    %3828 = vmatpush1.msra.mxu0 0.0
    %3829 = vmatprep.subr.mxu0 0.0
    %3830 = vmatpush1.msra.mxu0 0.0
    %3831 = vmatprep.subr.mxu0 0.0
    %3832 = vmatpush1.msra.mxu0 0.0
    %3833 = vmatprep.subr.mxu0 0.0
    %3834 = vmatpush1.msra.mxu0 0.0
    %3835 = vmatprep.mubr.f32.mxu0 0.0
    %3836 = vmatmul.mubr.f32.gmra.mrb[0].mxu0 %v3197
    %v3837 = vpop.f32.mrb[0].mxu0
    %v3838 = vadd.f32 0.0, %v3837
    %v3839 = vpop.f32.mrb[0].mxu0
    %3840 = vmatprep.mubr.f32.mxu0 0.0
    %3841 = vmatmul.mubr.f32.gmra.mrb[0].mxu0 %v3200
    %v3842 = vpop.f32.mrb[0].mxu0
    %v3843 = vadd.f32 0.0, %v3842
    %v3844 = vpop.f32.mrb[0].mxu0
    %3845 = vmatprep.mubr.f32.mxu0 0.0
    %3846 = vmatmul.mubr.f32.gmra.mrb[0].mxu0 %v3203
    %v3847 = vpop.f32.mrb[0].mxu0
    %v3848 = vadd.f32 0.0, %v3847
    %v3849 = vpop.f32.mrb[0].mxu0
    %3850 = vdwg.mxu0
    %s3851 = scalar_lea.vmem %s8, 96
    %v3852 = vld [vmem:[%s3851] sm:$0xff]
    %v3853 = vld [vmem:[%s3851 + $0x8] sm:$0xff]
    %v3854 = vld [vmem:[%s3851 + $0x10] sm:$0xff]
    %v3855 = vld [vmem:[%s3851 + $0x18] sm:$0xff]
    %3856 = vmatprep.subr.mxu0 0.0
    %3857 = vmatpush1.msra.mxu0 %v3852
    %3858 = vmatprep.subr.mxu0 0.0
    %3859 = vmatpush1.msra.mxu0 %v3853
    %3860 = vmatprep.subr.mxu0 0.0
    %3861 = vmatpush1.msra.mxu0 %v3854
    %3862 = vmatprep.subr.mxu0 0.0
    %3863 = vmatpush1.msra.mxu0 %v3855
    %3864 = vmatprep.subr.mxu0 0.0
    %3865 = vmatpush1.msra.mxu0 0.0
    %3866 = vmatprep.subr.mxu0 0.0
    %3867 = vmatpush1.msra.mxu0 0.0
    %3868 = vmatprep.subr.mxu0 0.0
    %3869 = vmatpush1.msra.mxu0 0.0
    %3870 = vmatprep.subr.mxu0 0.0
    %3871 = vmatpush1.msra.mxu0 0.0
    %3872 = vmatprep.subr.mxu0 0.0
    %3873 = vmatpush1.msra.mxu0 0.0
    %3874 = vmatprep.subr.mxu0 0.0
    %3875 = vmatpush1.msra.mxu0 0.0
    %3876 = vmatprep.subr.mxu0 0.0
    %3877 = vmatpush1.msra.mxu0 0.0
    %3878 = vmatprep.subr.mxu0 0.0
    %3879 = vmatpush1.msra.mxu0 0.0
    %3880 = vmatprep.subr.mxu0 0.0
    %3881 = vmatpush1.msra.mxu0 0.0
    %3882 = vmatprep.subr.mxu0 0.0
    %3883 = vmatpush1.msra.mxu0 0.0
    %3884 = vmatprep.subr.mxu0 0.0
    %3885 = vmatpush1.msra.mxu0 0.0
    %3886 = vmatprep.subr.mxu0 0.0
    %3887 = vmatpush1.msra.mxu0 0.0
    %3888 = vmatprep.subr.mxu0 0.0
    %3889 = vmatpush1.msra.mxu0 0.0
    %3890 = vmatprep.subr.mxu0 0.0
    %3891 = vmatpush1.msra.mxu0 0.0
    %3892 = vmatprep.subr.mxu0 0.0
    %3893 = vmatpush1.msra.mxu0 0.0
    %3894 = vmatprep.subr.mxu0 0.0
    %3895 = vmatpush1.msra.mxu0 0.0
    %3896 = vmatprep.subr.mxu0 0.0
    %3897 = vmatpush1.msra.mxu0 0.0
    %3898 = vmatprep.subr.mxu0 0.0
    %3899 = vmatpush1.msra.mxu0 0.0
    %3900 = vmatprep.subr.mxu0 0.0
    %3901 = vmatpush1.msra.mxu0 0.0
    %3902 = vmatprep.subr.mxu0 0.0
    %3903 = vmatpush1.msra.mxu0 0.0
    %3904 = vmatprep.subr.mxu0 0.0
    %3905 = vmatpush1.msra.mxu0 0.0
    %3906 = vmatprep.subr.mxu0 0.0
    %3907 = vmatpush1.msra.mxu0 0.0
    %3908 = vmatprep.subr.mxu0 0.0
    %3909 = vmatpush1.msra.mxu0 0.0
    %3910 = vmatprep.subr.mxu0 0.0
    %3911 = vmatpush1.msra.mxu0 0.0
    %3912 = vmatprep.subr.mxu0 0.0
    %3913 = vmatpush1.msra.mxu0 0.0
    %3914 = vmatprep.subr.mxu0 0.0
    %3915 = vmatpush1.msra.mxu0 0.0
    %3916 = vmatprep.subr.mxu0 0.0
    %3917 = vmatpush1.msra.mxu0 0.0
    %3918 = vmatprep.subr.mxu0 0.0
    %3919 = vmatpush1.msra.mxu0 0.0
    %3920 = vmatprep.mubr.f32.mxu0 0.0
    %3921 = vmatmul.mubr.f32.gmra.mrb[0].mxu0 %v3197
    %v3922 = vpop.f32.mrb[0].mxu0
    %v3923 = vadd.f32 0.0, %v3922
    %v3924 = vpop.f32.mrb[0].mxu0
    %3925 = vmatprep.mubr.f32.mxu0 0.0
    %3926 = vmatmul.mubr.f32.gmra.mrb[0].mxu0 %v3200
    %v3927 = vpop.f32.mrb[0].mxu0
    %v3928 = vadd.f32 0.0, %v3927
    %v3929 = vpop.f32.mrb[0].mxu0
    %3930 = vmatprep.mubr.f32.mxu0 0.0
    %3931 = vmatmul.mubr.f32.gmra.mrb[0].mxu0 %v3203
    %v3932 = vpop.f32.mrb[0].mxu0
    %v3933 = vadd.f32 0.0, %v3932
    %v3934 = vpop.f32.mrb[0].mxu0
    %3935 = vdwg.mxu0
    %v3937 = vsel %vm586, %v3753, 0
    %v3940 = vsel %vm586, %v3758, 0
    %v3943 = vsel %vm586, %v3763, 0
    %v3946 = vsel %vm586, %v3838, 0
    %v3949 = vsel %vm586, %v3843, 0
    %v3952 = vsel %vm586, %v3848, 0
    %3954 = vmatprep.subr.mxu0 0.0
    %3955 = vmatpush1.xpose.msra.mxu0 %v3946
    %3956 = vmatprep.subr.mxu0 0.0
    %3957 = vmatpush1.xpose.msra.mxu0 %v3949
    %3958 = vmatprep.subr.mxu0 0.0
    %3959 = vmatpush1.xpose.msra.mxu0 %v3952
    %3960 = vmatprep.subr.mxu0 0.0
    %3961 = vmatpush1.xpose.msra.mxu0 0.0
    %3962 = vmatprep.subr.mxu0 0.0
    %3963 = vmatpush1.xpose.msra.mxu0 0.0
    %3964 = vmatprep.subr.mxu0 0.0
    %3965 = vmatpush1.xpose.msra.mxu0 0.0
    %3966 = vmatprep.subr.mxu0 0.0
    %3967 = vmatpush1.xpose.msra.mxu0 0.0
    %3968 = vmatprep.subr.mxu0 0.0
    %3969 = vmatpush1.xpose.msra.mxu0 0.0
    %3970 = vmatprep.subr.mxu0 0.0
    %3971 = vmatpush1.xpose.msra.mxu0 0.0
    %3972 = vmatprep.subr.mxu0 0.0
    %3973 = vmatpush1.xpose.msra.mxu0 0.0
    %3974 = vmatprep.subr.mxu0 0.0
    %3975 = vmatpush1.xpose.msra.mxu0 0.0
    %3976 = vmatprep.subr.mxu0 0.0
    %3977 = vmatpush1.xpose.msra.mxu0 0.0
    %3978 = vmatprep.subr.mxu0 0.0
    %3979 = vmatpush1.xpose.msra.mxu0 0.0
    %3980 = vmatprep.subr.mxu0 0.0
    %3981 = vmatpush1.xpose.msra.mxu0 0.0
    %3982 = vmatprep.subr.mxu0 0.0
    %3983 = vmatpush1.xpose.msra.mxu0 0.0
    %3984 = vmatprep.subr.mxu0 0.0
    %3985 = vmatpush1.xpose.msra.mxu0 0.0
    %3986 = vmatprep.subr.mxu0 0.0
    %3987 = vmatpush1.xpose.msra.mxu0 0.0
    %3988 = vmatprep.subr.mxu0 0.0
    %3989 = vmatpush1.xpose.msra.mxu0 0.0
    %3990 = vmatprep.subr.mxu0 0.0
    %3991 = vmatpush1.xpose.msra.mxu0 0.0
    %3992 = vmatprep.subr.mxu0 0.0
    %3993 = vmatpush1.xpose.msra.mxu0 0.0
    %3994 = vmatprep.subr.mxu0 0.0
    %3995 = vmatpush1.xpose.msra.mxu0 0.0
    %3996 = vmatprep.subr.mxu0 0.0
    %3997 = vmatpush1.xpose.msra.mxu0 0.0
    %3998 = vmatprep.subr.mxu0 0.0
    %3999 = vmatpush1.xpose.msra.mxu0 0.0
    %4000 = vmatprep.subr.mxu0 0.0
    %4001 = vmatpush1.xpose.msra.mxu0 0.0
    %4002 = vmatprep.subr.mxu0 0.0
    %4003 = vmatpush1.xpose.msra.mxu0 0.0
    %4004 = vmatprep.subr.mxu0 0.0
    %4005 = vmatpush1.xpose.msra.mxu0 0.0
    %4006 = vmatprep.subr.mxu0 0.0
    %4007 = vmatpush1.xpose.msra.mxu0 0.0
    %4008 = vmatprep.subr.mxu0 0.0
    %4009 = vmatpush1.xpose.msra.mxu0 0.0
    %4010 = vmatprep.subr.mxu0 0.0
    %4011 = vmatpush1.xpose.msra.mxu0 0.0
    %4012 = vmatprep.subr.mxu0 0.0
    %4013 = vmatpush1.xpose.msra.mxu0 0.0
    %4014 = vmatprep.subr.mxu0 0.0
    %4015 = vmatpush1.xpose.msra.mxu0 0.0
    %4016 = vmatprep.subr.mxu0 0.0
    %4017 = vmatpush1.xpose.msra.mxu0 0.0
    %4018 = vmatprep.mubr.f32.mxu0 0.0
    %4019 = vmatmul.mubr.f32.gmra.mrb[0].mxu0 %v3937
    %v4020 = vpop.f32.mrb[0].mxu0
    %v4021 = vadd.f32 0.0, %v4020
    %v4022 = vpop.f32.mrb[0].mxu0
    %4023 = vmatprep.mubr.f32.mxu0 0.0
    %4024 = vmatmul.mubr.f32.gmra.mrb[0].mxu0 %v3940
    %v4025 = vpop.f32.mrb[0].mxu0
    %v4026 = vadd.f32 0.0, %v4025
    %v4027 = vpop.f32.mrb[0].mxu0
    %4028 = vmatprep.mubr.f32.mxu0 0.0
    %4029 = vmatmul.mubr.f32.gmra.mrb[0].mxu0 %v3943
    %v4030 = vpop.f32.mrb[0].mxu0
    %v4031 = vadd.f32 0.0, %v4030
    %v4032 = vpop.f32.mrb[0].mxu0
    %4033 = vdwg.mxu0
    %v4034 = vmul.f32 %v4021, 0.25
    %v4035 = vmul.f32 %v4026, 0.25
    %v4036 = vmul.f32 %v4031, 0.25
    %v4037 = vsel %vm688, %v4034, -inf
    %4038 = vmax.xlane.f32.xlu0 %v4037
    %v4039 = vpop.xlane.xlu0 %4038
    %v4040 = vsel %vm688, %v4035, -inf
    %4041 = vmax.xlane.f32.xlu0 %v4040
    %v4042 = vpop.xlane.xlu0 %4041
    %v4043 = vsel %vm695, %v4036, -inf
    %4044 = vmax.xlane.f32.xlu0 %v4043
    %v4045 = vpop.xlane.xlu0 %4044
    %v4046 = vsub.f32 %v4034, %v4039
    %v4047 = vsub.f32 %v4035, %v4042
    %v4048 = vsub.f32 %v4036, %v4045
    %v4049 = vmul.f32 %v4046, 1.442695
    %v4050 = vpow.pop %v4049
    %v4051 = vmul.f32 %v4047, 1.442695
    %v4052 = vpow.pop %v4051
    %v4053 = vmul.f32 %v4048, 1.442695
    %v4054 = vpow.pop %v4053
    %v4055 = vsel %vm688, %v4050, 0.0
    %4056 = vadd.xlane.f32.xlu0 %v4055
    %v4057 = vpop.xlane.xlu0 %4056
    %v4058 = vsel %vm688, %v4052, 0.0
    %4059 = vadd.xlane.f32.xlu0 %v4058
    %v4060 = vpop.xlane.xlu0 %4059
    %v4061 = vsel %vm695, %v4054, 0.0
    %4062 = vadd.xlane.f32.xlu0 %v4061
    %v4063 = vpop.xlane.xlu0 %4062
    %v4064 = vrcp.pop %v4057
    %v4065 = vrcp.pop %v4060
    %v4066 = vrcp.pop %v4063
    %v4067 = vmul.f32 %v4050, %v4064
    %v4068 = vmul.f32 %v4052, %v4065
    %v4069 = vmul.f32 %v4054, %v4066
    %v4071 = vsel %vm688, %v4067, 0
    %v4074 = vsel %vm688, %v4068, 0
    %v4077 = vsel %vm688, %v4069, 0
    %v4080 = vsel %vm732, %v3933, 0
    %4082 = vmatprep.subr.mxu0 0.0
    %4083 = vmatpush1.msra.mxu0 %v3923
    %4084 = vmatprep.subr.mxu0 0.0
    %4085 = vmatpush1.msra.mxu0 %v3928
    %4086 = vmatprep.subr.mxu0 0.0
    %4087 = vmatpush1.msra.mxu0 %v4080
    %4088 = vmatprep.subr.mxu0 0.0
    %4089 = vmatpush1.msra.mxu0 0.0
    %4090 = vmatprep.subr.mxu0 0.0
    %4091 = vmatpush1.msra.mxu0 0.0
    %4092 = vmatprep.subr.mxu0 0.0
    %4093 = vmatpush1.msra.mxu0 0.0
    %4094 = vmatprep.subr.mxu0 0.0
    %4095 = vmatpush1.msra.mxu0 0.0
    %4096 = vmatprep.subr.mxu0 0.0
    %4097 = vmatpush1.msra.mxu0 0.0
    %4098 = vmatprep.subr.mxu0 0.0
    %4099 = vmatpush1.msra.mxu0 0.0
    %4100 = vmatprep.subr.mxu0 0.0
    %4101 = vmatpush1.msra.mxu0 0.0
    %4102 = vmatprep.subr.mxu0 0.0
    %4103 = vmatpush1.msra.mxu0 0.0
    %4104 = vmatprep.subr.mxu0 0.0
    %4105 = vmatpush1.msra.mxu0 0.0
    %4106 = vmatprep.subr.mxu0 0.0
    %4107 = vmatpush1.msra.mxu0 0.0
    %4108 = vmatprep.subr.mxu0 0.0
    %4109 = vmatpush1.msra.mxu0 0.0
    %4110 = vmatprep.subr.mxu0 0.0
    %4111 = vmatpush1.msra.mxu0 0.0
    %4112 = vmatprep.subr.mxu0 0.0
    %4113 = vmatpush1.msra.mxu0 0.0
    %4114 = vmatprep.subr.mxu0 0.0
    %4115 = vmatpush1.msra.mxu0 0.0
    %4116 = vmatprep.subr.mxu0 0.0
    %4117 = vmatpush1.msra.mxu0 0.0
    %4118 = vmatprep.subr.mxu0 0.0
    %4119 = vmatpush1.msra.mxu0 0.0
    %4120 = vmatprep.subr.mxu0 0.0
    %4121 = vmatpush1.msra.mxu0 0.0
    %4122 = vmatprep.subr.mxu0 0.0
    %4123 = vmatpush1.msra.mxu0 0.0
    %4124 = vmatprep.subr.mxu0 0.0
    %4125 = vmatpush1.msra.mxu0 0.0
    %4126 = vmatprep.subr.mxu0 0.0
    %4127 = vmatpush1.msra.mxu0 0.0
    %4128 = vmatprep.subr.mxu0 0.0
    %4129 = vmatpush1.msra.mxu0 0.0
    %4130 = vmatprep.subr.mxu0 0.0
    %4131 = vmatpush1.msra.mxu0 0.0
    %4132 = vmatprep.subr.mxu0 0.0
    %4133 = vmatpush1.msra.mxu0 0.0
    %4134 = vmatprep.subr.mxu0 0.0
    %4135 = vmatpush1.msra.mxu0 0.0
    %4136 = vmatprep.subr.mxu0 0.0
    %4137 = vmatpush1.msra.mxu0 0.0
    %4138 = vmatprep.subr.mxu0 0.0
    %4139 = vmatpush1.msra.mxu0 0.0
    %4140 = vmatprep.subr.mxu0 0.0
    %4141 = vmatpush1.msra.mxu0 0.0
    %4142 = vmatprep.subr.mxu0 0.0
    %4143 = vmatpush1.msra.mxu0 0.0
    %4144 = vmatprep.subr.mxu0 0.0
    %4145 = vmatpush1.msra.mxu0 0.0
    %4146 = vmatprep.mubr.f32.mxu0 0.0
    %4147 = vmatmul.mubr.f32.gmra.mrb[0].mxu0 %v4071
    %v4148 = vpop.f32.mrb[0].mxu0
    %v4149 = vadd.f32 0.0, %v4148
    %v4150 = vpop.f32.mrb[0].mxu0
    %4151 = vmatprep.mubr.f32.mxu0 0.0
    %4152 = vmatmul.mubr.f32.gmra.mrb[0].mxu0 %v4074
    %v4153 = vpop.f32.mrb[0].mxu0
    %v4154 = vadd.f32 0.0, %v4153
    %v4155 = vpop.f32.mrb[0].mxu0
    %4156 = vmatprep.mubr.f32.mxu0 0.0
    %4157 = vmatmul.mubr.f32.gmra.mrb[0].mxu0 %v4077
    %v4158 = vpop.f32.mrb[0].mxu0
    %v4159 = vadd.f32 0.0, %v4158
    %v4160 = vpop.f32.mrb[0].mxu0
    %4161 = vdwg.mxu0
    %v4163 = vsel %vm586, %v4149, 0
    %v4166 = vsel %vm586, %v4154, 0
    %v4169 = vsel %vm586, %v4159, 0
    %4171 = vmatprep.subr.mxu0 0.0
    %4172 = vmatpush1.msra.mxu0 %v3187
    %4173 = vmatprep.subr.mxu0 0.0
    %4174 = vmatpush1.msra.mxu0 %v3188
    %4175 = vmatprep.subr.mxu0 0.0
    %4176 = vmatpush1.msra.mxu0 0.0
    %4177 = vmatprep.subr.mxu0 0.0
    %4178 = vmatpush1.msra.mxu0 0.0
    %4179 = vmatprep.subr.mxu0 0.0
    %4180 = vmatpush1.msra.mxu0 0.0
    %4181 = vmatprep.subr.mxu0 0.0
    %4182 = vmatpush1.msra.mxu0 0.0
    %4183 = vmatprep.subr.mxu0 0.0
    %4184 = vmatpush1.msra.mxu0 0.0
    %4185 = vmatprep.subr.mxu0 0.0
    %4186 = vmatpush1.msra.mxu0 0.0
    %4187 = vmatprep.subr.mxu0 0.0
    %4188 = vmatpush1.msra.mxu0 0.0
    %4189 = vmatprep.subr.mxu0 0.0
    %4190 = vmatpush1.msra.mxu0 0.0
    %4191 = vmatprep.subr.mxu0 0.0
    %4192 = vmatpush1.msra.mxu0 0.0
    %4193 = vmatprep.subr.mxu0 0.0
    %4194 = vmatpush1.msra.mxu0 0.0
    %4195 = vmatprep.subr.mxu0 0.0
    %4196 = vmatpush1.msra.mxu0 0.0
    %4197 = vmatprep.subr.mxu0 0.0
    %4198 = vmatpush1.msra.mxu0 0.0
    %4199 = vmatprep.subr.mxu0 0.0
    %4200 = vmatpush1.msra.mxu0 0.0
    %4201 = vmatprep.subr.mxu0 0.0
    %4202 = vmatpush1.msra.mxu0 0.0
    %4203 = vmatprep.subr.mxu0 0.0
    %4204 = vmatpush1.msra.mxu0 0.0
    %4205 = vmatprep.subr.mxu0 0.0
    %4206 = vmatpush1.msra.mxu0 0.0
    %4207 = vmatprep.subr.mxu0 0.0
    %4208 = vmatpush1.msra.mxu0 0.0
    %4209 = vmatprep.subr.mxu0 0.0
    %4210 = vmatpush1.msra.mxu0 0.0
    %4211 = vmatprep.subr.mxu0 0.0
    %4212 = vmatpush1.msra.mxu0 0.0
    %4213 = vmatprep.subr.mxu0 0.0
    %4214 = vmatpush1.msra.mxu0 0.0
    %4215 = vmatprep.subr.mxu0 0.0
    %4216 = vmatpush1.msra.mxu0 0.0
    %4217 = vmatprep.subr.mxu0 0.0
    %4218 = vmatpush1.msra.mxu0 0.0
    %4219 = vmatprep.subr.mxu0 0.0
    %4220 = vmatpush1.msra.mxu0 0.0
    %4221 = vmatprep.subr.mxu0 0.0
    %4222 = vmatpush1.msra.mxu0 0.0
    %4223 = vmatprep.subr.mxu0 0.0
    %4224 = vmatpush1.msra.mxu0 0.0
    %4225 = vmatprep.subr.mxu0 0.0
    %4226 = vmatpush1.msra.mxu0 0.0
    %4227 = vmatprep.subr.mxu0 0.0
    %4228 = vmatpush1.msra.mxu0 0.0
    %4229 = vmatprep.subr.mxu0 0.0
    %4230 = vmatpush1.msra.mxu0 0.0
    %4231 = vmatprep.subr.mxu0 0.0
    %4232 = vmatpush1.msra.mxu0 0.0
    %4233 = vmatprep.subr.mxu0 0.0
    %4234 = vmatpush1.msra.mxu0 0.0
    %4235 = vmatprep.mubr.f32.mxu0 0.0
    %4236 = vmatmul.mubr.f32.gmra.mrb[0].mxu0 %v4163
    %v4237 = vpop.f32.mrb[0].mxu0
    %v4238 = vadd.f32 0.0, %v4237
    %v4239 = vpop.f32.mrb[0].mxu0
    %4240 = vmatprep.mubr.f32.mxu0 0.0
    %4241 = vmatmul.mubr.f32.gmra.mrb[0].mxu0 %v4166
    %v4242 = vpop.f32.mrb[0].mxu0
    %v4243 = vadd.f32 0.0, %v4242
    %v4244 = vpop.f32.mrb[0].mxu0
    %4245 = vmatprep.mubr.f32.mxu0 0.0
    %4246 = vmatmul.mubr.f32.gmra.mrb[0].mxu0 %v4169
    %v4247 = vpop.f32.mrb[0].mxu0
    %v4248 = vadd.f32 0.0, %v4247
    %v4249 = vpop.f32.mrb[0].mxu0
    %4250 = vdwg.mxu0
    %v4252 = vsel %vm586, %v3668, 0
    %v4255 = vsel %vm586, %v3673, 0
    %v4258 = vsel %vm586, %v3678, 0
    %4260 = vmatprep.subr.mxu0 0.0
    %4261 = vmatpush1.msra.mxu0 %v3185
    %4262 = vmatprep.subr.mxu0 0.0
    %4263 = vmatpush1.msra.mxu0 %v3186
    %4264 = vmatprep.subr.mxu0 0.0
    %4265 = vmatpush1.msra.mxu0 0.0
    %4266 = vmatprep.subr.mxu0 0.0
    %4267 = vmatpush1.msra.mxu0 0.0
    %4268 = vmatprep.subr.mxu0 0.0
    %4269 = vmatpush1.msra.mxu0 0.0
    %4270 = vmatprep.subr.mxu0 0.0
    %4271 = vmatpush1.msra.mxu0 0.0
    %4272 = vmatprep.subr.mxu0 0.0
    %4273 = vmatpush1.msra.mxu0 0.0
    %4274 = vmatprep.subr.mxu0 0.0
    %4275 = vmatpush1.msra.mxu0 0.0
    %4276 = vmatprep.subr.mxu0 0.0
    %4277 = vmatpush1.msra.mxu0 0.0
    %4278 = vmatprep.subr.mxu0 0.0
    %4279 = vmatpush1.msra.mxu0 0.0
    %4280 = vmatprep.subr.mxu0 0.0
    %4281 = vmatpush1.msra.mxu0 0.0
    %4282 = vmatprep.subr.mxu0 0.0
    %4283 = vmatpush1.msra.mxu0 0.0
    %4284 = vmatprep.subr.mxu0 0.0
    %4285 = vmatpush1.msra.mxu0 0.0
    %4286 = vmatprep.subr.mxu0 0.0
    %4287 = vmatpush1.msra.mxu0 0.0
    %4288 = vmatprep.subr.mxu0 0.0
    %4289 = vmatpush1.msra.mxu0 0.0
    %4290 = vmatprep.subr.mxu0 0.0
    %4291 = vmatpush1.msra.mxu0 0.0
    %4292 = vmatprep.subr.mxu0 0.0
    %4293 = vmatpush1.msra.mxu0 0.0
    %4294 = vmatprep.subr.mxu0 0.0
    %4295 = vmatpush1.msra.mxu0 0.0
    %4296 = vmatprep.subr.mxu0 0.0
    %4297 = vmatpush1.msra.mxu0 0.0
    %4298 = vmatprep.subr.mxu0 0.0
    %4299 = vmatpush1.msra.mxu0 0.0
    %4300 = vmatprep.subr.mxu0 0.0
    %4301 = vmatpush1.msra.mxu0 0.0
    %4302 = vmatprep.subr.mxu0 0.0
    %4303 = vmatpush1.msra.mxu0 0.0
    %4304 = vmatprep.subr.mxu0 0.0
    %4305 = vmatpush1.msra.mxu0 0.0
    %4306 = vmatprep.subr.mxu0 0.0
    %4307 = vmatpush1.msra.mxu0 0.0
    %4308 = vmatprep.subr.mxu0 0.0
    %4309 = vmatpush1.msra.mxu0 0.0
    %4310 = vmatprep.subr.mxu0 0.0
    %4311 = vmatpush1.msra.mxu0 0.0
    %4312 = vmatprep.subr.mxu0 0.0
    %4313 = vmatpush1.msra.mxu0 0.0
    %4314 = vmatprep.subr.mxu0 0.0
    %4315 = vmatpush1.msra.mxu0 0.0
    %4316 = vmatprep.subr.mxu0 0.0
    %4317 = vmatpush1.msra.mxu0 0.0
    %4318 = vmatprep.subr.mxu0 0.0
    %4319 = vmatpush1.msra.mxu0 0.0
    %4320 = vmatprep.subr.mxu0 0.0
    %4321 = vmatpush1.msra.mxu0 0.0
    %4322 = vmatprep.subr.mxu0 0.0
    %4323 = vmatpush1.msra.mxu0 0.0
    %4324 = vmatprep.mubr.f32.mxu0 0.0
    %4325 = vmatmul.mubr.f32.gmra.mrb[0].mxu0 %v4252
    %v4326 = vpop.f32.mrb[0].mxu0
    %v4327 = vadd.f32 %v4238, %v4326
    %v4328 = vpop.f32.mrb[0].mxu0
    %4329 = vmatprep.mubr.f32.mxu0 0.0
    %4330 = vmatmul.mubr.f32.gmra.mrb[0].mxu0 %v4255
    %v4331 = vpop.f32.mrb[0].mxu0
    %v4332 = vadd.f32 %v4243, %v4331
    %v4333 = vpop.f32.mrb[0].mxu0
    %4334 = vmatprep.mubr.f32.mxu0 0.0
    %4335 = vmatmul.mubr.f32.gmra.mrb[0].mxu0 %v4258
    %v4336 = vpop.f32.mrb[0].mxu0
    %v4337 = vadd.f32 %v4248, %v4336
    %v4338 = vpop.f32.mrb[0].mxu0
    %4339 = vdwg.mxu0
    %v4340 = vadd.f32 %v3072, %v4327
    %v4341 = vadd.f32 %v3073, %v4332
    %v4342 = vadd.f32 %v3074, %v4337
    %v4344 = vlaneseq
    %v4345 = vshrl.u32 %v4344, 7
    %v4346 = vsub.s32 0, %v4345
    %v4347 = vrot.slane %v3190, %v4346
    %v4349 = vadd.f32 %v4340, %v4347
    %v4350 = vadd.f32 %v4341, %v4347
    %v4351 = vadd.f32 %v4342, %v4347
    %4352 = vst.msk [vmem:[#allocation2] sm:$0xff] %vm190, %v4349
    %4353 = vst.msk [vmem:[#allocation2 + $0x8] sm:$0xff] %vm190, %v4350
    %4354 = vst.msk [vmem:[#allocation2 + $0x10] sm:$0x1] %vm1489, %v4351
    %v4355 = vld [vmem:[%s3191] sm:$0xff]
    %v4356 = vld [vmem:[%s3191 + $0x8] sm:$0xff]
    %v4357 = vld [vmem:[%s3191 + $0x10] sm:$0xff]
    %v4358 = vld [vmem:[%s3191 + $0x18] sm:$0xff]
    %v4360 = vsel %vm190, %v3181, 0
    %v4363 = vsel %vm190, %v3182, 0
    %v4366 = vsel %vm190, %v3183, 0
    %4368 = vmatprep.subr.mxu0 0.0
    %4369 = vmatpush1.msra.mxu0 %v4355
    %4370 = vmatprep.subr.mxu0 0.0
    %4371 = vmatpush1.msra.mxu0 %v4356
    %4372 = vmatprep.subr.mxu0 0.0
    %4373 = vmatpush1.msra.mxu0 %v4357
    %4374 = vmatprep.subr.mxu0 0.0
    %4375 = vmatpush1.msra.mxu0 %v4358
    %4376 = vmatprep.subr.mxu0 0.0
    %4377 = vmatpush1.msra.mxu0 0.0
    %4378 = vmatprep.subr.mxu0 0.0
    %4379 = vmatpush1.msra.mxu0 0.0
    %4380 = vmatprep.subr.mxu0 0.0
    %4381 = vmatpush1.msra.mxu0 0.0
    %4382 = vmatprep.subr.mxu0 0.0
    %4383 = vmatpush1.msra.mxu0 0.0
    %4384 = vmatprep.subr.mxu0 0.0
    %4385 = vmatpush1.msra.mxu0 0.0
    %4386 = vmatprep.subr.mxu0 0.0
    %4387 = vmatpush1.msra.mxu0 0.0
    %4388 = vmatprep.subr.mxu0 0.0
    %4389 = vmatpush1.msra.mxu0 0.0
    %4390 = vmatprep.subr.mxu0 0.0
    %4391 = vmatpush1.msra.mxu0 0.0
    %4392 = vmatprep.subr.mxu0 0.0
    %4393 = vmatpush1.msra.mxu0 0.0
    %4394 = vmatprep.subr.mxu0 0.0
    %4395 = vmatpush1.msra.mxu0 0.0
    %4396 = vmatprep.subr.mxu0 0.0
    %4397 = vmatpush1.msra.mxu0 0.0
    %4398 = vmatprep.subr.mxu0 0.0
    %4399 = vmatpush1.msra.mxu0 0.0
    %4400 = vmatprep.subr.mxu0 0.0
    %4401 = vmatpush1.msra.mxu0 0.0
    %4402 = vmatprep.subr.mxu0 0.0
    %4403 = vmatpush1.msra.mxu0 0.0
    %4404 = vmatprep.subr.mxu0 0.0
    %4405 = vmatpush1.msra.mxu0 0.0
    %4406 = vmatprep.subr.mxu0 0.0
    %4407 = vmatpush1.msra.mxu0 0.0
    %4408 = vmatprep.subr.mxu0 0.0
    %4409 = vmatpush1.msra.mxu0 0.0
    %4410 = vmatprep.subr.mxu0 0.0
    %4411 = vmatpush1.msra.mxu0 0.0
    %4412 = vmatprep.subr.mxu0 0.0
    %4413 = vmatpush1.msra.mxu0 0.0
    %4414 = vmatprep.subr.mxu0 0.0
    %4415 = vmatpush1.msra.mxu0 0.0
    %4416 = vmatprep.subr.mxu0 0.0
    %4417 = vmatpush1.msra.mxu0 0.0
    %4418 = vmatprep.subr.mxu0 0.0
    %4419 = vmatpush1.msra.mxu0 0.0
    %4420 = vmatprep.subr.mxu0 0.0
    %4421 = vmatpush1.msra.mxu0 0.0
    %4422 = vmatprep.subr.mxu0 0.0
    %4423 = vmatpush1.msra.mxu0 0.0
    %4424 = vmatprep.subr.mxu0 0.0
    %4425 = vmatpush1.msra.mxu0 0.0
    %4426 = vmatprep.subr.mxu0 0.0
    %4427 = vmatpush1.msra.mxu0 0.0
    %4428 = vmatprep.subr.mxu0 0.0
    %4429 = vmatpush1.msra.mxu0 0.0
    %4430 = vmatprep.subr.mxu0 0.0
    %4431 = vmatpush1.msra.mxu0 0.0
    %4432 = vmatprep.mubr.f32.mxu0 0.0
    %4433 = vmatmul.mubr.f32.gmra.mrb[0].mxu0 %v4360
    %v4434 = vpop.f32.mrb[0].mxu0
    %v4435 = vadd.f32 0.0, %v4434
    %v4436 = vpop.f32.mrb[0].mxu0
    %4437 = vmatprep.mubr.f32.mxu0 0.0
    %4438 = vmatmul.mubr.f32.gmra.mrb[0].mxu0 %v4363
    %v4439 = vpop.f32.mrb[0].mxu0
    %v4440 = vadd.f32 0.0, %v4439
    %v4441 = vpop.f32.mrb[0].mxu0
    %4442 = vmatprep.mubr.f32.mxu0 0.0
    %4443 = vmatmul.mubr.f32.gmra.mrb[0].mxu0 %v4366
    %v4444 = vpop.f32.mrb[0].mxu0
    %v4445 = vadd.f32 0.0, %v4444
    %v4446 = vpop.f32.mrb[0].mxu0
    %4447 = vdwg.mxu0
    %v4448 = vld [vmem:[%s3285] sm:$0xff]
    %v4449 = vld [vmem:[%s3285 + $0x8] sm:$0xff]
    %v4450 = vld [vmem:[%s3285 + $0x10] sm:$0xff]
    %v4451 = vld [vmem:[%s3285 + $0x18] sm:$0xff]
    %4452 = vmatprep.subr.mxu0 0.0
    %4453 = vmatpush1.msra.mxu0 %v4448
    %4454 = vmatprep.subr.mxu0 0.0
    %4455 = vmatpush1.msra.mxu0 %v4449
    %4456 = vmatprep.subr.mxu0 0.0
    %4457 = vmatpush1.msra.mxu0 %v4450
    %4458 = vmatprep.subr.mxu0 0.0
    %4459 = vmatpush1.msra.mxu0 %v4451
    %4460 = vmatprep.subr.mxu0 0.0
    %4461 = vmatpush1.msra.mxu0 0.0
    %4462 = vmatprep.subr.mxu0 0.0
    %4463 = vmatpush1.msra.mxu0 0.0
    %4464 = vmatprep.subr.mxu0 0.0
    %4465 = vmatpush1.msra.mxu0 0.0
    %4466 = vmatprep.subr.mxu0 0.0
    %4467 = vmatpush1.msra.mxu0 0.0
    %4468 = vmatprep.subr.mxu0 0.0
    %4469 = vmatpush1.msra.mxu0 0.0
    %4470 = vmatprep.subr.mxu0 0.0
    %4471 = vmatpush1.msra.mxu0 0.0
    %4472 = vmatprep.subr.mxu0 0.0
    %4473 = vmatpush1.msra.mxu0 0.0
    %4474 = vmatprep.subr.mxu0 0.0
    %4475 = vmatpush1.msra.mxu0 0.0
    %4476 = vmatprep.subr.mxu0 0.0
    %4477 = vmatpush1.msra.mxu0 0.0
    %4478 = vmatprep.subr.mxu0 0.0
    %4479 = vmatpush1.msra.mxu0 0.0
    %4480 = vmatprep.subr.mxu0 0.0
    %4481 = vmatpush1.msra.mxu0 0.0
    %4482 = vmatprep.subr.mxu0 0.0
    %4483 = vmatpush1.msra.mxu0 0.0
    %4484 = vmatprep.subr.mxu0 0.0
    %4485 = vmatpush1.msra.mxu0 0.0
    %4486 = vmatprep.subr.mxu0 0.0
    %4487 = vmatpush1.msra.mxu0 0.0
    %4488 = vmatprep.subr.mxu0 0.0
    %4489 = vmatpush1.msra.mxu0 0.0
    %4490 = vmatprep.subr.mxu0 0.0
    %4491 = vmatpush1.msra.mxu0 0.0
    %4492 = vmatprep.subr.mxu0 0.0
    %4493 = vmatpush1.msra.mxu0 0.0
    %4494 = vmatprep.subr.mxu0 0.0
    %4495 = vmatpush1.msra.mxu0 0.0
    %4496 = vmatprep.subr.mxu0 0.0
    %4497 = vmatpush1.msra.mxu0 0.0
    %4498 = vmatprep.subr.mxu0 0.0
    %4499 = vmatpush1.msra.mxu0 0.0
    %4500 = vmatprep.subr.mxu0 0.0
    %4501 = vmatpush1.msra.mxu0 0.0
    %4502 = vmatprep.subr.mxu0 0.0
    %4503 = vmatpush1.msra.mxu0 0.0
    %4504 = vmatprep.subr.mxu0 0.0
    %4505 = vmatpush1.msra.mxu0 0.0
    %4506 = vmatprep.subr.mxu0 0.0
    %4507 = vmatpush1.msra.mxu0 0.0
    %4508 = vmatprep.subr.mxu0 0.0
    %4509 = vmatpush1.msra.mxu0 0.0
    %4510 = vmatprep.subr.mxu0 0.0
    %4511 = vmatpush1.msra.mxu0 0.0
    %4512 = vmatprep.subr.mxu0 0.0
    %4513 = vmatpush1.msra.mxu0 0.0
    %4514 = vmatprep.subr.mxu0 0.0
    %4515 = vmatpush1.msra.mxu0 0.0
    %4516 = vmatprep.mubr.f32.mxu0 0.0
    %4517 = vmatmul.mubr.f32.gmra.mrb[0].mxu0 %v4360
    %v4518 = vpop.f32.mrb[0].mxu0
    %v4519 = vadd.f32 0.0, %v4518
    %v4520 = vpop.f32.mrb[0].mxu0
    %4521 = vmatprep.mubr.f32.mxu0 0.0
    %4522 = vmatmul.mubr.f32.gmra.mrb[0].mxu0 %v4363
    %v4523 = vpop.f32.mrb[0].mxu0
    %v4524 = vadd.f32 0.0, %v4523
    %v4525 = vpop.f32.mrb[0].mxu0
    %4526 = vmatprep.mubr.f32.mxu0 0.0
    %4527 = vmatmul.mubr.f32.gmra.mrb[0].mxu0 %v4366
    %v4528 = vpop.f32.mrb[0].mxu0
    %v4529 = vadd.f32 0.0, %v4528
    %v4530 = vpop.f32.mrb[0].mxu0
    %4531 = vdwg.mxu0
    %v4532 = vld [vmem:[%s3370] sm:$0xff]
    %v4533 = vld [vmem:[%s3370 + $0x8] sm:$0xff]
    %v4534 = vld [vmem:[%s3370 + $0x10] sm:$0xff]
    %v4535 = vld [vmem:[%s3370 + $0x18] sm:$0xff]
    %4536 = vmatprep.subr.mxu0 0.0
    %4537 = vmatpush1.msra.mxu0 %v4532
    %4538 = vmatprep.subr.mxu0 0.0
    %4539 = vmatpush1.msra.mxu0 %v4533
    %4540 = vmatprep.subr.mxu0 0.0
    %4541 = vmatpush1.msra.mxu0 %v4534
    %4542 = vmatprep.subr.mxu0 0.0
    %4543 = vmatpush1.msra.mxu0 %v4535
    %4544 = vmatprep.subr.mxu0 0.0
    %4545 = vmatpush1.msra.mxu0 0.0
    %4546 = vmatprep.subr.mxu0 0.0
    %4547 = vmatpush1.msra.mxu0 0.0
    %4548 = vmatprep.subr.mxu0 0.0
    %4549 = vmatpush1.msra.mxu0 0.0
    %4550 = vmatprep.subr.mxu0 0.0
    %4551 = vmatpush1.msra.mxu0 0.0
    %4552 = vmatprep.subr.mxu0 0.0
    %4553 = vmatpush1.msra.mxu0 0.0
    %4554 = vmatprep.subr.mxu0 0.0
    %4555 = vmatpush1.msra.mxu0 0.0
    %4556 = vmatprep.subr.mxu0 0.0
    %4557 = vmatpush1.msra.mxu0 0.0
    %4558 = vmatprep.subr.mxu0 0.0
    %4559 = vmatpush1.msra.mxu0 0.0
    %4560 = vmatprep.subr.mxu0 0.0
    %4561 = vmatpush1.msra.mxu0 0.0
    %4562 = vmatprep.subr.mxu0 0.0
    %4563 = vmatpush1.msra.mxu0 0.0
    %4564 = vmatprep.subr.mxu0 0.0
    %4565 = vmatpush1.msra.mxu0 0.0
    %4566 = vmatprep.subr.mxu0 0.0
    %4567 = vmatpush1.msra.mxu0 0.0
    %4568 = vmatprep.subr.mxu0 0.0
    %4569 = vmatpush1.msra.mxu0 0.0
    %4570 = vmatprep.subr.mxu0 0.0
    %4571 = vmatpush1.msra.mxu0 0.0
    %4572 = vmatprep.subr.mxu0 0.0
    %4573 = vmatpush1.msra.mxu0 0.0
    %4574 = vmatprep.subr.mxu0 0.0
    %4575 = vmatpush1.msra.mxu0 0.0
    %4576 = vmatprep.subr.mxu0 0.0
    %4577 = vmatpush1.msra.mxu0 0.0
    %4578 = vmatprep.subr.mxu0 0.0
    %4579 = vmatpush1.msra.mxu0 0.0
    %4580 = vmatprep.subr.mxu0 0.0
    %4581 = vmatpush1.msra.mxu0 0.0
    %4582 = vmatprep.subr.mxu0 0.0
    %4583 = vmatpush1.msra.mxu0 0.0
    %4584 = vmatprep.subr.mxu0 0.0
    %4585 = vmatpush1.msra.mxu0 0.0
    %4586 = vmatprep.subr.mxu0 0.0
    %4587 = vmatpush1.msra.mxu0 0.0
    %4588 = vmatprep.subr.mxu0 0.0
    %4589 = vmatpush1.msra.mxu0 0.0
    %4590 = vmatprep.subr.mxu0 0.0
    %4591 = vmatpush1.msra.mxu0 0.0
    %4592 = vmatprep.subr.mxu0 0.0
    %4593 = vmatpush1.msra.mxu0 0.0
    %4594 = vmatprep.subr.mxu0 0.0
    %4595 = vmatpush1.msra.mxu0 0.0
    %4596 = vmatprep.subr.mxu0 0.0
    %4597 = vmatpush1.msra.mxu0 0.0
    %4598 = vmatprep.subr.mxu0 0.0
    %4599 = vmatpush1.msra.mxu0 0.0
    %4600 = vmatprep.mubr.f32.mxu0 0.0
    %4601 = vmatmul.mubr.f32.gmra.mrb[0].mxu0 %v4360
    %v4602 = vpop.f32.mrb[0].mxu0
    %v4603 = vadd.f32 0.0, %v4602
    %v4604 = vpop.f32.mrb[0].mxu0
    %4605 = vmatprep.mubr.f32.mxu0 0.0
    %4606 = vmatmul.mubr.f32.gmra.mrb[0].mxu0 %v4363
    %v4607 = vpop.f32.mrb[0].mxu0
    %v4608 = vadd.f32 0.0, %v4607
    %v4609 = vpop.f32.mrb[0].mxu0
    %4610 = vmatprep.mubr.f32.mxu0 0.0
    %4611 = vmatmul.mubr.f32.gmra.mrb[0].mxu0 %v4366
    %v4612 = vpop.f32.mrb[0].mxu0
    %v4613 = vadd.f32 0.0, %v4612
    %v4614 = vpop.f32.mrb[0].mxu0
    %4615 = vdwg.mxu0
    %v4617 = vsel %vm586, %v4435, 0
    %v4620 = vsel %vm586, %v4440, 0
    %v4623 = vsel %vm586, %v4445, 0
    %v4626 = vsel %vm586, %v4519, 0
    %v4629 = vsel %vm586, %v4524, 0
    %v4632 = vsel %vm586, %v4529, 0
    %4634 = vmatprep.subr.mxu0 0.0
    %4635 = vmatpush1.xpose.msra.mxu0 %v4626
    %4636 = vmatprep.subr.mxu0 0.0
    %4637 = vmatpush1.xpose.msra.mxu0 %v4629
    %4638 = vmatprep.subr.mxu0 0.0
    %4639 = vmatpush1.xpose.msra.mxu0 %v4632
    %4640 = vmatprep.subr.mxu0 0.0
    %4641 = vmatpush1.xpose.msra.mxu0 0.0
    %4642 = vmatprep.subr.mxu0 0.0
    %4643 = vmatpush1.xpose.msra.mxu0 0.0
    %4644 = vmatprep.subr.mxu0 0.0
    %4645 = vmatpush1.xpose.msra.mxu0 0.0
    %4646 = vmatprep.subr.mxu0 0.0
    %4647 = vmatpush1.xpose.msra.mxu0 0.0
    %4648 = vmatprep.subr.mxu0 0.0
    %4649 = vmatpush1.xpose.msra.mxu0 0.0
    %4650 = vmatprep.subr.mxu0 0.0
    %4651 = vmatpush1.xpose.msra.mxu0 0.0
    %4652 = vmatprep.subr.mxu0 0.0
    %4653 = vmatpush1.xpose.msra.mxu0 0.0
    %4654 = vmatprep.subr.mxu0 0.0
    %4655 = vmatpush1.xpose.msra.mxu0 0.0
    %4656 = vmatprep.subr.mxu0 0.0
    %4657 = vmatpush1.xpose.msra.mxu0 0.0
    %4658 = vmatprep.subr.mxu0 0.0
    %4659 = vmatpush1.xpose.msra.mxu0 0.0
    %4660 = vmatprep.subr.mxu0 0.0
    %4661 = vmatpush1.xpose.msra.mxu0 0.0
    %4662 = vmatprep.subr.mxu0 0.0
    %4663 = vmatpush1.xpose.msra.mxu0 0.0
    %4664 = vmatprep.subr.mxu0 0.0
    %4665 = vmatpush1.xpose.msra.mxu0 0.0
    %4666 = vmatprep.subr.mxu0 0.0
    %4667 = vmatpush1.xpose.msra.mxu0 0.0
    %4668 = vmatprep.subr.mxu0 0.0
    %4669 = vmatpush1.xpose.msra.mxu0 0.0
    %4670 = vmatprep.subr.mxu0 0.0
    %4671 = vmatpush1.xpose.msra.mxu0 0.0
    %4672 = vmatprep.subr.mxu0 0.0
    %4673 = vmatpush1.xpose.msra.mxu0 0.0
    %4674 = vmatprep.subr.mxu0 0.0
    %4675 = vmatpush1.xpose.msra.mxu0 0.0
    %4676 = vmatprep.subr.mxu0 0.0
    %4677 = vmatpush1.xpose.msra.mxu0 0.0
    %4678 = vmatprep.subr.mxu0 0.0
    %4679 = vmatpush1.xpose.msra.mxu0 0.0
    %4680 = vmatprep.subr.mxu0 0.0
    %4681 = vmatpush1.xpose.msra.mxu0 0.0
    %4682 = vmatprep.subr.mxu0 0.0
    %4683 = vmatpush1.xpose.msra.mxu0 0.0
    %4684 = vmatprep.subr.mxu0 0.0
    %4685 = vmatpush1.xpose.msra.mxu0 0.0
    %4686 = vmatprep.subr.mxu0 0.0
    %4687 = vmatpush1.xpose.msra.mxu0 0.0
    %4688 = vmatprep.subr.mxu0 0.0
    %4689 = vmatpush1.xpose.msra.mxu0 0.0
    %4690 = vmatprep.subr.mxu0 0.0
    %4691 = vmatpush1.xpose.msra.mxu0 0.0
    %4692 = vmatprep.subr.mxu0 0.0
    %4693 = vmatpush1.xpose.msra.mxu0 0.0
    %4694 = vmatprep.subr.mxu0 0.0
    %4695 = vmatpush1.xpose.msra.mxu0 0.0
    %4696 = vmatprep.subr.mxu0 0.0
    %4697 = vmatpush1.xpose.msra.mxu0 0.0
    %4698 = vmatprep.mubr.f32.mxu0 0.0
    %4699 = vmatmul.mubr.f32.gmra.mrb[0].mxu0 %v4617
    %v4700 = vpop.f32.mrb[0].mxu0
    %v4701 = vadd.f32 0.0, %v4700
    %v4702 = vpop.f32.mrb[0].mxu0
    %4703 = vmatprep.mubr.f32.mxu0 0.0
    %4704 = vmatmul.mubr.f32.gmra.mrb[0].mxu0 %v4620
    %v4705 = vpop.f32.mrb[0].mxu0
    %v4706 = vadd.f32 0.0, %v4705
    %v4707 = vpop.f32.mrb[0].mxu0
    %4708 = vmatprep.mubr.f32.mxu0 0.0
    %4709 = vmatmul.mubr.f32.gmra.mrb[0].mxu0 %v4623
    %v4710 = vpop.f32.mrb[0].mxu0
    %v4711 = vadd.f32 0.0, %v4710
    %v4712 = vpop.f32.mrb[0].mxu0
    %4713 = vdwg.mxu0
    %v4714 = vmul.f32 %v4701, 0.25
    %v4715 = vmul.f32 %v4706, 0.25
    %v4716 = vmul.f32 %v4711, 0.25
    %v4717 = vsel %vm688, %v4714, -inf
    %4718 = vmax.xlane.f32.xlu0 %v4717
    %v4719 = vpop.xlane.xlu0 %4718
    %v4720 = vsel %vm688, %v4715, -inf
    %4721 = vmax.xlane.f32.xlu0 %v4720
    %v4722 = vpop.xlane.xlu0 %4721
    %v4723 = vsel %vm695, %v4716, -inf
    %4724 = vmax.xlane.f32.xlu0 %v4723
    %v4725 = vpop.xlane.xlu0 %4724
    %v4726 = vsub.f32 %v4714, %v4719
    %v4727 = vsub.f32 %v4715, %v4722
    %v4728 = vsub.f32 %v4716, %v4725
    %v4729 = vmul.f32 %v4726, 1.442695
    %v4730 = vpow.pop %v4729
    %v4731 = vmul.f32 %v4727, 1.442695
    %v4732 = vpow.pop %v4731
    %v4733 = vmul.f32 %v4728, 1.442695
    %v4734 = vpow.pop %v4733
    %v4735 = vsel %vm688, %v4730, 0.0
    %4736 = vadd.xlane.f32.xlu0 %v4735
    %v4737 = vpop.xlane.xlu0 %4736
    %v4738 = vsel %vm688, %v4732, 0.0
    %4739 = vadd.xlane.f32.xlu0 %v4738
    %v4740 = vpop.xlane.xlu0 %4739
    %v4741 = vsel %vm695, %v4734, 0.0
    %4742 = vadd.xlane.f32.xlu0 %v4741
    %v4743 = vpop.xlane.xlu0 %4742
    %v4744 = vrcp.pop %v4737
    %v4745 = vrcp.pop %v4740
    %v4746 = vrcp.pop %v4743
    %v4747 = vmul.f32 %v4730, %v4744
    %v4748 = vmul.f32 %v4732, %v4745
    %v4749 = vmul.f32 %v4734, %v4746
    %v4751 = vsel %vm688, %v4747, 0
    %v4754 = vsel %vm688, %v4748, 0
    %v4757 = vsel %vm688, %v4749, 0
    %v4760 = vsel %vm732, %v4613, 0
    %4762 = vmatprep.subr.mxu0 0.0
    %4763 = vmatpush1.msra.mxu0 %v4603
    %4764 = vmatprep.subr.mxu0 0.0
    %4765 = vmatpush1.msra.mxu0 %v4608
    %4766 = vmatprep.subr.mxu0 0.0
    %4767 = vmatpush1.msra.mxu0 %v4760
    %4768 = vmatprep.subr.mxu0 0.0
    %4769 = vmatpush1.msra.mxu0 0.0
    %4770 = vmatprep.subr.mxu0 0.0
    %4771 = vmatpush1.msra.mxu0 0.0
    %4772 = vmatprep.subr.mxu0 0.0
    %4773 = vmatpush1.msra.mxu0 0.0
    %4774 = vmatprep.subr.mxu0 0.0
    %4775 = vmatpush1.msra.mxu0 0.0
    %4776 = vmatprep.subr.mxu0 0.0
    %4777 = vmatpush1.msra.mxu0 0.0
    %4778 = vmatprep.subr.mxu0 0.0
    %4779 = vmatpush1.msra.mxu0 0.0
    %4780 = vmatprep.subr.mxu0 0.0
    %4781 = vmatpush1.msra.mxu0 0.0
    %4782 = vmatprep.subr.mxu0 0.0
    %4783 = vmatpush1.msra.mxu0 0.0
    %4784 = vmatprep.subr.mxu0 0.0
    %4785 = vmatpush1.msra.mxu0 0.0
    %4786 = vmatprep.subr.mxu0 0.0
    %4787 = vmatpush1.msra.mxu0 0.0
    %4788 = vmatprep.subr.mxu0 0.0
    %4789 = vmatpush1.msra.mxu0 0.0
    %4790 = vmatprep.subr.mxu0 0.0
    %4791 = vmatpush1.msra.mxu0 0.0
    %4792 = vmatprep.subr.mxu0 0.0
    %4793 = vmatpush1.msra.mxu0 0.0
    %4794 = vmatprep.subr.mxu0 0.0
    %4795 = vmatpush1.msra.mxu0 0.0
    %4796 = vmatprep.subr.mxu0 0.0
    %4797 = vmatpush1.msra.mxu0 0.0
    %4798 = vmatprep.subr.mxu0 0.0
    %4799 = vmatpush1.msra.mxu0 0.0
    %4800 = vmatprep.subr.mxu0 0.0
    %4801 = vmatpush1.msra.mxu0 0.0
    %4802 = vmatprep.subr.mxu0 0.0
    %4803 = vmatpush1.msra.mxu0 0.0
    %4804 = vmatprep.subr.mxu0 0.0
    %4805 = vmatpush1.msra.mxu0 0.0
    %4806 = vmatprep.subr.mxu0 0.0
    %4807 = vmatpush1.msra.mxu0 0.0
    %4808 = vmatprep.subr.mxu0 0.0
    %4809 = vmatpush1.msra.mxu0 0.0
    %4810 = vmatprep.subr.mxu0 0.0
    %4811 = vmatpush1.msra.mxu0 0.0
    %4812 = vmatprep.subr.mxu0 0.0
    %4813 = vmatpush1.msra.mxu0 0.0
    %4814 = vmatprep.subr.mxu0 0.0
    %4815 = vmatpush1.msra.mxu0 0.0
    %4816 = vmatprep.subr.mxu0 0.0
    %4817 = vmatpush1.msra.mxu0 0.0
    %4818 = vmatprep.subr.mxu0 0.0
    %4819 = vmatpush1.msra.mxu0 0.0
    %4820 = vmatprep.subr.mxu0 0.0
    %4821 = vmatpush1.msra.mxu0 0.0
    %4822 = vmatprep.subr.mxu0 0.0
    %4823 = vmatpush1.msra.mxu0 0.0
    %4824 = vmatprep.subr.mxu0 0.0
    %4825 = vmatpush1.msra.mxu0 0.0
    %4826 = vmatprep.mubr.f32.mxu0 0.0
    %4827 = vmatmul.mubr.f32.gmra.mrb[0].mxu0 %v4751
    %v4828 = vpop.f32.mrb[0].mxu0
    %v4829 = vadd.f32 0.0, %v4828
    %v4830 = vpop.f32.mrb[0].mxu0
    %4831 = vmatprep.mubr.f32.mxu0 0.0
    %4832 = vmatmul.mubr.f32.gmra.mrb[0].mxu0 %v4754
    %v4833 = vpop.f32.mrb[0].mxu0
    %v4834 = vadd.f32 0.0, %v4833
    %v4835 = vpop.f32.mrb[0].mxu0
    %4836 = vmatprep.mubr.f32.mxu0 0.0
    %4837 = vmatmul.mubr.f32.gmra.mrb[0].mxu0 %v4757
    %v4838 = vpop.f32.mrb[0].mxu0
    %v4839 = vadd.f32 0.0, %v4838
    %v4840 = vpop.f32.mrb[0].mxu0
    %4841 = vdwg.mxu0
    %v4842 = vld [vmem:[%s3681] sm:$0xff]
    %v4843 = vld [vmem:[%s3681 + $0x8] sm:$0xff]
    %v4844 = vld [vmem:[%s3681 + $0x10] sm:$0xff]
    %v4845 = vld [vmem:[%s3681 + $0x18] sm:$0xff]
    %4846 = vmatprep.subr.mxu0 0.0
    %4847 = vmatpush1.msra.mxu0 %v4842
    %4848 = vmatprep.subr.mxu0 0.0
    %4849 = vmatpush1.msra.mxu0 %v4843
    %4850 = vmatprep.subr.mxu0 0.0
    %4851 = vmatpush1.msra.mxu0 %v4844
    %4852 = vmatprep.subr.mxu0 0.0
    %4853 = vmatpush1.msra.mxu0 %v4845
    %4854 = vmatprep.subr.mxu0 0.0
    %4855 = vmatpush1.msra.mxu0 0.0
    %4856 = vmatprep.subr.mxu0 0.0
    %4857 = vmatpush1.msra.mxu0 0.0
    %4858 = vmatprep.subr.mxu0 0.0
    %4859 = vmatpush1.msra.mxu0 0.0
    %4860 = vmatprep.subr.mxu0 0.0
    %4861 = vmatpush1.msra.mxu0 0.0
    %4862 = vmatprep.subr.mxu0 0.0
    %4863 = vmatpush1.msra.mxu0 0.0
    %4864 = vmatprep.subr.mxu0 0.0
    %4865 = vmatpush1.msra.mxu0 0.0
    %4866 = vmatprep.subr.mxu0 0.0
    %4867 = vmatpush1.msra.mxu0 0.0
    %4868 = vmatprep.subr.mxu0 0.0
    %4869 = vmatpush1.msra.mxu0 0.0
    %4870 = vmatprep.subr.mxu0 0.0
    %4871 = vmatpush1.msra.mxu0 0.0
    %4872 = vmatprep.subr.mxu0 0.0
    %4873 = vmatpush1.msra.mxu0 0.0
    %4874 = vmatprep.subr.mxu0 0.0
    %4875 = vmatpush1.msra.mxu0 0.0
    %4876 = vmatprep.subr.mxu0 0.0
    %4877 = vmatpush1.msra.mxu0 0.0
    %4878 = vmatprep.subr.mxu0 0.0
    %4879 = vmatpush1.msra.mxu0 0.0
    %4880 = vmatprep.subr.mxu0 0.0
    %4881 = vmatpush1.msra.mxu0 0.0
    %4882 = vmatprep.subr.mxu0 0.0
    %4883 = vmatpush1.msra.mxu0 0.0
    %4884 = vmatprep.subr.mxu0 0.0
    %4885 = vmatpush1.msra.mxu0 0.0
    %4886 = vmatprep.subr.mxu0 0.0
    %4887 = vmatpush1.msra.mxu0 0.0
    %4888 = vmatprep.subr.mxu0 0.0
    %4889 = vmatpush1.msra.mxu0 0.0
    %4890 = vmatprep.subr.mxu0 0.0
    %4891 = vmatpush1.msra.mxu0 0.0
    %4892 = vmatprep.subr.mxu0 0.0
    %4893 = vmatpush1.msra.mxu0 0.0
    %4894 = vmatprep.subr.mxu0 0.0
    %4895 = vmatpush1.msra.mxu0 0.0
    %4896 = vmatprep.subr.mxu0 0.0
    %4897 = vmatpush1.msra.mxu0 0.0
    %4898 = vmatprep.subr.mxu0 0.0
    %4899 = vmatpush1.msra.mxu0 0.0
    %4900 = vmatprep.subr.mxu0 0.0
    %4901 = vmatpush1.msra.mxu0 0.0
    %4902 = vmatprep.subr.mxu0 0.0
    %4903 = vmatpush1.msra.mxu0 0.0
    %4904 = vmatprep.subr.mxu0 0.0
    %4905 = vmatpush1.msra.mxu0 0.0
    %4906 = vmatprep.subr.mxu0 0.0
    %4907 = vmatpush1.msra.mxu0 0.0
    %4908 = vmatprep.subr.mxu0 0.0
    %4909 = vmatpush1.msra.mxu0 0.0
    %4910 = vmatprep.mubr.f32.mxu0 0.0
    %4911 = vmatmul.mubr.f32.gmra.mrb[0].mxu0 %v4360
    %v4912 = vpop.f32.mrb[0].mxu0
    %v4913 = vadd.f32 0.0, %v4912
    %v4914 = vpop.f32.mrb[0].mxu0
    %4915 = vmatprep.mubr.f32.mxu0 0.0
    %4916 = vmatmul.mubr.f32.gmra.mrb[0].mxu0 %v4363
    %v4917 = vpop.f32.mrb[0].mxu0
    %v4918 = vadd.f32 0.0, %v4917
    %v4919 = vpop.f32.mrb[0].mxu0
    %4920 = vmatprep.mubr.f32.mxu0 0.0
    %4921 = vmatmul.mubr.f32.gmra.mrb[0].mxu0 %v4366
    %v4922 = vpop.f32.mrb[0].mxu0
    %v4923 = vadd.f32 0.0, %v4922
    %v4924 = vpop.f32.mrb[0].mxu0
    %4925 = vdwg.mxu0
    %v4926 = vld [vmem:[%s3766] sm:$0xff]
    %v4927 = vld [vmem:[%s3766 + $0x8] sm:$0xff]
    %v4928 = vld [vmem:[%s3766 + $0x10] sm:$0xff]
    %v4929 = vld [vmem:[%s3766 + $0x18] sm:$0xff]
    %4930 = vmatprep.subr.mxu0 0.0
    %4931 = vmatpush1.msra.mxu0 %v4926
    %4932 = vmatprep.subr.mxu0 0.0
    %4933 = vmatpush1.msra.mxu0 %v4927
    %4934 = vmatprep.subr.mxu0 0.0
    %4935 = vmatpush1.msra.mxu0 %v4928
    %4936 = vmatprep.subr.mxu0 0.0
    %4937 = vmatpush1.msra.mxu0 %v4929
    %4938 = vmatprep.subr.mxu0 0.0
    %4939 = vmatpush1.msra.mxu0 0.0
    %4940 = vmatprep.subr.mxu0 0.0
    %4941 = vmatpush1.msra.mxu0 0.0
    %4942 = vmatprep.subr.mxu0 0.0
    %4943 = vmatpush1.msra.mxu0 0.0
    %4944 = vmatprep.subr.mxu0 0.0
    %4945 = vmatpush1.msra.mxu0 0.0
    %4946 = vmatprep.subr.mxu0 0.0
    %4947 = vmatpush1.msra.mxu0 0.0
    %4948 = vmatprep.subr.mxu0 0.0
    %4949 = vmatpush1.msra.mxu0 0.0
    %4950 = vmatprep.subr.mxu0 0.0
    %4951 = vmatpush1.msra.mxu0 0.0
    %4952 = vmatprep.subr.mxu0 0.0
    %4953 = vmatpush1.msra.mxu0 0.0
    %4954 = vmatprep.subr.mxu0 0.0
    %4955 = vmatpush1.msra.mxu0 0.0
    %4956 = vmatprep.subr.mxu0 0.0
    %4957 = vmatpush1.msra.mxu0 0.0
    %4958 = vmatprep.subr.mxu0 0.0
    %4959 = vmatpush1.msra.mxu0 0.0
    %4960 = vmatprep.subr.mxu0 0.0
    %4961 = vmatpush1.msra.mxu0 0.0
    %4962 = vmatprep.subr.mxu0 0.0
    %4963 = vmatpush1.msra.mxu0 0.0
    %4964 = vmatprep.subr.mxu0 0.0
    %4965 = vmatpush1.msra.mxu0 0.0
    %4966 = vmatprep.subr.mxu0 0.0
    %4967 = vmatpush1.msra.mxu0 0.0
    %4968 = vmatprep.subr.mxu0 0.0
    %4969 = vmatpush1.msra.mxu0 0.0
    %4970 = vmatprep.subr.mxu0 0.0
    %4971 = vmatpush1.msra.mxu0 0.0
    %4972 = vmatprep.subr.mxu0 0.0
    %4973 = vmatpush1.msra.mxu0 0.0
    %4974 = vmatprep.subr.mxu0 0.0
    %4975 = vmatpush1.msra.mxu0 0.0
    %4976 = vmatprep.subr.mxu0 0.0
    %4977 = vmatpush1.msra.mxu0 0.0
    %4978 = vmatprep.subr.mxu0 0.0
    %4979 = vmatpush1.msra.mxu0 0.0
    %4980 = vmatprep.subr.mxu0 0.0
    %4981 = vmatpush1.msra.mxu0 0.0
    %4982 = vmatprep.subr.mxu0 0.0
    %4983 = vmatpush1.msra.mxu0 0.0
    %4984 = vmatprep.subr.mxu0 0.0
    %4985 = vmatpush1.msra.mxu0 0.0
    %4986 = vmatprep.subr.mxu0 0.0
    %4987 = vmatpush1.msra.mxu0 0.0
    %4988 = vmatprep.subr.mxu0 0.0
    %4989 = vmatpush1.msra.mxu0 0.0
    %4990 = vmatprep.subr.mxu0 0.0
    %4991 = vmatpush1.msra.mxu0 0.0
    %4992 = vmatprep.subr.mxu0 0.0
    %4993 = vmatpush1.msra.mxu0 0.0
    %4994 = vmatprep.mubr.f32.mxu0 0.0
    %4995 = vmatmul.mubr.f32.gmra.mrb[0].mxu0 %v4360
    %v4996 = vpop.f32.mrb[0].mxu0
    %v4997 = vadd.f32 0.0, %v4996
    %v4998 = vpop.f32.mrb[0].mxu0
    %4999 = vmatprep.mubr.f32.mxu0 0.0
    %5000 = vmatmul.mubr.f32.gmra.mrb[0].mxu0 %v4363
    %v5001 = vpop.f32.mrb[0].mxu0
    %v5002 = vadd.f32 0.0, %v5001
    %v5003 = vpop.f32.mrb[0].mxu0
    %5004 = vmatprep.mubr.f32.mxu0 0.0
    %5005 = vmatmul.mubr.f32.gmra.mrb[0].mxu0 %v4366
    %v5006 = vpop.f32.mrb[0].mxu0
    %v5007 = vadd.f32 0.0, %v5006
    %v5008 = vpop.f32.mrb[0].mxu0
    %5009 = vdwg.mxu0
    %v5010 = vld [vmem:[%s3851] sm:$0xff]
    %v5011 = vld [vmem:[%s3851 + $0x8] sm:$0xff]
    %v5012 = vld [vmem:[%s3851 + $0x10] sm:$0xff]
    %v5013 = vld [vmem:[%s3851 + $0x18] sm:$0xff]
    %5014 = vmatprep.subr.mxu0 0.0
    %5015 = vmatpush1.msra.mxu0 %v5010
    %5016 = vmatprep.subr.mxu0 0.0
    %5017 = vmatpush1.msra.mxu0 %v5011
    %5018 = vmatprep.subr.mxu0 0.0
    %5019 = vmatpush1.msra.mxu0 %v5012
    %5020 = vmatprep.subr.mxu0 0.0
    %5021 = vmatpush1.msra.mxu0 %v5013
    %5022 = vmatprep.subr.mxu0 0.0
    %5023 = vmatpush1.msra.mxu0 0.0
    %5024 = vmatprep.subr.mxu0 0.0
    %5025 = vmatpush1.msra.mxu0 0.0
    %5026 = vmatprep.subr.mxu0 0.0
    %5027 = vmatpush1.msra.mxu0 0.0
    %5028 = vmatprep.subr.mxu0 0.0
    %5029 = vmatpush1.msra.mxu0 0.0
    %5030 = vmatprep.subr.mxu0 0.0
    %5031 = vmatpush1.msra.mxu0 0.0
    %5032 = vmatprep.subr.mxu0 0.0
    %5033 = vmatpush1.msra.mxu0 0.0
    %5034 = vmatprep.subr.mxu0 0.0
    %5035 = vmatpush1.msra.mxu0 0.0
    %5036 = vmatprep.subr.mxu0 0.0
    %5037 = vmatpush1.msra.mxu0 0.0
    %5038 = vmatprep.subr.mxu0 0.0
    %5039 = vmatpush1.msra.mxu0 0.0
    %5040 = vmatprep.subr.mxu0 0.0
    %5041 = vmatpush1.msra.mxu0 0.0
    %5042 = vmatprep.subr.mxu0 0.0
    %5043 = vmatpush1.msra.mxu0 0.0
    %5044 = vmatprep.subr.mxu0 0.0
    %5045 = vmatpush1.msra.mxu0 0.0
    %5046 = vmatprep.subr.mxu0 0.0
    %5047 = vmatpush1.msra.mxu0 0.0
    %5048 = vmatprep.subr.mxu0 0.0
    %5049 = vmatpush1.msra.mxu0 0.0
    %5050 = vmatprep.subr.mxu0 0.0
    %5051 = vmatpush1.msra.mxu0 0.0
    %5052 = vmatprep.subr.mxu0 0.0
    %5053 = vmatpush1.msra.mxu0 0.0
    %5054 = vmatprep.subr.mxu0 0.0
    %5055 = vmatpush1.msra.mxu0 0.0
    %5056 = vmatprep.subr.mxu0 0.0
    %5057 = vmatpush1.msra.mxu0 0.0
    %5058 = vmatprep.subr.mxu0 0.0
    %5059 = vmatpush1.msra.mxu0 0.0
    %5060 = vmatprep.subr.mxu0 0.0
    %5061 = vmatpush1.msra.mxu0 0.0
    %5062 = vmatprep.subr.mxu0 0.0
    %5063 = vmatpush1.msra.mxu0 0.0
    %5064 = vmatprep.subr.mxu0 0.0
    %5065 = vmatpush1.msra.mxu0 0.0
    %5066 = vmatprep.subr.mxu0 0.0
    %5067 = vmatpush1.msra.mxu0 0.0
    %5068 = vmatprep.subr.mxu0 0.0
    %5069 = vmatpush1.msra.mxu0 0.0
    %5070 = vmatprep.subr.mxu0 0.0
    %5071 = vmatpush1.msra.mxu0 0.0
    %5072 = vmatprep.subr.mxu0 0.0
    %5073 = vmatpush1.msra.mxu0 0.0
    %5074 = vmatprep.subr.mxu0 0.0
    %5075 = vmatpush1.msra.mxu0 0.0
    %5076 = vmatprep.subr.mxu0 0.0
    %5077 = vmatpush1.msra.mxu0 0.0
    %5078 = vmatprep.mubr.f32.mxu0 0.0
    %5079 = vmatmul.mubr.f32.gmra.mrb[0].mxu0 %v4360
    %v5080 = vpop.f32.mrb[0].mxu0
    %v5081 = vadd.f32 0.0, %v5080
    %v5082 = vpop.f32.mrb[0].mxu0
    %5083 = vmatprep.mubr.f32.mxu0 0.0
    %5084 = vmatmul.mubr.f32.gmra.mrb[0].mxu0 %v4363
    %v5085 = vpop.f32.mrb[0].mxu0
    %v5086 = vadd.f32 0.0, %v5085
    %v5087 = vpop.f32.mrb[0].mxu0
    %5088 = vmatprep.mubr.f32.mxu0 0.0
    %5089 = vmatmul.mubr.f32.gmra.mrb[0].mxu0 %v4366
    %v5090 = vpop.f32.mrb[0].mxu0
    %v5091 = vadd.f32 0.0, %v5090
    %v5092 = vpop.f32.mrb[0].mxu0
    %5093 = vdwg.mxu0
    %v5095 = vsel %vm586, %v4913, 0
    %v5098 = vsel %vm586, %v4918, 0
    %v5101 = vsel %vm586, %v4923, 0
    %v5104 = vsel %vm586, %v4997, 0
    %v5107 = vsel %vm586, %v5002, 0
    %v5110 = vsel %vm586, %v5007, 0
    %5112 = vmatprep.subr.mxu0 0.0
    %5113 = vmatpush1.xpose.msra.mxu0 %v5104
    %5114 = vmatprep.subr.mxu0 0.0
    %5115 = vmatpush1.xpose.msra.mxu0 %v5107
    %5116 = vmatprep.subr.mxu0 0.0
    %5117 = vmatpush1.xpose.msra.mxu0 %v5110
    %5118 = vmatprep.subr.mxu0 0.0
    %5119 = vmatpush1.xpose.msra.mxu0 0.0
    %5120 = vmatprep.subr.mxu0 0.0
    %5121 = vmatpush1.xpose.msra.mxu0 0.0
    %5122 = vmatprep.subr.mxu0 0.0
    %5123 = vmatpush1.xpose.msra.mxu0 0.0
    %5124 = vmatprep.subr.mxu0 0.0
    %5125 = vmatpush1.xpose.msra.mxu0 0.0
    %5126 = vmatprep.subr.mxu0 0.0
    %5127 = vmatpush1.xpose.msra.mxu0 0.0
    %5128 = vmatprep.subr.mxu0 0.0
    %5129 = vmatpush1.xpose.msra.mxu0 0.0
    %5130 = vmatprep.subr.mxu0 0.0
    %5131 = vmatpush1.xpose.msra.mxu0 0.0
    %5132 = vmatprep.subr.mxu0 0.0
    %5133 = vmatpush1.xpose.msra.mxu0 0.0
    %5134 = vmatprep.subr.mxu0 0.0
    %5135 = vmatpush1.xpose.msra.mxu0 0.0
    %5136 = vmatprep.subr.mxu0 0.0
    %5137 = vmatpush1.xpose.msra.mxu0 0.0
    %5138 = vmatprep.subr.mxu0 0.0
    %5139 = vmatpush1.xpose.msra.mxu0 0.0
    %5140 = vmatprep.subr.mxu0 0.0
    %5141 = vmatpush1.xpose.msra.mxu0 0.0
    %5142 = vmatprep.subr.mxu0 0.0
    %5143 = vmatpush1.xpose.msra.mxu0 0.0
    %5144 = vmatprep.subr.mxu0 0.0
    %5145 = vmatpush1.xpose.msra.mxu0 0.0
    %5146 = vmatprep.subr.mxu0 0.0
    %5147 = vmatpush1.xpose.msra.mxu0 0.0
    %5148 = vmatprep.subr.mxu0 0.0
    %5149 = vmatpush1.xpose.msra.mxu0 0.0
    %5150 = vmatprep.subr.mxu0 0.0
    %5151 = vmatpush1.xpose.msra.mxu0 0.0
    %5152 = vmatprep.subr.mxu0 0.0
    %5153 = vmatpush1.xpose.msra.mxu0 0.0
    %5154 = vmatprep.subr.mxu0 0.0
    %5155 = vmatpush1.xpose.msra.mxu0 0.0
    %5156 = vmatprep.subr.mxu0 0.0
    %5157 = vmatpush1.xpose.msra.mxu0 0.0
    %5158 = vmatprep.subr.mxu0 0.0
    %5159 = vmatpush1.xpose.msra.mxu0 0.0
    %5160 = vmatprep.subr.mxu0 0.0
    %5161 = vmatpush1.xpose.msra.mxu0 0.0
    %5162 = vmatprep.subr.mxu0 0.0
    %5163 = vmatpush1.xpose.msra.mxu0 0.0
    %5164 = vmatprep.subr.mxu0 0.0
    %5165 = vmatpush1.xpose.msra.mxu0 0.0
    %5166 = vmatprep.subr.mxu0 0.0
    %5167 = vmatpush1.xpose.msra.mxu0 0.0
    %5168 = vmatprep.subr.mxu0 0.0
    %5169 = vmatpush1.xpose.msra.mxu0 0.0
    %5170 = vmatprep.subr.mxu0 0.0
    %5171 = vmatpush1.xpose.msra.mxu0 0.0
    %5172 = vmatprep.subr.mxu0 0.0
    %5173 = vmatpush1.xpose.msra.mxu0 0.0
    %5174 = vmatprep.subr.mxu0 0.0
    %5175 = vmatpush1.xpose.msra.mxu0 0.0
    %5176 = vmatprep.mubr.f32.mxu0 0.0
    %5177 = vmatmul.mubr.f32.gmra.mrb[0].mxu0 %v5095
    %v5178 = vpop.f32.mrb[0].mxu0
    %v5179 = vadd.f32 0.0, %v5178
    %v5180 = vpop.f32.mrb[0].mxu0
    %5181 = vmatprep.mubr.f32.mxu0 0.0
    %5182 = vmatmul.mubr.f32.gmra.mrb[0].mxu0 %v5098
    %v5183 = vpop.f32.mrb[0].mxu0
    %v5184 = vadd.f32 0.0, %v5183
    %v5185 = vpop.f32.mrb[0].mxu0
    %5186 = vmatprep.mubr.f32.mxu0 0.0
    %5187 = vmatmul.mubr.f32.gmra.mrb[0].mxu0 %v5101
    %v5188 = vpop.f32.mrb[0].mxu0
    %v5189 = vadd.f32 0.0, %v5188
    %v5190 = vpop.f32.mrb[0].mxu0
    %5191 = vdwg.mxu0
    %v5192 = vmul.f32 %v5179, 0.25
    %v5193 = vmul.f32 %v5184, 0.25
    %v5194 = vmul.f32 %v5189, 0.25
    %v5195 = vsel %vm688, %v5192, -inf
    %5196 = vmax.xlane.f32.xlu0 %v5195
    %v5197 = vpop.xlane.xlu0 %5196
    %v5198 = vsel %vm688, %v5193, -inf
    %5199 = vmax.xlane.f32.xlu0 %v5198
    %v5200 = vpop.xlane.xlu0 %5199
    %v5201 = vsel %vm695, %v5194, -inf
    %5202 = vmax.xlane.f32.xlu0 %v5201
    %v5203 = vpop.xlane.xlu0 %5202
    %v5204 = vsub.f32 %v5192, %v5197
    %v5205 = vsub.f32 %v5193, %v5200
    %v5206 = vsub.f32 %v5194, %v5203
    %v5207 = vmul.f32 %v5204, 1.442695
    %v5208 = vpow.pop %v5207
    %v5209 = vmul.f32 %v5205, 1.442695
    %v5210 = vpow.pop %v5209
    %v5211 = vmul.f32 %v5206, 1.442695
    %v5212 = vpow.pop %v5211
    %v5213 = vsel %vm688, %v5208, 0.0
    %5214 = vadd.xlane.f32.xlu0 %v5213
    %v5215 = vpop.xlane.xlu0 %5214
    %v5216 = vsel %vm688, %v5210, 0.0
    %5217 = vadd.xlane.f32.xlu0 %v5216
    %v5218 = vpop.xlane.xlu0 %5217
    %v5219 = vsel %vm695, %v5212, 0.0
    %5220 = vadd.xlane.f32.xlu0 %v5219
    %v5221 = vpop.xlane.xlu0 %5220
    %v5222 = vrcp.pop %v5215
    %v5223 = vrcp.pop %v5218
    %v5224 = vrcp.pop %v5221
    %v5225 = vmul.f32 %v5208, %v5222
    %v5226 = vmul.f32 %v5210, %v5223
    %v5227 = vmul.f32 %v5212, %v5224
    %v5229 = vsel %vm688, %v5225, 0
    %v5232 = vsel %vm688, %v5226, 0
    %v5235 = vsel %vm688, %v5227, 0
    %v5238 = vsel %vm732, %v5091, 0
    %5240 = vmatprep.subr.mxu0 0.0
    %5241 = vmatpush1.msra.mxu0 %v5081
    %5242 = vmatprep.subr.mxu0 0.0
    %5243 = vmatpush1.msra.mxu0 %v5086
    %5244 = vmatprep.subr.mxu0 0.0
    %5245 = vmatpush1.msra.mxu0 %v5238
    %5246 = vmatprep.subr.mxu0 0.0
    %5247 = vmatpush1.msra.mxu0 0.0
    %5248 = vmatprep.subr.mxu0 0.0
    %5249 = vmatpush1.msra.mxu0 0.0
    %5250 = vmatprep.subr.mxu0 0.0
    %5251 = vmatpush1.msra.mxu0 0.0
    %5252 = vmatprep.subr.mxu0 0.0
    %5253 = vmatpush1.msra.mxu0 0.0
    %5254 = vmatprep.subr.mxu0 0.0
    %5255 = vmatpush1.msra.mxu0 0.0
    %5256 = vmatprep.subr.mxu0 0.0
    %5257 = vmatpush1.msra.mxu0 0.0
    %5258 = vmatprep.subr.mxu0 0.0
    %5259 = vmatpush1.msra.mxu0 0.0
    %5260 = vmatprep.subr.mxu0 0.0
    %5261 = vmatpush1.msra.mxu0 0.0
    %5262 = vmatprep.subr.mxu0 0.0
    %5263 = vmatpush1.msra.mxu0 0.0
    %5264 = vmatprep.subr.mxu0 0.0
    %5265 = vmatpush1.msra.mxu0 0.0
    %5266 = vmatprep.subr.mxu0 0.0
    %5267 = vmatpush1.msra.mxu0 0.0
    %5268 = vmatprep.subr.mxu0 0.0
    %5269 = vmatpush1.msra.mxu0 0.0
    %5270 = vmatprep.subr.mxu0 0.0
    %5271 = vmatpush1.msra.mxu0 0.0
    %5272 = vmatprep.subr.mxu0 0.0
    %5273 = vmatpush1.msra.mxu0 0.0
    %5274 = vmatprep.subr.mxu0 0.0
    %5275 = vmatpush1.msra.mxu0 0.0
    %5276 = vmatprep.subr.mxu0 0.0
    %5277 = vmatpush1.msra.mxu0 0.0
    %5278 = vmatprep.subr.mxu0 0.0
    %5279 = vmatpush1.msra.mxu0 0.0
    %5280 = vmatprep.subr.mxu0 0.0
    %5281 = vmatpush1.msra.mxu0 0.0
    %5282 = vmatprep.subr.mxu0 0.0
    %5283 = vmatpush1.msra.mxu0 0.0
    %5284 = vmatprep.subr.mxu0 0.0
    %5285 = vmatpush1.msra.mxu0 0.0
    %5286 = vmatprep.subr.mxu0 0.0
    %5287 = vmatpush1.msra.mxu0 0.0
    %5288 = vmatprep.subr.mxu0 0.0
    %5289 = vmatpush1.msra.mxu0 0.0
    %5290 = vmatprep.subr.mxu0 0.0
    %5291 = vmatpush1.msra.mxu0 0.0
    %5292 = vmatprep.subr.mxu0 0.0
    %5293 = vmatpush1.msra.mxu0 0.0
    %5294 = vmatprep.subr.mxu0 0.0
    %5295 = vmatpush1.msra.mxu0 0.0
    %5296 = vmatprep.subr.mxu0 0.0
    %5297 = vmatpush1.msra.mxu0 0.0
    %5298 = vmatprep.subr.mxu0 0.0
    %5299 = vmatpush1.msra.mxu0 0.0
    %5300 = vmatprep.subr.mxu0 0.0
    %5301 = vmatpush1.msra.mxu0 0.0
    %5302 = vmatprep.subr.mxu0 0.0
    %5303 = vmatpush1.msra.mxu0 0.0
    %5304 = vmatprep.mubr.f32.mxu0 0.0
    %5305 = vmatmul.mubr.f32.gmra.mrb[0].mxu0 %v5229
    %v5306 = vpop.f32.mrb[0].mxu0
    %v5307 = vadd.f32 0.0, %v5306
    %v5308 = vpop.f32.mrb[0].mxu0
    %5309 = vmatprep.mubr.f32.mxu0 0.0
    %5310 = vmatmul.mubr.f32.gmra.mrb[0].mxu0 %v5232
    %v5311 = vpop.f32.mrb[0].mxu0
    %v5312 = vadd.f32 0.0, %v5311
    %v5313 = vpop.f32.mrb[0].mxu0
    %5314 = vmatprep.mubr.f32.mxu0 0.0
    %5315 = vmatmul.mubr.f32.gmra.mrb[0].mxu0 %v5235
    %v5316 = vpop.f32.mrb[0].mxu0
    %v5317 = vadd.f32 0.0, %v5316
    %v5318 = vpop.f32.mrb[0].mxu0
    %5319 = vdwg.mxu0
    %v5321 = vsel %vm586, %v5307, 0
    %v5324 = vsel %vm586, %v5312, 0
    %v5327 = vsel %vm586, %v5317, 0
    %5329 = vmatprep.subr.mxu0 0.0
    %5330 = vmatpush1.msra.mxu0 %v3187
    %5331 = vmatprep.subr.mxu0 0.0
    %5332 = vmatpush1.msra.mxu0 %v3188
    %5333 = vmatprep.subr.mxu0 0.0
    %5334 = vmatpush1.msra.mxu0 0.0
    %5335 = vmatprep.subr.mxu0 0.0
    %5336 = vmatpush1.msra.mxu0 0.0
    %5337 = vmatprep.subr.mxu0 0.0
    %5338 = vmatpush1.msra.mxu0 0.0
    %5339 = vmatprep.subr.mxu0 0.0
    %5340 = vmatpush1.msra.mxu0 0.0
    %5341 = vmatprep.subr.mxu0 0.0
    %5342 = vmatpush1.msra.mxu0 0.0
    %5343 = vmatprep.subr.mxu0 0.0
    %5344 = vmatpush1.msra.mxu0 0.0
    %5345 = vmatprep.subr.mxu0 0.0
    %5346 = vmatpush1.msra.mxu0 0.0
    %5347 = vmatprep.subr.mxu0 0.0
    %5348 = vmatpush1.msra.mxu0 0.0
    %5349 = vmatprep.subr.mxu0 0.0
    %5350 = vmatpush1.msra.mxu0 0.0
    %5351 = vmatprep.subr.mxu0 0.0
    %5352 = vmatpush1.msra.mxu0 0.0
    %5353 = vmatprep.subr.mxu0 0.0
    %5354 = vmatpush1.msra.mxu0 0.0
    %5355 = vmatprep.subr.mxu0 0.0
    %5356 = vmatpush1.msra.mxu0 0.0
    %5357 = vmatprep.subr.mxu0 0.0
    %5358 = vmatpush1.msra.mxu0 0.0
    %5359 = vmatprep.subr.mxu0 0.0
    %5360 = vmatpush1.msra.mxu0 0.0
    %5361 = vmatprep.subr.mxu0 0.0
    %5362 = vmatpush1.msra.mxu0 0.0
    %5363 = vmatprep.subr.mxu0 0.0
    %5364 = vmatpush1.msra.mxu0 0.0
    %5365 = vmatprep.subr.mxu0 0.0
    %5366 = vmatpush1.msra.mxu0 0.0
    %5367 = vmatprep.subr.mxu0 0.0
    %5368 = vmatpush1.msra.mxu0 0.0
    %5369 = vmatprep.subr.mxu0 0.0
    %5370 = vmatpush1.msra.mxu0 0.0
    %5371 = vmatprep.subr.mxu0 0.0
    %5372 = vmatpush1.msra.mxu0 0.0
    %5373 = vmatprep.subr.mxu0 0.0
    %5374 = vmatpush1.msra.mxu0 0.0
    %5375 = vmatprep.subr.mxu0 0.0
    %5376 = vmatpush1.msra.mxu0 0.0
    %5377 = vmatprep.subr.mxu0 0.0
    %5378 = vmatpush1.msra.mxu0 0.0
    %5379 = vmatprep.subr.mxu0 0.0
    %5380 = vmatpush1.msra.mxu0 0.0
    %5381 = vmatprep.subr.mxu0 0.0
    %5382 = vmatpush1.msra.mxu0 0.0
    %5383 = vmatprep.subr.mxu0 0.0
    %5384 = vmatpush1.msra.mxu0 0.0
    %5385 = vmatprep.subr.mxu0 0.0
    %5386 = vmatpush1.msra.mxu0 0.0
    %5387 = vmatprep.subr.mxu0 0.0
    %5388 = vmatpush1.msra.mxu0 0.0
    %5389 = vmatprep.subr.mxu0 0.0
    %5390 = vmatpush1.msra.mxu0 0.0
    %5391 = vmatprep.subr.mxu0 0.0
    %5392 = vmatpush1.msra.mxu0 0.0
    %5393 = vmatprep.mubr.f32.mxu0 0.0
    %5394 = vmatmul.mubr.f32.gmra.mrb[0].mxu0 %v5321
    %v5395 = vpop.f32.mrb[0].mxu0
    %v5396 = vadd.f32 0.0, %v5395
    %v5397 = vpop.f32.mrb[0].mxu0
    %5398 = vmatprep.mubr.f32.mxu0 0.0
    %5399 = vmatmul.mubr.f32.gmra.mrb[0].mxu0 %v5324
    %v5400 = vpop.f32.mrb[0].mxu0
    %v5401 = vadd.f32 0.0, %v5400
    %v5402 = vpop.f32.mrb[0].mxu0
    %5403 = vmatprep.mubr.f32.mxu0 0.0
    %5404 = vmatmul.mubr.f32.gmra.mrb[0].mxu0 %v5327
    %v5405 = vpop.f32.mrb[0].mxu0
    %v5406 = vadd.f32 0.0, %v5405
    %v5407 = vpop.f32.mrb[0].mxu0
    %5408 = vdwg.mxu0
    %v5410 = vsel %vm586, %v4829, 0
    %v5413 = vsel %vm586, %v4834, 0
    %v5416 = vsel %vm586, %v4839, 0
    %5418 = vmatprep.subr.mxu0 0.0
    %5419 = vmatpush1.msra.mxu0 %v3185
    %5420 = vmatprep.subr.mxu0 0.0
    %5421 = vmatpush1.msra.mxu0 %v3186
    %5422 = vmatprep.subr.mxu0 0.0
    %5423 = vmatpush1.msra.mxu0 0.0
    %5424 = vmatprep.subr.mxu0 0.0
    %5425 = vmatpush1.msra.mxu0 0.0
    %5426 = vmatprep.subr.mxu0 0.0
    %5427 = vmatpush1.msra.mxu0 0.0
    %5428 = vmatprep.subr.mxu0 0.0
    %5429 = vmatpush1.msra.mxu0 0.0
    %5430 = vmatprep.subr.mxu0 0.0
    %5431 = vmatpush1.msra.mxu0 0.0
    %5432 = vmatprep.subr.mxu0 0.0
    %5433 = vmatpush1.msra.mxu0 0.0
    %5434 = vmatprep.subr.mxu0 0.0
    %5435 = vmatpush1.msra.mxu0 0.0
    %5436 = vmatprep.subr.mxu0 0.0
    %5437 = vmatpush1.msra.mxu0 0.0
    %5438 = vmatprep.subr.mxu0 0.0
    %5439 = vmatpush1.msra.mxu0 0.0
    %5440 = vmatprep.subr.mxu0 0.0
    %5441 = vmatpush1.msra.mxu0 0.0
    %5442 = vmatprep.subr.mxu0 0.0
    %5443 = vmatpush1.msra.mxu0 0.0
    %5444 = vmatprep.subr.mxu0 0.0
    %5445 = vmatpush1.msra.mxu0 0.0
    %5446 = vmatprep.subr.mxu0 0.0
    %5447 = vmatpush1.msra.mxu0 0.0
    %5448 = vmatprep.subr.mxu0 0.0
    %5449 = vmatpush1.msra.mxu0 0.0
    %5450 = vmatprep.subr.mxu0 0.0
    %5451 = vmatpush1.msra.mxu0 0.0
    %5452 = vmatprep.subr.mxu0 0.0
    %5453 = vmatpush1.msra.mxu0 0.0
    %5454 = vmatprep.subr.mxu0 0.0
    %5455 = vmatpush1.msra.mxu0 0.0
    %5456 = vmatprep.subr.mxu0 0.0
    %5457 = vmatpush1.msra.mxu0 0.0
    %5458 = vmatprep.subr.mxu0 0.0
    %5459 = vmatpush1.msra.mxu0 0.0
    %5460 = vmatprep.subr.mxu0 0.0
    %5461 = vmatpush1.msra.mxu0 0.0
    %5462 = vmatprep.subr.mxu0 0.0
    %5463 = vmatpush1.msra.mxu0 0.0
    %5464 = vmatprep.subr.mxu0 0.0
    %5465 = vmatpush1.msra.mxu0 0.0
    %5466 = vmatprep.subr.mxu0 0.0
    %5467 = vmatpush1.msra.mxu0 0.0
    %5468 = vmatprep.subr.mxu0 0.0
    %5469 = vmatpush1.msra.mxu0 0.0
    %5470 = vmatprep.subr.mxu0 0.0
    %5471 = vmatpush1.msra.mxu0 0.0
    %5472 = vmatprep.subr.mxu0 0.0
    %5473 = vmatpush1.msra.mxu0 0.0
    %5474 = vmatprep.subr.mxu0 0.0
    %5475 = vmatpush1.msra.mxu0 0.0
    %5476 = vmatprep.subr.mxu0 0.0
    %5477 = vmatpush1.msra.mxu0 0.0
    %5478 = vmatprep.subr.mxu0 0.0
    %5479 = vmatpush1.msra.mxu0 0.0
    %5480 = vmatprep.subr.mxu0 0.0
    %5481 = vmatpush1.msra.mxu0 0.0
    %5482 = vmatprep.mubr.f32.mxu0 0.0
    %5483 = vmatmul.mubr.f32.gmra.mrb[0].mxu0 %v5410
    %v5484 = vpop.f32.mrb[0].mxu0
    %v5485 = vadd.f32 %v5396, %v5484
    %v5486 = vpop.f32.mrb[0].mxu0
    %5487 = vmatprep.mubr.f32.mxu0 0.0
    %5488 = vmatmul.mubr.f32.gmra.mrb[0].mxu0 %v5413
    %v5489 = vpop.f32.mrb[0].mxu0
    %v5490 = vadd.f32 %v5401, %v5489
    %v5491 = vpop.f32.mrb[0].mxu0
    %5492 = vmatprep.mubr.f32.mxu0 0.0
    %5493 = vmatmul.mubr.f32.gmra.mrb[0].mxu0 %v5416
    %v5494 = vpop.f32.mrb[0].mxu0
    %v5495 = vadd.f32 %v5406, %v5494
    %v5496 = vpop.f32.mrb[0].mxu0
    %5497 = vdwg.mxu0
    %v5498 = vadd.f32 %v3075, %v5485
    %v5499 = vadd.f32 %v3076, %v5490
    %v5500 = vadd.f32 %v3077, %v5495
    %v5501 = vadd.f32 %v5498, %v4347
    %v5502 = vadd.f32 %v5499, %v4347
    %v5503 = vadd.f32 %v5500, %v4347
    %5504 = vst.msk [vmem:[#allocation2 + $0x18] sm:$0xff] %vm190, %v5501
    %5505 = vst.msk [vmem:[#allocation2 + $0x20] sm:$0xff] %vm190, %v5502
    %5506 = vst.msk [vmem:[#allocation2 + $0x28] sm:$0x1] %vm1489, %v5503
    %v5507 = vld [vmem:[#allocation2] sm:$0xff]
    %v5508 = vld [vmem:[#allocation2 + $0x8] sm:$0xff]
    %v5509 = vld [vmem:[#allocation2 + $0x10] sm:$0xff]
    %v5510 = vld [vmem:[#allocation2 + $0x18] sm:$0xff]
    %v5511 = vld [vmem:[#allocation2 + $0x20] sm:$0xff]
    %v5512 = vld [vmem:[#allocation2 + $0x28] sm:$0xff]
    %s5513 = scalar_lea.vmem %s11, 1
    %v5514 = vld [vmem:[%s5513] sm:$0x1]
    %s5515 = scalar_lea.vmem %s12, 1
    %v5516 = vld [vmem:[%s5515] sm:$0x1]
    %v5517 = vsel %vm190, %v5507, 0.0
    %5518 = vadd.xlane.f32.xlu0 %v5517
    %v5519 = vpop.xlane.xlu0 %5518
    %v5520 = vsel %vm190, %v5508, 0.0
    %5521 = vadd.xlane.f32.xlu0 %v5520
    %v5522 = vpop.xlane.xlu0 %5521
    %v5523 = vsel %vm190, %v5509, 0.0
    %5524 = vadd.xlane.f32.xlu0 %v5523
    %v5525 = vpop.xlane.xlu0 %5524
    %v5526 = vsel %vm190, %v5510, 0.0
    %5527 = vadd.xlane.f32.xlu0 %v5526
    %v5528 = vpop.xlane.xlu0 %5527
    %v5529 = vsel %vm190, %v5511, 0.0
    %5530 = vadd.xlane.f32.xlu0 %v5529
    %v5531 = vpop.xlane.xlu0 %5530
    %v5532 = vsel %vm190, %v5512, 0.0
    %5533 = vadd.xlane.f32.xlu0 %v5532
    %v5534 = vpop.xlane.xlu0 %5533
    %v5535 = vmul.f32 %v5519, %v235
    %v5536 = vmul.f32 %v5522, %v235
    %v5537 = vmul.f32 %v5525, %v235
    %v5538 = vmul.f32 %v5528, %v235
    %v5539 = vmul.f32 %v5531, %v235
    %v5540 = vmul.f32 %v5534, %v235
    %v5541 = vsub.f32 %v5507, %v5535
    %v5542 = vsub.f32 %v5508, %v5536
    %v5543 = vsub.f32 %v5509, %v5537
    %v5544 = vsub.f32 %v5510, %v5538
    %v5545 = vsub.f32 %v5511, %v5539
    %v5546 = vsub.f32 %v5512, %v5540
    %v5547 = vmul.f32 %v5541, %v5541
    %v5548 = vmul.f32 %v5542, %v5542
    %v5549 = vmul.f32 %v5543, %v5543
    %v5550 = vmul.f32 %v5544, %v5544
    %v5551 = vmul.f32 %v5545, %v5545
    %v5552 = vmul.f32 %v5546, %v5546
    %v5553 = vsel %vm190, %v5547, 0.0
    %5554 = vadd.xlane.f32.xlu0 %v5553
    %v5555 = vpop.xlane.xlu0 %5554
    %v5556 = vsel %vm190, %v5548, 0.0
    %5557 = vadd.xlane.f32.xlu0 %v5556
    %v5558 = vpop.xlane.xlu0 %5557
    %v5559 = vsel %vm190, %v5549, 0.0
    %5560 = vadd.xlane.f32.xlu0 %v5559
    %v5561 = vpop.xlane.xlu0 %5560
    %v5562 = vsel %vm190, %v5550, 0.0
    %5563 = vadd.xlane.f32.xlu0 %v5562
    %v5564 = vpop.xlane.xlu0 %5563
    %v5565 = vsel %vm190, %v5551, 0.0
    %5566 = vadd.xlane.f32.xlu0 %v5565
    %v5567 = vpop.xlane.xlu0 %5566
    %v5568 = vsel %vm190, %v5552, 0.0
    %5569 = vadd.xlane.f32.xlu0 %v5568
    %v5570 = vpop.xlane.xlu0 %5569
    %v5571 = vmul.f32 %v5555, %v235
    %v5572 = vmul.f32 %v5558, %v235
    %v5573 = vmul.f32 %v5561, %v235
    %v5574 = vmul.f32 %v5564, %v235
    %v5575 = vmul.f32 %v5567, %v235
    %v5576 = vmul.f32 %v5570, %v235
    %v5577 = vadd.f32 %v5571, 1e-05
    %v5578 = vadd.f32 %v5572, 1e-05
    %v5579 = vadd.f32 %v5573, 1e-05
    %v5580 = vadd.f32 %v5574, 1e-05
    %v5581 = vadd.f32 %v5575, 1e-05
    %v5582 = vadd.f32 %v5576, 1e-05
    %v5583 = vrsqrt.pop %v5577
    %v5584 = vrsqrt.pop %v5578
    %v5585 = vrsqrt.pop %v5579
    %v5586 = vrsqrt.pop %v5580
    %v5587 = vrsqrt.pop %v5581
    %v5588 = vrsqrt.pop %v5582
    %v5589 = vmul.f32 %v5541, %v5583
    %v5590 = vmul.f32 %v5542, %v5584
    %v5591 = vmul.f32 %v5543, %v5585
    %v5592 = vmul.f32 %v5544, %v5586
    %v5593 = vmul.f32 %v5545, %v5587
    %v5594 = vmul.f32 %v5546, %v5588
    %v5596 = vlaneseq
    %v5597 = vshrl.u32 %v5596, 7
    %v5598 = vsub.s32 0, %v5597
    %v5599 = vrot.slane %v5514, %v5598
    %v5601 = vmul.f32 %v5589, %v5599
    %v5602 = vmul.f32 %v5590, %v5599
    %v5603 = vmul.f32 %v5591, %v5599
    %v5604 = vmul.f32 %v5592, %v5599
    %v5605 = vmul.f32 %v5593, %v5599
    %v5606 = vmul.f32 %v5594, %v5599
    %v5608 = vlaneseq
    %v5609 = vshrl.u32 %v5608, 7
    %v5610 = vsub.s32 0, %v5609
    %v5611 = vrot.slane %v5516, %v5610
    %v5613 = vadd.f32 %v5601, %v5611
    %v5614 = vadd.f32 %v5602, %v5611
    %v5615 = vadd.f32 %v5603, %v5611
    %v5616 = vadd.f32 %v5604, %v5611
    %v5617 = vadd.f32 %v5605, %v5611
    %v5618 = vadd.f32 %v5606, %v5611
    %s5619 = scalar_lea.vmem %s13, 32
    %v5620 = vld [vmem:[%s5619] sm:$0xff]
    %v5621 = vld [vmem:[%s5619 + $0x8] sm:$0xff]
    %v5622 = vld [vmem:[%s5619 + $0x10] sm:$0xff]
    %v5623 = vld [vmem:[%s5619 + $0x18] sm:$0xff]
    %s5624 = scalar_lea.vmem %s14, 1
    %v5625 = vld [vmem:[%s5624] sm:$0x1]
    %v5627 = vlaneseq
    %v5628 = vshrl.u32 %v5627, 7
    %v5629 = vsub.s32 0, %v5628
    %v5630 = vrot.slane %v5625, %v5629
    %v5633 = vsel %vm190, %v5613, 0
    %v5636 = vsel %vm190, %v5614, 0
    %v5639 = vsel %vm190, %v5615, 0
    %v5642 = vsel %vm190, %v5616, 0
    %v5645 = vsel %vm190, %v5617, 0
    %v5648 = vsel %vm190, %v5618, 0
    %5650 = vmatprep.subr.mxu0 0.0
    %5651 = vmatpush1.msra.mxu0 %v5620
    %5652 = vmatprep.subr.mxu0 0.0
    %5653 = vmatpush1.msra.mxu0 %v5621
    %5654 = vmatprep.subr.mxu0 0.0
    %5655 = vmatpush1.msra.mxu0 %v5622
    %5656 = vmatprep.subr.mxu0 0.0
    %5657 = vmatpush1.msra.mxu0 %v5623
    %5658 = vmatprep.subr.mxu0 0.0
    %5659 = vmatpush1.msra.mxu0 0.0
    %5660 = vmatprep.subr.mxu0 0.0
    %5661 = vmatpush1.msra.mxu0 0.0
    %5662 = vmatprep.subr.mxu0 0.0
    %5663 = vmatpush1.msra.mxu0 0.0
    %5664 = vmatprep.subr.mxu0 0.0
    %5665 = vmatpush1.msra.mxu0 0.0
    %5666 = vmatprep.subr.mxu0 0.0
    %5667 = vmatpush1.msra.mxu0 0.0
    %5668 = vmatprep.subr.mxu0 0.0
    %5669 = vmatpush1.msra.mxu0 0.0
    %5670 = vmatprep.subr.mxu0 0.0
    %5671 = vmatpush1.msra.mxu0 0.0
    %5672 = vmatprep.subr.mxu0 0.0
    %5673 = vmatpush1.msra.mxu0 0.0
    %5674 = vmatprep.subr.mxu0 0.0
    %5675 = vmatpush1.msra.mxu0 0.0
    %5676 = vmatprep.subr.mxu0 0.0
    %5677 = vmatpush1.msra.mxu0 0.0
    %5678 = vmatprep.subr.mxu0 0.0
    %5679 = vmatpush1.msra.mxu0 0.0
    %5680 = vmatprep.subr.mxu0 0.0
    %5681 = vmatpush1.msra.mxu0 0.0
    %5682 = vmatprep.subr.mxu0 0.0
    %5683 = vmatpush1.msra.mxu0 0.0
    %5684 = vmatprep.subr.mxu0 0.0
    %5685 = vmatpush1.msra.mxu0 0.0
    %5686 = vmatprep.subr.mxu0 0.0
    %5687 = vmatpush1.msra.mxu0 0.0
    %5688 = vmatprep.subr.mxu0 0.0
    %5689 = vmatpush1.msra.mxu0 0.0
    %5690 = vmatprep.subr.mxu0 0.0
    %5691 = vmatpush1.msra.mxu0 0.0
    %5692 = vmatprep.subr.mxu0 0.0
    %5693 = vmatpush1.msra.mxu0 0.0
    %5694 = vmatprep.subr.mxu0 0.0
    %5695 = vmatpush1.msra.mxu0 0.0
    %5696 = vmatprep.subr.mxu0 0.0
    %5697 = vmatpush1.msra.mxu0 0.0
    %5698 = vmatprep.subr.mxu0 0.0
    %5699 = vmatpush1.msra.mxu0 0.0
    %5700 = vmatprep.subr.mxu0 0.0
    %5701 = vmatpush1.msra.mxu0 0.0
    %5702 = vmatprep.subr.mxu0 0.0
    %5703 = vmatpush1.msra.mxu0 0.0
    %5704 = vmatprep.subr.mxu0 0.0
    %5705 = vmatpush1.msra.mxu0 0.0
    %5706 = vmatprep.subr.mxu0 0.0
    %5707 = vmatpush1.msra.mxu0 0.0
    %5708 = vmatprep.subr.mxu0 0.0
    %5709 = vmatpush1.msra.mxu0 0.0
    %5710 = vmatprep.subr.mxu0 0.0
    %5711 = vmatpush1.msra.mxu0 0.0
    %5712 = vmatprep.subr.mxu0 0.0
    %5713 = vmatpush1.msra.mxu0 0.0
    %5714 = vmatprep.mubr.f32.mxu0 0.0
    %5715 = vmatmul.mubr.f32.gmra.mrb[0].mxu0 %v5633
    %v5716 = vpop.f32.mrb[0].mxu0
    %v5717 = vadd.f32 %v5630, %v5716
    %v5718 = vpop.f32.mrb[0].mxu0
    %5719 = vmatprep.mubr.f32.mxu0 0.0
    %5720 = vmatmul.mubr.f32.gmra.mrb[0].mxu0 %v5636
    %v5721 = vpop.f32.mrb[0].mxu0
    %v5722 = vadd.f32 %v5630, %v5721
    %v5723 = vpop.f32.mrb[0].mxu0
    %5724 = vmatprep.mubr.f32.mxu0 0.0
    %5725 = vmatmul.mubr.f32.gmra.mrb[0].mxu0 %v5639
    %v5726 = vpop.f32.mrb[0].mxu0
    %v5727 = vadd.f32 %v5630, %v5726
    %v5728 = vpop.f32.mrb[0].mxu0
    %5729 = vmatprep.mubr.f32.mxu0 0.0
    %5730 = vmatmul.mubr.f32.gmra.mrb[0].mxu0 %v5642
    %v5731 = vpop.f32.mrb[0].mxu0
    %v5732 = vadd.f32 %v5630, %v5731
    %v5733 = vpop.f32.mrb[0].mxu0
    %5734 = vmatprep.mubr.f32.mxu0 0.0
    %5735 = vmatmul.mubr.f32.gmra.mrb[0].mxu0 %v5645
    %v5736 = vpop.f32.mrb[0].mxu0
    %v5737 = vadd.f32 %v5630, %v5736
    %v5738 = vpop.f32.mrb[0].mxu0
    %5739 = vmatprep.mubr.f32.mxu0 0.0
    %5740 = vmatmul.mubr.f32.gmra.mrb[0].mxu0 %v5648
    %v5741 = vpop.f32.mrb[0].mxu0
    %v5742 = vadd.f32 %v5630, %v5741
    %v5743 = vpop.f32.mrb[0].mxu0
    %5744 = vdwg.mxu0
    %v5745 = vmul.f32 %v5717, 0.5
    %v5746 = vmul.f32 %v5722, 0.5
    %v5747 = vmul.f32 %v5727, 0.5
    %v5748 = vmul.f32 %v5732, 0.5
    %v5749 = vmul.f32 %v5737, 0.5
    %v5750 = vmul.f32 %v5742, 0.5
    %v5751 = vmul.f32 %v5717, 0.044715
    %v5752 = vmul.f32 %v5722, 0.044715
    %v5753 = vmul.f32 %v5727, 0.044715
    %v5754 = vmul.f32 %v5732, 0.044715
    %v5755 = vmul.f32 %v5737, 0.044715
    %v5756 = vmul.f32 %v5742, 0.044715
    %v5757 = vmul.f32 %v5751, %v5717
    %v5758 = vmul.f32 %v5752, %v5722
    %v5759 = vmul.f32 %v5753, %v5727
    %v5760 = vmul.f32 %v5754, %v5732
    %v5761 = vmul.f32 %v5755, %v5737
    %v5762 = vmul.f32 %v5756, %v5742
    %v5763 = vmul.f32 %v5757, %v5717
    %v5764 = vmul.f32 %v5758, %v5722
    %v5765 = vmul.f32 %v5759, %v5727
    %v5766 = vmul.f32 %v5760, %v5732
    %v5767 = vmul.f32 %v5761, %v5737
    %v5768 = vmul.f32 %v5762, %v5742
    %v5769 = vadd.f32 %v5717, %v5763
    %v5770 = vadd.f32 %v5722, %v5764
    %v5771 = vadd.f32 %v5727, %v5765
    %v5772 = vadd.f32 %v5732, %v5766
    %v5773 = vadd.f32 %v5737, %v5767
    %v5774 = vadd.f32 %v5742, %v5768
    %v5775 = vmul.f32 %v5769, 0.7978846
    %v5776 = vmul.f32 %v5770, 0.7978846
    %v5777 = vmul.f32 %v5771, 0.7978846
    %v5778 = vmul.f32 %v5772, 0.7978846
    %v5779 = vmul.f32 %v5773, 0.7978846
    %v5780 = vmul.f32 %v5774, 0.7978846
    %v5781 = vtanh.pop %v5775
    %v5782 = vtanh.pop %v5776
    %v5783 = vtanh.pop %v5777
    %v5784 = vtanh.pop %v5778
    %v5785 = vtanh.pop %v5779
    %v5786 = vtanh.pop %v5780
    %v5787 = vadd.f32 %v5781, 1.0
    %v5788 = vadd.f32 %v5782, 1.0
    %v5789 = vadd.f32 %v5783, 1.0
    %v5790 = vadd.f32 %v5784, 1.0
    %v5791 = vadd.f32 %v5785, 1.0
    %v5792 = vadd.f32 %v5786, 1.0
    %v5793 = vmul.f32 %v5745, %v5787
    %v5794 = vmul.f32 %v5746, %v5788
    %v5795 = vmul.f32 %v5747, %v5789
    %v5796 = vmul.f32 %v5748, %v5790
    %v5797 = vmul.f32 %v5749, %v5791
    %v5798 = vmul.f32 %v5750, %v5792
    %s5799 = scalar_lea.vmem %s15, 64
    %v5800 = vld [vmem:[%s5799] sm:$0xff]
    %v5801 = vld [vmem:[%s5799 + $0x8] sm:$0xff]
    %v5802 = vld [vmem:[%s5799 + $0x10] sm:$0xff]
    %v5803 = vld [vmem:[%s5799 + $0x18] sm:$0xff]
    %v5804 = vld [vmem:[%s5799 + $0x20] sm:$0xff]
    %v5805 = vld [vmem:[%s5799 + $0x28] sm:$0xff]
    %v5806 = vld [vmem:[%s5799 + $0x30] sm:$0xff]
    %v5807 = vld [vmem:[%s5799 + $0x38] sm:$0xff]
    %s5808 = scalar_lea.vmem %s16, 1
    %v5809 = vld [vmem:[%s5808] sm:$0x1]
    %v5811 = vlaneseq
    %v5812 = vshrl.u32 %v5811, 7
    %v5813 = vsub.s32 0, %v5812
    %v5814 = vrot.slane %v5809, %v5813
    %v5817 = vsel %vm2946, %v5793, 0
    %v5820 = vsel %vm2946, %v5794, 0
    %v5823 = vsel %vm2946, %v5795, 0
    %v5826 = vsel %vm2946, %v5796, 0
    %v5829 = vsel %vm2946, %v5797, 0
    %v5832 = vsel %vm2946, %v5798, 0
    %5834 = vmatprep.subr.mxu0 0.0
    %5835 = vmatpush1.msra.mxu0 %v5800
    %5836 = vmatprep.subr.mxu0 0.0
    %5837 = vmatpush1.msra.mxu0 %v5801
    %5838 = vmatprep.subr.mxu0 0.0
    %5839 = vmatpush1.msra.mxu0 %v5802
    %5840 = vmatprep.subr.mxu0 0.0
    %5841 = vmatpush1.msra.mxu0 %v5803
    %5842 = vmatprep.subr.mxu0 0.0
    %5843 = vmatpush1.msra.mxu0 %v5804
    %5844 = vmatprep.subr.mxu0 0.0
    %5845 = vmatpush1.msra.mxu0 %v5805
    %5846 = vmatprep.subr.mxu0 0.0
    %5847 = vmatpush1.msra.mxu0 %v5806
    %5848 = vmatprep.subr.mxu0 0.0
    %5849 = vmatpush1.msra.mxu0 %v5807
    %5850 = vmatprep.subr.mxu0 0.0
    %5851 = vmatpush1.msra.mxu0 0.0
    %5852 = vmatprep.subr.mxu0 0.0
    %5853 = vmatpush1.msra.mxu0 0.0
    %5854 = vmatprep.subr.mxu0 0.0
    %5855 = vmatpush1.msra.mxu0 0.0
    %5856 = vmatprep.subr.mxu0 0.0
    %5857 = vmatpush1.msra.mxu0 0.0
    %5858 = vmatprep.subr.mxu0 0.0
    %5859 = vmatpush1.msra.mxu0 0.0
    %5860 = vmatprep.subr.mxu0 0.0
    %5861 = vmatpush1.msra.mxu0 0.0
    %5862 = vmatprep.subr.mxu0 0.0
    %5863 = vmatpush1.msra.mxu0 0.0
    %5864 = vmatprep.subr.mxu0 0.0
    %5865 = vmatpush1.msra.mxu0 0.0
    %5866 = vmatprep.subr.mxu0 0.0
    %5867 = vmatpush1.msra.mxu0 0.0
    %5868 = vmatprep.subr.mxu0 0.0
    %5869 = vmatpush1.msra.mxu0 0.0
    %5870 = vmatprep.subr.mxu0 0.0
    %5871 = vmatpush1.msra.mxu0 0.0
    %5872 = vmatprep.subr.mxu0 0.0
    %5873 = vmatpush1.msra.mxu0 0.0
    %5874 = vmatprep.subr.mxu0 0.0
    %5875 = vmatpush1.msra.mxu0 0.0
    %5876 = vmatprep.subr.mxu0 0.0
    %5877 = vmatpush1.msra.mxu0 0.0
    %5878 = vmatprep.subr.mxu0 0.0
    %5879 = vmatpush1.msra.mxu0 0.0
    %5880 = vmatprep.subr.mxu0 0.0
    %5881 = vmatpush1.msra.mxu0 0.0
    %5882 = vmatprep.subr.mxu0 0.0
    %5883 = vmatpush1.msra.mxu0 0.0
    %5884 = vmatprep.subr.mxu0 0.0
    %5885 = vmatpush1.msra.mxu0 0.0
    %5886 = vmatprep.subr.mxu0 0.0
    %5887 = vmatpush1.msra.mxu0 0.0
    %5888 = vmatprep.subr.mxu0 0.0
    %5889 = vmatpush1.msra.mxu0 0.0
    %5890 = vmatprep.subr.mxu0 0.0
    %5891 = vmatpush1.msra.mxu0 0.0
    %5892 = vmatprep.subr.mxu0 0.0
    %5893 = vmatpush1.msra.mxu0 0.0
    %5894 = vmatprep.subr.mxu0 0.0
    %5895 = vmatpush1.msra.mxu0 0.0
    %5896 = vmatprep.subr.mxu0 0.0
    %5897 = vmatpush1.msra.mxu0 0.0
    %5898 = vmatprep.mubr.f32.mxu0 0.0
    %5899 = vmatmul.mubr.f32.gmra.mrb[0].mxu0 %v5817
    %v5900 = vpop.f32.mrb[0].mxu0
    %v5901 = vadd.f32 %v5814, %v5900
    %v5902 = vpop.f32.mrb[0].mxu0
    %5903 = vmatprep.mubr.f32.mxu0 0.0
    %5904 = vmatmul.mubr.f32.gmra.mrb[0].mxu0 %v5820
    %v5905 = vpop.f32.mrb[0].mxu0
    %v5906 = vadd.f32 %v5814, %v5905
    %v5907 = vpop.f32.mrb[0].mxu0
    %5908 = vmatprep.mubr.f32.mxu0 0.0
    %5909 = vmatmul.mubr.f32.gmra.mrb[0].mxu0 %v5823
    %v5910 = vpop.f32.mrb[0].mxu0
    %v5911 = vadd.f32 %v5814, %v5910
    %v5912 = vpop.f32.mrb[0].mxu0
    %5913 = vmatprep.mubr.f32.mxu0 0.0
    %5914 = vmatmul.mubr.f32.gmra.mrb[0].mxu0 %v5826
    %v5915 = vpop.f32.mrb[0].mxu0
    %v5916 = vadd.f32 %v5814, %v5915
    %v5917 = vpop.f32.mrb[0].mxu0
    %5918 = vmatprep.mubr.f32.mxu0 0.0
    %5919 = vmatmul.mubr.f32.gmra.mrb[0].mxu0 %v5829
    %v5920 = vpop.f32.mrb[0].mxu0
    %v5921 = vadd.f32 %v5814, %v5920
    %v5922 = vpop.f32.mrb[0].mxu0
    %5923 = vmatprep.mubr.f32.mxu0 0.0
    %5924 = vmatmul.mubr.f32.gmra.mrb[0].mxu0 %v5832
    %v5925 = vpop.f32.mrb[0].mxu0
    %v5926 = vadd.f32 %v5814, %v5925
    %v5927 = vpop.f32.mrb[0].mxu0
    %5928 = vdwg.mxu0
    %v5929 = vadd.f32 %v5507, %v5901
    %v5930 = vadd.f32 %v5508, %v5906
    %v5931 = vadd.f32 %v5509, %v5911
    %v5932 = vadd.f32 %v5510, %v5916
    %v5933 = vadd.f32 %v5511, %v5921
    %v5934 = vadd.f32 %v5512, %v5926
    %5935 = vst.msk [vmem:[#allocation2] sm:$0xff] %vm190, %v5929
    %5936 = vst.msk [vmem:[#allocation2 + $0x8] sm:$0xff] %vm190, %v5930
    %5937 = vst.msk [vmem:[#allocation2 + $0x10] sm:$0xff] %vm190, %v5931
    %5938 = vst.msk [vmem:[#allocation2 + $0x18] sm:$0xff] %vm190, %v5932
    %5939 = vst.msk [vmem:[#allocation2 + $0x20] sm:$0xff] %vm190, %v5933
    %5940 = vst.msk [vmem:[#allocation2 + $0x28] sm:$0xff] %vm190, %v5934
    %v5941 = vld [vmem:[#allocation2 + $0x10] sm:$0xff]
    %v5942 = vld [vmem:[#allocation2 + $0x28] sm:$0xff]
    %v5944 = vrot.slane %v5942, 7
    %v5946 = vsel %vm732, %v5941, %v5944
    %v5947 = vld [vmem:[%s17] sm:$0x1]
    %v5948 = vld [vmem:[%s18] sm:$0x1]
    %vm5949 = vcmask 254976
    %v5950 = vsel %vm5949, %v5946, 0.0
    %5951 = vadd.xlane.f32.xlu0 %v5950
    %v5952 = vpop.xlane.xlu0 %5951
    %v5953 = vmul.f32 %v5952, %v235
    %v5954 = vsub.f32 %v5946, %v5953
    %v5955 = vmul.f32 %v5954, %v5954
    %v5956 = vsel %vm5949, %v5955, 0.0
    %5957 = vadd.xlane.f32.xlu0 %v5956
    %v5958 = vpop.xlane.xlu0 %5957
    %v5959 = vmul.f32 %v5958, %v235
    %v5960 = vadd.f32 %v5959, 1e-05
    %v5961 = vrsqrt.pop %v5960
    %v5962 = vmul.f32 %v5954, %v5961
    %v5964 = vlaneseq
    %v5965 = vshrl.u32 %v5964, 7
    %v5966 = vsub.s32 0, %v5965
    %v5967 = vrot.slane %v5947, %v5966
    %v5969 = vmul.f32 %v5962, %v5967
    %v5971 = vlaneseq
    %v5972 = vshrl.u32 %v5971, 7
    %v5973 = vsub.s32 0, %v5972
    %v5974 = vrot.slane %v5948, %v5973
    %v5976 = vadd.f32 %v5969, %v5974
    %v5977 = vld [vmem:[%s19] sm:$0xff]
    %v5978 = vld [vmem:[%s19 + $0x8] sm:$0xff]
    %v5979 = vld [vmem:[%s19 + $0x10] sm:$0xff]
    %v5980 = vld [vmem:[%s19 + $0x18] sm:$0xff]
    %v5981 = vld [vmem:[%s20] sm:$0x1]
    %v5983 = vlaneseq
    %v5984 = vshrl.u32 %v5983, 7
    %v5985 = vsub.s32 0, %v5984
    %v5986 = vrot.slane %v5981, %v5985
    %v5989 = vsel %vm190, %v5976, 0
    %5991 = vmatprep.subr.mxu0 0.0
    %5992 = vmatpush1.msra.mxu0 %v5977
    %5993 = vmatprep.subr.mxu0 0.0
    %5994 = vmatpush1.msra.mxu0 %v5978
    %5995 = vmatprep.subr.mxu0 0.0
    %5996 = vmatpush1.msra.mxu0 %v5979
    %5997 = vmatprep.subr.mxu0 0.0
    %5998 = vmatpush1.msra.mxu0 %v5980
    %5999 = vmatprep.subr.mxu0 0.0
    %6000 = vmatpush1.msra.mxu0 0.0
    %6001 = vmatprep.subr.mxu0 0.0
    %6002 = vmatpush1.msra.mxu0 0.0
    %6003 = vmatprep.subr.mxu0 0.0
    %6004 = vmatpush1.msra.mxu0 0.0
    %6005 = vmatprep.subr.mxu0 0.0
    %6006 = vmatpush1.msra.mxu0 0.0
    %6007 = vmatprep.subr.mxu0 0.0
    %6008 = vmatpush1.msra.mxu0 0.0
    %6009 = vmatprep.subr.mxu0 0.0
    %6010 = vmatpush1.msra.mxu0 0.0
    %6011 = vmatprep.subr.mxu0 0.0
    %6012 = vmatpush1.msra.mxu0 0.0
    %6013 = vmatprep.subr.mxu0 0.0
    %6014 = vmatpush1.msra.mxu0 0.0
    %6015 = vmatprep.subr.mxu0 0.0
    %6016 = vmatpush1.msra.mxu0 0.0
    %6017 = vmatprep.subr.mxu0 0.0
    %6018 = vmatpush1.msra.mxu0 0.0
    %6019 = vmatprep.subr.mxu0 0.0
    %6020 = vmatpush1.msra.mxu0 0.0
    %6021 = vmatprep.subr.mxu0 0.0
    %6022 = vmatpush1.msra.mxu0 0.0
    %6023 = vmatprep.subr.mxu0 0.0
    %6024 = vmatpush1.msra.mxu0 0.0
    %6025 = vmatprep.subr.mxu0 0.0
    %6026 = vmatpush1.msra.mxu0 0.0
    %6027 = vmatprep.subr.mxu0 0.0
    %6028 = vmatpush1.msra.mxu0 0.0
    %6029 = vmatprep.subr.mxu0 0.0
    %6030 = vmatpush1.msra.mxu0 0.0
    %6031 = vmatprep.subr.mxu0 0.0
    %6032 = vmatpush1.msra.mxu0 0.0
    %6033 = vmatprep.subr.mxu0 0.0
    %6034 = vmatpush1.msra.mxu0 0.0
    %6035 = vmatprep.subr.mxu0 0.0
    %6036 = vmatpush1.msra.mxu0 0.0
    %6037 = vmatprep.subr.mxu0 0.0
    %6038 = vmatpush1.msra.mxu0 0.0
    %6039 = vmatprep.subr.mxu0 0.0
    %6040 = vmatpush1.msra.mxu0 0.0
    %6041 = vmatprep.subr.mxu0 0.0
    %6042 = vmatpush1.msra.mxu0 0.0
    %6043 = vmatprep.subr.mxu0 0.0
    %6044 = vmatpush1.msra.mxu0 0.0
    %6045 = vmatprep.subr.mxu0 0.0
    %6046 = vmatpush1.msra.mxu0 0.0
    %6047 = vmatprep.subr.mxu0 0.0
    %6048 = vmatpush1.msra.mxu0 0.0
    %6049 = vmatprep.subr.mxu0 0.0
    %6050 = vmatpush1.msra.mxu0 0.0
    %6051 = vmatprep.subr.mxu0 0.0
    %6052 = vmatpush1.msra.mxu0 0.0
    %6053 = vmatprep.subr.mxu0 0.0
    %6054 = vmatpush1.msra.mxu0 0.0
    %6055 = vmatprep.mubr.f32.mxu0 0.0
    %6056 = vmatmul.mubr.f32.gmra.mrb[0].mxu0 %v5989
    %v6057 = vpop.f32.mrb[0].mxu0
    %v6058 = vadd.f32 %v5986, %v6057
    %v6059 = vpop.f32.mrb[0].mxu0
    %6060 = vdwg.mxu0
    %vm6061 = vcmask 74752
    %6062 = vst.msk [vmem:[#allocation3] sm:$0x3] %vm6061, %v6058
    // Predicated region
    $region86: #{vit_forward.1} parent=1 // pred_check
      _
    $region87: #{vit_forward.1} parent=1 // pred_check_branch
      %6064 = sbr.rel (0) target = $region89
    $region88: #{vit_forward.1} parent=1 // pred_region
      %s6066 = ssub.s32 32, 32
      %6067 = vsyncadd [#allocation4], %s6066
      %s6069 = sshll.u32 [#allocation3], 4
      %s6070 = int_to_ptr.vmem [resolvable:$true] %s6069
      %6072 = dma.vmem_to_hbm [thread:$0]  %s6070, 32, %s21, [#allocation4]
    $region89: #{vit_forward.1} parent=1 // pred_fallthru
      _
    // Predicated region
    $region90: #{vit_forward.1} parent=1 // pred_check
      _
    $region91: #{vit_forward.1} parent=1 // pred_check_branch
      %6074 = sbr.rel (0) target = $region93
    $region92: #{vit_forward.1} parent=1 // pred_region
      %6075 = dma.done [#allocation4], 32
    $region93: #{vit_forward.1} parent=1 // pred_fallthru
      _
    %6076 = vsyncpa [#allocation4], 1

</llo_original>
